<compile_context>
chip_gen: v6e
topology: v6e:2x2x1
jax: 0.10.0
libtpu: 0.0.40
codegen_flags: <defaults>
</compile_context>

<pallas_src>
import math

import jax
import jax.numpy as jnp
from jax import lax
from jax.experimental import pallas as pl
from jax.experimental.pallas import tpu as pltpu

_SQRT2 = math.sqrt(2.0)


def _gelu_exact(x):
    # Matches torch.nn.GELU() (approximate='none'): 0.5*x*(1+erf(x/sqrt(2)))
    return 0.5 * x * (1.0 + lax.erf(x / _SQRT2))


# ----------------------------- Pallas kernels -----------------------------

def input_projection(x, w, b):
    """1x1 conv: (B,H,W,cin) -> (B,H,W,d), NHWC.

    For this model cin == 1, so instead of feeding a K=1 contraction to the
    MXU (a wasted systolic pass) it is a VPU broadcast multiply-add.
    Grid over batch, marked parallel.
    """
    B, H, W, cin = x.shape
    d = w.shape[1]
    b2 = b.reshape(1, d)

    def kernel(x_ref, w_ref, b_ref, o_ref):
        xv = x_ref[0].astype(jnp.float32)              # (H, W, cin)
        wv = w_ref[...].astype(jnp.float32)            # (cin, d)
        if cin == 1:
            out = xv * wv[0]                           # (H,W,1)*(d,) -> (H,W,d)
        else:
            out = jnp.dot(xv.reshape(H * W, cin), wv,
                          preferred_element_type=jnp.float32).reshape(H, W, d)
        o_ref[0] = (out + b_ref[0]).astype(o_ref.dtype)

    return pl.pallas_call(
        kernel,
        out_shape=jax.ShapeDtypeStruct((B, H, W, d), x.dtype),
        grid=(B,),
        in_specs=[
            pl.BlockSpec((1, H, W, cin), lambda bi: (bi, 0, 0, 0)),
            pl.BlockSpec((cin, d), lambda bi: (0, 0)),
            pl.BlockSpec((1, d), lambda bi: (0, 0)),
        ],
        out_specs=pl.BlockSpec((1, H, W, d), lambda bi: (bi, 0, 0, 0)),
        compiler_params=pltpu.CompilerParams(dimension_semantics=("parallel",)),
    )(x, w, b2)


def convnext_block(x, dw_w, dw_b, gn_g, gn_b, pw1_w, pw1_b, pw2_w, pw2_b,
                   *, eps=1e-5):
    """One fully fused ConvNeXt block (NHWC), one batch sample per program.

    depthwise KxK conv ('same') -> GroupNorm(1 group) -> 1x1 conv -> GELU ->
    1x1 conv -> + residual, all while the (H, W, C) slab stays in VMEM.
    """
    B, H, W, C = x.shape
    K = dw_w.shape[0]
    p = K // 2
    # W-padding rounded up to the sublane size (8) so the interior write into
    # the padded scratch is aligned; tap reads use static (possibly unaligned)
    # offsets, which Mosaic handles.
    wpad = ((p + 7) // 8) * 8
    hid = pw1_w.shape[1]

    dw_w2 = dw_w.reshape(K * K, C)
    dw_b2 = dw_b.reshape(1, C)
    gn_g2 = gn_g.reshape(1, C)
    gn_b2 = gn_b.reshape(1, C)
    pw1_b2 = pw1_b.reshape(1, hid)
    pw2_b2 = pw2_b.reshape(1, C)

    def kernel(x_ref, dww_ref, dwb_ref, g_ref, gb_ref,
               w1_ref, b1_ref, w2_ref, b2_ref, o_ref, xp_ref):
        xv = x_ref[0].astype(jnp.float32)                          # (H, W, C)

        # ---- depthwise KxK conv, zero 'same' padding built in VMEM --------
        xp_ref[...] = jnp.zeros(xp_ref.shape, xp_ref.dtype)
        xp_ref[p:p + H, wpad:wpad + W, :] = xv
        acc = jnp.zeros((H, W, C), jnp.float32)
        for dy in range(K):
            for dx in range(K):
                c0 = wpad - p + dx
                tap = xp_ref[dy:dy + H, c0:c0 + W, :]
                acc = acc + tap * dww_ref[dy * K + dx].astype(jnp.float32)
        acc = acc + dwb_ref[0].astype(jnp.float32)

        # ---- GroupNorm(num_groups=1): single-pass sum / sum-of-squares ----
        n = float(H * W * C)
        s = jnp.sum(acc)
        ss = jnp.sum(acc * acc)
        mean = s / n
        var = ss / n - mean * mean                     # biased var, like GN
        y = (acc - mean) * lax.rsqrt(var + eps)
        y = y * g_ref[0].astype(jnp.float32) + gb_ref[0].astype(jnp.float32)

        # ---- inverted bottleneck: 1x1 -> GELU -> 1x1 (+ residual) ---------
        yf = y.reshape(H * W, C)
        h = jnp.dot(yf, w1_ref[...], preferred_element_type=jnp.float32)
        h = _gelu_exact(h + b1_ref[...])
        z = jnp.dot(h, w2_ref[...], preferred_element_type=jnp.float32)
        z = z + b2_ref[...] + xv.reshape(H * W, C)     # Identity shortcut
        o_ref[0] = z.reshape(H, W, C).astype(o_ref.dtype)

    return pl.pallas_call(
        kernel,
        out_shape=jax.ShapeDtypeStruct((B, H, W, C), x.dtype),
        grid=(B,),
        in_specs=[
            pl.BlockSpec((1, H, W, C), lambda bi: (bi, 0, 0, 0)),
            pl.BlockSpec((K * K, C), lambda bi: (0, 0)),
            pl.BlockSpec((1, C), lambda bi: (0, 0)),
            pl.BlockSpec((1, C), lambda bi: (0, 0)),
            pl.BlockSpec((1, C), lambda bi: (0, 0)),
            pl.BlockSpec((C, hid), lambda bi: (0, 0)),
            pl.BlockSpec((1, hid), lambda bi: (0, 0)),
            pl.BlockSpec((hid, C), lambda bi: (0, 0)),
            pl.BlockSpec((1, C), lambda bi: (0, 0)),
        ],
        out_specs=pl.BlockSpec((1, H, W, C), lambda bi: (bi, 0, 0, 0)),
        scratch_shapes=[pltpu.VMEM((H + 2 * p, W + 2 * wpad, C), jnp.float32)],
        compiler_params=pltpu.CompilerParams(
            dimension_semantics=("parallel",),
            vmem_limit_bytes=32 * 1024 * 1024,
        ),
    )(x, dw_w2, dw_b2, gn_g2, gn_b2, pw1_w, pw1_b2, pw2_w, pw2_b2)


def classifier_head(x, fc1_w, fc1_b, fc2_w, fc2_b):
    """Fused: mean-pool 'b h w c -> b c' -> Linear -> GELU -> Linear."""
    B, H, W, C = x.shape
    hid = fc1_w.shape[1]
    ncls = fc2_w.shape[1]
    b1 = fc1_b.reshape(1, hid)
    b2 = fc2_b.reshape(1, ncls)

    def kernel(x_ref, w1_ref, b1_ref, w2_ref, b2_ref, o_ref):
        xv = x_ref[...].astype(jnp.float32)            # (B, H, W, C)
        pooled = jnp.mean(xv, axis=(1, 2))             # (B, C)
        h = jnp.dot(pooled, w1_ref[...], preferred_element_type=jnp.float32)
        h = _gelu_exact(h + b1_ref[...])
        logits = jnp.dot(h, w2_ref[...], preferred_element_type=jnp.float32)
        o_ref[...] = (logits + b2_ref[...]).astype(o_ref.dtype)

    return pl.pallas_call(
        kernel,
        out_shape=jax.ShapeDtypeStruct((B, ncls), x.dtype),
        grid=(1,),
        in_specs=[
            pl.BlockSpec((B, H, W, C), lambda i: (0, 0, 0, 0)),
            pl.BlockSpec((C, hid), lambda i: (0, 0)),
            pl.BlockSpec((1, hid), lambda i: (0, 0)),
            pl.BlockSpec((hid, ncls), lambda i: (0, 0)),
            pl.BlockSpec((1, ncls), lambda i: (0, 0)),
        ],
        out_specs=pl.BlockSpec((B, ncls), lambda i: (0, 0)),
    )(x, fc1_w, b1, fc2_w, b2)


# ----------------------------- model wrapper ------------------------------

def init_params(key, *, input_dim, latent_dim, expansion_factor, kernel_size,
                num_layers, num_classes):
    d = latent_dim
    hid = d * expansion_factor
    keys = iter(jax.random.split(key, 8 + 8 * num_layers))

    def dense(k, fan_in, shape):
        return jax.random.normal(k, shape, jnp.float32) / math.sqrt(fan_in)

    params = {
        # input_projection: Conv2d(input_dim, d, 1) == per-pixel channel mix
        "inproj_w": dense(next(keys), input_dim, (input_dim, d)),
        "inproj_b": 0.01 * jax.random.normal(next(keys), (d,), jnp.float32),
        "blocks": [],
        # classifier Linear(d, hid) and Linear(hid, num_classes)
        "fc1_w": dense(next(keys), d, (d, hid)),
        "fc1_b": 0.01 * jax.random.normal(next(keys), (hid,), jnp.float32),
        "fc2_w": dense(next(keys), hid, (hid, num_classes)),
        "fc2_b": 0.01 * jax.random.normal(next(keys), (num_classes,), jnp.float32),
    }
    for _ in range(num_layers):
        params["blocks"].append({
            # depthwise Conv2d(d, d, k, groups=d), stored as (k, k, d)
            "dw_w": dense(next(keys), kernel_size * kernel_size,
                          (kernel_size, kernel_size, d)),
            "dw_b": 0.01 * jax.random.normal(next(keys), (d,), jnp.float32),
            # GroupNorm(1, d) affine params
            "gn_g": jnp.ones((d,), jnp.float32),
            "gn_b": jnp.zeros((d,), jnp.float32),
            # Conv2d(d, hid, 1) and Conv2d(hid, d, 1), stored as matmul weights
            "pw1_w": dense(next(keys), d, (d, hid)),
            "pw1_b": 0.01 * jax.random.normal(next(keys), (hid,), jnp.float32),
            "pw2_w": dense(next(keys), hid, (hid, d)),
            "pw2_b": 0.01 * jax.random.normal(next(keys), (d,), jnp.float32),
        })
    return params


def net_forward(params, x_nchw):
    """Pallas implementation of Net.forward.  Input is NCHW like PyTorch."""
    x = jnp.transpose(x_nchw, (0, 2, 3, 1)).astype(jnp.float32)  # NCHW -> NHWC
    x = input_projection(x, params["inproj_w"], params["inproj_b"])
    for blk in params["blocks"]:
        x = convnext_block(x, blk["dw_w"], blk["dw_b"], blk["gn_g"],
                           blk["gn_b"], blk["pw1_w"], blk["pw1_b"],
                           blk["pw2_w"], blk["pw2_b"])
    return classifier_head(x, params["fc1_w"], params["fc1_b"],
                           params["fc2_w"], params["fc2_b"])


def net_forward_ref(params, x_nchw):
    """Pure-jnp reference for correctness checking."""
    x = jnp.transpose(x_nchw, (0, 2, 3, 1)).astype(jnp.float32)
    B, H, W, cin = x.shape
    d = params["inproj_w"].shape[1]
    x = (x.reshape(B * H * W, cin) @ params["inproj_w"]
         + params["inproj_b"]).reshape(B, H, W, d)
    for blk in params["blocks"]:
        sc = x
        K = blk["dw_w"].shape[0]
        p = K // 2
        xp = jnp.pad(x, ((0, 0), (p, p), (p, p), (0, 0)))
        y = jnp.zeros_like(x)
        for dy in range(K):
            for dx in range(K):
                y = y + xp[:, dy:dy + H, dx:dx + W, :] * blk["dw_w"][dy, dx]
        y = y + blk["dw_b"]
        mean = jnp.mean(y, axis=(1, 2, 3), keepdims=True)
        var = jnp.mean((y - mean) ** 2, axis=(1, 2, 3), keepdims=True)
        y = (y - mean) * lax.rsqrt(var + 1e-5) * blk["gn_g"] + blk["gn_b"]
        h = _gelu_exact(y.reshape(B * H * W, d) @ blk["pw1_w"] + blk["pw1_b"])
        x = (h @ blk["pw2_w"] + blk["pw2_b"]
             + sc.reshape(B * H * W, d)).reshape(B, H, W, d)
    pooled = jnp.mean(x, axis=(1, 2))
    h = _gelu_exact(pooled @ params["fc1_w"] + params["fc1_b"])
    return h @ params["fc2_w"] + params["fc2_b"]


if __name__ == "__main__":
    key = jax.random.PRNGKey(0)
    pkey, xkey = jax.random.split(key)

    # Small shapes consistent with the module: input_dim=1, square images,
    # latent_dim=128 (module default) so the channel/lane axis is 128-dense.
    B, CIN, H, W = 2, 1, 16, 16
    LATENT, EXP, KSIZE, NLAYERS, NCLASSES = 128, 4, 7, 2, 10

    params = init_params(pkey, input_dim=CIN, latent_dim=LATENT,
                         expansion_factor=EXP, kernel_size=KSIZE,
                         num_layers=NLAYERS, num_classes=NCLASSES)
    x = jax.random.normal(xkey, (B, CIN, H, W), jnp.float32)

    fwd = jax.jit(net_forward)
    logits = jax.block_until_ready(fwd(params, x))
    assert logits.shape == (B, NCLASSES)

    ref = jax.block_until_ready(net_forward_ref(params, x))
    max_err = float(jnp.max(jnp.abs(logits - ref)))
    assert max_err < 1e-2, f"mismatch vs reference: {max_err}"

    print("KERNEL_OK")
</pallas_src>

<mosaic_0001>
module attributes {stable_mosaic.version = 11 : i64} {
  func.func @kernel(%arg0: i32, %arg1: memref<1x16x16x1xf32, #tpu.memory_space<vmem>>, %arg2: memref<1x128xf32, #tpu.memory_space<vmem>>, %arg3: memref<1x128xf32, #tpu.memory_space<vmem>>, %arg4: memref<1x16x16x128xf32, #tpu.memory_space<vmem>>) attributes {dimension_semantics = [#tpu.dimension_semantics<parallel>], iteration_bounds = array<i64: 2>, scalar_prefetch = 0 : i64, scratch_operands = 0 : i64, tpu.core_type = #tpu.core_type<tc>, window_params = [{transform_indices = @transform_0, window_bounds = array<i64: 1, 16, 16, 1>}, {pipeline_mode = #tpu.pipeline_mode<synchronous>, transform_indices = @transform_1, window_bounds = array<i64: 1, 128>}, {pipeline_mode = #tpu.pipeline_mode<synchronous>, transform_indices = @transform_2, window_bounds = array<i64: 1, 128>}, {transform_indices = @transform_3, window_bounds = array<i64: 1, 16, 16, 128>}]} {
    %c0 = arith.constant 0 : index
    %c0_0 = arith.constant 0 : index
    %c0_1 = arith.constant 0 : index
    %c0_2 = arith.constant 0 : index
    %0 = vector.load %arg1[%c0, %c0_0, %c0_1, %c0_2] : memref<1x16x16x1xf32, #tpu.memory_space<vmem>>, vector<1x16x16x1xf32>
    %1 = vector.shape_cast %0 : vector<1x16x16x1xf32> to vector<16x16x1xf32>
    %c0_3 = arith.constant 0 : index
    %c0_4 = arith.constant 0 : index
    %2 = vector.load %arg2[%c0_3, %c0_4] : memref<1x128xf32, #tpu.memory_space<vmem>>, vector<1x128xf32>
    %3 = vector.shape_cast %2 : vector<1x128xf32> to vector<128xf32>
    %4 = vector.shape_cast %3 : vector<128xf32> to vector<1x1x128xf32>
    %5 = vector.broadcast %1 : vector<16x16x1xf32> to vector<16x16x128xf32>
    %6 = vector.broadcast %4 : vector<1x1x128xf32> to vector<16x16x128xf32>
    %7 = arith.mulf %5, %6 : vector<16x16x128xf32>
    %c0_5 = arith.constant 0 : index
    %c0_6 = arith.constant 0 : index
    %8 = vector.load %arg3[%c0_5, %c0_6] : memref<1x128xf32, #tpu.memory_space<vmem>>, vector<1x128xf32>
    %9 = vector.shape_cast %8 : vector<1x128xf32> to vector<128xf32>
    %10 = vector.shape_cast %9 : vector<128xf32> to vector<1x1x128xf32>
    %11 = vector.broadcast %10 : vector<1x1x128xf32> to vector<16x16x128xf32>
    %12 = arith.addf %7, %11 : vector<16x16x128xf32>
    %c0_7 = arith.constant 0 : index
    %c0_8 = arith.constant 0 : index
    %c0_9 = arith.constant 0 : index
    %c0_10 = arith.constant 0 : index
    %13 = vector.load %arg4[%c0_7, %c0_8, %c0_9, %c0_10] : memref<1x16x16x128xf32, #tpu.memory_space<vmem>>, vector<1x16x16x128xf32>
    %14 = vector.shape_cast %13 : vector<1x16x16x128xf32> to vector<16x16x128xf32>
    %15 = vector.shape_cast %12 : vector<16x16x128xf32> to vector<1x16x16x128xf32>
    tpu.vector_store %arg4[%c0_7, %c0_8, %c0_9, %c0_10], %15 {strides = array<i32>} : memref<1x16x16x128xf32, #tpu.memory_space<vmem>>, vector<1x16x16x128xf32>,
    return
  }
  func.func @transform_0(%arg0: i32) -> (i32, i32, i32, i32) {
    %c0_i32 = arith.constant 0 : i32
    %c0_i32_0 = arith.constant 0 : i32
    %c0_i32_1 = arith.constant 0 : i32
    %c0_i32_2 = arith.constant 0 : i32
    return %arg0, %c0_i32, %c0_i32_0, %c0_i32_1 : i32, i32, i32, i32
  }
  func.func @transform_1(%arg0: i32) -> (i32, i32) {
    %c0_i32 = arith.constant 0 : i32
    %c0_i32_0 = arith.constant 0 : i32
    %c0_i32_1 = arith.constant 0 : i32
    return %c0_i32, %c0_i32_0 : i32, i32
  }
  func.func @transform_2(%arg0: i32) -> (i32, i32) {
    %c0_i32 = arith.constant 0 : i32
    %c0_i32_0 = arith.constant 0 : i32
    %c0_i32_1 = arith.constant 0 : i32
    return %c0_i32, %c0_i32_0 : i32, i32
  }
  func.func @transform_3(%arg0: i32) -> (i32, i32, i32, i32) {
    %c0_i32 = arith.constant 0 : i32
    %c0_i32_0 = arith.constant 0 : i32
    %c0_i32_1 = arith.constant 0 : i32
    %c0_i32_2 = arith.constant 0 : i32
    return %arg0, %c0_i32, %c0_i32_0, %c0_i32_1 : i32, i32, i32, i32
  }
}

module attributes {stable_mosaic.version = 11 : i64} {
  func.func @kernel(%arg0: i32, %arg1: memref<1x16x16x128xf32, #tpu.memory_space<vmem>>, %arg2: memref<49x128xf32, #tpu.memory_space<vmem>>, %arg3: memref<1x128xf32, #tpu.memory_space<vmem>>, %arg4: memref<1x128xf32, #tpu.memory_space<vmem>>, %arg5: memref<1x128xf32, #tpu.memory_space<vmem>>, %arg6: memref<128x512xf32, #tpu.memory_space<vmem>>, %arg7: memref<1x512xf32, #tpu.memory_space<vmem>>, %arg8: memref<512x128xf32, #tpu.memory_space<vmem>>, %arg9: memref<1x128xf32, #tpu.memory_space<vmem>>, %arg10: memref<1x16x16x128xf32, #tpu.memory_space<vmem>>, %arg11: memref<22x32x128xf32, #tpu.memory_space<vmem>>) attributes {dimension_semantics = [#tpu.dimension_semantics<parallel>], iteration_bounds = array<i64: 2>, scalar_prefetch = 0 : i64, scratch_operands = 1 : i64, tpu.core_type = #tpu.core_type<tc>, window_params = [{transform_indices = @transform_0, window_bounds = array<i64: 1, 16, 16, 128>}, {pipeline_mode = #tpu.pipeline_mode<synchronous>, transform_indices = @transform_1, window_bounds = array<i64: 49, 128>}, {pipeline_mode = #tpu.pipeline_mode<synchronous>, transform_indices = @transform_2, window_bounds = array<i64: 1, 128>}, {pipeline_mode = #tpu.pipeline_mode<synchronous>, transform_indices = @transform_3, window_bounds = array<i64: 1, 128>}, {pipeline_mode = #tpu.pipeline_mode<synchronous>, transform_indices = @transform_4, window_bounds = array<i64: 1, 128>}, {pipeline_mode = #tpu.pipeline_mode<synchronous>, transform_indices = @transform_5, window_bounds = array<i64: 128, 512>}, {pipeline_mode = #tpu.pipeline_mode<synchronous>, transform_indices = @transform_6, window_bounds = array<i64: 1, 512>}, {pipeline_mode = #tpu.pipeline_mode<synchronous>, transform_indices = @transform_7, window_bounds = array<i64: 512, 128>}, {pipeline_mode = #tpu.pipeline_mode<synchronous>, transform_indices = @transform_8, window_bounds = array<i64: 1, 128>}, {transform_indices = @transform_9, window_bounds = array<i64: 1, 16, 16, 128>}]} {
    %c0 = arith.constant 0 : index
    %c0_0 = arith.constant 0 : index
    %c0_1 = arith.constant 0 : index
    %c0_2 = arith.constant 0 : index
    %0 = vector.load %arg1[%c0, %c0_0, %c0_1, %c0_2] : memref<1x16x16x128xf32, #tpu.memory_space<vmem>>, vector<1x16x16x128xf32>
    %1 = vector.shape_cast %0 : vector<1x16x16x128xf32> to vector<16x16x128xf32>
    %cst = arith.constant 0.000000e+00 : f32
    %2 = vector.broadcast %cst : f32 to vector<22x32x128xf32>
    %c0_3 = arith.constant 0 : index
    %c0_4 = arith.constant 0 : index
    %c0_5 = arith.constant 0 : index
    %3 = vector.load %arg11[%c0_3, %c0_4, %c0_5] : memref<22x32x128xf32, #tpu.memory_space<vmem>>, vector<22x32x128xf32>
    tpu.vector_store %arg11[%c0_3, %c0_4, %c0_5], %2 {strides = array<i32>} : memref<22x32x128xf32, #tpu.memory_space<vmem>>, vector<22x32x128xf32>,
    %c3 = arith.constant 3 : index
    %c8 = arith.constant 8 : index
    %c0_6 = arith.constant 0 : index
    %4 = vector.load %arg11[%c3, %c8, %c0_6] : memref<22x32x128xf32, #tpu.memory_space<vmem>>, vector<16x16x128xf32>
    tpu.vector_store %arg11[%c3, %c8, %c0_6], %1 {strides = array<i32>} : memref<22x32x128xf32, #tpu.memory_space<vmem>>, vector<16x16x128xf32>,
    %cst_7 = arith.constant 0.000000e+00 : f32
    %5 = vector.broadcast %cst_7 : f32 to vector<16x16x128xf32>
    %c0_8 = arith.constant 0 : index
    %c5 = arith.constant 5 : index
    %c0_9 = arith.constant 0 : index
    %6 = vector.load %arg11[%c0_8, %c5, %c0_9] : memref<22x32x128xf32, #tpu.memory_space<vmem>>, vector<16x16x128xf32>
    %c0_10 = arith.constant 0 : index
    %c0_11 = arith.constant 0 : index
    %7 = vector.load %arg2[%c0_10, %c0_11] : memref<49x128xf32, #tpu.memory_space<vmem>>, vector<1x128xf32>
    %8 = vector.shape_cast %7 : vector<1x128xf32> to vector<128xf32>
    %9 = vector.shape_cast %8 : vector<128xf32> to vector<1x1x128xf32>
    %10 = vector.broadcast %9 : vector<1x1x128xf32> to vector<16x16x128xf32>
    %11 = arith.mulf %6, %10 : vector<16x16x128xf32>
    %12 = arith.addf %5, %11 : vector<16x16x128xf32>
    %c0_12 = arith.constant 0 : index
    %c6 = arith.constant 6 : index
    %c0_13 = arith.constant 0 : index
    %13 = vector.load %arg11[%c0_12, %c6, %c0_13] : memref<22x32x128xf32, #tpu.memory_space<vmem>>, vector<16x16x128xf32>
    %c1 = arith.constant 1 : index
    %c0_14 = arith.constant 0 : index
    %14 = vector.load %arg2[%c1, %c0_14] : memref<49x128xf32, #tpu.memory_space<vmem>>, vector<1x128xf32>
    %15 = vector.shape_cast %14 : vector<1x128xf32> to vector<128xf32>
    %16 = vector.shape_cast %15 : vector<128xf32> to vector<1x1x128xf32>
    %17 = vector.broadcast %16 : vector<1x1x128xf32> to vector<16x16x128xf32>
    %18 = arith.mulf %13, %17 : vector<16x16x128xf32>
    %19 = arith.addf %12, %18 : vector<16x16x128xf32>
    %c0_15 = arith.constant 0 : index
    %c7 = arith.constant 7 : index
    %c0_16 = arith.constant 0 : index
    %20 = vector.load %arg11[%c0_15, %c7, %c0_16] : memref<22x32x128xf32, #tpu.memory_space<vmem>>, vector<16x16x128xf32>
    %c2 = arith.constant 2 : index
    %c0_17 = arith.constant 0 : index
    %21 = vector.load %arg2[%c2, %c0_17] : memref<49x128xf32, #tpu.memory_space<vmem>>, vector<1x128xf32>
    %22 = vector.shape_cast %21 : vector<1x128xf32> to vector<128xf32>
    %23 = vector.shape_cast %22 : vector<128xf32> to vector<1x1x128xf32>
    %24 = vector.broadcast %23 : vector<1x1x128xf32> to vector<16x16x128xf32>
    %25 = arith.mulf %20, %24 : vector<16x16x128xf32>
    %26 = arith.addf %19, %25 : vector<16x16x128xf32>
    %c0_18 = arith.constant 0 : index
    %c8_19 = arith.constant 8 : index
    %c0_20 = arith.constant 0 : index
    %27 = vector.load %arg11[%c0_18, %c8_19, %c0_20] : memref<22x32x128xf32, #tpu.memory_space<vmem>>, vector<16x16x128xf32>
    %c3_21 = arith.constant 3 : index
    %c0_22 = arith.constant 0 : index
    %28 = vector.load %arg2[%c3_21, %c0_22] : memref<49x128xf32, #tpu.memory_space<vmem>>, vector<1x128xf32>
    %29 = vector.shape_cast %28 : vector<1x128xf32> to vector<128xf32>
    %30 = vector.shape_cast %29 : vector<128xf32> to vector<1x1x128xf32>
    %31 = vector.broadcast %30 : vector<1x1x128xf32> to vector<16x16x128xf32>
    %32 = arith.mulf %27, %31 : vector<16x16x128xf32>
    %33 = arith.addf %26, %32 : vector<16x16x128xf32>
    %c0_23 = arith.constant 0 : index
    %c9 = arith.constant 9 : index
    %c0_24 = arith.constant 0 : index
    %34 = vector.load %arg11[%c0_23, %c9, %c0_24] : memref<22x32x128xf32, #tpu.memory_space<vmem>>, vector<16x16x128xf32>
    %c4 = arith.constant 4 : index
    %c0_25 = arith.constant 0 : index
    %35 = vector.load %arg2[%c4, %c0_25] : memref<49x128xf32, #tpu.memory_space<vmem>>, vector<1x128xf32>
    %36 = vector.shape_cast %35 : vector<1x128xf32> to vector<128xf32>
    %37 = vector.shape_cast %36 : vector<128xf32> to vector<1x1x128xf32>
    %38 = vector.broadcast %37 : vector<1x1x128xf32> to vector<16x16x128xf32>
    %39 = arith.mulf %34, %38 : vector<16x16x128xf32>
    %40 = arith.addf %33, %39 : vector<16x16x128xf32>
    %c0_26 = arith.constant 0 : index
    %c10 = arith.constant 10 : index
    %c0_27 = arith.constant 0 : index
    %41 = vector.load %arg11[%c0_26, %c10, %c0_27] : memref<22x32x128xf32, #tpu.memory_space<vmem>>, vector<16x16x128xf32>
    %c5_28 = arith.constant 5 : index
    %c0_29 = arith.constant 0 : index
    %42 = vector.load %arg2[%c5_28, %c0_29] : memref<49x128xf32, #tpu.memory_space<vmem>>, vector<1x128xf32>
    %43 = vector.shape_cast %42 : vector<1x128xf32> to vector<128xf32>
    %44 = vector.shape_cast %43 : vector<128xf32> to vector<1x1x128xf32>
    %45 = vector.broadcast %44 : vector<1x1x128xf32> to vector<16x16x128xf32>
    %46 = arith.mulf %41, %45 : vector<16x16x128xf32>
    %47 = arith.addf %40, %46 : vector<16x16x128xf32>
    %c0_30 = arith.constant 0 : index
    %c11 = arith.constant 11 : index
    %c0_31 = arith.constant 0 : index
    %48 = vector.load %arg11[%c0_30, %c11, %c0_31] : memref<22x32x128xf32, #tpu.memory_space<vmem>>, vector<16x16x128xf32>
    %c6_32 = arith.constant 6 : index
    %c0_33 = arith.constant 0 : index
    %49 = vector.load %arg2[%c6_32, %c0_33] : memref<49x128xf32, #tpu.memory_space<vmem>>, vector<1x128xf32>
    %50 = vector.shape_cast %49 : vector<1x128xf32> to vector<128xf32>
    %51 = vector.shape_cast %50 : vector<128xf32> to vector<1x1x128xf32>
    %52 = vector.broadcast %51 : vector<1x1x128xf32> to vector<16x16x128xf32>
    %53 = arith.mulf %48, %52 : vector<16x16x128xf32>
    %54 = arith.addf %47, %53 : vector<16x16x128xf32>
    %c1_34 = arith.constant 1 : index
    %c5_35 = arith.constant 5 : index
    %c0_36 = arith.constant 0 : index
    %55 = vector.load %arg11[%c1_34, %c5_35, %c0_36] : memref<22x32x128xf32, #tpu.memory_space<vmem>>, vector<16x16x128xf32>
    %c7_37 = arith.constant 7 : index
    %c0_38 = arith.constant 0 : index
    %56 = vector.load %arg2[%c7_37, %c0_38] : memref<49x128xf32, #tpu.memory_space<vmem>>, vector<1x128xf32>
    %57 = vector.shape_cast %56 : vector<1x128xf32> to vector<128xf32>
    %58 = vector.shape_cast %57 : vector<128xf32> to vector<1x1x128xf32>
    %59 = vector.broadcast %58 : vector<1x1x128xf32> to vector<16x16x128xf32>
    %60 = arith.mulf %55, %59 : vector<16x16x128xf32>
    %61 = arith.addf %54, %60 : vector<16x16x128xf32>
    %c1_39 = arith.constant 1 : index
    %c6_40 = arith.constant 6 : index
    %c0_41 = arith.constant 0 : index
    %62 = vector.load %arg11[%c1_39, %c6_40, %c0_41] : memref<22x32x128xf32, #tpu.memory_space<vmem>>, vector<16x16x128xf32>
    %c8_42 = arith.constant 8 : index
    %c0_43 = arith.constant 0 : index
    %63 = vector.load %arg2[%c8_42, %c0_43] : memref<49x128xf32, #tpu.memory_space<vmem>>, vector<1x128xf32>
    %64 = vector.shape_cast %63 : vector<1x128xf32> to vector<128xf32>
    %65 = vector.shape_cast %64 : vector<128xf32> to vector<1x1x128xf32>
    %66 = vector.broadcast %65 : vector<1x1x128xf32> to vector<16x16x128xf32>
    %67 = arith.mulf %62, %66 : vector<16x16x128xf32>
    %68 = arith.addf %61, %67 : vector<16x16x128xf32>
    %c1_44 = arith.constant 1 : index
    %c7_45 = arith.constant 7 : index
    %c0_46 = arith.constant 0 : index
    %69 = vector.load %arg11[%c1_44, %c7_45, %c0_46] : memref<22x32x128xf32, #tpu.memory_space<vmem>>, vector<16x16x128xf32>
    %c9_47 = arith.constant 9 : index
    %c0_48 = arith.constant 0 : index
    %70 = vector.load %arg2[%c9_47, %c0_48] : memref<49x128xf32, #tpu.memory_space<vmem>>, vector<1x128xf32>
    %71 = vector.shape_cast %70 : vector<1x128xf32> to vector<128xf32>
    %72 = vector.shape_cast %71 : vector<128xf32> to vector<1x1x128xf32>
    %73 = vector.broadcast %72 : vector<1x1x128xf32> to vector<16x16x128xf32>
    %74 = arith.mulf %69, %73 : vector<16x16x128xf32>
    %75 = arith.addf %68, %74 : vector<16x16x128xf32>
    %c1_49 = arith.constant 1 : index
    %c8_50 = arith.constant 8 : index
    %c0_51 = arith.constant 0 : index
    %76 = vector.load %arg11[%c1_49, %c8_50, %c0_51] : memref<22x32x128xf32, #tpu.memory_space<vmem>>, vector<16x16x128xf32>
    %c10_52 = arith.constant 10 : index
    %c0_53 = arith.constant 0 : index
    %77 = vector.load %arg2[%c10_52, %c0_53] : memref<49x128xf32, #tpu.memory_space<vmem>>, vector<1x128xf32>
    %78 = vector.shape_cast %77 : vector<1x128xf32> to vector<128xf32>
    %79 = vector.shape_cast %78 : vector<128xf32> to vector<1x1x128xf32>
    %80 = vector.broadcast %79 : vector<1x1x128xf32> to vector<16x16x128xf32>
    %81 = arith.mulf %76, %80 : vector<16x16x128xf32>
    %82 = arith.addf %75, %81 : vector<16x16x128xf32>
    %c1_54 = arith.constant 1 : index
    %c9_55 = arith.constant 9 : index
    %c0_56 = arith.constant 0 : index
    %83 = vector.load %arg11[%c1_54, %c9_55, %c0_56] : memref<22x32x128xf32, #tpu.memory_space<vmem>>, vector<16x16x128xf32>
    %c11_57 = arith.constant 11 : index
    %c0_58 = arith.constant 0 : index
    %84 = vector.load %arg2[%c11_57, %c0_58] : memref<49x128xf32, #tpu.memory_space<vmem>>, vector<1x128xf32>
    %85 = vector.shape_cast %84 : vector<1x128xf32> to vector<128xf32>
    %86 = vector.shape_cast %85 : vector<128xf32> to vector<1x1x128xf32>
    %87 = vector.broadcast %86 : vector<1x1x128xf32> to vector<16x16x128xf32>
    %88 = arith.mulf %83, %87 : vector<16x16x128xf32>
    %89 = arith.addf %82, %88 : vector<16x16x128xf32>
    %c1_59 = arith.constant 1 : index
    %c10_60 = arith.constant 10 : index
    %c0_61 = arith.constant 0 : index
    %90 = vector.load %arg11[%c1_59, %c10_60, %c0_61] : memref<22x32x128xf32, #tpu.memory_space<vmem>>, vector<16x16x128xf32>
    %c12 = arith.constant 12 : index
    %c0_62 = arith.constant 0 : index
    %91 = vector.load %arg2[%c12, %c0_62] : memref<49x128xf32, #tpu.memory_space<vmem>>, vector<1x128xf32>
    %92 = vector.shape_cast %91 : vector<1x128xf32> to vector<128xf32>
    %93 = vector.shape_cast %92 : vector<128xf32> to vector<1x1x128xf32>
    %94 = vector.broadcast %93 : vector<1x1x128xf32> to vector<16x16x128xf32>
    %95 = arith.mulf %90, %94 : vector<16x16x128xf32>
    %96 = arith.addf %89, %95 : vector<16x16x128xf32>
    %c1_63 = arith.constant 1 : index
    %c11_64 = arith.constant 11 : index
    %c0_65 = arith.constant 0 : index
    %97 = vector.load %arg11[%c1_63, %c11_64, %c0_65] : memref<22x32x128xf32, #tpu.memory_space<vmem>>, vector<16x16x128xf32>
    %c13 = arith.constant 13 : index
    %c0_66 = arith.constant 0 : index
    %98 = vector.load %arg2[%c13, %c0_66] : memref<49x128xf32, #tpu.memory_space<vmem>>, vector<1x128xf32>
    %99 = vector.shape_cast %98 : vector<1x128xf32> to vector<128xf32>
    %100 = vector.shape_cast %99 : vector<128xf32> to vector<1x1x128xf32>
    %101 = vector.broadcast %100 : vector<1x1x128xf32> to vector<16x16x128xf32>
    %102 = arith.mulf %97, %101 : vector<16x16x128xf32>
    %103 = arith.addf %96, %102 : vector<16x16x128xf32>
    %c2_67 = arith.constant 2 : index
    %c5_68 = arith.constant 5 : index
    %c0_69 = arith.constant 0 : index
    %104 = vector.load %arg11[%c2_67, %c5_68, %c0_69] : memref<22x32x128xf32, #tpu.memory_space<vmem>>, vector<16x16x128xf32>
    %c14 = arith.constant 14 : index
    %c0_70 = arith.constant 0 : index
    %105 = vector.load %arg2[%c14, %c0_70] : memref<49x128xf32, #tpu.memory_space<vmem>>, vector<1x128xf32>
    %106 = vector.shape_cast %105 : vector<1x128xf32> to vector<128xf32>
    %107 = vector.shape_cast %106 : vector<128xf32> to vector<1x1x128xf32>
    %108 = vector.broadcast %107 : vector<1x1x128xf32> to vector<16x16x128xf32>
    %109 = arith.mulf %104, %108 : vector<16x16x128xf32>
    %110 = arith.addf %103, %109 : vector<16x16x128xf32>
    %c2_71 = arith.constant 2 : index
    %c6_72 = arith.constant 6 : index
    %c0_73 = arith.constant 0 : index
    %111 = vector.load %arg11[%c2_71, %c6_72, %c0_73] : memref<22x32x128xf32, #tpu.memory_space<vmem>>, vector<16x16x128xf32>
    %c15 = arith.constant 15 : index
    %c0_74 = arith.constant 0 : index
    %112 = vector.load %arg2[%c15, %c0_74] : memref<49x128xf32, #tpu.memory_space<vmem>>, vector<1x128xf32>
    %113 = vector.shape_cast %112 : vector<1x128xf32> to vector<128xf32>
    %114 = vector.shape_cast %113 : vector<128xf32> to vector<1x1x128xf32>
    %115 = vector.broadcast %114 : vector<1x1x128xf32> to vector<16x16x128xf32>
    %116 = arith.mulf %111, %115 : vector<16x16x128xf32>
    %117 = arith.addf %110, %116 : vector<16x16x128xf32>
    %c2_75 = arith.constant 2 : index
    %c7_76 = arith.constant 7 : index
    %c0_77 = arith.constant 0 : index
    %118 = vector.load %arg11[%c2_75, %c7_76, %c0_77] : memref<22x32x128xf32, #tpu.memory_space<vmem>>, vector<16x16x128xf32>
    %c16 = arith.constant 16 : index
    %c0_78 = arith.constant 0 : index
    %119 = vector.load %arg2[%c16, %c0_78] : memref<49x128xf32, #tpu.memory_space<vmem>>, vector<1x128xf32>
    %120 = vector.shape_cast %119 : vector<1x128xf32> to vector<128xf32>
    %121 = vector.shape_cast %120 : vector<128xf32> to vector<1x1x128xf32>
    %122 = vector.broadcast %121 : vector<1x1x128xf32> to vector<16x16x128xf32>
    %123 = arith.mulf %118, %122 : vector<16x16x128xf32>
    %124 = arith.addf %117, %123 : vector<16x16x128xf32>
    %c2_79 = arith.constant 2 : index
    %c8_80 = arith.constant 8 : index
    %c0_81 = arith.constant 0 : index
    %125 = vector.load %arg11[%c2_79, %c8_80, %c0_81] : memref<22x32x128xf32, #tpu.memory_space<vmem>>, vector<16x16x128xf32>
    %c17 = arith.constant 17 : index
    %c0_82 = arith.constant 0 : index
    %126 = vector.load %arg2[%c17, %c0_82] : memref<49x128xf32, #tpu.memory_space<vmem>>, vector<1x128xf32>
    %127 = vector.shape_cast %126 : vector<1x128xf32> to vector<128xf32>
    %128 = vector.shape_cast %127 : vector<128xf32> to vector<1x1x128xf32>
    %129 = vector.broadcast %128 : vector<1x1x128xf32> to vector<16x16x128xf32>
    %130 = arith.mulf %125, %129 : vector<16x16x128xf32>
    %131 = arith.addf %124, %130 : vector<16x16x128xf32>
    %c2_83 = arith.constant 2 : index
    %c9_84 = arith.constant 9 : index
    %c0_85 = arith.constant 0 : index
    %132 = vector.load %arg11[%c2_83, %c9_84, %c0_85] : memref<22x32x128xf32, #tpu.memory_space<vmem>>, vector<16x16x128xf32>
    %c18 = arith.constant 18 : index
    %c0_86 = arith.constant 0 : index
    %133 = vector.load %arg2[%c18, %c0_86] : memref<49x128xf32, #tpu.memory_space<vmem>>, vector<1x128xf32>
    %134 = vector.shape_cast %133 : vector<1x128xf32> to vector<128xf32>
    %135 = vector.shape_cast %134 : vector<128xf32> to vector<1x1x128xf32>
    %136 = vector.broadcast %135 : vector<1x1x128xf32> to vector<16x16x128xf32>
    %137 = arith.mulf %132, %136 : vector<16x16x128xf32>
    %138 = arith.addf %131, %137 : vector<16x16x128xf32>
    %c2_87 = arith.constant 2 : index
    %c10_88 = arith.constant 10 : index
    %c0_89 = arith.constant 0 : index
    %139 = vector.load %arg11[%c2_87, %c10_88, %c0_89] : memref<22x32x128xf32, #tpu.memory_space<vmem>>, vector<16x16x128xf32>
    %c19 = arith.constant 19 : index
    %c0_90 = arith.constant 0 : index
    %140 = vector.load %arg2[%c19, %c0_90] : memref<49x128xf32, #tpu.memory_space<vmem>>, vector<1x128xf32>
    %141 = vector.shape_cast %140 : vector<1x128xf32> to vector<128xf32>
    %142 = vector.shape_cast %141 : vector<128xf32> to vector<1x1x128xf32>
    %143 = vector.broadcast %142 : vector<1x1x128xf32> to vector<16x16x128xf32>
    %144 = arith.mulf %139, %143 : vector<16x16x128xf32>
    %145 = arith.addf %138, %144 : vector<16x16x128xf32>
    %c2_91 = arith.constant 2 : index
    %c11_92 = arith.constant 11 : index
    %c0_93 = arith.constant 0 : index
    %146 = vector.load %arg11[%c2_91, %c11_92, %c0_93] : memref<22x32x128xf32, #tpu.memory_space<vmem>>, vector<16x16x128xf32>
    %c20 = arith.constant 20 : index
    %c0_94 = arith.constant 0 : index
    %147 = vector.load %arg2[%c20, %c0_94] : memref<49x128xf32, #tpu.memory_space<vmem>>, vector<1x128xf32>
    %148 = vector.shape_cast %147 : vector<1x128xf32> to vector<128xf32>
    %149 = vector.shape_cast %148 : vector<128xf32> to vector<1x1x128xf32>
    %150 = vector.broadcast %149 : vector<1x1x128xf32> to vector<16x16x128xf32>
    %151 = arith.mulf %146, %150 : vector<16x16x128xf32>
    %152 = arith.addf %145, %151 : vector<16x16x128xf32>
    %c3_95 = arith.constant 3 : index
    %c5_96 = arith.constant 5 : index
    %c0_97 = arith.constant 0 : index
    %153 = vector.load %arg11[%c3_95, %c5_96, %c0_97] : memref<22x32x128xf32, #tpu.memory_space<vmem>>, vector<16x16x128xf32>
    %c21 = arith.constant 21 : index
    %c0_98 = arith.constant 0 : index
    %154 = vector.load %arg2[%c21, %c0_98] : memref<49x128xf32, #tpu.memory_space<vmem>>, vector<1x128xf32>
    %155 = vector.shape_cast %154 : vector<1x128xf32> to vector<128xf32>
    %156 = vector.shape_cast %155 : vector<128xf32> to vector<1x1x128xf32>
    %157 = vector.broadcast %156 : vector<1x1x128xf32> to vector<16x16x128xf32>
    %158 = arith.mulf %153, %157 : vector<16x16x128xf32>
    %159 = arith.addf %152, %158 : vector<16x16x128xf32>
    %c3_99 = arith.constant 3 : index
    %c6_100 = arith.constant 6 : index
    %c0_101 = arith.constant 0 : index
    %160 = vector.load %arg11[%c3_99, %c6_100, %c0_101] : memref<22x32x128xf32, #tpu.memory_space<vmem>>, vector<16x16x128xf32>
    %c22 = arith.constant 22 : index
    %c0_102 = arith.constant 0 : index
    %161 = vector.load %arg2[%c22, %c0_102] : memref<49x128xf32, #tpu.memory_space<vmem>>, vector<1x128xf32>
    %162 = vector.shape_cast %161 : vector<1x128xf32> to vector<128xf32>
    %163 = vector.shape_cast %162 : vector<128xf32> to vector<1x1x128xf32>
    %164 = vector.broadcast %163 : vector<1x1x128xf32> to vector<16x16x128xf32>
    %165 = arith.mulf %160, %164 : vector<16x16x128xf32>
    %166 = arith.addf %159, %165 : vector<16x16x128xf32>
    %c3_103 = arith.constant 3 : index
    %c7_104 = arith.constant 7 : index
    %c0_105 = arith.constant 0 : index
    %167 = vector.load %arg11[%c3_103, %c7_104, %c0_105] : memref<22x32x128xf32, #tpu.memory_space<vmem>>, vector<16x16x128xf32>
    %c23 = arith.constant 23 : index
    %c0_106 = arith.constant 0 : index
    %168 = vector.load %arg2[%c23, %c0_106] : memref<49x128xf32, #tpu.memory_space<vmem>>, vector<1x128xf32>
    %169 = vector.shape_cast %168 : vector<1x128xf32> to vector<128xf32>
    %170 = vector.shape_cast %169 : vector<128xf32> to vector<1x1x128xf32>
    %171 = vector.broadcast %170 : vector<1x1x128xf32> to vector<16x16x128xf32>
    %172 = arith.mulf %167, %171 : vector<16x16x128xf32>
    %173 = arith.addf %166, %172 : vector<16x16x128xf32>
    %c3_107 = arith.constant 3 : index
    %c8_108 = arith.constant 8 : index
    %c0_109 = arith.constant 0 : index
    %174 = vector.load %arg11[%c3_107, %c8_108, %c0_109] : memref<22x32x128xf32, #tpu.memory_space<vmem>>, vector<16x16x128xf32>
    %c24 = arith.constant 24 : index
    %c0_110 = arith.constant 0 : index
    %175 = vector.load %arg2[%c24, %c0_110] : memref<49x128xf32, #tpu.memory_space<vmem>>, vector<1x128xf32>
    %176 = vector.shape_cast %175 : vector<1x128xf32> to vector<128xf32>
    %177 = vector.shape_cast %176 : vector<128xf32> to vector<1x1x128xf32>
    %178 = vector.broadcast %177 : vector<1x1x128xf32> to vector<16x16x128xf32>
    %179 = arith.mulf %174, %178 : vector<16x16x128xf32>
    %180 = arith.addf %173, %179 : vector<16x16x128xf32>
    %c3_111 = arith.constant 3 : index
    %c9_112 = arith.constant 9 : index
    %c0_113 = arith.constant 0 : index
    %181 = vector.load %arg11[%c3_111, %c9_112, %c0_113] : memref<22x32x128xf32, #tpu.memory_space<vmem>>, vector<16x16x128xf32>
    %c25 = arith.constant 25 : index
    %c0_114 = arith.constant 0 : index
    %182 = vector.load %arg2[%c25, %c0_114] : memref<49x128xf32, #tpu.memory_space<vmem>>, vector<1x128xf32>
    %183 = vector.shape_cast %182 : vector<1x128xf32> to vector<128xf32>
    %184 = vector.shape_cast %183 : vector<128xf32> to vector<1x1x128xf32>
    %185 = vector.broadcast %184 : vector<1x1x128xf32> to vector<16x16x128xf32>
    %186 = arith.mulf %181, %185 : vector<16x16x128xf32>
    %187 = arith.addf %180, %186 : vector<16x16x128xf32>
    %c3_115 = arith.constant 3 : index
    %c10_116 = arith.constant 10 : index
    %c0_117 = arith.constant 0 : index
    %188 = vector.load %arg11[%c3_115, %c10_116, %c0_117] : memref<22x32x128xf32, #tpu.memory_space<vmem>>, vector<16x16x128xf32>
    %c26 = arith.constant 26 : index
    %c0_118 = arith.constant 0 : index
    %189 = vector.load %arg2[%c26, %c0_118] : memref<49x128xf32, #tpu.memory_space<vmem>>, vector<1x128xf32>
    %190 = vector.shape_cast %189 : vector<1x128xf32> to vector<128xf32>
    %191 = vector.shape_cast %190 : vector<128xf32> to vector<1x1x128xf32>
    %192 = vector.broadcast %191 : vector<1x1x128xf32> to vector<16x16x128xf32>
    %193 = arith.mulf %188, %192 : vector<16x16x128xf32>
    %194 = arith.addf %187, %193 : vector<16x16x128xf32>
    %c3_119 = arith.constant 3 : index
    %c11_120 = arith.constant 11 : index
    %c0_121 = arith.constant 0 : index
    %195 = vector.load %arg11[%c3_119, %c11_120, %c0_121] : memref<22x32x128xf32, #tpu.memory_space<vmem>>, vector<16x16x128xf32>
    %c27 = arith.constant 27 : index
    %c0_122 = arith.constant 0 : index
    %196 = vector.load %arg2[%c27, %c0_122] : memref<49x128xf32, #tpu.memory_space<vmem>>, vector<1x128xf32>
    %197 = vector.shape_cast %196 : vector<1x128xf32> to vector<128xf32>
    %198 = vector.shape_cast %197 : vector<128xf32> to vector<1x1x128xf32>
    %199 = vector.broadcast %198 : vector<1x1x128xf32> to vector<16x16x128xf32>
    %200 = arith.mulf %195, %199 : vector<16x16x128xf32>
    %201 = arith.addf %194, %200 : vector<16x16x128xf32>
    %c4_123 = arith.constant 4 : index
    %c5_124 = arith.constant 5 : index
    %c0_125 = arith.constant 0 : index
    %202 = vector.load %arg11[%c4_123, %c5_124, %c0_125] : memref<22x32x128xf32, #tpu.memory_space<vmem>>, vector<16x16x128xf32>
    %c28 = arith.constant 28 : index
    %c0_126 = arith.constant 0 : index
    %203 = vector.load %arg2[%c28, %c0_126] : memref<49x128xf32, #tpu.memory_space<vmem>>, vector<1x128xf32>
    %204 = vector.shape_cast %203 : vector<1x128xf32> to vector<128xf32>
    %205 = vector.shape_cast %204 : vector<128xf32> to vector<1x1x128xf32>
    %206 = vector.broadcast %205 : vector<1x1x128xf32> to vector<16x16x128xf32>
    %207 = arith.mulf %202, %206 : vector<16x16x128xf32>
    %208 = arith.addf %201, %207 : vector<16x16x128xf32>
    %c4_127 = arith.constant 4 : index
    %c6_128 = arith.constant 6 : index
    %c0_129 = arith.constant 0 : index
    %209 = vector.load %arg11[%c4_127, %c6_128, %c0_129] : memref<22x32x128xf32, #tpu.memory_space<vmem>>, vector<16x16x128xf32>
    %c29 = arith.constant 29 : index
    %c0_130 = arith.constant 0 : index
    %210 = vector.load %arg2[%c29, %c0_130] : memref<49x128xf32, #tpu.memory_space<vmem>>, vector<1x128xf32>
    %211 = vector.shape_cast %210 : vector<1x128xf32> to vector<128xf32>
    %212 = vector.shape_cast %211 : vector<128xf32> to vector<1x1x128xf32>
    %213 = vector.broadcast %212 : vector<1x1x128xf32> to vector<16x16x128xf32>
    %214 = arith.mulf %209, %213 : vector<16x16x128xf32>
    %215 = arith.addf %208, %214 : vector<16x16x128xf32>
    %c4_131 = arith.constant 4 : index
    %c7_132 = arith.constant 7 : index
    %c0_133 = arith.constant 0 : index
    %216 = vector.load %arg11[%c4_131, %c7_132, %c0_133] : memref<22x32x128xf32, #tpu.memory_space<vmem>>, vector<16x16x128xf32>
    %c30 = arith.constant 30 : index
    %c0_134 = arith.constant 0 : index
    %217 = vector.load %arg2[%c30, %c0_134] : memref<49x128xf32, #tpu.memory_space<vmem>>, vector<1x128xf32>
    %218 = vector.shape_cast %217 : vector<1x128xf32> to vector<128xf32>
    %219 = vector.shape_cast %218 : vector<128xf32> to vector<1x1x128xf32>
    %220 = vector.broadcast %219 : vector<1x1x128xf32> to vector<16x16x128xf32>
    %221 = arith.mulf %216, %220 : vector<16x16x128xf32>
    %222 = arith.addf %215, %221 : vector<16x16x128xf32>
    %c4_135 = arith.constant 4 : index
    %c8_136 = arith.constant 8 : index
    %c0_137 = arith.constant 0 : index
    %223 = vector.load %arg11[%c4_135, %c8_136, %c0_137] : memref<22x32x128xf32, #tpu.memory_space<vmem>>, vector<16x16x128xf32>
    %c31 = arith.constant 31 : index
    %c0_138 = arith.constant 0 : index
    %224 = vector.load %arg2[%c31, %c0_138] : memref<49x128xf32, #tpu.memory_space<vmem>>, vector<1x128xf32>
    %225 = vector.shape_cast %224 : vector<1x128xf32> to vector<128xf32>
    %226 = vector.shape_cast %225 : vector<128xf32> to vector<1x1x128xf32>
    %227 = vector.broadcast %226 : vector<1x1x128xf32> to vector<16x16x128xf32>
    %228 = arith.mulf %223, %227 : vector<16x16x128xf32>
    %229 = arith.addf %222, %228 : vector<16x16x128xf32>
    %c4_139 = arith.constant 4 : index
    %c9_140 = arith.constant 9 : index
    %c0_141 = arith.constant 0 : index
    %230 = vector.load %arg11[%c4_139, %c9_140, %c0_141] : memref<22x32x128xf32, #tpu.memory_space<vmem>>, vector<16x16x128xf32>
    %c32 = arith.constant 32 : index
    %c0_142 = arith.constant 0 : index
    %231 = vector.load %arg2[%c32, %c0_142] : memref<49x128xf32, #tpu.memory_space<vmem>>, vector<1x128xf32>
    %232 = vector.shape_cast %231 : vector<1x128xf32> to vector<128xf32>
    %233 = vector.shape_cast %232 : vector<128xf32> to vector<1x1x128xf32>
    %234 = vector.broadcast %233 : vector<1x1x128xf32> to vector<16x16x128xf32>
    %235 = arith.mulf %230, %234 : vector<16x16x128xf32>
    %236 = arith.addf %229, %235 : vector<16x16x128xf32>
    %c4_143 = arith.constant 4 : index
    %c10_144 = arith.constant 10 : index
    %c0_145 = arith.constant 0 : index
    %237 = vector.load %arg11[%c4_143, %c10_144, %c0_145] : memref<22x32x128xf32, #tpu.memory_space<vmem>>, vector<16x16x128xf32>
    %c33 = arith.constant 33 : index
    %c0_146 = arith.constant 0 : index
    %238 = vector.load %arg2[%c33, %c0_146] : memref<49x128xf32, #tpu.memory_space<vmem>>, vector<1x128xf32>
    %239 = vector.shape_cast %238 : vector<1x128xf32> to vector<128xf32>
    %240 = vector.shape_cast %239 : vector<128xf32> to vector<1x1x128xf32>
    %241 = vector.broadcast %240 : vector<1x1x128xf32> to vector<16x16x128xf32>
    %242 = arith.mulf %237, %241 : vector<16x16x128xf32>
    %243 = arith.addf %236, %242 : vector<16x16x128xf32>
    %c4_147 = arith.constant 4 : index
    %c11_148 = arith.constant 11 : index
    %c0_149 = arith.constant 0 : index
    %244 = vector.load %arg11[%c4_147, %c11_148, %c0_149] : memref<22x32x128xf32, #tpu.memory_space<vmem>>, vector<16x16x128xf32>
    %c34 = arith.constant 34 : index
    %c0_150 = arith.constant 0 : index
    %245 = vector.load %arg2[%c34, %c0_150] : memref<49x128xf32, #tpu.memory_space<vmem>>, vector<1x128xf32>
    %246 = vector.shape_cast %245 : vector<1x128xf32> to vector<128xf32>
    %247 = vector.shape_cast %246 : vector<128xf32> to vector<1x1x128xf32>
    %248 = vector.broadcast %247 : vector<1x1x128xf32> to vector<16x16x128xf32>
    %249 = arith.mulf %244, %248 : vector<16x16x128xf32>
    %250 = arith.addf %243, %249 : vector<16x16x128xf32>
    %c5_151 = arith.constant 5 : index
    %c5_152 = arith.constant 5 : index
    %c0_153 = arith.constant 0 : index
    %251 = vector.load %arg11[%c5_151, %c5_152, %c0_153] : memref<22x32x128xf32, #tpu.memory_space<vmem>>, vector<16x16x128xf32>
    %c35 = arith.constant 35 : index
    %c0_154 = arith.constant 0 : index
    %252 = vector.load %arg2[%c35, %c0_154] : memref<49x128xf32, #tpu.memory_space<vmem>>, vector<1x128xf32>
    %253 = vector.shape_cast %252 : vector<1x128xf32> to vector<128xf32>
    %254 = vector.shape_cast %253 : vector<128xf32> to vector<1x1x128xf32>
    %255 = vector.broadcast %254 : vector<1x1x128xf32> to vector<16x16x128xf32>
    %256 = arith.mulf %251, %255 : vector<16x16x128xf32>
    %257 = arith.addf %250, %256 : vector<16x16x128xf32>
    %c5_155 = arith.constant 5 : index
    %c6_156 = arith.constant 6 : index
    %c0_157 = arith.constant 0 : index
    %258 = vector.load %arg11[%c5_155, %c6_156, %c0_157] : memref<22x32x128xf32, #tpu.memory_space<vmem>>, vector<16x16x128xf32>
    %c36 = arith.constant 36 : index
    %c0_158 = arith.constant 0 : index
    %259 = vector.load %arg2[%c36, %c0_158] : memref<49x128xf32, #tpu.memory_space<vmem>>, vector<1x128xf32>
    %260 = vector.shape_cast %259 : vector<1x128xf32> to vector<128xf32>
    %261 = vector.shape_cast %260 : vector<128xf32> to vector<1x1x128xf32>
    %262 = vector.broadcast %261 : vector<1x1x128xf32> to vector<16x16x128xf32>
    %263 = arith.mulf %258, %262 : vector<16x16x128xf32>
    %264 = arith.addf %257, %263 : vector<16x16x128xf32>
    %c5_159 = arith.constant 5 : index
    %c7_160 = arith.constant 7 : index
    %c0_161 = arith.constant 0 : index
    %265 = vector.load %arg11[%c5_159, %c7_160, %c0_161] : memref<22x32x128xf32, #tpu.memory_space<vmem>>, vector<16x16x128xf32>
    %c37 = arith.constant 37 : index
    %c0_162 = arith.constant 0 : index
    %266 = vector.load %arg2[%c37, %c0_162] : memref<49x128xf32, #tpu.memory_space<vmem>>, vector<1x128xf32>
    %267 = vector.shape_cast %266 : vector<1x128xf32> to vector<128xf32>
    %268 = vector.shape_cast %267 : vector<128xf32> to vector<1x1x128xf32>
    %269 = vector.broadcast %268 : vector<1x1x128xf32> to vector<16x16x128xf32>
    %270 = arith.mulf %265, %269 : vector<16x16x128xf32>
    %271 = arith.addf %264, %270 : vector<16x16x128xf32>
    %c5_163 = arith.constant 5 : index
    %c8_164 = arith.constant 8 : index
    %c0_165 = arith.constant 0 : index
    %272 = vector.load %arg11[%c5_163, %c8_164, %c0_165] : memref<22x32x128xf32, #tpu.memory_space<vmem>>, vector<16x16x128xf32>
    %c38 = arith.constant 38 : index
    %c0_166 = arith.constant 0 : index
    %273 = vector.load %arg2[%c38, %c0_166] : memref<49x128xf32, #tpu.memory_space<vmem>>, vector<1x128xf32>
    %274 = vector.shape_cast %273 : vector<1x128xf32> to vector<128xf32>
    %275 = vector.shape_cast %274 : vector<128xf32> to vector<1x1x128xf32>
    %276 = vector.broadcast %275 : vector<1x1x128xf32> to vector<16x16x128xf32>
    %277 = arith.mulf %272, %276 : vector<16x16x128xf32>
    %278 = arith.addf %271, %277 : vector<16x16x128xf32>
    %c5_167 = arith.constant 5 : index
    %c9_168 = arith.constant 9 : index
    %c0_169 = arith.constant 0 : index
    %279 = vector.load %arg11[%c5_167, %c9_168, %c0_169] : memref<22x32x128xf32, #tpu.memory_space<vmem>>, vector<16x16x128xf32>
    %c39 = arith.constant 39 : index
    %c0_170 = arith.constant 0 : index
    %280 = vector.load %arg2[%c39, %c0_170] : memref<49x128xf32, #tpu.memory_space<vmem>>, vector<1x128xf32>
    %281 = vector.shape_cast %280 : vector<1x128xf32> to vector<128xf32>
    %282 = vector.shape_cast %281 : vector<128xf32> to vector<1x1x128xf32>
    %283 = vector.broadcast %282 : vector<1x1x128xf32> to vector<16x16x128xf32>
    %284 = arith.mulf %279, %283 : vector<16x16x128xf32>
    %285 = arith.addf %278, %284 : vector<16x16x128xf32>
    %c5_171 = arith.constant 5 : index
    %c10_172 = arith.constant 10 : index
    %c0_173 = arith.constant 0 : index
    %286 = vector.load %arg11[%c5_171, %c10_172, %c0_173] : memref<22x32x128xf32, #tpu.memory_space<vmem>>, vector<16x16x128xf32>
    %c40 = arith.constant 40 : index
    %c0_174 = arith.constant 0 : index
    %287 = vector.load %arg2[%c40, %c0_174] : memref<49x128xf32, #tpu.memory_space<vmem>>, vector<1x128xf32>
    %288 = vector.shape_cast %287 : vector<1x128xf32> to vector<128xf32>
    %289 = vector.shape_cast %288 : vector<128xf32> to vector<1x1x128xf32>
    %290 = vector.broadcast %289 : vector<1x1x128xf32> to vector<16x16x128xf32>
    %291 = arith.mulf %286, %290 : vector<16x16x128xf32>
    %292 = arith.addf %285, %291 : vector<16x16x128xf32>
    %c5_175 = arith.constant 5 : index
    %c11_176 = arith.constant 11 : index
    %c0_177 = arith.constant 0 : index
    %293 = vector.load %arg11[%c5_175, %c11_176, %c0_177] : memref<22x32x128xf32, #tpu.memory_space<vmem>>, vector<16x16x128xf32>
    %c41 = arith.constant 41 : index
    %c0_178 = arith.constant 0 : index
    %294 = vector.load %arg2[%c41, %c0_178] : memref<49x128xf32, #tpu.memory_space<vmem>>, vector<1x128xf32>
    %295 = vector.shape_cast %294 : vector<1x128xf32> to vector<128xf32>
    %296 = vector.shape_cast %295 : vector<128xf32> to vector<1x1x128xf32>
    %297 = vector.broadcast %296 : vector<1x1x128xf32> to vector<16x16x128xf32>
    %298 = arith.mulf %293, %297 : vector<16x16x128xf32>
    %299 = arith.addf %292, %298 : vector<16x16x128xf32>
    %c6_179 = arith.constant 6 : index
    %c5_180 = arith.constant 5 : index
    %c0_181 = arith.constant 0 : index
    %300 = vector.load %arg11[%c6_179, %c5_180, %c0_181] : memref<22x32x128xf32, #tpu.memory_space<vmem>>, vector<16x16x128xf32>
    %c42 = arith.constant 42 : index
    %c0_182 = arith.constant 0 : index
    %301 = vector.load %arg2[%c42, %c0_182] : memref<49x128xf32, #tpu.memory_space<vmem>>, vector<1x128xf32>
    %302 = vector.shape_cast %301 : vector<1x128xf32> to vector<128xf32>
    %303 = vector.shape_cast %302 : vector<128xf32> to vector<1x1x128xf32>
    %304 = vector.broadcast %303 : vector<1x1x128xf32> to vector<16x16x128xf32>
    %305 = arith.mulf %300, %304 : vector<16x16x128xf32>
    %306 = arith.addf %299, %305 : vector<16x16x128xf32>
    %c6_183 = arith.constant 6 : index
    %c6_184 = arith.constant 6 : index
    %c0_185 = arith.constant 0 : index
    %307 = vector.load %arg11[%c6_183, %c6_184, %c0_185] : memref<22x32x128xf32, #tpu.memory_space<vmem>>, vector<16x16x128xf32>
    %c43 = arith.constant 43 : index
    %c0_186 = arith.constant 0 : index
    %308 = vector.load %arg2[%c43, %c0_186] : memref<49x128xf32, #tpu.memory_space<vmem>>, vector<1x128xf32>
    %309 = vector.shape_cast %308 : vector<1x128xf32> to vector<128xf32>
    %310 = vector.shape_cast %309 : vector<128xf32> to vector<1x1x128xf32>
    %311 = vector.broadcast %310 : vector<1x1x128xf32> to vector<16x16x128xf32>
    %312 = arith.mulf %307, %311 : vector<16x16x128xf32>
    %313 = arith.addf %306, %312 : vector<16x16x128xf32>
    %c6_187 = arith.constant 6 : index
    %c7_188 = arith.constant 7 : index
    %c0_189 = arith.constant 0 : index
    %314 = vector.load %arg11[%c6_187, %c7_188, %c0_189] : memref<22x32x128xf32, #tpu.memory_space<vmem>>, vector<16x16x128xf32>
    %c44 = arith.constant 44 : index
    %c0_190 = arith.constant 0 : index
    %315 = vector.load %arg2[%c44, %c0_190] : memref<49x128xf32, #tpu.memory_space<vmem>>, vector<1x128xf32>
    %316 = vector.shape_cast %315 : vector<1x128xf32> to vector<128xf32>
    %317 = vector.shape_cast %316 : vector<128xf32> to vector<1x1x128xf32>
    %318 = vector.broadcast %317 : vector<1x1x128xf32> to vector<16x16x128xf32>
    %319 = arith.mulf %314, %318 : vector<16x16x128xf32>
    %320 = arith.addf %313, %319 : vector<16x16x128xf32>
    %c6_191 = arith.constant 6 : index
    %c8_192 = arith.constant 8 : index
    %c0_193 = arith.constant 0 : index
    %321 = vector.load %arg11[%c6_191, %c8_192, %c0_193] : memref<22x32x128xf32, #tpu.memory_space<vmem>>, vector<16x16x128xf32>
    %c45 = arith.constant 45 : index
    %c0_194 = arith.constant 0 : index
    %322 = vector.load %arg2[%c45, %c0_194] : memref<49x128xf32, #tpu.memory_space<vmem>>, vector<1x128xf32>
    %323 = vector.shape_cast %322 : vector<1x128xf32> to vector<128xf32>
    %324 = vector.shape_cast %323 : vector<128xf32> to vector<1x1x128xf32>
    %325 = vector.broadcast %324 : vector<1x1x128xf32> to vector<16x16x128xf32>
    %326 = arith.mulf %321, %325 : vector<16x16x128xf32>
    %327 = arith.addf %320, %326 : vector<16x16x128xf32>
    %c6_195 = arith.constant 6 : index
    %c9_196 = arith.constant 9 : index
    %c0_197 = arith.constant 0 : index
    %328 = vector.load %arg11[%c6_195, %c9_196, %c0_197] : memref<22x32x128xf32, #tpu.memory_space<vmem>>, vector<16x16x128xf32>
    %c46 = arith.constant 46 : index
    %c0_198 = arith.constant 0 : index
    %329 = vector.load %arg2[%c46, %c0_198] : memref<49x128xf32, #tpu.memory_space<vmem>>, vector<1x128xf32>
    %330 = vector.shape_cast %329 : vector<1x128xf32> to vector<128xf32>
    %331 = vector.shape_cast %330 : vector<128xf32> to vector<1x1x128xf32>
    %332 = vector.broadcast %331 : vector<1x1x128xf32> to vector<16x16x128xf32>
    %333 = arith.mulf %328, %332 : vector<16x16x128xf32>
    %334 = arith.addf %327, %333 : vector<16x16x128xf32>
    %c6_199 = arith.constant 6 : index
    %c10_200 = arith.constant 10 : index
    %c0_201 = arith.constant 0 : index
    %335 = vector.load %arg11[%c6_199, %c10_200, %c0_201] : memref<22x32x128xf32, #tpu.memory_space<vmem>>, vector<16x16x128xf32>
    %c47 = arith.constant 47 : index
    %c0_202 = arith.constant 0 : index
    %336 = vector.load %arg2[%c47, %c0_202] : memref<49x128xf32, #tpu.memory_space<vmem>>, vector<1x128xf32>
    %337 = vector.shape_cast %336 : vector<1x128xf32> to vector<128xf32>
    %338 = vector.shape_cast %337 : vector<128xf32> to vector<1x1x128xf32>
    %339 = vector.broadcast %338 : vector<1x1x128xf32> to vector<16x16x128xf32>
    %340 = arith.mulf %335, %339 : vector<16x16x128xf32>
    %341 = arith.addf %334, %340 : vector<16x16x128xf32>
    %c6_203 = arith.constant 6 : index
    %c11_204 = arith.constant 11 : index
    %c0_205 = arith.constant 0 : index
    %342 = vector.load %arg11[%c6_203, %c11_204, %c0_205] : memref<22x32x128xf32, #tpu.memory_space<vmem>>, vector<16x16x128xf32>
    %c48 = arith.constant 48 : index
    %c0_206 = arith.constant 0 : index
    %343 = vector.load %arg2[%c48, %c0_206] : memref<49x128xf32, #tpu.memory_space<vmem>>, vector<1x128xf32>
    %344 = vector.shape_cast %343 : vector<1x128xf32> to vector<128xf32>
    %345 = vector.shape_cast %344 : vector<128xf32> to vector<1x1x128xf32>
    %346 = vector.broadcast %345 : vector<1x1x128xf32> to vector<16x16x128xf32>
    %347 = arith.mulf %342, %346 : vector<16x16x128xf32>
    %348 = arith.addf %341, %347 : vector<16x16x128xf32>
    %c0_207 = arith.constant 0 : index
    %c0_208 = arith.constant 0 : index
    %349 = vector.load %arg3[%c0_207, %c0_208] : memref<1x128xf32, #tpu.memory_space<vmem>>, vector<1x128xf32>
    %350 = vector.shape_cast %349 : vector<1x128xf32> to vector<128xf32>
    %351 = vector.shape_cast %350 : vector<128xf32> to vector<1x1x128xf32>
    %352 = vector.broadcast %351 : vector<1x1x128xf32> to vector<16x16x128xf32>
    %353 = arith.addf %348, %352 : vector<16x16x128xf32>
    %354 = vector.shape_cast %353 : vector<16x16x128xf32> to vector<1x16x16x128xf32>
    %cst_209 = arith.constant dense<0.000000e+00> : vector<1xf32>
    %355 = vector.multi_reduction <add>, %354, %cst_209 [1, 2, 3] : vector<1x16x16x128xf32> to vector<1xf32>
    %356 = vector.shape_cast %355 : vector<1xf32> to vector<1x1x1x1xf32>
    %357 = vector.extract %356[0, 0, 0, 0] : f32 from vector<1x1x1x1xf32>
    %358 = arith.mulf %353, %353 : vector<16x16x128xf32>
    %359 = vector.shape_cast %358 : vector<16x16x128xf32> to vector<1x16x16x128xf32>
    %cst_210 = arith.constant dense<0.000000e+00> : vector<1xf32>
    %360 = vector.multi_reduction <add>, %359, %cst_210 [1, 2, 3] : vector<1x16x16x128xf32> to vector<1xf32>
    %361 = vector.shape_cast %360 : vector<1xf32> to vector<1x1x1x1xf32>
    %362 = vector.extract %361[0, 0, 0, 0] : f32 from vector<1x1x1x1xf32>
    %cst_211 = arith.constant 3.276800e+04 : f32
    %363 = arith.divf %357, %cst_211 : f32
    %cst_212 = arith.constant 3.276800e+04 : f32
    %364 = arith.divf %362, %cst_212 : f32
    %365 = arith.mulf %363, %363 : f32
    %366 = arith.subf %364, %365 : f32
    %367 = vector.broadcast %363 : f32 to vector<16x16x128xf32>
    %368 = arith.subf %353, %367 : vector<16x16x128xf32>
    %cst_213 = arith.constant 9.99999974E-6 : f32
    %369 = arith.addf %366, %cst_213 : f32
    %370 = math.rsqrt %369 : f32
    %371 = vector.broadcast %370 : f32 to vector<16x16x128xf32>
    %372 = arith.mulf %368, %371 : vector<16x16x128xf32>
    %c0_214 = arith.constant 0 : index
    %c0_215 = arith.constant 0 : index
    %373 = vector.load %arg4[%c0_214, %c0_215] : memref<1x128xf32, #tpu.memory_space<vmem>>, vector<1x128xf32>
    %374 = vector.shape_cast %373 : vector<1x128xf32> to vector<128xf32>
    %375 = vector.shape_cast %374 : vector<128xf32> to vector<1x1x128xf32>
    %376 = vector.broadcast %375 : vector<1x1x128xf32> to vector<16x16x128xf32>
    %377 = arith.mulf %372, %376 : vector<16x16x128xf32>
    %c0_216 = arith.constant 0 : index
    %c0_217 = arith.constant 0 : index
    %378 = vector.load %arg5[%c0_216, %c0_217] : memref<1x128xf32, #tpu.memory_space<vmem>>, vector<1x128xf32>
    %379 = vector.shape_cast %378 : vector<1x128xf32> to vector<128xf32>
    %380 = vector.shape_cast %379 : vector<128xf32> to vector<1x1x128xf32>
    %381 = vector.broadcast %380 : vector<1x1x128xf32> to vector<16x16x128xf32>
    %382 = arith.addf %377, %381 : vector<16x16x128xf32>
    %383 = vector.shape_cast %382 : vector<16x16x128xf32> to vector<256x128xf32>
    %c0_218 = arith.constant 0 : index
    %c0_219 = arith.constant 0 : index
    %384 = vector.load %arg6[%c0_218, %c0_219] : memref<128x512xf32, #tpu.memory_space<vmem>>, vector<128x512xf32>
    %cst_220 = arith.constant dense<0.000000e+00> : vector<256x512xf32>
    %385 = tpu.matmul %383, %384, %cst_220 {dimension_numbers = #tpu.dot_dimension_numbers<[1], [0], [0], [1], [0, 0, 1, 1], [], []>} : vector<256x128xf32>, vector<128x512xf32>, vector<256x512xf32> -> vector<256x512xf32>
    %c0_221 = arith.constant 0 : index
    %c0_222 = arith.constant 0 : index
    %386 = vector.load %arg7[%c0_221, %c0_222] : memref<1x512xf32, #tpu.memory_space<vmem>>, vector<1x512xf32>
    %387 = vector.broadcast %386 : vector<1x512xf32> to vector<256x512xf32>
    %388 = arith.addf %385, %387 : vector<256x512xf32>
    %cst_223 = arith.constant 5.000000e-01 : f32
    %389 = vector.broadcast %cst_223 : f32 to vector<256x512xf32>
    %390 = arith.mulf %389, %388 : vector<256x512xf32>
    %cst_224 = arith.constant 1.41421354 : f32
    %391 = vector.broadcast %cst_224 : f32 to vector<256x512xf32>
    %392 = arith.divf %388, %391 : vector<256x512xf32>
    %393 = math.erf %392 : vector<256x512xf32>
    %cst_225 = arith.constant 1.000000e+00 : f32
    %394 = vector.broadcast %cst_225 : f32 to vector<256x512xf32>
    %395 = arith.addf %394, %393 : vector<256x512xf32>
    %396 = arith.mulf %390, %395 : vector<256x512xf32>
    %c0_226 = arith.constant 0 : index
    %c0_227 = arith.constant 0 : index
    %397 = vector.load %arg8[%c0_226, %c0_227] : memref<512x128xf32, #tpu.memory_space<vmem>>, vector<512x128xf32>
    %cst_228 = arith.constant dense<0.000000e+00> : vector<256x128xf32>
    %398 = tpu.matmul %396, %397, %cst_228 {dimension_numbers = #tpu.dot_dimension_numbers<[1], [0], [0], [1], [0, 0, 1, 1], [], []>} : vector<256x512xf32>, vector<512x128xf32>, vector<256x128xf32> -> vector<256x128xf32>
    %c0_229 = arith.constant 0 : index
    %c0_230 = arith.constant 0 : index
    %399 = vector.load %arg9[%c0_229, %c0_230] : memref<1x128xf32, #tpu.memory_space<vmem>>, vector<1x128xf32>
    %400 = vector.broadcast %399 : vector<1x128xf32> to vector<256x128xf32>
    %401 = arith.addf %398, %400 : vector<256x128xf32>
    %402 = vector.shape_cast %1 : vector<16x16x128xf32> to vector<256x128xf32>
    %403 = arith.addf %401, %402 : vector<256x128xf32>
    %404 = vector.shape_cast %403 : vector<256x128xf32> to vector<16x16x128xf32>
    %c0_231 = arith.constant 0 : index
    %c0_232 = arith.constant 0 : index
    %c0_233 = arith.constant 0 : index
    %c0_234 = arith.constant 0 : index
    %405 = vector.load %arg10[%c0_231, %c0_232, %c0_233, %c0_234] : memref<1x16x16x128xf32, #tpu.memory_space<vmem>>, vector<1x16x16x128xf32>
    %406 = vector.shape_cast %405 : vector<1x16x16x128xf32> to vector<16x16x128xf32>
    %407 = vector.shape_cast %404 : vector<16x16x128xf32> to vector<1x16x16x128xf32>
    tpu.vector_store %arg10[%c0_231, %c0_232, %c0_233, %c0_234], %407 {strides = array<i32>} : memref<1x16x16x128xf32, #tpu.memory_space<vmem>>, vector<1x16x16x128xf32>,
    return
  }
  func.func @transform_0(%arg0: i32) -> (i32, i32, i32, i32) {
    %c0_i32 = arith.constant 0 : i32
    %c0_i32_0 = arith.constant 0 : i32
    %c0_i32_1 = arith.constant 0 : i32
    %c0_i32_2 = arith.constant 0 : i32
    return %arg0, %c0_i32, %c0_i32_0, %c0_i32_1 : i32, i32, i32, i32
  }
  func.func @transform_1(%arg0: i32) -> (i32, i32) {
    %c0_i32 = arith.constant 0 : i32
    %c0_i32_0 = arith.constant 0 : i32
    %c0_i32_1 = arith.constant 0 : i32
    return %c0_i32, %c0_i32_0 : i32, i32
  }
  func.func @transform_2(%arg0: i32) -> (i32, i32) {
    %c0_i32 = arith.constant 0 : i32
    %c0_i32_0 = arith.constant 0 : i32
    %c0_i32_1 = arith.constant 0 : i32
    return %c0_i32, %c0_i32_0 : i32, i32
  }
  func.func @transform_3(%arg0: i32) -> (i32, i32) {
    %c0_i32 = arith.constant 0 : i32
    %c0_i32_0 = arith.constant 0 : i32
    %c0_i32_1 = arith.constant 0 : i32
    return %c0_i32, %c0_i32_0 : i32, i32
  }
  func.func @transform_4(%arg0: i32) -> (i32, i32) {
    %c0_i32 = arith.constant 0 : i32
    %c0_i32_0 = arith.constant 0 : i32
    %c0_i32_1 = arith.constant 0 : i32
    return %c0_i32, %c0_i32_0 : i32, i32
  }
  func.func @transform_5(%arg0: i32) -> (i32, i32) {
    %c0_i32 = arith.constant 0 : i32
    %c0_i32_0 = arith.constant 0 : i32
    %c0_i32_1 = arith.constant 0 : i32
    return %c0_i32, %c0_i32_0 : i32, i32
  }
  func.func @transform_6(%arg0: i32) -> (i32, i32) {
    %c0_i32 = arith.constant 0 : i32
    %c0_i32_0 = arith.constant 0 : i32
    %c0_i32_1 = arith.constant 0 : i32
    return %c0_i32, %c0_i32_0 : i32, i32
  }
  func.func @transform_7(%arg0: i32) -> (i32, i32) {
    %c0_i32 = arith.constant 0 : i32
    %c0_i32_0 = arith.constant 0 : i32
    %c0_i32_1 = arith.constant 0 : i32
    return %c0_i32, %c0_i32_0 : i32, i32
  }
  func.func @transform_8(%arg0: i32) -> (i32, i32) {
    %c0_i32 = arith.constant 0 : i32
    %c0_i32_0 = arith.constant 0 : i32
    %c0_i32_1 = arith.constant 0 : i32
    return %c0_i32, %c0_i32_0 : i32, i32
  }
  func.func @transform_9(%arg0: i32) -> (i32, i32, i32, i32) {
    %c0_i32 = arith.constant 0 : i32
    %c0_i32_0 = arith.constant 0 : i32
    %c0_i32_1 = arith.constant 0 : i32
    %c0_i32_2 = arith.constant 0 : i32
    return %arg0, %c0_i32, %c0_i32_0, %c0_i32_1 : i32, i32, i32, i32
  }
}

module attributes {stable_mosaic.version = 11 : i64} {
  func.func @kernel(%arg0: i32, %arg1: memref<2x16x16x128xf32, #tpu.memory_space<vmem>>, %arg2: memref<128x512xf32, #tpu.memory_space<vmem>>, %arg3: memref<1x512xf32, #tpu.memory_space<vmem>>, %arg4: memref<512x10xf32, #tpu.memory_space<vmem>>, %arg5: memref<1x10xf32, #tpu.memory_space<vmem>>, %arg6: memref<2x10xf32, #tpu.memory_space<vmem>>) attributes {dimension_semantics = [#tpu.dimension_semantics<arbitrary>], iteration_bounds = array<i64: 1>, scalar_prefetch = 0 : i64, scratch_operands = 0 : i64, tpu.core_type = #tpu.core_type<tc>, window_params = [{pipeline_mode = #tpu.pipeline_mode<synchronous>, transform_indices = @transform_0, window_bounds = array<i64: 2, 16, 16, 128>}, {pipeline_mode = #tpu.pipeline_mode<synchronous>, transform_indices = @transform_1, window_bounds = array<i64: 128, 512>}, {pipeline_mode = #tpu.pipeline_mode<synchronous>, transform_indices = @transform_2, window_bounds = array<i64: 1, 512>}, {pipeline_mode = #tpu.pipeline_mode<synchronous>, transform_indices = @transform_3, window_bounds = array<i64: 512, 10>}, {pipeline_mode = #tpu.pipeline_mode<synchronous>, transform_indices = @transform_4, window_bounds = array<i64: 1, 10>}, {pipeline_mode = #tpu.pipeline_mode<synchronous>, transform_indices = @transform_5, window_bounds = array<i64: 2, 10>}]} {
    %c0 = arith.constant 0 : index
    %c0_0 = arith.constant 0 : index
    %c0_1 = arith.constant 0 : index
    %c0_2 = arith.constant 0 : index
    %0 = vector.load %arg1[%c0, %c0_0, %c0_1, %c0_2] : memref<2x16x16x128xf32, #tpu.memory_space<vmem>>, vector<2x16x16x128xf32>
    %cst = arith.constant dense<0.000000e+00> : vector<2x128xf32>
    %1 = vector.multi_reduction <add>, %0, %cst [1, 2] : vector<2x16x16x128xf32> to vector<2x128xf32>
    %cst_3 = arith.constant 2.560000e+02 : f32
    %2 = vector.broadcast %cst_3 : f32 to vector<2x128xf32>
    %3 = arith.divf %1, %2 : vector<2x128xf32>
    %c0_4 = arith.constant 0 : index
    %c0_5 = arith.constant 0 : index
    %4 = vector.load %arg2[%c0_4, %c0_5] : memref<128x512xf32, #tpu.memory_space<vmem>>, vector<128x512xf32>
    %cst_6 = arith.constant dense<0.000000e+00> : vector<2x512xf32>
    %5 = tpu.matmul %3, %4, %cst_6 {dimension_numbers = #tpu.dot_dimension_numbers<[1], [0], [0], [1], [0, 0, 1, 1], [], []>} : vector<2x128xf32>, vector<128x512xf32>, vector<2x512xf32> -> vector<2x512xf32>
    %c0_7 = arith.constant 0 : index
    %c0_8 = arith.constant 0 : index
    %6 = vector.load %arg3[%c0_7, %c0_8] : memref<1x512xf32, #tpu.memory_space<vmem>>, vector<1x512xf32>
    %7 = vector.broadcast %6 : vector<1x512xf32> to vector<2x512xf32>
    %8 = arith.addf %5, %7 : vector<2x512xf32>
    %cst_9 = arith.constant 5.000000e-01 : f32
    %9 = vector.broadcast %cst_9 : f32 to vector<2x512xf32>
    %10 = arith.mulf %9, %8 : vector<2x512xf32>
    %cst_10 = arith.constant 1.41421354 : f32
    %11 = vector.broadcast %cst_10 : f32 to vector<2x512xf32>
    %12 = arith.divf %8, %11 : vector<2x512xf32>
    %13 = math.erf %12 : vector<2x512xf32>
    %cst_11 = arith.constant 1.000000e+00 : f32
    %14 = vector.broadcast %cst_11 : f32 to vector<2x512xf32>
    %15 = arith.addf %14, %13 : vector<2x512xf32>
    %16 = arith.mulf %10, %15 : vector<2x512xf32>
    %c0_12 = arith.constant 0 : index
    %c0_13 = arith.constant 0 : index
    %17 = vector.load %arg4[%c0_12, %c0_13] : memref<512x10xf32, #tpu.memory_space<vmem>>, vector<512x10xf32>
    %cst_14 = arith.constant dense<0.000000e+00> : vector<2x10xf32>
    %18 = tpu.matmul %16, %17, %cst_14 {dimension_numbers = #tpu.dot_dimension_numbers<[1], [0], [0], [1], [0, 0, 1, 1], [], []>} : vector<2x512xf32>, vector<512x10xf32>, vector<2x10xf32> -> vector<2x10xf32>
    %c0_15 = arith.constant 0 : index
    %c0_16 = arith.constant 0 : index
    %19 = vector.load %arg5[%c0_15, %c0_16] : memref<1x10xf32, #tpu.memory_space<vmem>>, vector<1x10xf32>
    %20 = vector.broadcast %19 : vector<1x10xf32> to vector<2x10xf32>
    %21 = arith.addf %18, %20 : vector<2x10xf32>
    %c0_17 = arith.constant 0 : index
    %c0_18 = arith.constant 0 : index
    %22 = vector.load %arg6[%c0_17, %c0_18] : memref<2x10xf32, #tpu.memory_space<vmem>>, vector<2x10xf32>
    tpu.vector_store %arg6[%c0_17, %c0_18], %21 {strides = array<i32>} : memref<2x10xf32, #tpu.memory_space<vmem>>, vector<2x10xf32>,
    return
  }
  func.func @transform_0(%arg0: i32) -> (i32, i32, i32, i32) {
    %c0_i32 = arith.constant 0 : i32
    %c0_i32_0 = arith.constant 0 : i32
    %c0_i32_1 = arith.constant 0 : i32
    %c0_i32_2 = arith.constant 0 : i32
    %c0_i32_3 = arith.constant 0 : i32
    return %c0_i32, %c0_i32_0, %c0_i32_1, %c0_i32_2 : i32, i32, i32, i32
  }
  func.func @transform_1(%arg0: i32) -> (i32, i32) {
    %c0_i32 = arith.constant 0 : i32
    %c0_i32_0 = arith.constant 0 : i32
    %c0_i32_1 = arith.constant 0 : i32
    return %c0_i32, %c0_i32_0 : i32, i32
  }
  func.func @transform_2(%arg0: i32) -> (i32, i32) {
    %c0_i32 = arith.constant 0 : i32
    %c0_i32_0 = arith.constant 0 : i32
    %c0_i32_1 = arith.constant 0 : i32
    return %c0_i32, %c0_i32_0 : i32, i32
  }
  func.func @transform_3(%arg0: i32) -> (i32, i32) {
    %c0_i32 = arith.constant 0 : i32
    %c0_i32_0 = arith.constant 0 : i32
    %c0_i32_1 = arith.constant 0 : i32
    return %c0_i32, %c0_i32_0 : i32, i32
  }
  func.func @transform_4(%arg0: i32) -> (i32, i32) {
    %c0_i32 = arith.constant 0 : i32
    %c0_i32_0 = arith.constant 0 : i32
    %c0_i32_1 = arith.constant 0 : i32
    return %c0_i32, %c0_i32_0 : i32, i32
  }
  func.func @transform_5(%arg0: i32) -> (i32, i32) {
    %c0_i32 = arith.constant 0 : i32
    %c0_i32_0 = arith.constant 0 : i32
    %c0_i32_1 = arith.constant 0 : i32
    return %c0_i32, %c0_i32_0 : i32, i32
  }
}

</mosaic_0001>

<llo_original>
// kernel: net_forward.4
$region0: #{net_forward.4}
  #allocation0 [shape = 'u32[]', space=smem, size = 0x4, offset = 0x4, fixed_abs, tag = 'smem constant byte address 0x4 - core index']
  #allocation1 [shape = 'u32[144,128]{1,0:T(1,128)}', space=vmem, size = 0x12000, scoped, tag = 'internal scratch']
  %s0 = inlined_call_operand.vmem [shape: f32[2,16,16,1], index: 0, kind: input, shape index: {}]
  %s1 = inlined_call_operand.vmem [shape: f32[1,128], index: 1, kind: input, shape index: {}]
  %s2 = inlined_call_operand.vmem [shape: f32[1,128], index: 2, kind: input, shape index: {}]
  %s3 = inlined_call_operand.vmem [shape: f32[2,16,16,128], index: 3, kind: output, shape index: {}]
  %s4 = sld [smem:[#allocation0]]
  $region45: #{net_forward.4} parent=0
    _
  %s6 = ssub.s32 1, %s4
  %s7 = scalar_select 0, %s6, %s4
  loop: start=0, step=1, limit=4
  $region2: #{net_forward.4} parent=0 // loop_pre_header
    _
  $region3: #{net_forward.4} parent=0 // loop_header
    %s9 = sphi 0, %s13
    %p10 = scmp.ge.s32.totalorder %s9, 4
    %s19 = sphi 0, %s21
    %s22 = sphi 0, %s19
    %s23 = sphi 0, %s22
    %s39 = sphi 0, %s23
    %s43 = sphi 0, %s43
    %s45 = sphi 0, %s43
    %s46 = sphi 0, %s45
    %s60 = sphi 0, %s46
    %s64 = sphi 0, %s64
    %s66 = sphi 0, %s64
    %s67 = sphi 0, %s66
    %s81 = sphi 0, %s67
    %s87 = sphi 0, %s89
    %s90 = sphi 0, %s87
    %s91 = sphi 0, %s90
    %s107 = sphi 0, %s91
  $region4: #{net_forward.4} parent=0 // loop_header_branch
    %12 = sbr.rel (%p10) target = $region8
  $region5: #{net_forward.4} parent=0 // loop_body
    %s14 = ssub.s32 %s9, 1
    %s15 = ssub.s32 %s9, 2
    %s16 = sadd.s32 %s9, 1
    %s17 = ssub.s32 %s9, %s16
    %p18 = scmp.eq.s32.totalorder %s17, 0
    %s20 = sadd.s32 %s19, 1
    %s21 = scalar_select %p18, %s19, %s20
    %p24 = pneg %p18
    %p25 = scmp.eq.s32.totalorder %s9, 1
    %p26 = por %p24, %p25
    %p27 = scmp.ne.s32.totalorder %s19, %s22
    %p28 = scmp.eq.s32.totalorder %s9, 0
    %p29 = por %p27, %p28
    %p30 = scmp.ne.s32.totalorder %s19, %s22
    %p31 = scmp.eq.s32.totalorder %s14, 1
    %p32 = por %p30, %p31
    %p33 = scmp.ne.s32.totalorder %s22, %s23
    %p34 = scmp.eq.s32.totalorder %s14, 0
    %p35 = por %p33, %p34
    %p36 = scmp.ne.s32.totalorder %s22, %s23
    %p37 = scmp.eq.s32.totalorder %s15, 1
    %p38 = por %p36, %p37
    %p40 = scmp.ne.s32.totalorder %s23, %s39
    %p41 = scmp.eq.s32.totalorder %s15, 0
    %p42 = por %p40, %p41
    %s44 = sadd.s32 %s43, 1
    %p47 = scmp.eq.s32.totalorder %s9, 1
    %p48 = scmp.ne.s32.totalorder %s43, %s45
    %p49 = scmp.eq.s32.totalorder %s9, 0
    %p50 = por %p48, %p49
    %p51 = scmp.ne.s32.totalorder %s43, %s45
    %p52 = scmp.eq.s32.totalorder %s14, 1
    %p53 = por %p51, %p52
    %p54 = scmp.ne.s32.totalorder %s45, %s46
    %p55 = scmp.eq.s32.totalorder %s14, 0
    %p56 = por %p54, %p55
    %p57 = scmp.ne.s32.totalorder %s45, %s46
    %p58 = scmp.eq.s32.totalorder %s15, 1
    %p59 = por %p57, %p58
    %p61 = scmp.ne.s32.totalorder %s46, %s60
    %p62 = scmp.eq.s32.totalorder %s15, 0
    %p63 = por %p61, %p62
    %s65 = sadd.s32 %s64, 1
    %p68 = scmp.eq.s32.totalorder %s9, 1
    %p69 = scmp.ne.s32.totalorder %s64, %s66
    %p70 = scmp.eq.s32.totalorder %s9, 0
    %p71 = por %p69, %p70
    %p72 = scmp.ne.s32.totalorder %s64, %s66
    %p73 = scmp.eq.s32.totalorder %s14, 1
    %p74 = por %p72, %p73
    %p75 = scmp.ne.s32.totalorder %s66, %s67
    %p76 = scmp.eq.s32.totalorder %s14, 0
    %p77 = por %p75, %p76
    %p78 = scmp.ne.s32.totalorder %s66, %s67
    %p79 = scmp.eq.s32.totalorder %s15, 1
    %p80 = por %p78, %p79
    %p82 = scmp.ne.s32.totalorder %s67, %s81
    %p83 = scmp.eq.s32.totalorder %s15, 0
    %p84 = por %p82, %p83
    %s85 = ssub.s32 %s9, %s16
    %p86 = scmp.eq.s32.totalorder %s85, 0
    %s88 = sadd.s32 %s87, 1
    %s89 = scalar_select %p86, %s87, %s88
    %p92 = pneg %p86
    %p93 = scmp.eq.s32.totalorder %s9, 1
    %p94 = por %p92, %p93
    %p95 = scmp.ne.s32.totalorder %s87, %s90
    %p96 = scmp.eq.s32.totalorder %s9, 0
    %p97 = por %p95, %p96
    %p98 = scmp.ne.s32.totalorder %s87, %s90
    %p99 = scmp.eq.s32.totalorder %s14, 1
    %p100 = por %p98, %p99
    %p101 = scmp.ne.s32.totalorder %s90, %s91
    %p102 = scmp.eq.s32.totalorder %s14, 0
    %p103 = por %p101, %p102
    %p104 = scmp.ne.s32.totalorder %s90, %s91
    %p105 = scmp.eq.s32.totalorder %s15, 1
    %p106 = por %p104, %p105
    %p108 = scmp.ne.s32.totalorder %s91, %s107
    %p109 = scmp.eq.s32.totalorder %s15, 0
    %p110 = por %p108, %p109
    %p111 = scmp.le.s32.totalorder 1, %s9
    %p112 = scmp.lt.s32.totalorder %s9, 3
    %p113 = pnand %p111, %p112
    %p114 = pneg %p113
    // Predicated region
    $region9: #{net_forward.4} parent=5 // pred_check
      _
    $region10: #{net_forward.4} parent=5 // pred_check_branch
      %116 = sbr.rel (%p113) target = $region12
    $region11: #{net_forward.4} parent=5 // pred_region
      %s117 = ssub.s32 %s9, 1
      // Predicated region
      $region13: #{net_forward.4} parent=11 // pred_check
        %p118 = pneg %p56
      $region14: #{net_forward.4} parent=11 // pred_check_branch
        %120 = sbr.rel (%p118) target = $region16
      $region15: #{net_forward.4} parent=11 // pred_region
        _
      $region16: #{net_forward.4} parent=11 // pred_fallthru
        _
      // Predicated region
      $region17: #{net_forward.4} parent=11 // pred_check
        %p121 = pneg %p77
      $region18: #{net_forward.4} parent=11 // pred_check_branch
        %123 = sbr.rel (%p121) target = $region20
      $region19: #{net_forward.4} parent=11 // pred_region
        _
      $region20: #{net_forward.4} parent=11 // pred_fallthru
        _
    $region12: #{net_forward.4} parent=5 // pred_fallthru
      _
    %p124 = scmp.lt.s32.totalorder %s9, 2
    // Predicated region
    $region21: #{net_forward.4} parent=5 // pred_check
      %p125 = pneg %p124
    $region22: #{net_forward.4} parent=5 // pred_check_branch
      %127 = sbr.rel (%p125) target = $region24
    $region23: #{net_forward.4} parent=5 // pred_region
      // Predicated region
      $region25: #{net_forward.4} parent=23 // pred_check
        %p128 = pneg %p29
      $region26: #{net_forward.4} parent=23 // pred_check_branch
        %130 = sbr.rel (%p128) target = $region28
      $region27: #{net_forward.4} parent=23 // pred_region
        %p131 = scmp.lt.s32.totalorder %s9, 1
        %s132 = scalar_select %p131, %s9, 1
        %s133 = smul.addr %s132, 32
        %s134 = smul.addr %s133, 8
        %s135 = scalar_lea.vmem %s0, %s134
      $region28: #{net_forward.4} parent=23 // pred_fallthru
        _
    $region24: #{net_forward.4} parent=5 // pred_fallthru
      _
    %p136 = scmp.le.s32.totalorder 1, %s9
    %p137 = scmp.lt.s32.totalorder %s9, 3
    %p138 = pnand %p136, %p137
    %p139 = pneg %p138
    // Predicated region
    $region29: #{net_forward.4} parent=5 // pred_check
      _
    $region30: #{net_forward.4} parent=5 // pred_check_branch
      %141 = sbr.rel (%p138) target = $region32
    $region31: #{net_forward.4} parent=5 // pred_region
      %s142 = ssub.s32 %s9, 1
      %p143 = scmp.lt.s32.totalorder %s14, 1
      %s144 = scalar_select %p143, %s14, 1
      %s145 = smul.addr %s144, 32
      %s146 = smul.addr %s145, 8
      %s147 = scalar_lea.vmem %s0, %s146
      %p148 = pneg %p35
      %p149 = pneg %p32
      %p150 = pneg %p56
      %p151 = pneg %p53
      %p152 = pneg %p77
      %p153 = pneg %p74
      %p154 = pneg %p103
      %p155 = pneg %p100
      %p156 = scmp.lt.s32.totalorder %s14, 1
      %s157 = scalar_select %p156, %s14, 1
      %s158 = smul.addr %s157, 32
      %s159 = smul.addr %s158, 8
      %s160 = scalar_lea.vmem %s3, %s159
      %p161 = scmp.lt.s32.totalorder %s14, 1
      %s162 = scalar_select %p161, %s14, 1
      %s163 = smul.addr %s162, 32
      %s164 = smul.addr %s163, 8
      %s165 = scalar_lea.vmem %s0, %s164
      %p166 = scmp.lt.s32.totalorder %s14, 1
      %s167 = scalar_select %p166, %s14, 1
      %s168 = smul.addr %s167, 32
      %s169 = smul.addr %s168, 8
      %s170 = scalar_lea.vmem %s3, %s169
      %v171 = vld [vmem:[%s165] sm:$0xff]
      %v172 = vld [vmem:[%s165 + $0x8] sm:$0xff]
      %v173 = vld [vmem:[%s165 + $0x10] sm:$0xff]
      %v174 = vld [vmem:[%s165 + $0x18] sm:$0xff]
      %v175 = vld [vmem:[%s165 + $0x20] sm:$0xff]
      %v176 = vld [vmem:[%s165 + $0x28] sm:$0xff]
      %v177 = vld [vmem:[%s165 + $0x30] sm:$0xff]
      %v178 = vld [vmem:[%s165 + $0x38] sm:$0xff]
      %v179 = vld [vmem:[%s165 + $0x40] sm:$0xff]
      %v180 = vld [vmem:[%s165 + $0x48] sm:$0xff]
      %v181 = vld [vmem:[%s165 + $0x50] sm:$0xff]
      %v182 = vld [vmem:[%s165 + $0x58] sm:$0xff]
      %v183 = vld [vmem:[%s165 + $0x60] sm:$0xff]
      %v184 = vld [vmem:[%s165 + $0x68] sm:$0xff]
      %v185 = vld [vmem:[%s165 + $0x70] sm:$0xff]
      %v186 = vld [vmem:[%s165 + $0x78] sm:$0xff]
      %v187 = vld [vmem:[%s165 + $0x80] sm:$0xff]
      %v188 = vld [vmem:[%s165 + $0x88] sm:$0xff]
      %v189 = vld [vmem:[%s165 + $0x90] sm:$0xff]
      %v190 = vld [vmem:[%s165 + $0x98] sm:$0xff]
      %v191 = vld [vmem:[%s165 + $0xa0] sm:$0xff]
      %v192 = vld [vmem:[%s165 + $0xa8] sm:$0xff]
      %v193 = vld [vmem:[%s165 + $0xb0] sm:$0xff]
      %v194 = vld [vmem:[%s165 + $0xb8] sm:$0xff]
      %v195 = vld [vmem:[%s165 + $0xc0] sm:$0xff]
      %v196 = vld [vmem:[%s165 + $0xc8] sm:$0xff]
      %v197 = vld [vmem:[%s165 + $0xd0] sm:$0xff]
      %v198 = vld [vmem:[%s165 + $0xd8] sm:$0xff]
      %v199 = vld [vmem:[%s165 + $0xe0] sm:$0xff]
      %v200 = vld [vmem:[%s165 + $0xe8] sm:$0xff]
      %v201 = vld [vmem:[%s165 + $0xf0] sm:$0xff]
      %v202 = vld [vmem:[%s165 + $0xf8] sm:$0xff]
      %v203 = vld [vmem:[%s1] sm:$0x1]
      %205 = vset.pattern.permute.xlu0 0
      %206 = vperm.xlu0 %205, %v171
      %v207 = vpop.permute.xlu0 %206
      %210 = vset.pattern.permute.xlu0 0
      %211 = vperm.xlu0 %210, %v172
      %v212 = vpop.permute.xlu0 %211
      %215 = vset.pattern.permute.xlu0 0
      %216 = vperm.xlu0 %215, %v173
      %v217 = vpop.permute.xlu0 %216
      %220 = vset.pattern.permute.xlu0 0
      %221 = vperm.xlu0 %220, %v174
      %v222 = vpop.permute.xlu0 %221
      %225 = vset.pattern.permute.xlu0 0
      %226 = vperm.xlu0 %225, %v175
      %v227 = vpop.permute.xlu0 %226
      %230 = vset.pattern.permute.xlu0 0
      %231 = vperm.xlu0 %230, %v176
      %v232 = vpop.permute.xlu0 %231
      %235 = vset.pattern.permute.xlu0 0
      %236 = vperm.xlu0 %235, %v177
      %v237 = vpop.permute.xlu0 %236
      %240 = vset.pattern.permute.xlu0 0
      %241 = vperm.xlu0 %240, %v178
      %v242 = vpop.permute.xlu0 %241
      %245 = vset.pattern.permute.xlu0 0
      %246 = vperm.xlu0 %245, %v179
      %v247 = vpop.permute.xlu0 %246
      %250 = vset.pattern.permute.xlu0 0
      %251 = vperm.xlu0 %250, %v180
      %v252 = vpop.permute.xlu0 %251
      %255 = vset.pattern.permute.xlu0 0
      %256 = vperm.xlu0 %255, %v181
      %v257 = vpop.permute.xlu0 %256
      %260 = vset.pattern.permute.xlu0 0
      %261 = vperm.xlu0 %260, %v182
      %v262 = vpop.permute.xlu0 %261
      %265 = vset.pattern.permute.xlu0 0
      %266 = vperm.xlu0 %265, %v183
      %v267 = vpop.permute.xlu0 %266
      %270 = vset.pattern.permute.xlu0 0
      %271 = vperm.xlu0 %270, %v184
      %v272 = vpop.permute.xlu0 %271
      %275 = vset.pattern.permute.xlu0 0
      %276 = vperm.xlu0 %275, %v185
      %v277 = vpop.permute.xlu0 %276
      %280 = vset.pattern.permute.xlu0 0
      %281 = vperm.xlu0 %280, %v186
      %v282 = vpop.permute.xlu0 %281
      %285 = vset.pattern.permute.xlu0 0
      %286 = vperm.xlu0 %285, %v187
      %v287 = vpop.permute.xlu0 %286
      %290 = vset.pattern.permute.xlu0 0
      %291 = vperm.xlu0 %290, %v188
      %v292 = vpop.permute.xlu0 %291
      %295 = vset.pattern.permute.xlu0 0
      %296 = vperm.xlu0 %295, %v189
      %v297 = vpop.permute.xlu0 %296
      %300 = vset.pattern.permute.xlu0 0
      %301 = vperm.xlu0 %300, %v190
      %v302 = vpop.permute.xlu0 %301
      %305 = vset.pattern.permute.xlu0 0
      %306 = vperm.xlu0 %305, %v191
      %v307 = vpop.permute.xlu0 %306
      %310 = vset.pattern.permute.xlu0 0
      %311 = vperm.xlu0 %310, %v192
      %v312 = vpop.permute.xlu0 %311
      %315 = vset.pattern.permute.xlu0 0
      %316 = vperm.xlu0 %315, %v193
      %v317 = vpop.permute.xlu0 %316
      %320 = vset.pattern.permute.xlu0 0
      %321 = vperm.xlu0 %320, %v194
      %v322 = vpop.permute.xlu0 %321
      %325 = vset.pattern.permute.xlu0 0
      %326 = vperm.xlu0 %325, %v195
      %v327 = vpop.permute.xlu0 %326
      %330 = vset.pattern.permute.xlu0 0
      %331 = vperm.xlu0 %330, %v196
      %v332 = vpop.permute.xlu0 %331
      %335 = vset.pattern.permute.xlu0 0
      %336 = vperm.xlu0 %335, %v197
      %v337 = vpop.permute.xlu0 %336
      %340 = vset.pattern.permute.xlu0 0
      %341 = vperm.xlu0 %340, %v198
      %v342 = vpop.permute.xlu0 %341
      %345 = vset.pattern.permute.xlu0 0
      %346 = vperm.xlu0 %345, %v199
      %v347 = vpop.permute.xlu0 %346
      %350 = vset.pattern.permute.xlu0 0
      %351 = vperm.xlu0 %350, %v200
      %v352 = vpop.permute.xlu0 %351
      %355 = vset.pattern.permute.xlu0 0
      %356 = vperm.xlu0 %355, %v201
      %v357 = vpop.permute.xlu0 %356
      %360 = vset.pattern.permute.xlu0 0
      %361 = vperm.xlu0 %360, %v202
      %v362 = vpop.permute.xlu0 %361
      %v365 = vlaneseq
      %v366 = vshrl.u32 %v365, 7
      %v367 = vsub.s32 0, %v366
      %v368 = vrot.slane %v203, %v367
      %v370 = vmul.f32 %v207, %v368
      %v371 = vmul.f32 %v212, %v368
      %v372 = vmul.f32 %v217, %v368
      %v373 = vmul.f32 %v222, %v368
      %v374 = vmul.f32 %v227, %v368
      %v375 = vmul.f32 %v232, %v368
      %v376 = vmul.f32 %v237, %v368
      %v377 = vmul.f32 %v242, %v368
      %v378 = vmul.f32 %v247, %v368
      %v379 = vmul.f32 %v252, %v368
      %v380 = vmul.f32 %v257, %v368
      %v381 = vmul.f32 %v262, %v368
      %v382 = vmul.f32 %v267, %v368
      %v383 = vmul.f32 %v272, %v368
      %v384 = vmul.f32 %v277, %v368
      %v385 = vmul.f32 %v282, %v368
      %v386 = vmul.f32 %v287, %v368
      %v387 = vmul.f32 %v292, %v368
      %v388 = vmul.f32 %v297, %v368
      %v389 = vmul.f32 %v302, %v368
      %v390 = vmul.f32 %v307, %v368
      %v391 = vmul.f32 %v312, %v368
      %v392 = vmul.f32 %v317, %v368
      %v393 = vmul.f32 %v322, %v368
      %v394 = vmul.f32 %v327, %v368
      %v395 = vmul.f32 %v332, %v368
      %v396 = vmul.f32 %v337, %v368
      %v397 = vmul.f32 %v342, %v368
      %v398 = vmul.f32 %v347, %v368
      %v399 = vmul.f32 %v352, %v368
      %v400 = vmul.f32 %v357, %v368
      %v401 = vmul.f32 %v362, %v368
      %v402 = vld [vmem:[%s2] sm:$0x1]
      %v404 = vlaneseq
      %v405 = vshrl.u32 %v404, 7
      %v406 = vsub.s32 0, %v405
      %v407 = vrot.slane %v402, %v406
      %v409 = vadd.f32 %v370, %v407
      %v410 = vadd.f32 %v371, %v407
      %v411 = vadd.f32 %v372, %v407
      %v412 = vadd.f32 %v373, %v407
      %v413 = vadd.f32 %v374, %v407
      %v414 = vadd.f32 %v375, %v407
      %v415 = vadd.f32 %v376, %v407
      %v416 = vadd.f32 %v377, %v407
      %v417 = vadd.f32 %v378, %v407
      %v418 = vadd.f32 %v379, %v407
      %v419 = vadd.f32 %v380, %v407
      %v420 = vadd.f32 %v381, %v407
      %v421 = vadd.f32 %v382, %v407
      %v422 = vadd.f32 %v383, %v407
      %v423 = vadd.f32 %v384, %v407
      %v424 = vadd.f32 %v385, %v407
      %v425 = vadd.f32 %v386, %v407
      %v426 = vadd.f32 %v387, %v407
      %v427 = vadd.f32 %v388, %v407
      %v428 = vadd.f32 %v389, %v407
      %v429 = vadd.f32 %v390, %v407
      %v430 = vadd.f32 %v391, %v407
      %v431 = vadd.f32 %v392, %v407
      %v432 = vadd.f32 %v393, %v407
      %v433 = vadd.f32 %v394, %v407
      %v434 = vadd.f32 %v395, %v407
      %v435 = vadd.f32 %v396, %v407
      %v436 = vadd.f32 %v397, %v407
      %v437 = vadd.f32 %v398, %v407
      %v438 = vadd.f32 %v399, %v407
      %v439 = vadd.f32 %v400, %v407
      %v440 = vadd.f32 %v401, %v407
      %441 = vst [vmem:[%s170] sm:$0xff] %v409
      %442 = vst [vmem:[%s170 + $0x8] sm:$0xff] %v410
      %443 = vst [vmem:[%s170 + $0x10] sm:$0xff] %v411
      %444 = vst [vmem:[%s170 + $0x18] sm:$0xff] %v412
      %445 = vst [vmem:[%s170 + $0x20] sm:$0xff] %v413
      %446 = vst [vmem:[%s170 + $0x28] sm:$0xff] %v414
      %447 = vst [vmem:[%s170 + $0x30] sm:$0xff] %v415
      %448 = vst [vmem:[%s170 + $0x38] sm:$0xff] %v416
      %449 = vst [vmem:[%s170 + $0x40] sm:$0xff] %v417
      %450 = vst [vmem:[%s170 + $0x48] sm:$0xff] %v418
      %451 = vst [vmem:[%s170 + $0x50] sm:$0xff] %v419
      %452 = vst [vmem:[%s170 + $0x58] sm:$0xff] %v420
      %453 = vst [vmem:[%s170 + $0x60] sm:$0xff] %v421
      %454 = vst [vmem:[%s170 + $0x68] sm:$0xff] %v422
      %455 = vst [vmem:[%s170 + $0x70] sm:$0xff] %v423
      %456 = vst [vmem:[%s170 + $0x78] sm:$0xff] %v424
      %457 = vst [vmem:[%s170 + $0x80] sm:$0xff] %v425
      %458 = vst [vmem:[%s170 + $0x88] sm:$0xff] %v426
      %459 = vst [vmem:[%s170 + $0x90] sm:$0xff] %v427
      %460 = vst [vmem:[%s170 + $0x98] sm:$0xff] %v428
      %461 = vst [vmem:[%s170 + $0xa0] sm:$0xff] %v429
      %462 = vst [vmem:[%s170 + $0xa8] sm:$0xff] %v430
      %463 = vst [vmem:[%s170 + $0xb0] sm:$0xff] %v431
      %464 = vst [vmem:[%s170 + $0xb8] sm:$0xff] %v432
      %465 = vst [vmem:[%s170 + $0xc0] sm:$0xff] %v433
      %466 = vst [vmem:[%s170 + $0xc8] sm:$0xff] %v434
      %467 = vst [vmem:[%s170 + $0xd0] sm:$0xff] %v435
      %468 = vst [vmem:[%s170 + $0xd8] sm:$0xff] %v436
      %469 = vst [vmem:[%s170 + $0xe0] sm:$0xff] %v437
      %470 = vst [vmem:[%s170 + $0xe8] sm:$0xff] %v438
      %471 = vst [vmem:[%s170 + $0xf0] sm:$0xff] %v439
      %472 = vst [vmem:[%s170 + $0xf8] sm:$0xff] %v440
      %p473 = scmp.lt.s32.totalorder %s14, 1
      %s474 = scalar_select %p473, %s14, 1
      %s475 = smul.addr %s474, 32
      %s476 = smul.addr %s475, 8
      %s477 = scalar_lea.vmem %s3, %s476
      // Predicated region
      $region33: #{net_forward.4} parent=31 // pred_check
        %p478 = pneg %p100
      $region34: #{net_forward.4} parent=31 // pred_check_branch
        %480 = sbr.rel (%p478) target = $region36
      $region35: #{net_forward.4} parent=31 // pred_region
        _
      $region36: #{net_forward.4} parent=31 // pred_fallthru
        _
    $region32: #{net_forward.4} parent=5 // pred_fallthru
      _
    %p481 = scmp.le.s32.totalorder 2, %s9
    // Predicated region
    $region37: #{net_forward.4} parent=5 // pred_check
      %p482 = pneg %p481
    $region38: #{net_forward.4} parent=5 // pred_check_branch
      %484 = sbr.rel (%p482) target = $region40
    $region39: #{net_forward.4} parent=5 // pred_region
      %s485 = ssub.s32 %s9, 2
      // Predicated region
      $region41: #{net_forward.4} parent=39 // pred_check
        %p486 = pneg %p106
      $region42: #{net_forward.4} parent=39 // pred_check_branch
        %488 = sbr.rel (%p486) target = $region44
      $region43: #{net_forward.4} parent=39 // pred_region
        %p489 = scmp.lt.s32.totalorder %s15, 1
        %s490 = scalar_select %p489, %s15, 1
        %s491 = smul.addr %s490, 32
        %s492 = smul.addr %s491, 8
        %s493 = scalar_lea.vmem %s3, %s492
      $region44: #{net_forward.4} parent=39 // pred_fallthru
        _
    $region40: #{net_forward.4} parent=5 // pred_fallthru
      _
  $region6: #{net_forward.4} parent=0 // loop_footer
    %s13 = sadd.s32 1, %s9
  $region7: #{net_forward.4} parent=0 // loop_footer_branch
    %8 = sbr.rel target = $region3
  $region8: #{net_forward.4} parent=0 // loop_exit
    _

// kernel: net_forward.7
$region0: #{net_forward.7}
  #allocation0 [shape = 'u32[]', space=smem, size = 0x4, offset = 0x4, fixed_abs, tag = 'smem constant byte address 0x4 - core index']
  #allocation1 [shape = 'u32[144,128]{1,0:T(1,128)}', space=vmem, size = 0x12000, scoped, tag = 'internal scratch']
  %s0 = inlined_call_operand.vmem [shape: f32[2,16,16,128], index: 0, kind: input, shape index: {}]
  %s1 = inlined_call_operand.vmem [shape: f32[128,512], index: 1, kind: input, shape index: {}]
  %s2 = inlined_call_operand.vmem [shape: f32[1,512], index: 2, kind: input, shape index: {}]
  %s3 = inlined_call_operand.vmem [shape: f32[512,10], index: 3, kind: input, shape index: {}]
  %s4 = inlined_call_operand.vmem [shape: f32[1,10], index: 4, kind: input, shape index: {}]
  %s5 = inlined_call_operand.hbm [shape: f32[2,10], index: 5, kind: output, shape index: {}]
  %s6 = sld [smem:[#allocation0]]
  $region30: #{net_forward.7} parent=0
    _
  %s8 = ssub.s32 1, %s6
  %s9 = scalar_select 0, %s8, %s6
  $region1: #{net_forward.7} parent=0
    #allocation2 [shape = 'u8[1024]{0}', space=vmem, size = 0x400, scoped, tag = 'output window, operand 0, single buffered']
    #allocation3 [shape = 's32[1]{0}', space=sflag, size = 0x4, scoped, tag = 'scoped memory for net_forward.7']
    %10 = vsyncpa [#allocation3], 0
    // Predicated region
    $region2: #{net_forward.7} parent=1 // pred_check
      _
    $region3: #{net_forward.7} parent=1 // pred_check_branch
      %12 = sbr.rel (0) target = $region5
    $region4: #{net_forward.7} parent=1 // pred_region
      _
    $region5: #{net_forward.7} parent=1 // pred_fallthru
      _
    // Predicated region
    $region6: #{net_forward.7} parent=1 // pred_check
      _
    $region7: #{net_forward.7} parent=1 // pred_check_branch
      %14 = sbr.rel (0) target = $region9
    $region8: #{net_forward.7} parent=1 // pred_region
      _
    $region9: #{net_forward.7} parent=1 // pred_fallthru
      _
    // Predicated region
    $region10: #{net_forward.7} parent=1 // pred_check
      _
    $region11: #{net_forward.7} parent=1 // pred_check_branch
      %16 = sbr.rel (0) target = $region13
    $region12: #{net_forward.7} parent=1 // pred_region
      _
    $region13: #{net_forward.7} parent=1 // pred_fallthru
      _
    // Predicated region
    $region14: #{net_forward.7} parent=1 // pred_check
      _
    $region15: #{net_forward.7} parent=1 // pred_check_branch
      %18 = sbr.rel (0) target = $region17
    $region16: #{net_forward.7} parent=1 // pred_region
      _
    $region17: #{net_forward.7} parent=1 // pred_fallthru
      _
    // Predicated region
    $region18: #{net_forward.7} parent=1 // pred_check
      _
    $region19: #{net_forward.7} parent=1 // pred_check_branch
      %20 = sbr.rel (0) target = $region21
    $region20: #{net_forward.7} parent=1 // pred_region
      _
    $region21: #{net_forward.7} parent=1 // pred_fallthru
      _
    %v21 = vld [vmem:[%s0] sm:$0xff]
    %v22 = vld [vmem:[%s0 + $0x8] sm:$0xff]
    %v23 = vld [vmem:[%s0 + $0x10] sm:$0xff]
    %v24 = vld [vmem:[%s0 + $0x18] sm:$0xff]
    %v25 = vld [vmem:[%s0 + $0x20] sm:$0xff]
    %v26 = vld [vmem:[%s0 + $0x28] sm:$0xff]
    %v27 = vld [vmem:[%s0 + $0x30] sm:$0xff]
    %v28 = vld [vmem:[%s0 + $0x38] sm:$0xff]
    %v29 = vld [vmem:[%s0 + $0x40] sm:$0xff]
    %v30 = vld [vmem:[%s0 + $0x48] sm:$0xff]
    %v31 = vld [vmem:[%s0 + $0x50] sm:$0xff]
    %v32 = vld [vmem:[%s0 + $0x58] sm:$0xff]
    %v33 = vld [vmem:[%s0 + $0x60] sm:$0xff]
    %v34 = vld [vmem:[%s0 + $0x68] sm:$0xff]
    %v35 = vld [vmem:[%s0 + $0x70] sm:$0xff]
    %v36 = vld [vmem:[%s0 + $0x78] sm:$0xff]
    %v37 = vld [vmem:[%s0 + $0x80] sm:$0xff]
    %v38 = vld [vmem:[%s0 + $0x88] sm:$0xff]
    %v39 = vld [vmem:[%s0 + $0x90] sm:$0xff]
    %v40 = vld [vmem:[%s0 + $0x98] sm:$0xff]
    %v41 = vld [vmem:[%s0 + $0xa0] sm:$0xff]
    %v42 = vld [vmem:[%s0 + $0xa8] sm:$0xff]
    %v43 = vld [vmem:[%s0 + $0xb0] sm:$0xff]
    %v44 = vld [vmem:[%s0 + $0xb8] sm:$0xff]
    %v45 = vld [vmem:[%s0 + $0xc0] sm:$0xff]
    %v46 = vld [vmem:[%s0 + $0xc8] sm:$0xff]
    %v47 = vld [vmem:[%s0 + $0xd0] sm:$0xff]
    %v48 = vld [vmem:[%s0 + $0xd8] sm:$0xff]
    %v49 = vld [vmem:[%s0 + $0xe0] sm:$0xff]
    %v50 = vld [vmem:[%s0 + $0xe8] sm:$0xff]
    %v51 = vld [vmem:[%s0 + $0xf0] sm:$0xff]
    %v52 = vld [vmem:[%s0 + $0xf8] sm:$0xff]
    %v53 = vld [vmem:[%s0 + $0x100] sm:$0xff]
    %v54 = vld [vmem:[%s0 + $0x108] sm:$0xff]
    %v55 = vld [vmem:[%s0 + $0x110] sm:$0xff]
    %v56 = vld [vmem:[%s0 + $0x118] sm:$0xff]
    %v57 = vld [vmem:[%s0 + $0x120] sm:$0xff]
    %v58 = vld [vmem:[%s0 + $0x128] sm:$0xff]
    %v59 = vld [vmem:[%s0 + $0x130] sm:$0xff]
    %v60 = vld [vmem:[%s0 + $0x138] sm:$0xff]
    %v61 = vld [vmem:[%s0 + $0x140] sm:$0xff]
    %v62 = vld [vmem:[%s0 + $0x148] sm:$0xff]
    %v63 = vld [vmem:[%s0 + $0x150] sm:$0xff]
    %v64 = vld [vmem:[%s0 + $0x158] sm:$0xff]
    %v65 = vld [vmem:[%s0 + $0x160] sm:$0xff]
    %v66 = vld [vmem:[%s0 + $0x168] sm:$0xff]
    %v67 = vld [vmem:[%s0 + $0x170] sm:$0xff]
    %v68 = vld [vmem:[%s0 + $0x178] sm:$0xff]
    %v69 = vld [vmem:[%s0 + $0x180] sm:$0xff]
    %v70 = vld [vmem:[%s0 + $0x188] sm:$0xff]
    %v71 = vld [vmem:[%s0 + $0x190] sm:$0xff]
    %v72 = vld [vmem:[%s0 + $0x198] sm:$0xff]
    %v73 = vld [vmem:[%s0 + $0x1a0] sm:$0xff]
    %v74 = vld [vmem:[%s0 + $0x1a8] sm:$0xff]
    %v75 = vld [vmem:[%s0 + $0x1b0] sm:$0xff]
    %v76 = vld [vmem:[%s0 + $0x1b8] sm:$0xff]
    %v77 = vld [vmem:[%s0 + $0x1c0] sm:$0xff]
    %v78 = vld [vmem:[%s0 + $0x1c8] sm:$0xff]
    %v79 = vld [vmem:[%s0 + $0x1d0] sm:$0xff]
    %v80 = vld [vmem:[%s0 + $0x1d8] sm:$0xff]
    %v81 = vld [vmem:[%s0 + $0x1e0] sm:$0xff]
    %v82 = vld [vmem:[%s0 + $0x1e8] sm:$0xff]
    %v83 = vld [vmem:[%s0 + $0x1f0] sm:$0xff]
    %v84 = vld [vmem:[%s0 + $0x1f8] sm:$0xff]
    %v85 = vadd.f32 %v21, %v22
    %v86 = vadd.f32 %v85, %v23
    %v87 = vadd.f32 %v86, %v24
    %v88 = vadd.f32 %v87, %v25
    %v89 = vadd.f32 %v88, %v26
    %v90 = vadd.f32 %v89, %v27
    %v91 = vadd.f32 %v90, %v28
    %v92 = vadd.f32 %v91, %v29
    %v93 = vadd.f32 %v92, %v30
    %v94 = vadd.f32 %v93, %v31
    %v95 = vadd.f32 %v94, %v32
    %v96 = vadd.f32 %v95, %v33
    %v97 = vadd.f32 %v96, %v34
    %v98 = vadd.f32 %v97, %v35
    %v99 = vadd.f32 %v98, %v36
    %v100 = vadd.f32 %v99, %v37
    %v101 = vadd.f32 %v100, %v38
    %v102 = vadd.f32 %v101, %v39
    %v103 = vadd.f32 %v102, %v40
    %v104 = vadd.f32 %v103, %v41
    %v105 = vadd.f32 %v104, %v42
    %v106 = vadd.f32 %v105, %v43
    %v107 = vadd.f32 %v106, %v44
    %v108 = vadd.f32 %v107, %v45
    %v109 = vadd.f32 %v108, %v46
    %v110 = vadd.f32 %v109, %v47
    %v111 = vadd.f32 %v110, %v48
    %v112 = vadd.f32 %v111, %v49
    %v113 = vadd.f32 %v112, %v50
    %v114 = vadd.f32 %v113, %v51
    %v115 = vadd.f32 %v114, %v52
    %v116 = vrot.slane %v115, 4
    %v117 = vadd.f32 %v115, %v116
    %v118 = vrot.slane %v117, 2
    %v119 = vadd.f32 %v117, %v118
    %v120 = vrot.slane %v119, 1
    %v121 = vadd.f32 %v119, %v120
    %v122 = vadd.f32 %v53, %v54
    %v123 = vadd.f32 %v122, %v55
    %v124 = vadd.f32 %v123, %v56
    %v125 = vadd.f32 %v124, %v57
    %v126 = vadd.f32 %v125, %v58
    %v127 = vadd.f32 %v126, %v59
    %v128 = vadd.f32 %v127, %v60
    %v129 = vadd.f32 %v128, %v61
    %v130 = vadd.f32 %v129, %v62
    %v131 = vadd.f32 %v130, %v63
    %v132 = vadd.f32 %v131, %v64
    %v133 = vadd.f32 %v132, %v65
    %v134 = vadd.f32 %v133, %v66
    %v135 = vadd.f32 %v134, %v67
    %v136 = vadd.f32 %v135, %v68
    %v137 = vadd.f32 %v136, %v69
    %v138 = vadd.f32 %v137, %v70
    %v139 = vadd.f32 %v138, %v71
    %v140 = vadd.f32 %v139, %v72
    %v141 = vadd.f32 %v140, %v73
    %v142 = vadd.f32 %v141, %v74
    %v143 = vadd.f32 %v142, %v75
    %v144 = vadd.f32 %v143, %v76
    %v145 = vadd.f32 %v144, %v77
    %v146 = vadd.f32 %v145, %v78
    %v147 = vadd.f32 %v146, %v79
    %v148 = vadd.f32 %v147, %v80
    %v149 = vadd.f32 %v148, %v81
    %v150 = vadd.f32 %v149, %v82
    %v151 = vadd.f32 %v150, %v83
    %v152 = vadd.f32 %v151, %v84
    %v153 = vrot.slane %v152, 4
    %v154 = vadd.f32 %v152, %v153
    %v155 = vrot.slane %v154, 2
    %v156 = vadd.f32 %v154, %v155
    %v157 = vrot.slane %v156, 1
    %v158 = vadd.f32 %v156, %v157
    %v159 = vrcp.pop 256.0
    %v160 = vmul.f32 %v121, %v159
    %v161 = vmul.f32 %v158, %v159
    %v162 = vld [vmem:[%s1] sm:$0xff]
    %v163 = vld [vmem:[%s1 + $0x8] sm:$0xff]
    %v164 = vld [vmem:[%s1 + $0x10] sm:$0xff]
    %v165 = vld [vmem:[%s1 + $0x18] sm:$0xff]
    %v166 = vld [vmem:[%s1 + $0x20] sm:$0xff]
    %v167 = vld [vmem:[%s1 + $0x28] sm:$0xff]
    %v168 = vld [vmem:[%s1 + $0x30] sm:$0xff]
    %v169 = vld [vmem:[%s1 + $0x38] sm:$0xff]
    %v170 = vld [vmem:[%s1 + $0x40] sm:$0xff]
    %v171 = vld [vmem:[%s1 + $0x48] sm:$0xff]
    %v172 = vld [vmem:[%s1 + $0x50] sm:$0xff]
    %v173 = vld [vmem:[%s1 + $0x58] sm:$0xff]
    %v174 = vld [vmem:[%s1 + $0x60] sm:$0xff]
    %v175 = vld [vmem:[%s1 + $0x68] sm:$0xff]
    %v176 = vld [vmem:[%s1 + $0x70] sm:$0xff]
    %v177 = vld [vmem:[%s1 + $0x78] sm:$0xff]
    %v178 = vld [vmem:[%s1 + $0x80] sm:$0xff]
    %v179 = vld [vmem:[%s1 + $0x88] sm:$0xff]
    %v180 = vld [vmem:[%s1 + $0x90] sm:$0xff]
    %v181 = vld [vmem:[%s1 + $0x98] sm:$0xff]
    %v182 = vld [vmem:[%s1 + $0xa0] sm:$0xff]
    %v183 = vld [vmem:[%s1 + $0xa8] sm:$0xff]
    %v184 = vld [vmem:[%s1 + $0xb0] sm:$0xff]
    %v185 = vld [vmem:[%s1 + $0xb8] sm:$0xff]
    %v186 = vld [vmem:[%s1 + $0xc0] sm:$0xff]
    %v187 = vld [vmem:[%s1 + $0xc8] sm:$0xff]
    %v188 = vld [vmem:[%s1 + $0xd0] sm:$0xff]
    %v189 = vld [vmem:[%s1 + $0xd8] sm:$0xff]
    %v190 = vld [vmem:[%s1 + $0xe0] sm:$0xff]
    %v191 = vld [vmem:[%s1 + $0xe8] sm:$0xff]
    %v192 = vld [vmem:[%s1 + $0xf0] sm:$0xff]
    %v193 = vld [vmem:[%s1 + $0xf8] sm:$0xff]
    %v194 = vld [vmem:[%s1 + $0x100] sm:$0xff]
    %v195 = vld [vmem:[%s1 + $0x108] sm:$0xff]
    %v196 = vld [vmem:[%s1 + $0x110] sm:$0xff]
    %v197 = vld [vmem:[%s1 + $0x118] sm:$0xff]
    %v198 = vld [vmem:[%s1 + $0x120] sm:$0xff]
    %v199 = vld [vmem:[%s1 + $0x128] sm:$0xff]
    %v200 = vld [vmem:[%s1 + $0x130] sm:$0xff]
    %v201 = vld [vmem:[%s1 + $0x138] sm:$0xff]
    %v202 = vld [vmem:[%s1 + $0x140] sm:$0xff]
    %v203 = vld [vmem:[%s1 + $0x148] sm:$0xff]
    %v204 = vld [vmem:[%s1 + $0x150] sm:$0xff]
    %v205 = vld [vmem:[%s1 + $0x158] sm:$0xff]
    %v206 = vld [vmem:[%s1 + $0x160] sm:$0xff]
    %v207 = vld [vmem:[%s1 + $0x168] sm:$0xff]
    %v208 = vld [vmem:[%s1 + $0x170] sm:$0xff]
    %v209 = vld [vmem:[%s1 + $0x178] sm:$0xff]
    %v210 = vld [vmem:[%s1 + $0x180] sm:$0xff]
    %v211 = vld [vmem:[%s1 + $0x188] sm:$0xff]
    %v212 = vld [vmem:[%s1 + $0x190] sm:$0xff]
    %v213 = vld [vmem:[%s1 + $0x198] sm:$0xff]
    %v214 = vld [vmem:[%s1 + $0x1a0] sm:$0xff]
    %v215 = vld [vmem:[%s1 + $0x1a8] sm:$0xff]
    %v216 = vld [vmem:[%s1 + $0x1b0] sm:$0xff]
    %v217 = vld [vmem:[%s1 + $0x1b8] sm:$0xff]
    %v218 = vld [vmem:[%s1 + $0x1c0] sm:$0xff]
    %v219 = vld [vmem:[%s1 + $0x1c8] sm:$0xff]
    %v220 = vld [vmem:[%s1 + $0x1d0] sm:$0xff]
    %v221 = vld [vmem:[%s1 + $0x1d8] sm:$0xff]
    %v222 = vld [vmem:[%s1 + $0x1e0] sm:$0xff]
    %v223 = vld [vmem:[%s1 + $0x1e8] sm:$0xff]
    %v224 = vld [vmem:[%s1 + $0x1f0] sm:$0xff]
    %v225 = vld [vmem:[%s1 + $0x1f8] sm:$0xff]
    %v226 = vld [vmem:[%s2] sm:$0xf]
    %v228 = vlaneseq
    %v229 = vshrl.u32 %v228, 7
    %v230 = vsub.s32 0, %v229
    %v231 = vrot.slane %v226, %v230
    %v232 = vlaneseq
    %v233 = vshrl.u32 %v232, 7
    %v234 = vsub.s32 1, %v233
    %v235 = vrot.slane %v226, %v234
    %v236 = vlaneseq
    %v237 = vshrl.u32 %v236, 7
    %v238 = vsub.s32 2, %v237
    %v239 = vrot.slane %v226, %v238
    %v240 = vlaneseq
    %v241 = vshrl.u32 %v240, 7
    %v242 = vsub.s32 3, %v241
    %v243 = vrot.slane %v226, %v242
    %vm250 = vcmask 1041409
    %v251 = vsel %vm250, %v161, %v160
    %253 = vmatprep.subr.mxu0 %v223
    %254 = vmatpush1.msra.mxu0 %v222
    %255 = vmatprep.subr.mxu0 %v219
    %256 = vmatpush1.msra.mxu0 %v218
    %257 = vmatprep.subr.mxu0 %v215
    %258 = vmatpush1.msra.mxu0 %v214
    %259 = vmatprep.subr.mxu0 %v211
    %260 = vmatpush1.msra.mxu0 %v210
    %261 = vmatprep.subr.mxu0 %v207
    %262 = vmatpush1.msra.mxu0 %v206
    %263 = vmatprep.subr.mxu0 %v203
    %264 = vmatpush1.msra.mxu0 %v202
    %265 = vmatprep.subr.mxu0 %v199
    %266 = vmatpush1.msra.mxu0 %v198
    %267 = vmatprep.subr.mxu0 %v195
    %268 = vmatpush1.msra.mxu0 %v194
    %269 = vmatprep.subr.mxu0 %v191
    %270 = vmatpush1.msra.mxu0 %v190
    %271 = vmatprep.subr.mxu0 %v187
    %272 = vmatpush1.msra.mxu0 %v186
    %273 = vmatprep.subr.mxu0 %v183
    %274 = vmatpush1.msra.mxu0 %v182
    %275 = vmatprep.subr.mxu0 %v179
    %276 = vmatpush1.msra.mxu0 %v178
    %277 = vmatprep.subr.mxu0 %v175
    %278 = vmatpush1.msra.mxu0 %v174
    %279 = vmatprep.subr.mxu0 %v171
    %280 = vmatpush1.msra.mxu0 %v170
    %281 = vmatprep.subr.mxu0 %v167
    %282 = vmatpush1.msra.mxu0 %v166
    %283 = vmatprep.subr.mxu0 %v163
    %284 = vmatpush1.msra.mxu0 %v162
    %285 = vmatprep.subr.mxu0 0.0
    %286 = vmatpush2.msra.mxu0 0.0
    %287 = vmatprep.subr.mxu0 0.0
    %288 = vmatpush2.msra.mxu0 0.0
    %289 = vmatprep.subr.mxu0 0.0
    %290 = vmatpush2.msra.mxu0 0.0
    %291 = vmatprep.subr.mxu0 0.0
    %292 = vmatpush2.msra.mxu0 0.0
    %293 = vmatprep.subr.mxu0 0.0
    %294 = vmatpush2.msra.mxu0 0.0
    %295 = vmatprep.subr.mxu0 0.0
    %296 = vmatpush2.msra.mxu0 0.0
    %297 = vmatprep.subr.mxu0 0.0
    %298 = vmatpush2.msra.mxu0 0.0
    %299 = vmatprep.subr.mxu0 0.0
    %300 = vmatpush2.msra.mxu0 0.0
    %301 = vmatprep.subr.mxu0 0.0
    %302 = vmatpush2.msra.mxu0 0.0
    %303 = vmatprep.subr.mxu0 0.0
    %304 = vmatpush2.msra.mxu0 0.0
    %305 = vmatprep.subr.mxu0 0.0
    %306 = vmatpush2.msra.mxu0 0.0
    %307 = vmatprep.subr.mxu0 0.0
    %308 = vmatpush2.msra.mxu0 0.0
    %309 = vmatprep.subr.mxu0 0.0
    %310 = vmatpush2.msra.mxu0 0.0
    %311 = vmatprep.subr.mxu0 0.0
    %312 = vmatpush2.msra.mxu0 0.0
    %313 = vmatprep.subr.mxu0 0.0
    %314 = vmatpush2.msra.mxu0 0.0
    %315 = vmatprep.subr.mxu0 0.0
    %316 = vmatpush2.msra.mxu0 0.0
    %317 = vmatprep.mubr.f32.mxu0 0.0
    %318 = vmatmul.mubr.f32.gmra.mxu0 %v251
    %v319 = vpop.f32.mrf.mxu0
    %v320 = vadd.f32 %v231, %v319
    %v321 = vpop.f32.mrf.mxu0
    %v322 = vadd.f32 %v235, %v321
    %323 = vdwg.mxu0
    %324 = vmatprep.subr.mxu0 %v225
    %325 = vmatpush1.msra.mxu0 %v224
    %326 = vmatprep.subr.mxu0 %v221
    %327 = vmatpush1.msra.mxu0 %v220
    %328 = vmatprep.subr.mxu0 %v217
    %329 = vmatpush1.msra.mxu0 %v216
    %330 = vmatprep.subr.mxu0 %v213
    %331 = vmatpush1.msra.mxu0 %v212
    %332 = vmatprep.subr.mxu0 %v209
    %333 = vmatpush1.msra.mxu0 %v208
    %334 = vmatprep.subr.mxu0 %v205
    %335 = vmatpush1.msra.mxu0 %v204
    %336 = vmatprep.subr.mxu0 %v201
    %337 = vmatpush1.msra.mxu0 %v200
    %338 = vmatprep.subr.mxu0 %v197
    %339 = vmatpush1.msra.mxu0 %v196
    %340 = vmatprep.subr.mxu0 %v193
    %341 = vmatpush1.msra.mxu0 %v192
    %342 = vmatprep.subr.mxu0 %v189
    %343 = vmatpush1.msra.mxu0 %v188
    %344 = vmatprep.subr.mxu0 %v185
    %345 = vmatpush1.msra.mxu0 %v184
    %346 = vmatprep.subr.mxu0 %v181
    %347 = vmatpush1.msra.mxu0 %v180
    %348 = vmatprep.subr.mxu0 %v177
    %349 = vmatpush1.msra.mxu0 %v176
    %350 = vmatprep.subr.mxu0 %v173
    %351 = vmatpush1.msra.mxu0 %v172
    %352 = vmatprep.subr.mxu0 %v169
    %353 = vmatpush1.msra.mxu0 %v168
    %354 = vmatprep.subr.mxu0 %v165
    %355 = vmatpush1.msra.mxu0 %v164
    %356 = vmatprep.subr.mxu0 0.0
    %357 = vmatpush2.msra.mxu0 0.0
    %358 = vmatprep.subr.mxu0 0.0
    %359 = vmatpush2.msra.mxu0 0.0
    %360 = vmatprep.subr.mxu0 0.0
    %361 = vmatpush2.msra.mxu0 0.0
    %362 = vmatprep.subr.mxu0 0.0
    %363 = vmatpush2.msra.mxu0 0.0
    %364 = vmatprep.subr.mxu0 0.0
    %365 = vmatpush2.msra.mxu0 0.0
    %366 = vmatprep.subr.mxu0 0.0
    %367 = vmatpush2.msra.mxu0 0.0
    %368 = vmatprep.subr.mxu0 0.0
    %369 = vmatpush2.msra.mxu0 0.0
    %370 = vmatprep.subr.mxu0 0.0
    %371 = vmatpush2.msra.mxu0 0.0
    %372 = vmatprep.subr.mxu0 0.0
    %373 = vmatpush2.msra.mxu0 0.0
    %374 = vmatprep.subr.mxu0 0.0
    %375 = vmatpush2.msra.mxu0 0.0
    %376 = vmatprep.subr.mxu0 0.0
    %377 = vmatpush2.msra.mxu0 0.0
    %378 = vmatprep.subr.mxu0 0.0
    %379 = vmatpush2.msra.mxu0 0.0
    %380 = vmatprep.subr.mxu0 0.0
    %381 = vmatpush2.msra.mxu0 0.0
    %382 = vmatprep.subr.mxu0 0.0
    %383 = vmatpush2.msra.mxu0 0.0
    %384 = vmatprep.subr.mxu0 0.0
    %385 = vmatpush2.msra.mxu0 0.0
    %386 = vmatprep.subr.mxu0 0.0
    %387 = vmatpush2.msra.mxu0 0.0
    %388 = vmatprep.mubr.f32.mxu0 0.0
    %389 = vmatmul.mubr.f32.gmra.mxu0 %v251
    %v390 = vpop.f32.mrf.mxu0
    %v391 = vadd.f32 %v239, %v390
    %v392 = vpop.f32.mrf.mxu0
    %v393 = vadd.f32 %v243, %v392
    %394 = vdwg.mxu0
    %v395 = vmul.f32 %v320, 0.5
    %v396 = vmul.f32 %v322, 0.5
    %v397 = vmul.f32 %v391, 0.5
    %v398 = vmul.f32 %v393, 0.5
    %v399 = vrcp.pop 1.4142135
    %v400 = vmul.f32 %v320, %v399
    %v401 = vmul.f32 %v322, %v399
    %v402 = vmul.f32 %v391, %v399
    %v403 = vmul.f32 %v393, %v399
    %v404 = verf.f32.pop %v400
    %v405 = verf.f32.pop %v401
    %v406 = verf.f32.pop %v402
    %v407 = verf.f32.pop %v403
    %v408 = vadd.f32 %v404, 1.0
    %v409 = vadd.f32 %v405, 1.0
    %v410 = vadd.f32 %v406, 1.0
    %v411 = vadd.f32 %v407, 1.0
    %v412 = vmul.f32 %v395, %v408
    %v413 = vmul.f32 %v396, %v409
    %v414 = vmul.f32 %v397, %v410
    %v415 = vmul.f32 %v398, %v411
    %v416 = vld [vmem:[%s3] sm:$0xff]
    %v417 = vld [vmem:[%s3 + $0x8] sm:$0xff]
    %v418 = vld [vmem:[%s3 + $0x10] sm:$0xff]
    %v419 = vld [vmem:[%s3 + $0x18] sm:$0xff]
    %v420 = vld [vmem:[%s3 + $0x20] sm:$0xff]
    %v421 = vld [vmem:[%s3 + $0x28] sm:$0xff]
    %v422 = vld [vmem:[%s3 + $0x30] sm:$0xff]
    %v423 = vld [vmem:[%s3 + $0x38] sm:$0xff]
    %v424 = vld [vmem:[%s3 + $0x40] sm:$0xff]
    %v425 = vld [vmem:[%s3 + $0x48] sm:$0xff]
    %v426 = vld [vmem:[%s3 + $0x50] sm:$0xff]
    %v427 = vld [vmem:[%s3 + $0x58] sm:$0xff]
    %v428 = vld [vmem:[%s3 + $0x60] sm:$0xff]
    %v429 = vld [vmem:[%s3 + $0x68] sm:$0xff]
    %v430 = vld [vmem:[%s3 + $0x70] sm:$0xff]
    %v431 = vld [vmem:[%s3 + $0x78] sm:$0xff]
    %v432 = vld [vmem:[%s3 + $0x80] sm:$0xff]
    %v433 = vld [vmem:[%s3 + $0x88] sm:$0xff]
    %v434 = vld [vmem:[%s3 + $0x90] sm:$0xff]
    %v435 = vld [vmem:[%s3 + $0x98] sm:$0xff]
    %v436 = vld [vmem:[%s3 + $0xa0] sm:$0xff]
    %v437 = vld [vmem:[%s3 + $0xa8] sm:$0xff]
    %v438 = vld [vmem:[%s3 + $0xb0] sm:$0xff]
    %v439 = vld [vmem:[%s3 + $0xb8] sm:$0xff]
    %v440 = vld [vmem:[%s3 + $0xc0] sm:$0xff]
    %v441 = vld [vmem:[%s3 + $0xc8] sm:$0xff]
    %v442 = vld [vmem:[%s3 + $0xd0] sm:$0xff]
    %v443 = vld [vmem:[%s3 + $0xd8] sm:$0xff]
    %v444 = vld [vmem:[%s3 + $0xe0] sm:$0xff]
    %v445 = vld [vmem:[%s3 + $0xe8] sm:$0xff]
    %v446 = vld [vmem:[%s3 + $0xf0] sm:$0xff]
    %v447 = vld [vmem:[%s3 + $0xf8] sm:$0xff]
    %v448 = vld [vmem:[%s3 + $0x100] sm:$0xff]
    %v449 = vld [vmem:[%s3 + $0x108] sm:$0xff]
    %v450 = vld [vmem:[%s3 + $0x110] sm:$0xff]
    %v451 = vld [vmem:[%s3 + $0x118] sm:$0xff]
    %v452 = vld [vmem:[%s3 + $0x120] sm:$0xff]
    %v453 = vld [vmem:[%s3 + $0x128] sm:$0xff]
    %v454 = vld [vmem:[%s3 + $0x130] sm:$0xff]
    %v455 = vld [vmem:[%s3 + $0x138] sm:$0xff]
    %v456 = vld [vmem:[%s3 + $0x140] sm:$0xff]
    %v457 = vld [vmem:[%s3 + $0x148] sm:$0xff]
    %v458 = vld [vmem:[%s3 + $0x150] sm:$0xff]
    %v459 = vld [vmem:[%s3 + $0x158] sm:$0xff]
    %v460 = vld [vmem:[%s3 + $0x160] sm:$0xff]
    %v461 = vld [vmem:[%s3 + $0x168] sm:$0xff]
    %v462 = vld [vmem:[%s3 + $0x170] sm:$0xff]
    %v463 = vld [vmem:[%s3 + $0x178] sm:$0xff]
    %v464 = vld [vmem:[%s3 + $0x180] sm:$0xff]
    %v465 = vld [vmem:[%s3 + $0x188] sm:$0xff]
    %v466 = vld [vmem:[%s3 + $0x190] sm:$0xff]
    %v467 = vld [vmem:[%s3 + $0x198] sm:$0xff]
    %v468 = vld [vmem:[%s3 + $0x1a0] sm:$0xff]
    %v469 = vld [vmem:[%s3 + $0x1a8] sm:$0xff]
    %v470 = vld [vmem:[%s3 + $0x1b0] sm:$0xff]
    %v471 = vld [vmem:[%s3 + $0x1b8] sm:$0xff]
    %v472 = vld [vmem:[%s3 + $0x1c0] sm:$0xff]
    %v473 = vld [vmem:[%s3 + $0x1c8] sm:$0xff]
    %v474 = vld [vmem:[%s3 + $0x1d0] sm:$0xff]
    %v475 = vld [vmem:[%s3 + $0x1d8] sm:$0xff]
    %v476 = vld [vmem:[%s3 + $0x1e0] sm:$0xff]
    %v477 = vld [vmem:[%s3 + $0x1e8] sm:$0xff]
    %v478 = vld [vmem:[%s3 + $0x1f0] sm:$0xff]
    %v479 = vld [vmem:[%s3 + $0x1f8] sm:$0xff]
    %v480 = vld [vmem:[%s4] sm:$0x1]
    %v482 = vlaneseq
    %v483 = vshrl.u32 %v482, 7
    %v484 = vsub.s32 0, %v483
    %v485 = vrot.slane %v480, %v484
    %487 = vmatprep.subr.mxu0 0.0
    %488 = vmatpush1.msra.mxu0 %v431
    %489 = vmatprep.subr.mxu0 0.0
    %490 = vmatpush1.msra.mxu0 %v430
    %491 = vmatprep.subr.mxu0 0.0
    %492 = vmatpush1.msra.mxu0 %v429
    %493 = vmatprep.subr.mxu0 0.0
    %494 = vmatpush1.msra.mxu0 %v428
    %495 = vmatprep.subr.mxu0 0.0
    %496 = vmatpush1.msra.mxu0 %v427
    %497 = vmatprep.subr.mxu0 0.0
    %498 = vmatpush1.msra.mxu0 %v426
    %499 = vmatprep.subr.mxu0 0.0
    %500 = vmatpush1.msra.mxu0 %v425
    %501 = vmatprep.subr.mxu0 0.0
    %502 = vmatpush1.msra.mxu0 %v424
    %503 = vmatprep.subr.mxu0 0.0
    %504 = vmatpush1.msra.mxu0 %v423
    %505 = vmatprep.subr.mxu0 0.0
    %506 = vmatpush1.msra.mxu0 %v422
    %507 = vmatprep.subr.mxu0 0.0
    %508 = vmatpush1.msra.mxu0 %v421
    %509 = vmatprep.subr.mxu0 0.0
    %510 = vmatpush1.msra.mxu0 %v420
    %511 = vmatprep.subr.mxu0 0.0
    %512 = vmatpush1.msra.mxu0 %v419
    %513 = vmatprep.subr.mxu0 0.0
    %514 = vmatpush1.msra.mxu0 %v418
    %515 = vmatprep.subr.mxu0 0.0
    %516 = vmatpush1.msra.mxu0 %v417
    %517 = vmatprep.subr.mxu0 0.0
    %518 = vmatpush1.msra.mxu0 %v416
    %519 = vmatprep.subr.mxu0 0.0
    %520 = vmatpush2.msra.mxu0 %v447
    %521 = vmatprep.subr.mxu0 0.0
    %522 = vmatpush2.msra.mxu0 %v446
    %523 = vmatprep.subr.mxu0 0.0
    %524 = vmatpush2.msra.mxu0 %v445
    %525 = vmatprep.subr.mxu0 0.0
    %526 = vmatpush2.msra.mxu0 %v444
    %527 = vmatprep.subr.mxu0 0.0
    %528 = vmatpush2.msra.mxu0 %v443
    %529 = vmatprep.subr.mxu0 0.0
    %530 = vmatpush2.msra.mxu0 %v442
    %531 = vmatprep.subr.mxu0 0.0
    %532 = vmatpush2.msra.mxu0 %v441
    %533 = vmatprep.subr.mxu0 0.0
    %534 = vmatpush2.msra.mxu0 %v440
    %535 = vmatprep.subr.mxu0 0.0
    %536 = vmatpush2.msra.mxu0 %v439
    %537 = vmatprep.subr.mxu0 0.0
    %538 = vmatpush2.msra.mxu0 %v438
    %539 = vmatprep.subr.mxu0 0.0
    %540 = vmatpush2.msra.mxu0 %v437
    %541 = vmatprep.subr.mxu0 0.0
    %542 = vmatpush2.msra.mxu0 %v436
    %543 = vmatprep.subr.mxu0 0.0
    %544 = vmatpush2.msra.mxu0 %v435
    %545 = vmatprep.subr.mxu0 0.0
    %546 = vmatpush2.msra.mxu0 %v434
    %547 = vmatprep.subr.mxu0 0.0
    %548 = vmatpush2.msra.mxu0 %v433
    %549 = vmatprep.subr.mxu0 0.0
    %550 = vmatpush2.msra.mxu0 %v432
    %551 = vmatprep.mubr.f32.mxu0 %v413
    %552 = vmatmul.mubr.f32.gmra.mxu0 %v412
    %v553 = vpop.f32.mrf.mxu0
    %v554 = vadd.f32 %v485, %v553
    %v555 = vpop.f32.mrf.mxu0
    %556 = vdwg.mxu0
    %557 = vmatprep.subr.mxu0 0.0
    %558 = vmatpush1.msra.mxu0 %v463
    %559 = vmatprep.subr.mxu0 0.0
    %560 = vmatpush1.msra.mxu0 %v462
    %561 = vmatprep.subr.mxu0 0.0
    %562 = vmatpush1.msra.mxu0 %v461
    %563 = vmatprep.subr.mxu0 0.0
    %564 = vmatpush1.msra.mxu0 %v460
    %565 = vmatprep.subr.mxu0 0.0
    %566 = vmatpush1.msra.mxu0 %v459
    %567 = vmatprep.subr.mxu0 0.0
    %568 = vmatpush1.msra.mxu0 %v458
    %569 = vmatprep.subr.mxu0 0.0
    %570 = vmatpush1.msra.mxu0 %v457
    %571 = vmatprep.subr.mxu0 0.0
    %572 = vmatpush1.msra.mxu0 %v456
    %573 = vmatprep.subr.mxu0 0.0
    %574 = vmatpush1.msra.mxu0 %v455
    %575 = vmatprep.subr.mxu0 0.0
    %576 = vmatpush1.msra.mxu0 %v454
    %577 = vmatprep.subr.mxu0 0.0
    %578 = vmatpush1.msra.mxu0 %v453
    %579 = vmatprep.subr.mxu0 0.0
    %580 = vmatpush1.msra.mxu0 %v452
    %581 = vmatprep.subr.mxu0 0.0
    %582 = vmatpush1.msra.mxu0 %v451
    %583 = vmatprep.subr.mxu0 0.0
    %584 = vmatpush1.msra.mxu0 %v450
    %585 = vmatprep.subr.mxu0 0.0
    %586 = vmatpush1.msra.mxu0 %v449
    %587 = vmatprep.subr.mxu0 0.0
    %588 = vmatpush1.msra.mxu0 %v448
    %589 = vmatprep.subr.mxu0 0.0
    %590 = vmatpush2.msra.mxu0 %v479
    %591 = vmatprep.subr.mxu0 0.0
    %592 = vmatpush2.msra.mxu0 %v478
    %593 = vmatprep.subr.mxu0 0.0
    %594 = vmatpush2.msra.mxu0 %v477
    %595 = vmatprep.subr.mxu0 0.0
    %596 = vmatpush2.msra.mxu0 %v476
    %597 = vmatprep.subr.mxu0 0.0
    %598 = vmatpush2.msra.mxu0 %v475
    %599 = vmatprep.subr.mxu0 0.0
    %600 = vmatpush2.msra.mxu0 %v474
    %601 = vmatprep.subr.mxu0 0.0
    %602 = vmatpush2.msra.mxu0 %v473
    %603 = vmatprep.subr.mxu0 0.0
    %604 = vmatpush2.msra.mxu0 %v472
    %605 = vmatprep.subr.mxu0 0.0
    %606 = vmatpush2.msra.mxu0 %v471
    %607 = vmatprep.subr.mxu0 0.0
    %608 = vmatpush2.msra.mxu0 %v470
    %609 = vmatprep.subr.mxu0 0.0
    %610 = vmatpush2.msra.mxu0 %v469
    %611 = vmatprep.subr.mxu0 0.0
    %612 = vmatpush2.msra.mxu0 %v468
    %613 = vmatprep.subr.mxu0 0.0
    %614 = vmatpush2.msra.mxu0 %v467
    %615 = vmatprep.subr.mxu0 0.0
    %616 = vmatpush2.msra.mxu0 %v466
    %617 = vmatprep.subr.mxu0 0.0
    %618 = vmatpush2.msra.mxu0 %v465
    %619 = vmatprep.subr.mxu0 0.0
    %620 = vmatpush2.msra.mxu0 %v464
    %621 = vmatprep.mubr.f32.mxu0 %v415
    %622 = vmatmul.mubr.f32.gmra.mxu0 %v414
    %v623 = vpop.f32.mrf.mxu0
    %v624 = vadd.f32 %v554, %v623
    %v625 = vpop.f32.mrf.mxu0
    %626 = vdwg.mxu0
    %vm627 = vcmask 74752
    %628 = vst.msk [vmem:[#allocation2] sm:$0x3] %vm627, %v624
    // Predicated region
    $region22: #{net_forward.7} parent=1 // pred_check
      _
    $region23: #{net_forward.7} parent=1 // pred_check_branch
      %630 = sbr.rel (0) target = $region25
    $region24: #{net_forward.7} parent=1 // pred_region
      %s632 = ssub.s32 32, 32
      %633 = vsyncadd [#allocation3], %s632
      %s635 = sshll.u32 [#allocation2], 4
      %s636 = int_to_ptr.vmem [resolvable:$true] %s635
      %638 = dma.vmem_to_hbm [thread:$0]  %s636, 32, %s5, [#allocation3]
    $region25: #{net_forward.7} parent=1 // pred_fallthru
      _
    // Predicated region
    $region26: #{net_forward.7} parent=1 // pred_check
      _
    $region27: #{net_forward.7} parent=1 // pred_check_branch
      %640 = sbr.rel (0) target = $region29
    $region28: #{net_forward.7} parent=1 // pred_region
      %641 = dma.done [#allocation3], 32
    $region29: #{net_forward.7} parent=1 // pred_fallthru
      _
    %642 = vsyncpa [#allocation3], 1

// kernel: net_forward.5
$region0: #{net_forward.5}
  #allocation0 [shape = 'u32[]', space=smem, size = 0x4, offset = 0x4, fixed_abs, tag = 'smem constant byte address 0x4 - core index']
  #allocation1 [shape = 'u32[144,128]{1,0:T(1,128)}', space=vmem, size = 0x12000, scoped, tag = 'internal scratch']
  #allocation2 [shape = 'f32[22,32,128]{2,1,0:T(8,128)}', space=vmem, size = 0x58000, scoped, tag = 'scratch operand']
  %s0 = inlined_call_operand.vmem [shape: f32[2,16,16,128], index: 0, kind: input, shape index: {}]
  %s1 = inlined_call_operand.vmem [shape: f32[49,128], index: 1, kind: input, shape index: {}]
  %s2 = inlined_call_operand.vmem [shape: f32[1,128], index: 2, kind: input, shape index: {}]
  %s3 = inlined_call_operand.vmem [shape: f32[1,128], index: 3, kind: input, shape index: {}]
  %s4 = inlined_call_operand.vmem [shape: f32[1,128], index: 4, kind: input, shape index: {}]
  %s5 = inlined_call_operand.vmem [shape: f32[128,512], index: 5, kind: input, shape index: {}]
  %s6 = inlined_call_operand.vmem [shape: f32[1,512], index: 6, kind: input, shape index: {}]
  %s7 = inlined_call_operand.vmem [shape: f32[512,128], index: 7, kind: input, shape index: {}]
  %s8 = inlined_call_operand.vmem [shape: f32[1,128], index: 8, kind: input, shape index: {}]
  %s9 = inlined_call_operand.vmem [shape: f32[2,16,16,128], index: 9, kind: output, shape index: {}]
  %s10 = sld [smem:[#allocation0]]
  $region69: #{net_forward.5} parent=0
    _
  %s12 = ssub.s32 1, %s10
  %s13 = scalar_select 0, %s12, %s10
  loop: start=0, step=1, limit=4
  $region2: #{net_forward.5} parent=0 // loop_pre_header
    _
  $region3: #{net_forward.5} parent=0 // loop_header
    %s15 = sphi 0, %s19
    %p16 = scmp.ge.s32.totalorder %s15, 4
    %s25 = sphi 0, %s27
    %s28 = sphi 0, %s25
    %s29 = sphi 0, %s28
    %s45 = sphi 0, %s29
    %s49 = sphi 0, %s49
    %s51 = sphi 0, %s49
    %s52 = sphi 0, %s51
    %s66 = sphi 0, %s52
    %s70 = sphi 0, %s70
    %s72 = sphi 0, %s70
    %s73 = sphi 0, %s72
    %s87 = sphi 0, %s73
    %s91 = sphi 0, %s91
    %s93 = sphi 0, %s91
    %s94 = sphi 0, %s93
    %s108 = sphi 0, %s94
    %s112 = sphi 0, %s112
    %s114 = sphi 0, %s112
    %s115 = sphi 0, %s114
    %s129 = sphi 0, %s115
    %s133 = sphi 0, %s133
    %s135 = sphi 0, %s133
    %s136 = sphi 0, %s135
    %s150 = sphi 0, %s136
    %s154 = sphi 0, %s154
    %s156 = sphi 0, %s154
    %s157 = sphi 0, %s156
    %s171 = sphi 0, %s157
    %s175 = sphi 0, %s175
    %s177 = sphi 0, %s175
    %s178 = sphi 0, %s177
    %s192 = sphi 0, %s178
    %s196 = sphi 0, %s196
    %s198 = sphi 0, %s196
    %s199 = sphi 0, %s198
    %s213 = sphi 0, %s199
    %s219 = sphi 0, %s221
    %s222 = sphi 0, %s219
    %s223 = sphi 0, %s222
    %s239 = sphi 0, %s223
  $region4: #{net_forward.5} parent=0 // loop_header_branch
    %18 = sbr.rel (%p16) target = $region8
  $region5: #{net_forward.5} parent=0 // loop_body
    %s20 = ssub.s32 %s15, 1
    %s21 = ssub.s32 %s15, 2
    %s22 = sadd.s32 %s15, 1
    %s23 = ssub.s32 %s15, %s22
    %p24 = scmp.eq.s32.totalorder %s23, 0
    %s26 = sadd.s32 %s25, 1
    %s27 = scalar_select %p24, %s25, %s26
    %p30 = pneg %p24
    %p31 = scmp.eq.s32.totalorder %s15, 1
    %p32 = por %p30, %p31
    %p33 = scmp.ne.s32.totalorder %s25, %s28
    %p34 = scmp.eq.s32.totalorder %s15, 0
    %p35 = por %p33, %p34
    %p36 = scmp.ne.s32.totalorder %s25, %s28
    %p37 = scmp.eq.s32.totalorder %s20, 1
    %p38 = por %p36, %p37
    %p39 = scmp.ne.s32.totalorder %s28, %s29
    %p40 = scmp.eq.s32.totalorder %s20, 0
    %p41 = por %p39, %p40
    %p42 = scmp.ne.s32.totalorder %s28, %s29
    %p43 = scmp.eq.s32.totalorder %s21, 1
    %p44 = por %p42, %p43
    %p46 = scmp.ne.s32.totalorder %s29, %s45
    %p47 = scmp.eq.s32.totalorder %s21, 0
    %p48 = por %p46, %p47
    %s50 = sadd.s32 %s49, 1
    %p53 = scmp.eq.s32.totalorder %s15, 1
    %p54 = scmp.ne.s32.totalorder %s49, %s51
    %p55 = scmp.eq.s32.totalorder %s15, 0
    %p56 = por %p54, %p55
    %p57 = scmp.ne.s32.totalorder %s49, %s51
    %p58 = scmp.eq.s32.totalorder %s20, 1
    %p59 = por %p57, %p58
    %p60 = scmp.ne.s32.totalorder %s51, %s52
    %p61 = scmp.eq.s32.totalorder %s20, 0
    %p62 = por %p60, %p61
    %p63 = scmp.ne.s32.totalorder %s51, %s52
    %p64 = scmp.eq.s32.totalorder %s21, 1
    %p65 = por %p63, %p64
    %p67 = scmp.ne.s32.totalorder %s52, %s66
    %p68 = scmp.eq.s32.totalorder %s21, 0
    %p69 = por %p67, %p68
    %s71 = sadd.s32 %s70, 1
    %p74 = scmp.eq.s32.totalorder %s15, 1
    %p75 = scmp.ne.s32.totalorder %s70, %s72
    %p76 = scmp.eq.s32.totalorder %s15, 0
    %p77 = por %p75, %p76
    %p78 = scmp.ne.s32.totalorder %s70, %s72
    %p79 = scmp.eq.s32.totalorder %s20, 1
    %p80 = por %p78, %p79
    %p81 = scmp.ne.s32.totalorder %s72, %s73
    %p82 = scmp.eq.s32.totalorder %s20, 0
    %p83 = por %p81, %p82
    %p84 = scmp.ne.s32.totalorder %s72, %s73
    %p85 = scmp.eq.s32.totalorder %s21, 1
    %p86 = por %p84, %p85
    %p88 = scmp.ne.s32.totalorder %s73, %s87
    %p89 = scmp.eq.s32.totalorder %s21, 0
    %p90 = por %p88, %p89
    %s92 = sadd.s32 %s91, 1
    %p95 = scmp.eq.s32.totalorder %s15, 1
    %p96 = scmp.ne.s32.totalorder %s91, %s93
    %p97 = scmp.eq.s32.totalorder %s15, 0
    %p98 = por %p96, %p97
    %p99 = scmp.ne.s32.totalorder %s91, %s93
    %p100 = scmp.eq.s32.totalorder %s20, 1
    %p101 = por %p99, %p100
    %p102 = scmp.ne.s32.totalorder %s93, %s94
    %p103 = scmp.eq.s32.totalorder %s20, 0
    %p104 = por %p102, %p103
    %p105 = scmp.ne.s32.totalorder %s93, %s94
    %p106 = scmp.eq.s32.totalorder %s21, 1
    %p107 = por %p105, %p106
    %p109 = scmp.ne.s32.totalorder %s94, %s108
    %p110 = scmp.eq.s32.totalorder %s21, 0
    %p111 = por %p109, %p110
    %s113 = sadd.s32 %s112, 1
    %p116 = scmp.eq.s32.totalorder %s15, 1
    %p117 = scmp.ne.s32.totalorder %s112, %s114
    %p118 = scmp.eq.s32.totalorder %s15, 0
    %p119 = por %p117, %p118
    %p120 = scmp.ne.s32.totalorder %s112, %s114
    %p121 = scmp.eq.s32.totalorder %s20, 1
    %p122 = por %p120, %p121
    %p123 = scmp.ne.s32.totalorder %s114, %s115
    %p124 = scmp.eq.s32.totalorder %s20, 0
    %p125 = por %p123, %p124
    %p126 = scmp.ne.s32.totalorder %s114, %s115
    %p127 = scmp.eq.s32.totalorder %s21, 1
    %p128 = por %p126, %p127
    %p130 = scmp.ne.s32.totalorder %s115, %s129
    %p131 = scmp.eq.s32.totalorder %s21, 0
    %p132 = por %p130, %p131
    %s134 = sadd.s32 %s133, 1
    %p137 = scmp.eq.s32.totalorder %s15, 1
    %p138 = scmp.ne.s32.totalorder %s133, %s135
    %p139 = scmp.eq.s32.totalorder %s15, 0
    %p140 = por %p138, %p139
    %p141 = scmp.ne.s32.totalorder %s133, %s135
    %p142 = scmp.eq.s32.totalorder %s20, 1
    %p143 = por %p141, %p142
    %p144 = scmp.ne.s32.totalorder %s135, %s136
    %p145 = scmp.eq.s32.totalorder %s20, 0
    %p146 = por %p144, %p145
    %p147 = scmp.ne.s32.totalorder %s135, %s136
    %p148 = scmp.eq.s32.totalorder %s21, 1
    %p149 = por %p147, %p148
    %p151 = scmp.ne.s32.totalorder %s136, %s150
    %p152 = scmp.eq.s32.totalorder %s21, 0
    %p153 = por %p151, %p152
    %s155 = sadd.s32 %s154, 1
    %p158 = scmp.eq.s32.totalorder %s15, 1
    %p159 = scmp.ne.s32.totalorder %s154, %s156
    %p160 = scmp.eq.s32.totalorder %s15, 0
    %p161 = por %p159, %p160
    %p162 = scmp.ne.s32.totalorder %s154, %s156
    %p163 = scmp.eq.s32.totalorder %s20, 1
    %p164 = por %p162, %p163
    %p165 = scmp.ne.s32.totalorder %s156, %s157
    %p166 = scmp.eq.s32.totalorder %s20, 0
    %p167 = por %p165, %p166
    %p168 = scmp.ne.s32.totalorder %s156, %s157
    %p169 = scmp.eq.s32.totalorder %s21, 1
    %p170 = por %p168, %p169
    %p172 = scmp.ne.s32.totalorder %s157, %s171
    %p173 = scmp.eq.s32.totalorder %s21, 0
    %p174 = por %p172, %p173
    %s176 = sadd.s32 %s175, 1
    %p179 = scmp.eq.s32.totalorder %s15, 1
    %p180 = scmp.ne.s32.totalorder %s175, %s177
    %p181 = scmp.eq.s32.totalorder %s15, 0
    %p182 = por %p180, %p181
    %p183 = scmp.ne.s32.totalorder %s175, %s177
    %p184 = scmp.eq.s32.totalorder %s20, 1
    %p185 = por %p183, %p184
    %p186 = scmp.ne.s32.totalorder %s177, %s178
    %p187 = scmp.eq.s32.totalorder %s20, 0
    %p188 = por %p186, %p187
    %p189 = scmp.ne.s32.totalorder %s177, %s178
    %p190 = scmp.eq.s32.totalorder %s21, 1
    %p191 = por %p189, %p190
    %p193 = scmp.ne.s32.totalorder %s178, %s192
    %p194 = scmp.eq.s32.totalorder %s21, 0
    %p195 = por %p193, %p194
    %s197 = sadd.s32 %s196, 1
    %p200 = scmp.eq.s32.totalorder %s15, 1
    %p201 = scmp.ne.s32.totalorder %s196, %s198
    %p202 = scmp.eq.s32.totalorder %s15, 0
    %p203 = por %p201, %p202
    %p204 = scmp.ne.s32.totalorder %s196, %s198
    %p205 = scmp.eq.s32.totalorder %s20, 1
    %p206 = por %p204, %p205
    %p207 = scmp.ne.s32.totalorder %s198, %s199
    %p208 = scmp.eq.s32.totalorder %s20, 0
    %p209 = por %p207, %p208
    %p210 = scmp.ne.s32.totalorder %s198, %s199
    %p211 = scmp.eq.s32.totalorder %s21, 1
    %p212 = por %p210, %p211
    %p214 = scmp.ne.s32.totalorder %s199, %s213
    %p215 = scmp.eq.s32.totalorder %s21, 0
    %p216 = por %p214, %p215
    %s217 = ssub.s32 %s15, %s22
    %p218 = scmp.eq.s32.totalorder %s217, 0
    %s220 = sadd.s32 %s219, 1
    %s221 = scalar_select %p218, %s219, %s220
    %p224 = pneg %p218
    %p225 = scmp.eq.s32.totalorder %s15, 1
    %p226 = por %p224, %p225
    %p227 = scmp.ne.s32.totalorder %s219, %s222
    %p228 = scmp.eq.s32.totalorder %s15, 0
    %p229 = por %p227, %p228
    %p230 = scmp.ne.s32.totalorder %s219, %s222
    %p231 = scmp.eq.s32.totalorder %s20, 1
    %p232 = por %p230, %p231
    %p233 = scmp.ne.s32.totalorder %s222, %s223
    %p234 = scmp.eq.s32.totalorder %s20, 0
    %p235 = por %p233, %p234
    %p236 = scmp.ne.s32.totalorder %s222, %s223
    %p237 = scmp.eq.s32.totalorder %s21, 1
    %p238 = por %p236, %p237
    %p240 = scmp.ne.s32.totalorder %s223, %s239
    %p241 = scmp.eq.s32.totalorder %s21, 0
    %p242 = por %p240, %p241
    %p243 = scmp.le.s32.totalorder 1, %s15
    %p244 = scmp.lt.s32.totalorder %s15, 3
    %p245 = pnand %p243, %p244
    %p246 = pneg %p245
    // Predicated region
    $region9: #{net_forward.5} parent=5 // pred_check
      _
    $region10: #{net_forward.5} parent=5 // pred_check_branch
      %248 = sbr.rel (%p245) target = $region12
    $region11: #{net_forward.5} parent=5 // pred_region
      %s249 = ssub.s32 %s15, 1
      // Predicated region
      $region13: #{net_forward.5} parent=11 // pred_check
        %p250 = pneg %p62
      $region14: #{net_forward.5} parent=11 // pred_check_branch
        %252 = sbr.rel (%p250) target = $region16
      $region15: #{net_forward.5} parent=11 // pred_region
        _
      $region16: #{net_forward.5} parent=11 // pred_fallthru
        _
      // Predicated region
      $region17: #{net_forward.5} parent=11 // pred_check
        %p253 = pneg %p83
      $region18: #{net_forward.5} parent=11 // pred_check_branch
        %255 = sbr.rel (%p253) target = $region20
      $region19: #{net_forward.5} parent=11 // pred_region
        _
      $region20: #{net_forward.5} parent=11 // pred_fallthru
        _
      // Predicated region
      $region21: #{net_forward.5} parent=11 // pred_check
        %p256 = pneg %p104
      $region22: #{net_forward.5} parent=11 // pred_check_branch
        %258 = sbr.rel (%p256) target = $region24
      $region23: #{net_forward.5} parent=11 // pred_region
        _
      $region24: #{net_forward.5} parent=11 // pred_fallthru
        _
      // Predicated region
      $region25: #{net_forward.5} parent=11 // pred_check
        %p259 = pneg %p125
      $region26: #{net_forward.5} parent=11 // pred_check_branch
        %261 = sbr.rel (%p259) target = $region28
      $region27: #{net_forward.5} parent=11 // pred_region
        _
      $region28: #{net_forward.5} parent=11 // pred_fallthru
        _
      // Predicated region
      $region29: #{net_forward.5} parent=11 // pred_check
        %p262 = pneg %p146
      $region30: #{net_forward.5} parent=11 // pred_check_branch
        %264 = sbr.rel (%p262) target = $region32
      $region31: #{net_forward.5} parent=11 // pred_region
        _
      $region32: #{net_forward.5} parent=11 // pred_fallthru
        _
      // Predicated region
      $region33: #{net_forward.5} parent=11 // pred_check
        %p265 = pneg %p167
      $region34: #{net_forward.5} parent=11 // pred_check_branch
        %267 = sbr.rel (%p265) target = $region36
      $region35: #{net_forward.5} parent=11 // pred_region
        _
      $region36: #{net_forward.5} parent=11 // pred_fallthru
        _
      // Predicated region
      $region37: #{net_forward.5} parent=11 // pred_check
        %p268 = pneg %p188
      $region38: #{net_forward.5} parent=11 // pred_check_branch
        %270 = sbr.rel (%p268) target = $region40
      $region39: #{net_forward.5} parent=11 // pred_region
        _
      $region40: #{net_forward.5} parent=11 // pred_fallthru
        _
      // Predicated region
      $region41: #{net_forward.5} parent=11 // pred_check
        %p271 = pneg %p209
      $region42: #{net_forward.5} parent=11 // pred_check_branch
        %273 = sbr.rel (%p271) target = $region44
      $region43: #{net_forward.5} parent=11 // pred_region
        _
      $region44: #{net_forward.5} parent=11 // pred_fallthru
        _
    $region12: #{net_forward.5} parent=5 // pred_fallthru
      _
    %p274 = scmp.lt.s32.totalorder %s15, 2
    // Predicated region
    $region45: #{net_forward.5} parent=5 // pred_check
      %p275 = pneg %p274
    $region46: #{net_forward.5} parent=5 // pred_check_branch
      %277 = sbr.rel (%p275) target = $region48
    $region47: #{net_forward.5} parent=5 // pred_region
      // Predicated region
      $region49: #{net_forward.5} parent=47 // pred_check
        %p278 = pneg %p35
      $region50: #{net_forward.5} parent=47 // pred_check_branch
        %280 = sbr.rel (%p278) target = $region52
      $region51: #{net_forward.5} parent=47 // pred_region
        %p281 = scmp.lt.s32.totalorder %s15, 1
        %s282 = scalar_select %p281, %s15, 1
        %s283 = smul.addr %s282, 32
        %s284 = smul.addr %s283, 8
        %s285 = scalar_lea.vmem %s0, %s284
      $region52: #{net_forward.5} parent=47 // pred_fallthru
        _
    $region48: #{net_forward.5} parent=5 // pred_fallthru
      _
    %p286 = scmp.le.s32.totalorder 1, %s15
    %p287 = scmp.lt.s32.totalorder %s15, 3
    %p288 = pnand %p286, %p287
    %p289 = pneg %p288
    // Predicated region
    $region53: #{net_forward.5} parent=5 // pred_check
      _
    $region54: #{net_forward.5} parent=5 // pred_check_branch
      %291 = sbr.rel (%p288) target = $region56
    $region55: #{net_forward.5} parent=5 // pred_region
      %s292 = ssub.s32 %s15, 1
      %p293 = scmp.lt.s32.totalorder %s20, 1
      %s294 = scalar_select %p293, %s20, 1
      %s295 = smul.addr %s294, 32
      %s296 = smul.addr %s295, 8
      %s297 = scalar_lea.vmem %s0, %s296
      %p298 = pneg %p41
      %p299 = pneg %p38
      %p300 = pneg %p62
      %p301 = pneg %p59
      %p302 = pneg %p83
      %p303 = pneg %p80
      %p304 = pneg %p104
      %p305 = pneg %p101
      %p306 = pneg %p125
      %p307 = pneg %p122
      %p308 = pneg %p146
      %p309 = pneg %p143
      %p310 = pneg %p167
      %p311 = pneg %p164
      %p312 = pneg %p188
      %p313 = pneg %p185
      %p314 = pneg %p209
      %p315 = pneg %p206
      %p316 = pneg %p235
      %p317 = pneg %p232
      %p318 = scmp.lt.s32.totalorder %s20, 1
      %s319 = scalar_select %p318, %s20, 1
      %s320 = smul.addr %s319, 32
      %s321 = smul.addr %s320, 8
      %s322 = scalar_lea.vmem %s9, %s321
      %p323 = scmp.lt.s32.totalorder %s20, 1
      %s324 = scalar_select %p323, %s20, 1
      %s325 = smul.addr %s324, 32
      %s326 = smul.addr %s325, 8
      %s327 = scalar_lea.vmem %s0, %s326
      %p328 = scmp.lt.s32.totalorder %s20, 1
      %s329 = scalar_select %p328, %s20, 1
      %s330 = smul.addr %s329, 32
      %s331 = smul.addr %s330, 8
      %s332 = scalar_lea.vmem %s9, %s331
      %v333 = vld [vmem:[%s327] sm:$0xff]
      %v334 = vld [vmem:[%s327 + $0x8] sm:$0xff]
      %v335 = vld [vmem:[%s327 + $0x10] sm:$0xff]
      %v336 = vld [vmem:[%s327 + $0x18] sm:$0xff]
      %v337 = vld [vmem:[%s327 + $0x20] sm:$0xff]
      %v338 = vld [vmem:[%s327 + $0x28] sm:$0xff]
      %v339 = vld [vmem:[%s327 + $0x30] sm:$0xff]
      %v340 = vld [vmem:[%s327 + $0x38] sm:$0xff]
      %v341 = vld [vmem:[%s327 + $0x40] sm:$0xff]
      %v342 = vld [vmem:[%s327 + $0x48] sm:$0xff]
      %v343 = vld [vmem:[%s327 + $0x50] sm:$0xff]
      %v344 = vld [vmem:[%s327 + $0x58] sm:$0xff]
      %v345 = vld [vmem:[%s327 + $0x60] sm:$0xff]
      %v346 = vld [vmem:[%s327 + $0x68] sm:$0xff]
      %v347 = vld [vmem:[%s327 + $0x70] sm:$0xff]
      %v348 = vld [vmem:[%s327 + $0x78] sm:$0xff]
      %v349 = vld [vmem:[%s327 + $0x80] sm:$0xff]
      %v350 = vld [vmem:[%s327 + $0x88] sm:$0xff]
      %v351 = vld [vmem:[%s327 + $0x90] sm:$0xff]
      %v352 = vld [vmem:[%s327 + $0x98] sm:$0xff]
      %v353 = vld [vmem:[%s327 + $0xa0] sm:$0xff]
      %v354 = vld [vmem:[%s327 + $0xa8] sm:$0xff]
      %v355 = vld [vmem:[%s327 + $0xb0] sm:$0xff]
      %v356 = vld [vmem:[%s327 + $0xb8] sm:$0xff]
      %v357 = vld [vmem:[%s327 + $0xc0] sm:$0xff]
      %v358 = vld [vmem:[%s327 + $0xc8] sm:$0xff]
      %v359 = vld [vmem:[%s327 + $0xd0] sm:$0xff]
      %v360 = vld [vmem:[%s327 + $0xd8] sm:$0xff]
      %v361 = vld [vmem:[%s327 + $0xe0] sm:$0xff]
      %v362 = vld [vmem:[%s327 + $0xe8] sm:$0xff]
      %v363 = vld [vmem:[%s327 + $0xf0] sm:$0xff]
      %v364 = vld [vmem:[%s327 + $0xf8] sm:$0xff]
      %365 = vst [vmem:[#allocation2] sm:$0xff] 0.0
      %366 = vst [vmem:[#allocation2 + $0x8] sm:$0xff] 0.0
      %367 = vst [vmem:[#allocation2 + $0x10] sm:$0xff] 0.0
      %368 = vst [vmem:[#allocation2 + $0x18] sm:$0xff] 0.0
      %369 = vst [vmem:[#allocation2 + $0x20] sm:$0xff] 0.0
      %370 = vst [vmem:[#allocation2 + $0x28] sm:$0xff] 0.0
      %371 = vst [vmem:[#allocation2 + $0x30] sm:$0xff] 0.0
      %372 = vst [vmem:[#allocation2 + $0x38] sm:$0xff] 0.0
      %373 = vst [vmem:[#allocation2 + $0x40] sm:$0xff] 0.0
      %374 = vst [vmem:[#allocation2 + $0x48] sm:$0xff] 0.0
      %375 = vst [vmem:[#allocation2 + $0x50] sm:$0xff] 0.0
      %376 = vst [vmem:[#allocation2 + $0x58] sm:$0xff] 0.0
      %377 = vst [vmem:[#allocation2 + $0x60] sm:$0xff] 0.0
      %378 = vst [vmem:[#allocation2 + $0x68] sm:$0xff] 0.0
      %379 = vst [vmem:[#allocation2 + $0x70] sm:$0xff] 0.0
      %380 = vst [vmem:[#allocation2 + $0x78] sm:$0xff] 0.0
      %381 = vst [vmem:[#allocation2 + $0x80] sm:$0xff] 0.0
      %382 = vst [vmem:[#allocation2 + $0x88] sm:$0xff] 0.0
      %383 = vst [vmem:[#allocation2 + $0x90] sm:$0xff] 0.0
      %384 = vst [vmem:[#allocation2 + $0x98] sm:$0xff] 0.0
      %385 = vst [vmem:[#allocation2 + $0xa0] sm:$0xff] 0.0
      %386 = vst [vmem:[#allocation2 + $0xa8] sm:$0xff] 0.0
      %387 = vst [vmem:[#allocation2 + $0xb0] sm:$0xff] 0.0
      %388 = vst [vmem:[#allocation2 + $0xb8] sm:$0xff] 0.0
      %389 = vst [vmem:[#allocation2 + $0xc0] sm:$0xff] 0.0
      %390 = vst [vmem:[#allocation2 + $0xc8] sm:$0xff] 0.0
      %391 = vst [vmem:[#allocation2 + $0xd0] sm:$0xff] 0.0
      %392 = vst [vmem:[#allocation2 + $0xd8] sm:$0xff] 0.0
      %393 = vst [vmem:[#allocation2 + $0xe0] sm:$0xff] 0.0
      %394 = vst [vmem:[#allocation2 + $0xe8] sm:$0xff] 0.0
      %395 = vst [vmem:[#allocation2 + $0xf0] sm:$0xff] 0.0
      %396 = vst [vmem:[#allocation2 + $0xf8] sm:$0xff] 0.0
      %397 = vst [vmem:[#allocation2 + $0x100] sm:$0xff] 0.0
      %398 = vst [vmem:[#allocation2 + $0x108] sm:$0xff] 0.0
      %399 = vst [vmem:[#allocation2 + $0x110] sm:$0xff] 0.0
      %400 = vst [vmem:[#allocation2 + $0x118] sm:$0xff] 0.0
      %401 = vst [vmem:[#allocation2 + $0x120] sm:$0xff] 0.0
      %402 = vst [vmem:[#allocation2 + $0x128] sm:$0xff] 0.0
      %403 = vst [vmem:[#allocation2 + $0x130] sm:$0xff] 0.0
      %404 = vst [vmem:[#allocation2 + $0x138] sm:$0xff] 0.0
      %405 = vst [vmem:[#allocation2 + $0x140] sm:$0xff] 0.0
      %406 = vst [vmem:[#allocation2 + $0x148] sm:$0xff] 0.0
      %407 = vst [vmem:[#allocation2 + $0x150] sm:$0xff] 0.0
      %408 = vst [vmem:[#allocation2 + $0x158] sm:$0xff] 0.0
      %409 = vst [vmem:[#allocation2 + $0x160] sm:$0xff] 0.0
      %410 = vst [vmem:[#allocation2 + $0x168] sm:$0xff] 0.0
      %411 = vst [vmem:[#allocation2 + $0x170] sm:$0xff] 0.0
      %412 = vst [vmem:[#allocation2 + $0x178] sm:$0xff] 0.0
      %413 = vst [vmem:[#allocation2 + $0x180] sm:$0xff] 0.0
      %414 = vst [vmem:[#allocation2 + $0x188] sm:$0xff] 0.0
      %415 = vst [vmem:[#allocation2 + $0x190] sm:$0xff] 0.0
      %416 = vst [vmem:[#allocation2 + $0x198] sm:$0xff] 0.0
      %417 = vst [vmem:[#allocation2 + $0x1a0] sm:$0xff] 0.0
      %418 = vst [vmem:[#allocation2 + $0x1a8] sm:$0xff] 0.0
      %419 = vst [vmem:[#allocation2 + $0x1b0] sm:$0xff] 0.0
      %420 = vst [vmem:[#allocation2 + $0x1b8] sm:$0xff] 0.0
      %421 = vst [vmem:[#allocation2 + $0x1c0] sm:$0xff] 0.0
      %422 = vst [vmem:[#allocation2 + $0x1c8] sm:$0xff] 0.0
      %423 = vst [vmem:[#allocation2 + $0x1d0] sm:$0xff] 0.0
      %424 = vst [vmem:[#allocation2 + $0x1d8] sm:$0xff] 0.0
      %425 = vst [vmem:[#allocation2 + $0x1e0] sm:$0xff] 0.0
      %426 = vst [vmem:[#allocation2 + $0x1e8] sm:$0xff] 0.0
      %427 = vst [vmem:[#allocation2 + $0x1f0] sm:$0xff] 0.0
      %428 = vst [vmem:[#allocation2 + $0x1f8] sm:$0xff] 0.0
      %429 = vst [vmem:[#allocation2 + $0x200] sm:$0xff] 0.0
      %430 = vst [vmem:[#allocation2 + $0x208] sm:$0xff] 0.0
      %431 = vst [vmem:[#allocation2 + $0x210] sm:$0xff] 0.0
      %432 = vst [vmem:[#allocation2 + $0x218] sm:$0xff] 0.0
      %433 = vst [vmem:[#allocation2 + $0x220] sm:$0xff] 0.0
      %434 = vst [vmem:[#allocation2 + $0x228] sm:$0xff] 0.0
      %435 = vst [vmem:[#allocation2 + $0x230] sm:$0xff] 0.0
      %436 = vst [vmem:[#allocation2 + $0x238] sm:$0xff] 0.0
      %437 = vst [vmem:[#allocation2 + $0x240] sm:$0xff] 0.0
      %438 = vst [vmem:[#allocation2 + $0x248] sm:$0xff] 0.0
      %439 = vst [vmem:[#allocation2 + $0x250] sm:$0xff] 0.0
      %440 = vst [vmem:[#allocation2 + $0x258] sm:$0xff] 0.0
      %441 = vst [vmem:[#allocation2 + $0x260] sm:$0xff] 0.0
      %442 = vst [vmem:[#allocation2 + $0x268] sm:$0xff] 0.0
      %443 = vst [vmem:[#allocation2 + $0x270] sm:$0xff] 0.0
      %444 = vst [vmem:[#allocation2 + $0x278] sm:$0xff] 0.0
      %445 = vst [vmem:[#allocation2 + $0x280] sm:$0xff] 0.0
      %446 = vst [vmem:[#allocation2 + $0x288] sm:$0xff] 0.0
      %447 = vst [vmem:[#allocation2 + $0x290] sm:$0xff] 0.0
      %448 = vst [vmem:[#allocation2 + $0x298] sm:$0xff] 0.0
      %449 = vst [vmem:[#allocation2 + $0x2a0] sm:$0xff] 0.0
      %450 = vst [vmem:[#allocation2 + $0x2a8] sm:$0xff] 0.0
      %451 = vst [vmem:[#allocation2 + $0x2b0] sm:$0xff] 0.0
      %452 = vst [vmem:[#allocation2 + $0x2b8] sm:$0xff] 0.0
      %s453 = scalar_lea.vmem [#allocation2], 96
      %454 = vst [vmem:[%s453 + $0x8] sm:$0xff] %v333
      %455 = vst [vmem:[%s453 + $0x10] sm:$0xff] %v334
      %456 = vst [vmem:[%s453 + $0x28] sm:$0xff] %v335
      %457 = vst [vmem:[%s453 + $0x30] sm:$0xff] %v336
      %458 = vst [vmem:[%s453 + $0x48] sm:$0xff] %v337
      %459 = vst [vmem:[%s453 + $0x50] sm:$0xff] %v338
      %460 = vst [vmem:[%s453 + $0x68] sm:$0xff] %v339
      %461 = vst [vmem:[%s453 + $0x70] sm:$0xff] %v340
      %462 = vst [vmem:[%s453 + $0x88] sm:$0xff] %v341
      %463 = vst [vmem:[%s453 + $0x90] sm:$0xff] %v342
      %464 = vst [vmem:[%s453 + $0xa8] sm:$0xff] %v343
      %465 = vst [vmem:[%s453 + $0xb0] sm:$0xff] %v344
      %466 = vst [vmem:[%s453 + $0xc8] sm:$0xff] %v345
      %467 = vst [vmem:[%s453 + $0xd0] sm:$0xff] %v346
      %468 = vst [vmem:[%s453 + $0xe8] sm:$0xff] %v347
      %469 = vst [vmem:[%s453 + $0xf0] sm:$0xff] %v348
      %470 = vst [vmem:[%s453 + $0x108] sm:$0xff] %v349
      %471 = vst [vmem:[%s453 + $0x110] sm:$0xff] %v350
      %472 = vst [vmem:[%s453 + $0x128] sm:$0xff] %v351
      %473 = vst [vmem:[%s453 + $0x130] sm:$0xff] %v352
      %474 = vst [vmem:[%s453 + $0x148] sm:$0xff] %v353
      %475 = vst [vmem:[%s453 + $0x150] sm:$0xff] %v354
      %476 = vst [vmem:[%s453 + $0x168] sm:$0xff] %v355
      %477 = vst [vmem:[%s453 + $0x170] sm:$0xff] %v356
      %478 = vst [vmem:[%s453 + $0x188] sm:$0xff] %v357
      %479 = vst [vmem:[%s453 + $0x190] sm:$0xff] %v358
      %480 = vst [vmem:[%s453 + $0x1a8] sm:$0xff] %v359
      %481 = vst [vmem:[%s453 + $0x1b0] sm:$0xff] %v360
      %482 = vst [vmem:[%s453 + $0x1c8] sm:$0xff] %v361
      %483 = vst [vmem:[%s453 + $0x1d0] sm:$0xff] %v362
      %484 = vst [vmem:[%s453 + $0x1e8] sm:$0xff] %v363
      %485 = vst [vmem:[%s453 + $0x1f0] sm:$0xff] %v364
      %v486 = vld [vmem:[#allocation2 + $0x5] sm:$0xff]
      %v487 = vld [vmem:[#allocation2 + $0xd] sm:$0xff]
      %v488 = vld [vmem:[#allocation2 + $0x25] sm:$0xff]
      %v489 = vld [vmem:[#allocation2 + $0x2d] sm:$0xff]
      %v490 = vld [vmem:[#allocation2 + $0x45] sm:$0xff]
      %v491 = vld [vmem:[#allocation2 + $0x4d] sm:$0xff]
      %v492 = vld [vmem:[#allocation2 + $0x65] sm:$0xff]
      %v493 = vld [vmem:[#allocation2 + $0x6d] sm:$0xff]
      %v494 = vld [vmem:[#allocation2 + $0x85] sm:$0xff]
      %v495 = vld [vmem:[#allocation2 + $0x8d] sm:$0xff]
      %v496 = vld [vmem:[#allocation2 + $0xa5] sm:$0xff]
      %v497 = vld [vmem:[#allocation2 + $0xad] sm:$0xff]
      %v498 = vld [vmem:[#allocation2 + $0xc5] sm:$0xff]
      %v499 = vld [vmem:[#allocation2 + $0xcd] sm:$0xff]
      %v500 = vld [vmem:[#allocation2 + $0xe5] sm:$0xff]
      %v501 = vld [vmem:[#allocation2 + $0xed] sm:$0xff]
      %v502 = vld [vmem:[#allocation2 + $0x105] sm:$0xff]
      %v503 = vld [vmem:[#allocation2 + $0x10d] sm:$0xff]
      %v504 = vld [vmem:[#allocation2 + $0x125] sm:$0xff]
      %v505 = vld [vmem:[#allocation2 + $0x12d] sm:$0xff]
      %v506 = vld [vmem:[#allocation2 + $0x145] sm:$0xff]
      %v507 = vld [vmem:[#allocation2 + $0x14d] sm:$0xff]
      %v508 = vld [vmem:[#allocation2 + $0x165] sm:$0xff]
      %v509 = vld [vmem:[#allocation2 + $0x16d] sm:$0xff]
      %v510 = vld [vmem:[#allocation2 + $0x185] sm:$0xff]
      %v511 = vld [vmem:[#allocation2 + $0x18d] sm:$0xff]
      %v512 = vld [vmem:[#allocation2 + $0x1a5] sm:$0xff]
      %v513 = vld [vmem:[#allocation2 + $0x1ad] sm:$0xff]
      %v514 = vld [vmem:[#allocation2 + $0x1c5] sm:$0xff]
      %v515 = vld [vmem:[#allocation2 + $0x1cd] sm:$0xff]
      %v516 = vld [vmem:[#allocation2 + $0x1e5] sm:$0xff]
      %v517 = vld [vmem:[#allocation2 + $0x1ed] sm:$0xff]
      %v518 = vld [vmem:[%s1] sm:$0x1]
      %v519 = vlaneseq
      %v520 = vshrl.u32 %v519, 7
      %v521 = vsub.s32 0, %v520
      %v522 = vrot.slane %v518, %v521
      %v523 = vmul.f32 %v486, %v522
      %v524 = vmul.f32 %v487, %v522
      %v525 = vmul.f32 %v488, %v522
      %v526 = vmul.f32 %v489, %v522
      %v527 = vmul.f32 %v490, %v522
      %v528 = vmul.f32 %v491, %v522
      %v529 = vmul.f32 %v492, %v522
      %v530 = vmul.f32 %v493, %v522
      %v531 = vmul.f32 %v494, %v522
      %v532 = vmul.f32 %v495, %v522
      %v533 = vmul.f32 %v496, %v522
      %v534 = vmul.f32 %v497, %v522
      %v535 = vmul.f32 %v498, %v522
      %v536 = vmul.f32 %v499, %v522
      %v537 = vmul.f32 %v500, %v522
      %v538 = vmul.f32 %v501, %v522
      %v539 = vmul.f32 %v502, %v522
      %v540 = vmul.f32 %v503, %v522
      %v541 = vmul.f32 %v504, %v522
      %v542 = vmul.f32 %v505, %v522
      %v543 = vmul.f32 %v506, %v522
      %v544 = vmul.f32 %v507, %v522
      %v545 = vmul.f32 %v508, %v522
      %v546 = vmul.f32 %v509, %v522
      %v547 = vmul.f32 %v510, %v522
      %v548 = vmul.f32 %v511, %v522
      %v549 = vmul.f32 %v512, %v522
      %v550 = vmul.f32 %v513, %v522
      %v551 = vmul.f32 %v514, %v522
      %v552 = vmul.f32 %v515, %v522
      %v553 = vmul.f32 %v516, %v522
      %v554 = vmul.f32 %v517, %v522
      %v555 = vadd.f32 %v523, 0.0
      %v556 = vadd.f32 %v524, 0.0
      %v557 = vadd.f32 %v525, 0.0
      %v558 = vadd.f32 %v526, 0.0
      %v559 = vadd.f32 %v527, 0.0
      %v560 = vadd.f32 %v528, 0.0
      %v561 = vadd.f32 %v529, 0.0
      %v562 = vadd.f32 %v530, 0.0
      %v563 = vadd.f32 %v531, 0.0
      %v564 = vadd.f32 %v532, 0.0
      %v565 = vadd.f32 %v533, 0.0
      %v566 = vadd.f32 %v534, 0.0
      %v567 = vadd.f32 %v535, 0.0
      %v568 = vadd.f32 %v536, 0.0
      %v569 = vadd.f32 %v537, 0.0
      %v570 = vadd.f32 %v538, 0.0
      %v571 = vadd.f32 %v539, 0.0
      %v572 = vadd.f32 %v540, 0.0
      %v573 = vadd.f32 %v541, 0.0
      %v574 = vadd.f32 %v542, 0.0
      %v575 = vadd.f32 %v543, 0.0
      %v576 = vadd.f32 %v544, 0.0
      %v577 = vadd.f32 %v545, 0.0
      %v578 = vadd.f32 %v546, 0.0
      %v579 = vadd.f32 %v547, 0.0
      %v580 = vadd.f32 %v548, 0.0
      %v581 = vadd.f32 %v549, 0.0
      %v582 = vadd.f32 %v550, 0.0
      %v583 = vadd.f32 %v551, 0.0
      %v584 = vadd.f32 %v552, 0.0
      %v585 = vadd.f32 %v553, 0.0
      %v586 = vadd.f32 %v554, 0.0
      %v587 = vld [vmem:[#allocation2 + $0x6] sm:$0xff]
      %v588 = vld [vmem:[#allocation2 + $0xe] sm:$0xff]
      %v589 = vld [vmem:[#allocation2 + $0x26] sm:$0xff]
      %v590 = vld [vmem:[#allocation2 + $0x2e] sm:$0xff]
      %v591 = vld [vmem:[#allocation2 + $0x46] sm:$0xff]
      %v592 = vld [vmem:[#allocation2 + $0x4e] sm:$0xff]
      %v593 = vld [vmem:[#allocation2 + $0x66] sm:$0xff]
      %v594 = vld [vmem:[#allocation2 + $0x6e] sm:$0xff]
      %v595 = vld [vmem:[#allocation2 + $0x86] sm:$0xff]
      %v596 = vld [vmem:[#allocation2 + $0x8e] sm:$0xff]
      %v597 = vld [vmem:[#allocation2 + $0xa6] sm:$0xff]
      %v598 = vld [vmem:[#allocation2 + $0xae] sm:$0xff]
      %v599 = vld [vmem:[#allocation2 + $0xc6] sm:$0xff]
      %v600 = vld [vmem:[#allocation2 + $0xce] sm:$0xff]
      %v601 = vld [vmem:[#allocation2 + $0xe6] sm:$0xff]
      %v602 = vld [vmem:[#allocation2 + $0xee] sm:$0xff]
      %v603 = vld [vmem:[#allocation2 + $0x106] sm:$0xff]
      %v604 = vld [vmem:[#allocation2 + $0x10e] sm:$0xff]
      %v605 = vld [vmem:[#allocation2 + $0x126] sm:$0xff]
      %v606 = vld [vmem:[#allocation2 + $0x12e] sm:$0xff]
      %v607 = vld [vmem:[#allocation2 + $0x146] sm:$0xff]
      %v608 = vld [vmem:[#allocation2 + $0x14e] sm:$0xff]
      %v609 = vld [vmem:[#allocation2 + $0x166] sm:$0xff]
      %v610 = vld [vmem:[#allocation2 + $0x16e] sm:$0xff]
      %v611 = vld [vmem:[#allocation2 + $0x186] sm:$0xff]
      %v612 = vld [vmem:[#allocation2 + $0x18e] sm:$0xff]
      %v613 = vld [vmem:[#allocation2 + $0x1a6] sm:$0xff]
      %v614 = vld [vmem:[#allocation2 + $0x1ae] sm:$0xff]
      %v615 = vld [vmem:[#allocation2 + $0x1c6] sm:$0xff]
      %v616 = vld [vmem:[#allocation2 + $0x1ce] sm:$0xff]
      %v617 = vld [vmem:[#allocation2 + $0x1e6] sm:$0xff]
      %v618 = vld [vmem:[#allocation2 + $0x1ee] sm:$0xff]
      %v619 = vld [vmem:[%s1 + $0x1] sm:$0x1]
      %v620 = vlaneseq
      %v621 = vshrl.u32 %v620, 7
      %v622 = vsub.s32 0, %v621
      %v623 = vrot.slane %v619, %v622
      %v624 = vmul.f32 %v587, %v623
      %v625 = vmul.f32 %v588, %v623
      %v626 = vmul.f32 %v589, %v623
      %v627 = vmul.f32 %v590, %v623
      %v628 = vmul.f32 %v591, %v623
      %v629 = vmul.f32 %v592, %v623
      %v630 = vmul.f32 %v593, %v623
      %v631 = vmul.f32 %v594, %v623
      %v632 = vmul.f32 %v595, %v623
      %v633 = vmul.f32 %v596, %v623
      %v634 = vmul.f32 %v597, %v623
      %v635 = vmul.f32 %v598, %v623
      %v636 = vmul.f32 %v599, %v623
      %v637 = vmul.f32 %v600, %v623
      %v638 = vmul.f32 %v601, %v623
      %v639 = vmul.f32 %v602, %v623
      %v640 = vmul.f32 %v603, %v623
      %v641 = vmul.f32 %v604, %v623
      %v642 = vmul.f32 %v605, %v623
      %v643 = vmul.f32 %v606, %v623
      %v644 = vmul.f32 %v607, %v623
      %v645 = vmul.f32 %v608, %v623
      %v646 = vmul.f32 %v609, %v623
      %v647 = vmul.f32 %v610, %v623
      %v648 = vmul.f32 %v611, %v623
      %v649 = vmul.f32 %v612, %v623
      %v650 = vmul.f32 %v613, %v623
      %v651 = vmul.f32 %v614, %v623
      %v652 = vmul.f32 %v615, %v623
      %v653 = vmul.f32 %v616, %v623
      %v654 = vmul.f32 %v617, %v623
      %v655 = vmul.f32 %v618, %v623
      %v656 = vadd.f32 %v555, %v624
      %v657 = vadd.f32 %v556, %v625
      %v658 = vadd.f32 %v557, %v626
      %v659 = vadd.f32 %v558, %v627
      %v660 = vadd.f32 %v559, %v628
      %v661 = vadd.f32 %v560, %v629
      %v662 = vadd.f32 %v561, %v630
      %v663 = vadd.f32 %v562, %v631
      %v664 = vadd.f32 %v563, %v632
      %v665 = vadd.f32 %v564, %v633
      %v666 = vadd.f32 %v565, %v634
      %v667 = vadd.f32 %v566, %v635
      %v668 = vadd.f32 %v567, %v636
      %v669 = vadd.f32 %v568, %v637
      %v670 = vadd.f32 %v569, %v638
      %v671 = vadd.f32 %v570, %v639
      %v672 = vadd.f32 %v571, %v640
      %v673 = vadd.f32 %v572, %v641
      %v674 = vadd.f32 %v573, %v642
      %v675 = vadd.f32 %v574, %v643
      %v676 = vadd.f32 %v575, %v644
      %v677 = vadd.f32 %v576, %v645
      %v678 = vadd.f32 %v577, %v646
      %v679 = vadd.f32 %v578, %v647
      %v680 = vadd.f32 %v579, %v648
      %v681 = vadd.f32 %v580, %v649
      %v682 = vadd.f32 %v581, %v650
      %v683 = vadd.f32 %v582, %v651
      %v684 = vadd.f32 %v583, %v652
      %v685 = vadd.f32 %v584, %v653
      %v686 = vadd.f32 %v585, %v654
      %v687 = vadd.f32 %v586, %v655
      %v688 = vld [vmem:[#allocation2 + $0x7] sm:$0xff]
      %v689 = vld [vmem:[#allocation2 + $0xf] sm:$0xff]
      %v690 = vld [vmem:[#allocation2 + $0x27] sm:$0xff]
      %v691 = vld [vmem:[#allocation2 + $0x2f] sm:$0xff]
      %v692 = vld [vmem:[#allocation2 + $0x47] sm:$0xff]
      %v693 = vld [vmem:[#allocation2 + $0x4f] sm:$0xff]
      %v694 = vld [vmem:[#allocation2 + $0x67] sm:$0xff]
      %v695 = vld [vmem:[#allocation2 + $0x6f] sm:$0xff]
      %v696 = vld [vmem:[#allocation2 + $0x87] sm:$0xff]
      %v697 = vld [vmem:[#allocation2 + $0x8f] sm:$0xff]
      %v698 = vld [vmem:[#allocation2 + $0xa7] sm:$0xff]
      %v699 = vld [vmem:[#allocation2 + $0xaf] sm:$0xff]
      %v700 = vld [vmem:[#allocation2 + $0xc7] sm:$0xff]
      %v701 = vld [vmem:[#allocation2 + $0xcf] sm:$0xff]
      %v702 = vld [vmem:[#allocation2 + $0xe7] sm:$0xff]
      %v703 = vld [vmem:[#allocation2 + $0xef] sm:$0xff]
      %v704 = vld [vmem:[#allocation2 + $0x107] sm:$0xff]
      %v705 = vld [vmem:[#allocation2 + $0x10f] sm:$0xff]
      %v706 = vld [vmem:[#allocation2 + $0x127] sm:$0xff]
      %v707 = vld [vmem:[#allocation2 + $0x12f] sm:$0xff]
      %v708 = vld [vmem:[#allocation2 + $0x147] sm:$0xff]
      %v709 = vld [vmem:[#allocation2 + $0x14f] sm:$0xff]
      %v710 = vld [vmem:[#allocation2 + $0x167] sm:$0xff]
      %v711 = vld [vmem:[#allocation2 + $0x16f] sm:$0xff]
      %v712 = vld [vmem:[#allocation2 + $0x187] sm:$0xff]
      %v713 = vld [vmem:[#allocation2 + $0x18f] sm:$0xff]
      %v714 = vld [vmem:[#allocation2 + $0x1a7] sm:$0xff]
      %v715 = vld [vmem:[#allocation2 + $0x1af] sm:$0xff]
      %v716 = vld [vmem:[#allocation2 + $0x1c7] sm:$0xff]
      %v717 = vld [vmem:[#allocation2 + $0x1cf] sm:$0xff]
      %v718 = vld [vmem:[#allocation2 + $0x1e7] sm:$0xff]
      %v719 = vld [vmem:[#allocation2 + $0x1ef] sm:$0xff]
      %v720 = vld [vmem:[%s1 + $0x2] sm:$0x1]
      %v721 = vlaneseq
      %v722 = vshrl.u32 %v721, 7
      %v723 = vsub.s32 0, %v722
      %v724 = vrot.slane %v720, %v723
      %v725 = vmul.f32 %v688, %v724
      %v726 = vmul.f32 %v689, %v724
      %v727 = vmul.f32 %v690, %v724
      %v728 = vmul.f32 %v691, %v724
      %v729 = vmul.f32 %v692, %v724
      %v730 = vmul.f32 %v693, %v724
      %v731 = vmul.f32 %v694, %v724
      %v732 = vmul.f32 %v695, %v724
      %v733 = vmul.f32 %v696, %v724
      %v734 = vmul.f32 %v697, %v724
      %v735 = vmul.f32 %v698, %v724
      %v736 = vmul.f32 %v699, %v724
      %v737 = vmul.f32 %v700, %v724
      %v738 = vmul.f32 %v701, %v724
      %v739 = vmul.f32 %v702, %v724
      %v740 = vmul.f32 %v703, %v724
      %v741 = vmul.f32 %v704, %v724
      %v742 = vmul.f32 %v705, %v724
      %v743 = vmul.f32 %v706, %v724
      %v744 = vmul.f32 %v707, %v724
      %v745 = vmul.f32 %v708, %v724
      %v746 = vmul.f32 %v709, %v724
      %v747 = vmul.f32 %v710, %v724
      %v748 = vmul.f32 %v711, %v724
      %v749 = vmul.f32 %v712, %v724
      %v750 = vmul.f32 %v713, %v724
      %v751 = vmul.f32 %v714, %v724
      %v752 = vmul.f32 %v715, %v724
      %v753 = vmul.f32 %v716, %v724
      %v754 = vmul.f32 %v717, %v724
      %v755 = vmul.f32 %v718, %v724
      %v756 = vmul.f32 %v719, %v724
      %v757 = vadd.f32 %v656, %v725
      %v758 = vadd.f32 %v657, %v726
      %v759 = vadd.f32 %v658, %v727
      %v760 = vadd.f32 %v659, %v728
      %v761 = vadd.f32 %v660, %v729
      %v762 = vadd.f32 %v661, %v730
      %v763 = vadd.f32 %v662, %v731
      %v764 = vadd.f32 %v663, %v732
      %v765 = vadd.f32 %v664, %v733
      %v766 = vadd.f32 %v665, %v734
      %v767 = vadd.f32 %v666, %v735
      %v768 = vadd.f32 %v667, %v736
      %v769 = vadd.f32 %v668, %v737
      %v770 = vadd.f32 %v669, %v738
      %v771 = vadd.f32 %v670, %v739
      %v772 = vadd.f32 %v671, %v740
      %v773 = vadd.f32 %v672, %v741
      %v774 = vadd.f32 %v673, %v742
      %v775 = vadd.f32 %v674, %v743
      %v776 = vadd.f32 %v675, %v744
      %v777 = vadd.f32 %v676, %v745
      %v778 = vadd.f32 %v677, %v746
      %v779 = vadd.f32 %v678, %v747
      %v780 = vadd.f32 %v679, %v748
      %v781 = vadd.f32 %v680, %v749
      %v782 = vadd.f32 %v681, %v750
      %v783 = vadd.f32 %v682, %v751
      %v784 = vadd.f32 %v683, %v752
      %v785 = vadd.f32 %v684, %v753
      %v786 = vadd.f32 %v685, %v754
      %v787 = vadd.f32 %v686, %v755
      %v788 = vadd.f32 %v687, %v756
      %v789 = vld [vmem:[#allocation2 + $0x8] sm:$0xff]
      %v790 = vld [vmem:[#allocation2 + $0x10] sm:$0xff]
      %v791 = vld [vmem:[#allocation2 + $0x28] sm:$0xff]
      %v792 = vld [vmem:[#allocation2 + $0x30] sm:$0xff]
      %v793 = vld [vmem:[#allocation2 + $0x48] sm:$0xff]
      %v794 = vld [vmem:[#allocation2 + $0x50] sm:$0xff]
      %v795 = vld [vmem:[#allocation2 + $0x68] sm:$0xff]
      %v796 = vld [vmem:[#allocation2 + $0x70] sm:$0xff]
      %v797 = vld [vmem:[#allocation2 + $0x88] sm:$0xff]
      %v798 = vld [vmem:[#allocation2 + $0x90] sm:$0xff]
      %v799 = vld [vmem:[#allocation2 + $0xa8] sm:$0xff]
      %v800 = vld [vmem:[#allocation2 + $0xb0] sm:$0xff]
      %v801 = vld [vmem:[#allocation2 + $0xc8] sm:$0xff]
      %v802 = vld [vmem:[#allocation2 + $0xd0] sm:$0xff]
      %v803 = vld [vmem:[#allocation2 + $0xe8] sm:$0xff]
      %v804 = vld [vmem:[#allocation2 + $0xf0] sm:$0xff]
      %v805 = vld [vmem:[#allocation2 + $0x108] sm:$0xff]
      %v806 = vld [vmem:[#allocation2 + $0x110] sm:$0xff]
      %v807 = vld [vmem:[#allocation2 + $0x128] sm:$0xff]
      %v808 = vld [vmem:[#allocation2 + $0x130] sm:$0xff]
      %v809 = vld [vmem:[#allocation2 + $0x148] sm:$0xff]
      %v810 = vld [vmem:[#allocation2 + $0x150] sm:$0xff]
      %v811 = vld [vmem:[#allocation2 + $0x168] sm:$0xff]
      %v812 = vld [vmem:[#allocation2 + $0x170] sm:$0xff]
      %v813 = vld [vmem:[#allocation2 + $0x188] sm:$0xff]
      %v814 = vld [vmem:[#allocation2 + $0x190] sm:$0xff]
      %v815 = vld [vmem:[#allocation2 + $0x1a8] sm:$0xff]
      %v816 = vld [vmem:[#allocation2 + $0x1b0] sm:$0xff]
      %v817 = vld [vmem:[#allocation2 + $0x1c8] sm:$0xff]
      %v818 = vld [vmem:[#allocation2 + $0x1d0] sm:$0xff]
      %v819 = vld [vmem:[#allocation2 + $0x1e8] sm:$0xff]
      %v820 = vld [vmem:[#allocation2 + $0x1f0] sm:$0xff]
      %v821 = vld [vmem:[%s1 + $0x3] sm:$0x1]
      %v822 = vlaneseq
      %v823 = vshrl.u32 %v822, 7
      %v824 = vsub.s32 0, %v823
      %v825 = vrot.slane %v821, %v824
      %v826 = vmul.f32 %v789, %v825
      %v827 = vmul.f32 %v790, %v825
      %v828 = vmul.f32 %v791, %v825
      %v829 = vmul.f32 %v792, %v825
      %v830 = vmul.f32 %v793, %v825
      %v831 = vmul.f32 %v794, %v825
      %v832 = vmul.f32 %v795, %v825
      %v833 = vmul.f32 %v796, %v825
      %v834 = vmul.f32 %v797, %v825
      %v835 = vmul.f32 %v798, %v825
      %v836 = vmul.f32 %v799, %v825
      %v837 = vmul.f32 %v800, %v825
      %v838 = vmul.f32 %v801, %v825
      %v839 = vmul.f32 %v802, %v825
      %v840 = vmul.f32 %v803, %v825
      %v841 = vmul.f32 %v804, %v825
      %v842 = vmul.f32 %v805, %v825
      %v843 = vmul.f32 %v806, %v825
      %v844 = vmul.f32 %v807, %v825
      %v845 = vmul.f32 %v808, %v825
      %v846 = vmul.f32 %v809, %v825
      %v847 = vmul.f32 %v810, %v825
      %v848 = vmul.f32 %v811, %v825
      %v849 = vmul.f32 %v812, %v825
      %v850 = vmul.f32 %v813, %v825
      %v851 = vmul.f32 %v814, %v825
      %v852 = vmul.f32 %v815, %v825
      %v853 = vmul.f32 %v816, %v825
      %v854 = vmul.f32 %v817, %v825
      %v855 = vmul.f32 %v818, %v825
      %v856 = vmul.f32 %v819, %v825
      %v857 = vmul.f32 %v820, %v825
      %v858 = vadd.f32 %v757, %v826
      %v859 = vadd.f32 %v758, %v827
      %v860 = vadd.f32 %v759, %v828
      %v861 = vadd.f32 %v760, %v829
      %v862 = vadd.f32 %v761, %v830
      %v863 = vadd.f32 %v762, %v831
      %v864 = vadd.f32 %v763, %v832
      %v865 = vadd.f32 %v764, %v833
      %v866 = vadd.f32 %v765, %v834
      %v867 = vadd.f32 %v766, %v835
      %v868 = vadd.f32 %v767, %v836
      %v869 = vadd.f32 %v768, %v837
      %v870 = vadd.f32 %v769, %v838
      %v871 = vadd.f32 %v770, %v839
      %v872 = vadd.f32 %v771, %v840
      %v873 = vadd.f32 %v772, %v841
      %v874 = vadd.f32 %v773, %v842
      %v875 = vadd.f32 %v774, %v843
      %v876 = vadd.f32 %v775, %v844
      %v877 = vadd.f32 %v776, %v845
      %v878 = vadd.f32 %v777, %v846
      %v879 = vadd.f32 %v778, %v847
      %v880 = vadd.f32 %v779, %v848
      %v881 = vadd.f32 %v780, %v849
      %v882 = vadd.f32 %v781, %v850
      %v883 = vadd.f32 %v782, %v851
      %v884 = vadd.f32 %v783, %v852
      %v885 = vadd.f32 %v784, %v853
      %v886 = vadd.f32 %v785, %v854
      %v887 = vadd.f32 %v786, %v855
      %v888 = vadd.f32 %v787, %v856
      %v889 = vadd.f32 %v788, %v857
      %v890 = vld [vmem:[#allocation2 + $0x9] sm:$0xff]
      %v891 = vld [vmem:[#allocation2 + $0x11] sm:$0xff]
      %v892 = vld [vmem:[#allocation2 + $0x29] sm:$0xff]
      %v893 = vld [vmem:[#allocation2 + $0x31] sm:$0xff]
      %v894 = vld [vmem:[#allocation2 + $0x49] sm:$0xff]
      %v895 = vld [vmem:[#allocation2 + $0x51] sm:$0xff]
      %v896 = vld [vmem:[#allocation2 + $0x69] sm:$0xff]
      %v897 = vld [vmem:[#allocation2 + $0x71] sm:$0xff]
      %v898 = vld [vmem:[#allocation2 + $0x89] sm:$0xff]
      %v899 = vld [vmem:[#allocation2 + $0x91] sm:$0xff]
      %v900 = vld [vmem:[#allocation2 + $0xa9] sm:$0xff]
      %v901 = vld [vmem:[#allocation2 + $0xb1] sm:$0xff]
      %v902 = vld [vmem:[#allocation2 + $0xc9] sm:$0xff]
      %v903 = vld [vmem:[#allocation2 + $0xd1] sm:$0xff]
      %v904 = vld [vmem:[#allocation2 + $0xe9] sm:$0xff]
      %v905 = vld [vmem:[#allocation2 + $0xf1] sm:$0xff]
      %v906 = vld [vmem:[#allocation2 + $0x109] sm:$0xff]
      %v907 = vld [vmem:[#allocation2 + $0x111] sm:$0xff]
      %v908 = vld [vmem:[#allocation2 + $0x129] sm:$0xff]
      %v909 = vld [vmem:[#allocation2 + $0x131] sm:$0xff]
      %v910 = vld [vmem:[#allocation2 + $0x149] sm:$0xff]
      %v911 = vld [vmem:[#allocation2 + $0x151] sm:$0xff]
      %v912 = vld [vmem:[#allocation2 + $0x169] sm:$0xff]
      %v913 = vld [vmem:[#allocation2 + $0x171] sm:$0xff]
      %v914 = vld [vmem:[#allocation2 + $0x189] sm:$0xff]
      %v915 = vld [vmem:[#allocation2 + $0x191] sm:$0xff]
      %v916 = vld [vmem:[#allocation2 + $0x1a9] sm:$0xff]
      %v917 = vld [vmem:[#allocation2 + $0x1b1] sm:$0xff]
      %v918 = vld [vmem:[#allocation2 + $0x1c9] sm:$0xff]
      %v919 = vld [vmem:[#allocation2 + $0x1d1] sm:$0xff]
      %v920 = vld [vmem:[#allocation2 + $0x1e9] sm:$0xff]
      %v921 = vld [vmem:[#allocation2 + $0x1f1] sm:$0xff]
      %v922 = vld [vmem:[%s1 + $0x4] sm:$0x1]
      %v923 = vlaneseq
      %v924 = vshrl.u32 %v923, 7
      %v925 = vsub.s32 0, %v924
      %v926 = vrot.slane %v922, %v925
      %v927 = vmul.f32 %v890, %v926
      %v928 = vmul.f32 %v891, %v926
      %v929 = vmul.f32 %v892, %v926
      %v930 = vmul.f32 %v893, %v926
      %v931 = vmul.f32 %v894, %v926
      %v932 = vmul.f32 %v895, %v926
      %v933 = vmul.f32 %v896, %v926
      %v934 = vmul.f32 %v897, %v926
      %v935 = vmul.f32 %v898, %v926
      %v936 = vmul.f32 %v899, %v926
      %v937 = vmul.f32 %v900, %v926
      %v938 = vmul.f32 %v901, %v926
      %v939 = vmul.f32 %v902, %v926
      %v940 = vmul.f32 %v903, %v926
      %v941 = vmul.f32 %v904, %v926
      %v942 = vmul.f32 %v905, %v926
      %v943 = vmul.f32 %v906, %v926
      %v944 = vmul.f32 %v907, %v926
      %v945 = vmul.f32 %v908, %v926
      %v946 = vmul.f32 %v909, %v926
      %v947 = vmul.f32 %v910, %v926
      %v948 = vmul.f32 %v911, %v926
      %v949 = vmul.f32 %v912, %v926
      %v950 = vmul.f32 %v913, %v926
      %v951 = vmul.f32 %v914, %v926
      %v952 = vmul.f32 %v915, %v926
      %v953 = vmul.f32 %v916, %v926
      %v954 = vmul.f32 %v917, %v926
      %v955 = vmul.f32 %v918, %v926
      %v956 = vmul.f32 %v919, %v926
      %v957 = vmul.f32 %v920, %v926
      %v958 = vmul.f32 %v921, %v926
      %v959 = vadd.f32 %v858, %v927
      %v960 = vadd.f32 %v859, %v928
      %v961 = vadd.f32 %v860, %v929
      %v962 = vadd.f32 %v861, %v930
      %v963 = vadd.f32 %v862, %v931
      %v964 = vadd.f32 %v863, %v932
      %v965 = vadd.f32 %v864, %v933
      %v966 = vadd.f32 %v865, %v934
      %v967 = vadd.f32 %v866, %v935
      %v968 = vadd.f32 %v867, %v936
      %v969 = vadd.f32 %v868, %v937
      %v970 = vadd.f32 %v869, %v938
      %v971 = vadd.f32 %v870, %v939
      %v972 = vadd.f32 %v871, %v940
      %v973 = vadd.f32 %v872, %v941
      %v974 = vadd.f32 %v873, %v942
      %v975 = vadd.f32 %v874, %v943
      %v976 = vadd.f32 %v875, %v944
      %v977 = vadd.f32 %v876, %v945
      %v978 = vadd.f32 %v877, %v946
      %v979 = vadd.f32 %v878, %v947
      %v980 = vadd.f32 %v879, %v948
      %v981 = vadd.f32 %v880, %v949
      %v982 = vadd.f32 %v881, %v950
      %v983 = vadd.f32 %v882, %v951
      %v984 = vadd.f32 %v883, %v952
      %v985 = vadd.f32 %v884, %v953
      %v986 = vadd.f32 %v885, %v954
      %v987 = vadd.f32 %v886, %v955
      %v988 = vadd.f32 %v887, %v956
      %v989 = vadd.f32 %v888, %v957
      %v990 = vadd.f32 %v889, %v958
      %v991 = vld [vmem:[#allocation2 + $0xa] sm:$0xff]
      %v992 = vld [vmem:[#allocation2 + $0x12] sm:$0xff]
      %v993 = vld [vmem:[#allocation2 + $0x2a] sm:$0xff]
      %v994 = vld [vmem:[#allocation2 + $0x32] sm:$0xff]
      %v995 = vld [vmem:[#allocation2 + $0x4a] sm:$0xff]
      %v996 = vld [vmem:[#allocation2 + $0x52] sm:$0xff]
      %v997 = vld [vmem:[#allocation2 + $0x6a] sm:$0xff]
      %v998 = vld [vmem:[#allocation2 + $0x72] sm:$0xff]
      %v999 = vld [vmem:[#allocation2 + $0x8a] sm:$0xff]
      %v1000 = vld [vmem:[#allocation2 + $0x92] sm:$0xff]
      %v1001 = vld [vmem:[#allocation2 + $0xaa] sm:$0xff]
      %v1002 = vld [vmem:[#allocation2 + $0xb2] sm:$0xff]
      %v1003 = vld [vmem:[#allocation2 + $0xca] sm:$0xff]
      %v1004 = vld [vmem:[#allocation2 + $0xd2] sm:$0xff]
      %v1005 = vld [vmem:[#allocation2 + $0xea] sm:$0xff]
      %v1006 = vld [vmem:[#allocation2 + $0xf2] sm:$0xff]
      %v1007 = vld [vmem:[#allocation2 + $0x10a] sm:$0xff]
      %v1008 = vld [vmem:[#allocation2 + $0x112] sm:$0xff]
      %v1009 = vld [vmem:[#allocation2 + $0x12a] sm:$0xff]
      %v1010 = vld [vmem:[#allocation2 + $0x132] sm:$0xff]
      %v1011 = vld [vmem:[#allocation2 + $0x14a] sm:$0xff]
      %v1012 = vld [vmem:[#allocation2 + $0x152] sm:$0xff]
      %v1013 = vld [vmem:[#allocation2 + $0x16a] sm:$0xff]
      %v1014 = vld [vmem:[#allocation2 + $0x172] sm:$0xff]
      %v1015 = vld [vmem:[#allocation2 + $0x18a] sm:$0xff]
      %v1016 = vld [vmem:[#allocation2 + $0x192] sm:$0xff]
      %v1017 = vld [vmem:[#allocation2 + $0x1aa] sm:$0xff]
      %v1018 = vld [vmem:[#allocation2 + $0x1b2] sm:$0xff]
      %v1019 = vld [vmem:[#allocation2 + $0x1ca] sm:$0xff]
      %v1020 = vld [vmem:[#allocation2 + $0x1d2] sm:$0xff]
      %v1021 = vld [vmem:[#allocation2 + $0x1ea] sm:$0xff]
      %v1022 = vld [vmem:[#allocation2 + $0x1f2] sm:$0xff]
      %v1023 = vld [vmem:[%s1 + $0x5] sm:$0x1]
      %v1024 = vlaneseq
      %v1025 = vshrl.u32 %v1024, 7
      %v1026 = vsub.s32 0, %v1025
      %v1027 = vrot.slane %v1023, %v1026
      %v1028 = vmul.f32 %v991, %v1027
      %v1029 = vmul.f32 %v992, %v1027
      %v1030 = vmul.f32 %v993, %v1027
      %v1031 = vmul.f32 %v994, %v1027
      %v1032 = vmul.f32 %v995, %v1027
      %v1033 = vmul.f32 %v996, %v1027
      %v1034 = vmul.f32 %v997, %v1027
      %v1035 = vmul.f32 %v998, %v1027
      %v1036 = vmul.f32 %v999, %v1027
      %v1037 = vmul.f32 %v1000, %v1027
      %v1038 = vmul.f32 %v1001, %v1027
      %v1039 = vmul.f32 %v1002, %v1027
      %v1040 = vmul.f32 %v1003, %v1027
      %v1041 = vmul.f32 %v1004, %v1027
      %v1042 = vmul.f32 %v1005, %v1027
      %v1043 = vmul.f32 %v1006, %v1027
      %v1044 = vmul.f32 %v1007, %v1027
      %v1045 = vmul.f32 %v1008, %v1027
      %v1046 = vmul.f32 %v1009, %v1027
      %v1047 = vmul.f32 %v1010, %v1027
      %v1048 = vmul.f32 %v1011, %v1027
      %v1049 = vmul.f32 %v1012, %v1027
      %v1050 = vmul.f32 %v1013, %v1027
      %v1051 = vmul.f32 %v1014, %v1027
      %v1052 = vmul.f32 %v1015, %v1027
      %v1053 = vmul.f32 %v1016, %v1027
      %v1054 = vmul.f32 %v1017, %v1027
      %v1055 = vmul.f32 %v1018, %v1027
      %v1056 = vmul.f32 %v1019, %v1027
      %v1057 = vmul.f32 %v1020, %v1027
      %v1058 = vmul.f32 %v1021, %v1027
      %v1059 = vmul.f32 %v1022, %v1027
      %v1060 = vadd.f32 %v959, %v1028
      %v1061 = vadd.f32 %v960, %v1029
      %v1062 = vadd.f32 %v961, %v1030
      %v1063 = vadd.f32 %v962, %v1031
      %v1064 = vadd.f32 %v963, %v1032
      %v1065 = vadd.f32 %v964, %v1033
      %v1066 = vadd.f32 %v965, %v1034
      %v1067 = vadd.f32 %v966, %v1035
      %v1068 = vadd.f32 %v967, %v1036
      %v1069 = vadd.f32 %v968, %v1037
      %v1070 = vadd.f32 %v969, %v1038
      %v1071 = vadd.f32 %v970, %v1039
      %v1072 = vadd.f32 %v971, %v1040
      %v1073 = vadd.f32 %v972, %v1041
      %v1074 = vadd.f32 %v973, %v1042
      %v1075 = vadd.f32 %v974, %v1043
      %v1076 = vadd.f32 %v975, %v1044
      %v1077 = vadd.f32 %v976, %v1045
      %v1078 = vadd.f32 %v977, %v1046
      %v1079 = vadd.f32 %v978, %v1047
      %v1080 = vadd.f32 %v979, %v1048
      %v1081 = vadd.f32 %v980, %v1049
      %v1082 = vadd.f32 %v981, %v1050
      %v1083 = vadd.f32 %v982, %v1051
      %v1084 = vadd.f32 %v983, %v1052
      %v1085 = vadd.f32 %v984, %v1053
      %v1086 = vadd.f32 %v985, %v1054
      %v1087 = vadd.f32 %v986, %v1055
      %v1088 = vadd.f32 %v987, %v1056
      %v1089 = vadd.f32 %v988, %v1057
      %v1090 = vadd.f32 %v989, %v1058
      %v1091 = vadd.f32 %v990, %v1059
      %v1092 = vld [vmem:[#allocation2 + $0xb] sm:$0xff]
      %v1093 = vld [vmem:[#allocation2 + $0x13] sm:$0xff]
      %v1094 = vld [vmem:[#allocation2 + $0x2b] sm:$0xff]
      %v1095 = vld [vmem:[#allocation2 + $0x33] sm:$0xff]
      %v1096 = vld [vmem:[#allocation2 + $0x4b] sm:$0xff]
      %v1097 = vld [vmem:[#allocation2 + $0x53] sm:$0xff]
      %v1098 = vld [vmem:[#allocation2 + $0x6b] sm:$0xff]
      %v1099 = vld [vmem:[#allocation2 + $0x73] sm:$0xff]
      %v1100 = vld [vmem:[#allocation2 + $0x8b] sm:$0xff]
      %v1101 = vld [vmem:[#allocation2 + $0x93] sm:$0xff]
      %v1102 = vld [vmem:[#allocation2 + $0xab] sm:$0xff]
      %v1103 = vld [vmem:[#allocation2 + $0xb3] sm:$0xff]
      %v1104 = vld [vmem:[#allocation2 + $0xcb] sm:$0xff]
      %v1105 = vld [vmem:[#allocation2 + $0xd3] sm:$0xff]
      %v1106 = vld [vmem:[#allocation2 + $0xeb] sm:$0xff]
      %v1107 = vld [vmem:[#allocation2 + $0xf3] sm:$0xff]
      %v1108 = vld [vmem:[#allocation2 + $0x10b] sm:$0xff]
      %v1109 = vld [vmem:[#allocation2 + $0x113] sm:$0xff]
      %v1110 = vld [vmem:[#allocation2 + $0x12b] sm:$0xff]
      %v1111 = vld [vmem:[#allocation2 + $0x133] sm:$0xff]
      %v1112 = vld [vmem:[#allocation2 + $0x14b] sm:$0xff]
      %v1113 = vld [vmem:[#allocation2 + $0x153] sm:$0xff]
      %v1114 = vld [vmem:[#allocation2 + $0x16b] sm:$0xff]
      %v1115 = vld [vmem:[#allocation2 + $0x173] sm:$0xff]
      %v1116 = vld [vmem:[#allocation2 + $0x18b] sm:$0xff]
      %v1117 = vld [vmem:[#allocation2 + $0x193] sm:$0xff]
      %v1118 = vld [vmem:[#allocation2 + $0x1ab] sm:$0xff]
      %v1119 = vld [vmem:[#allocation2 + $0x1b3] sm:$0xff]
      %v1120 = vld [vmem:[#allocation2 + $0x1cb] sm:$0xff]
      %v1121 = vld [vmem:[#allocation2 + $0x1d3] sm:$0xff]
      %v1122 = vld [vmem:[#allocation2 + $0x1eb] sm:$0xff]
      %v1123 = vld [vmem:[#allocation2 + $0x1f3] sm:$0xff]
      %v1124 = vld [vmem:[%s1 + $0x6] sm:$0x1]
      %v1125 = vlaneseq
      %v1126 = vshrl.u32 %v1125, 7
      %v1127 = vsub.s32 0, %v1126
      %v1128 = vrot.slane %v1124, %v1127
      %v1129 = vmul.f32 %v1092, %v1128
      %v1130 = vmul.f32 %v1093, %v1128
      %v1131 = vmul.f32 %v1094, %v1128
      %v1132 = vmul.f32 %v1095, %v1128
      %v1133 = vmul.f32 %v1096, %v1128
      %v1134 = vmul.f32 %v1097, %v1128
      %v1135 = vmul.f32 %v1098, %v1128
      %v1136 = vmul.f32 %v1099, %v1128
      %v1137 = vmul.f32 %v1100, %v1128
      %v1138 = vmul.f32 %v1101, %v1128
      %v1139 = vmul.f32 %v1102, %v1128
      %v1140 = vmul.f32 %v1103, %v1128
      %v1141 = vmul.f32 %v1104, %v1128
      %v1142 = vmul.f32 %v1105, %v1128
      %v1143 = vmul.f32 %v1106, %v1128
      %v1144 = vmul.f32 %v1107, %v1128
      %v1145 = vmul.f32 %v1108, %v1128
      %v1146 = vmul.f32 %v1109, %v1128
      %v1147 = vmul.f32 %v1110, %v1128
      %v1148 = vmul.f32 %v1111, %v1128
      %v1149 = vmul.f32 %v1112, %v1128
      %v1150 = vmul.f32 %v1113, %v1128
      %v1151 = vmul.f32 %v1114, %v1128
      %v1152 = vmul.f32 %v1115, %v1128
      %v1153 = vmul.f32 %v1116, %v1128
      %v1154 = vmul.f32 %v1117, %v1128
      %v1155 = vmul.f32 %v1118, %v1128
      %v1156 = vmul.f32 %v1119, %v1128
      %v1157 = vmul.f32 %v1120, %v1128
      %v1158 = vmul.f32 %v1121, %v1128
      %v1159 = vmul.f32 %v1122, %v1128
      %v1160 = vmul.f32 %v1123, %v1128
      %v1161 = vadd.f32 %v1060, %v1129
      %v1162 = vadd.f32 %v1061, %v1130
      %v1163 = vadd.f32 %v1062, %v1131
      %v1164 = vadd.f32 %v1063, %v1132
      %v1165 = vadd.f32 %v1064, %v1133
      %v1166 = vadd.f32 %v1065, %v1134
      %v1167 = vadd.f32 %v1066, %v1135
      %v1168 = vadd.f32 %v1067, %v1136
      %v1169 = vadd.f32 %v1068, %v1137
      %v1170 = vadd.f32 %v1069, %v1138
      %v1171 = vadd.f32 %v1070, %v1139
      %v1172 = vadd.f32 %v1071, %v1140
      %v1173 = vadd.f32 %v1072, %v1141
      %v1174 = vadd.f32 %v1073, %v1142
      %v1175 = vadd.f32 %v1074, %v1143
      %v1176 = vadd.f32 %v1075, %v1144
      %v1177 = vadd.f32 %v1076, %v1145
      %v1178 = vadd.f32 %v1077, %v1146
      %v1179 = vadd.f32 %v1078, %v1147
      %v1180 = vadd.f32 %v1079, %v1148
      %v1181 = vadd.f32 %v1080, %v1149
      %v1182 = vadd.f32 %v1081, %v1150
      %v1183 = vadd.f32 %v1082, %v1151
      %v1184 = vadd.f32 %v1083, %v1152
      %v1185 = vadd.f32 %v1084, %v1153
      %v1186 = vadd.f32 %v1085, %v1154
      %v1187 = vadd.f32 %v1086, %v1155
      %v1188 = vadd.f32 %v1087, %v1156
      %v1189 = vadd.f32 %v1088, %v1157
      %v1190 = vadd.f32 %v1089, %v1158
      %v1191 = vadd.f32 %v1090, %v1159
      %v1192 = vadd.f32 %v1091, %v1160
      %s1193 = scalar_lea.vmem [#allocation2], 32
      %v1194 = vld [vmem:[%s1193 + $0x5] sm:$0xff]
      %v1195 = vld [vmem:[%s1193 + $0xd] sm:$0xff]
      %v1196 = vld [vmem:[%s1193 + $0x25] sm:$0xff]
      %v1197 = vld [vmem:[%s1193 + $0x2d] sm:$0xff]
      %v1198 = vld [vmem:[%s1193 + $0x45] sm:$0xff]
      %v1199 = vld [vmem:[%s1193 + $0x4d] sm:$0xff]
      %v1200 = vld [vmem:[%s1193 + $0x65] sm:$0xff]
      %v1201 = vld [vmem:[%s1193 + $0x6d] sm:$0xff]
      %v1202 = vld [vmem:[%s1193 + $0x85] sm:$0xff]
      %v1203 = vld [vmem:[%s1193 + $0x8d] sm:$0xff]
      %v1204 = vld [vmem:[%s1193 + $0xa5] sm:$0xff]
      %v1205 = vld [vmem:[%s1193 + $0xad] sm:$0xff]
      %v1206 = vld [vmem:[%s1193 + $0xc5] sm:$0xff]
      %v1207 = vld [vmem:[%s1193 + $0xcd] sm:$0xff]
      %v1208 = vld [vmem:[%s1193 + $0xe5] sm:$0xff]
      %v1209 = vld [vmem:[%s1193 + $0xed] sm:$0xff]
      %v1210 = vld [vmem:[%s1193 + $0x105] sm:$0xff]
      %v1211 = vld [vmem:[%s1193 + $0x10d] sm:$0xff]
      %v1212 = vld [vmem:[%s1193 + $0x125] sm:$0xff]
      %v1213 = vld [vmem:[%s1193 + $0x12d] sm:$0xff]
      %v1214 = vld [vmem:[%s1193 + $0x145] sm:$0xff]
      %v1215 = vld [vmem:[%s1193 + $0x14d] sm:$0xff]
      %v1216 = vld [vmem:[%s1193 + $0x165] sm:$0xff]
      %v1217 = vld [vmem:[%s1193 + $0x16d] sm:$0xff]
      %v1218 = vld [vmem:[%s1193 + $0x185] sm:$0xff]
      %v1219 = vld [vmem:[%s1193 + $0x18d] sm:$0xff]
      %v1220 = vld [vmem:[%s1193 + $0x1a5] sm:$0xff]
      %v1221 = vld [vmem:[%s1193 + $0x1ad] sm:$0xff]
      %v1222 = vld [vmem:[%s1193 + $0x1c5] sm:$0xff]
      %v1223 = vld [vmem:[%s1193 + $0x1cd] sm:$0xff]
      %v1224 = vld [vmem:[%s1193 + $0x1e5] sm:$0xff]
      %v1225 = vld [vmem:[%s1193 + $0x1ed] sm:$0xff]
      %v1226 = vld [vmem:[%s1 + $0x7] sm:$0x1]
      %v1227 = vlaneseq
      %v1228 = vshrl.u32 %v1227, 7
      %v1229 = vsub.s32 0, %v1228
      %v1230 = vrot.slane %v1226, %v1229
      %v1231 = vmul.f32 %v1194, %v1230
      %v1232 = vmul.f32 %v1195, %v1230
      %v1233 = vmul.f32 %v1196, %v1230
      %v1234 = vmul.f32 %v1197, %v1230
      %v1235 = vmul.f32 %v1198, %v1230
      %v1236 = vmul.f32 %v1199, %v1230
      %v1237 = vmul.f32 %v1200, %v1230
      %v1238 = vmul.f32 %v1201, %v1230
      %v1239 = vmul.f32 %v1202, %v1230
      %v1240 = vmul.f32 %v1203, %v1230
      %v1241 = vmul.f32 %v1204, %v1230
      %v1242 = vmul.f32 %v1205, %v1230
      %v1243 = vmul.f32 %v1206, %v1230
      %v1244 = vmul.f32 %v1207, %v1230
      %v1245 = vmul.f32 %v1208, %v1230
      %v1246 = vmul.f32 %v1209, %v1230
      %v1247 = vmul.f32 %v1210, %v1230
      %v1248 = vmul.f32 %v1211, %v1230
      %v1249 = vmul.f32 %v1212, %v1230
      %v1250 = vmul.f32 %v1213, %v1230
      %v1251 = vmul.f32 %v1214, %v1230
      %v1252 = vmul.f32 %v1215, %v1230
      %v1253 = vmul.f32 %v1216, %v1230
      %v1254 = vmul.f32 %v1217, %v1230
      %v1255 = vmul.f32 %v1218, %v1230
      %v1256 = vmul.f32 %v1219, %v1230
      %v1257 = vmul.f32 %v1220, %v1230
      %v1258 = vmul.f32 %v1221, %v1230
      %v1259 = vmul.f32 %v1222, %v1230
      %v1260 = vmul.f32 %v1223, %v1230
      %v1261 = vmul.f32 %v1224, %v1230
      %v1262 = vmul.f32 %v1225, %v1230
      %v1263 = vadd.f32 %v1161, %v1231
      %v1264 = vadd.f32 %v1162, %v1232
      %v1265 = vadd.f32 %v1163, %v1233
      %v1266 = vadd.f32 %v1164, %v1234
      %v1267 = vadd.f32 %v1165, %v1235
      %v1268 = vadd.f32 %v1166, %v1236
      %v1269 = vadd.f32 %v1167, %v1237
      %v1270 = vadd.f32 %v1168, %v1238
      %v1271 = vadd.f32 %v1169, %v1239
      %v1272 = vadd.f32 %v1170, %v1240
      %v1273 = vadd.f32 %v1171, %v1241
      %v1274 = vadd.f32 %v1172, %v1242
      %v1275 = vadd.f32 %v1173, %v1243
      %v1276 = vadd.f32 %v1174, %v1244
      %v1277 = vadd.f32 %v1175, %v1245
      %v1278 = vadd.f32 %v1176, %v1246
      %v1279 = vadd.f32 %v1177, %v1247
      %v1280 = vadd.f32 %v1178, %v1248
      %v1281 = vadd.f32 %v1179, %v1249
      %v1282 = vadd.f32 %v1180, %v1250
      %v1283 = vadd.f32 %v1181, %v1251
      %v1284 = vadd.f32 %v1182, %v1252
      %v1285 = vadd.f32 %v1183, %v1253
      %v1286 = vadd.f32 %v1184, %v1254
      %v1287 = vadd.f32 %v1185, %v1255
      %v1288 = vadd.f32 %v1186, %v1256
      %v1289 = vadd.f32 %v1187, %v1257
      %v1290 = vadd.f32 %v1188, %v1258
      %v1291 = vadd.f32 %v1189, %v1259
      %v1292 = vadd.f32 %v1190, %v1260
      %v1293 = vadd.f32 %v1191, %v1261
      %v1294 = vadd.f32 %v1192, %v1262
      %v1295 = vld [vmem:[%s1193 + $0x6] sm:$0xff]
      %v1296 = vld [vmem:[%s1193 + $0xe] sm:$0xff]
      %v1297 = vld [vmem:[%s1193 + $0x26] sm:$0xff]
      %v1298 = vld [vmem:[%s1193 + $0x2e] sm:$0xff]
      %v1299 = vld [vmem:[%s1193 + $0x46] sm:$0xff]
      %v1300 = vld [vmem:[%s1193 + $0x4e] sm:$0xff]
      %v1301 = vld [vmem:[%s1193 + $0x66] sm:$0xff]
      %v1302 = vld [vmem:[%s1193 + $0x6e] sm:$0xff]
      %v1303 = vld [vmem:[%s1193 + $0x86] sm:$0xff]
      %v1304 = vld [vmem:[%s1193 + $0x8e] sm:$0xff]
      %v1305 = vld [vmem:[%s1193 + $0xa6] sm:$0xff]
      %v1306 = vld [vmem:[%s1193 + $0xae] sm:$0xff]
      %v1307 = vld [vmem:[%s1193 + $0xc6] sm:$0xff]
      %v1308 = vld [vmem:[%s1193 + $0xce] sm:$0xff]
      %v1309 = vld [vmem:[%s1193 + $0xe6] sm:$0xff]
      %v1310 = vld [vmem:[%s1193 + $0xee] sm:$0xff]
      %v1311 = vld [vmem:[%s1193 + $0x106] sm:$0xff]
      %v1312 = vld [vmem:[%s1193 + $0x10e] sm:$0xff]
      %v1313 = vld [vmem:[%s1193 + $0x126] sm:$0xff]
      %v1314 = vld [vmem:[%s1193 + $0x12e] sm:$0xff]
      %v1315 = vld [vmem:[%s1193 + $0x146] sm:$0xff]
      %v1316 = vld [vmem:[%s1193 + $0x14e] sm:$0xff]
      %v1317 = vld [vmem:[%s1193 + $0x166] sm:$0xff]
      %v1318 = vld [vmem:[%s1193 + $0x16e] sm:$0xff]
      %v1319 = vld [vmem:[%s1193 + $0x186] sm:$0xff]
      %v1320 = vld [vmem:[%s1193 + $0x18e] sm:$0xff]
      %v1321 = vld [vmem:[%s1193 + $0x1a6] sm:$0xff]
      %v1322 = vld [vmem:[%s1193 + $0x1ae] sm:$0xff]
      %v1323 = vld [vmem:[%s1193 + $0x1c6] sm:$0xff]
      %v1324 = vld [vmem:[%s1193 + $0x1ce] sm:$0xff]
      %v1325 = vld [vmem:[%s1193 + $0x1e6] sm:$0xff]
      %v1326 = vld [vmem:[%s1193 + $0x1ee] sm:$0xff]
      %v1327 = vld [vmem:[%s1 + $0x8] sm:$0x1]
      %v1328 = vlaneseq
      %v1329 = vshrl.u32 %v1328, 7
      %v1330 = vsub.s32 0, %v1329
      %v1331 = vrot.slane %v1327, %v1330
      %v1332 = vmul.f32 %v1295, %v1331
      %v1333 = vmul.f32 %v1296, %v1331
      %v1334 = vmul.f32 %v1297, %v1331
      %v1335 = vmul.f32 %v1298, %v1331
      %v1336 = vmul.f32 %v1299, %v1331
      %v1337 = vmul.f32 %v1300, %v1331
      %v1338 = vmul.f32 %v1301, %v1331
      %v1339 = vmul.f32 %v1302, %v1331
      %v1340 = vmul.f32 %v1303, %v1331
      %v1341 = vmul.f32 %v1304, %v1331
      %v1342 = vmul.f32 %v1305, %v1331
      %v1343 = vmul.f32 %v1306, %v1331
      %v1344 = vmul.f32 %v1307, %v1331
      %v1345 = vmul.f32 %v1308, %v1331
      %v1346 = vmul.f32 %v1309, %v1331
      %v1347 = vmul.f32 %v1310, %v1331
      %v1348 = vmul.f32 %v1311, %v1331
      %v1349 = vmul.f32 %v1312, %v1331
      %v1350 = vmul.f32 %v1313, %v1331
      %v1351 = vmul.f32 %v1314, %v1331
      %v1352 = vmul.f32 %v1315, %v1331
      %v1353 = vmul.f32 %v1316, %v1331
      %v1354 = vmul.f32 %v1317, %v1331
      %v1355 = vmul.f32 %v1318, %v1331
      %v1356 = vmul.f32 %v1319, %v1331
      %v1357 = vmul.f32 %v1320, %v1331
      %v1358 = vmul.f32 %v1321, %v1331
      %v1359 = vmul.f32 %v1322, %v1331
      %v1360 = vmul.f32 %v1323, %v1331
      %v1361 = vmul.f32 %v1324, %v1331
      %v1362 = vmul.f32 %v1325, %v1331
      %v1363 = vmul.f32 %v1326, %v1331
      %v1364 = vadd.f32 %v1263, %v1332
      %v1365 = vadd.f32 %v1264, %v1333
      %v1366 = vadd.f32 %v1265, %v1334
      %v1367 = vadd.f32 %v1266, %v1335
      %v1368 = vadd.f32 %v1267, %v1336
      %v1369 = vadd.f32 %v1268, %v1337
      %v1370 = vadd.f32 %v1269, %v1338
      %v1371 = vadd.f32 %v1270, %v1339
      %v1372 = vadd.f32 %v1271, %v1340
      %v1373 = vadd.f32 %v1272, %v1341
      %v1374 = vadd.f32 %v1273, %v1342
      %v1375 = vadd.f32 %v1274, %v1343
      %v1376 = vadd.f32 %v1275, %v1344
      %v1377 = vadd.f32 %v1276, %v1345
      %v1378 = vadd.f32 %v1277, %v1346
      %v1379 = vadd.f32 %v1278, %v1347
      %v1380 = vadd.f32 %v1279, %v1348
      %v1381 = vadd.f32 %v1280, %v1349
      %v1382 = vadd.f32 %v1281, %v1350
      %v1383 = vadd.f32 %v1282, %v1351
      %v1384 = vadd.f32 %v1283, %v1352
      %v1385 = vadd.f32 %v1284, %v1353
      %v1386 = vadd.f32 %v1285, %v1354
      %v1387 = vadd.f32 %v1286, %v1355
      %v1388 = vadd.f32 %v1287, %v1356
      %v1389 = vadd.f32 %v1288, %v1357
      %v1390 = vadd.f32 %v1289, %v1358
      %v1391 = vadd.f32 %v1290, %v1359
      %v1392 = vadd.f32 %v1291, %v1360
      %v1393 = vadd.f32 %v1292, %v1361
      %v1394 = vadd.f32 %v1293, %v1362
      %v1395 = vadd.f32 %v1294, %v1363
      %v1396 = vld [vmem:[%s1193 + $0x7] sm:$0xff]
      %v1397 = vld [vmem:[%s1193 + $0xf] sm:$0xff]
      %v1398 = vld [vmem:[%s1193 + $0x27] sm:$0xff]
      %v1399 = vld [vmem:[%s1193 + $0x2f] sm:$0xff]
      %v1400 = vld [vmem:[%s1193 + $0x47] sm:$0xff]
      %v1401 = vld [vmem:[%s1193 + $0x4f] sm:$0xff]
      %v1402 = vld [vmem:[%s1193 + $0x67] sm:$0xff]
      %v1403 = vld [vmem:[%s1193 + $0x6f] sm:$0xff]
      %v1404 = vld [vmem:[%s1193 + $0x87] sm:$0xff]
      %v1405 = vld [vmem:[%s1193 + $0x8f] sm:$0xff]
      %v1406 = vld [vmem:[%s1193 + $0xa7] sm:$0xff]
      %v1407 = vld [vmem:[%s1193 + $0xaf] sm:$0xff]
      %v1408 = vld [vmem:[%s1193 + $0xc7] sm:$0xff]
      %v1409 = vld [vmem:[%s1193 + $0xcf] sm:$0xff]
      %v1410 = vld [vmem:[%s1193 + $0xe7] sm:$0xff]
      %v1411 = vld [vmem:[%s1193 + $0xef] sm:$0xff]
      %v1412 = vld [vmem:[%s1193 + $0x107] sm:$0xff]
      %v1413 = vld [vmem:[%s1193 + $0x10f] sm:$0xff]
      %v1414 = vld [vmem:[%s1193 + $0x127] sm:$0xff]
      %v1415 = vld [vmem:[%s1193 + $0x12f] sm:$0xff]
      %v1416 = vld [vmem:[%s1193 + $0x147] sm:$0xff]
      %v1417 = vld [vmem:[%s1193 + $0x14f] sm:$0xff]
      %v1418 = vld [vmem:[%s1193 + $0x167] sm:$0xff]
      %v1419 = vld [vmem:[%s1193 + $0x16f] sm:$0xff]
      %v1420 = vld [vmem:[%s1193 + $0x187] sm:$0xff]
      %v1421 = vld [vmem:[%s1193 + $0x18f] sm:$0xff]
      %v1422 = vld [vmem:[%s1193 + $0x1a7] sm:$0xff]
      %v1423 = vld [vmem:[%s1193 + $0x1af] sm:$0xff]
      %v1424 = vld [vmem:[%s1193 + $0x1c7] sm:$0xff]
      %v1425 = vld [vmem:[%s1193 + $0x1cf] sm:$0xff]
      %v1426 = vld [vmem:[%s1193 + $0x1e7] sm:$0xff]
      %v1427 = vld [vmem:[%s1193 + $0x1ef] sm:$0xff]
      %v1428 = vld [vmem:[%s1 + $0x9] sm:$0x1]
      %v1429 = vlaneseq
      %v1430 = vshrl.u32 %v1429, 7
      %v1431 = vsub.s32 0, %v1430
      %v1432 = vrot.slane %v1428, %v1431
      %v1433 = vmul.f32 %v1396, %v1432
      %v1434 = vmul.f32 %v1397, %v1432
      %v1435 = vmul.f32 %v1398, %v1432
      %v1436 = vmul.f32 %v1399, %v1432
      %v1437 = vmul.f32 %v1400, %v1432
      %v1438 = vmul.f32 %v1401, %v1432
      %v1439 = vmul.f32 %v1402, %v1432
      %v1440 = vmul.f32 %v1403, %v1432
      %v1441 = vmul.f32 %v1404, %v1432
      %v1442 = vmul.f32 %v1405, %v1432
      %v1443 = vmul.f32 %v1406, %v1432
      %v1444 = vmul.f32 %v1407, %v1432
      %v1445 = vmul.f32 %v1408, %v1432
      %v1446 = vmul.f32 %v1409, %v1432
      %v1447 = vmul.f32 %v1410, %v1432
      %v1448 = vmul.f32 %v1411, %v1432
      %v1449 = vmul.f32 %v1412, %v1432
      %v1450 = vmul.f32 %v1413, %v1432
      %v1451 = vmul.f32 %v1414, %v1432
      %v1452 = vmul.f32 %v1415, %v1432
      %v1453 = vmul.f32 %v1416, %v1432
      %v1454 = vmul.f32 %v1417, %v1432
      %v1455 = vmul.f32 %v1418, %v1432
      %v1456 = vmul.f32 %v1419, %v1432
      %v1457 = vmul.f32 %v1420, %v1432
      %v1458 = vmul.f32 %v1421, %v1432
      %v1459 = vmul.f32 %v1422, %v1432
      %v1460 = vmul.f32 %v1423, %v1432
      %v1461 = vmul.f32 %v1424, %v1432
      %v1462 = vmul.f32 %v1425, %v1432
      %v1463 = vmul.f32 %v1426, %v1432
      %v1464 = vmul.f32 %v1427, %v1432
      %v1465 = vadd.f32 %v1364, %v1433
      %v1466 = vadd.f32 %v1365, %v1434
      %v1467 = vadd.f32 %v1366, %v1435
      %v1468 = vadd.f32 %v1367, %v1436
      %v1469 = vadd.f32 %v1368, %v1437
      %v1470 = vadd.f32 %v1369, %v1438
      %v1471 = vadd.f32 %v1370, %v1439
      %v1472 = vadd.f32 %v1371, %v1440
      %v1473 = vadd.f32 %v1372, %v1441
      %v1474 = vadd.f32 %v1373, %v1442
      %v1475 = vadd.f32 %v1374, %v1443
      %v1476 = vadd.f32 %v1375, %v1444
      %v1477 = vadd.f32 %v1376, %v1445
      %v1478 = vadd.f32 %v1377, %v1446
      %v1479 = vadd.f32 %v1378, %v1447
      %v1480 = vadd.f32 %v1379, %v1448
      %v1481 = vadd.f32 %v1380, %v1449
      %v1482 = vadd.f32 %v1381, %v1450
      %v1483 = vadd.f32 %v1382, %v1451
      %v1484 = vadd.f32 %v1383, %v1452
      %v1485 = vadd.f32 %v1384, %v1453
      %v1486 = vadd.f32 %v1385, %v1454
      %v1487 = vadd.f32 %v1386, %v1455
      %v1488 = vadd.f32 %v1387, %v1456
      %v1489 = vadd.f32 %v1388, %v1457
      %v1490 = vadd.f32 %v1389, %v1458
      %v1491 = vadd.f32 %v1390, %v1459
      %v1492 = vadd.f32 %v1391, %v1460
      %v1493 = vadd.f32 %v1392, %v1461
      %v1494 = vadd.f32 %v1393, %v1462
      %v1495 = vadd.f32 %v1394, %v1463
      %v1496 = vadd.f32 %v1395, %v1464
      %v1497 = vld [vmem:[%s1193 + $0x8] sm:$0xff]
      %v1498 = vld [vmem:[%s1193 + $0x10] sm:$0xff]
      %v1499 = vld [vmem:[%s1193 + $0x28] sm:$0xff]
      %v1500 = vld [vmem:[%s1193 + $0x30] sm:$0xff]
      %v1501 = vld [vmem:[%s1193 + $0x48] sm:$0xff]
      %v1502 = vld [vmem:[%s1193 + $0x50] sm:$0xff]
      %v1503 = vld [vmem:[%s1193 + $0x68] sm:$0xff]
      %v1504 = vld [vmem:[%s1193 + $0x70] sm:$0xff]
      %v1505 = vld [vmem:[%s1193 + $0x88] sm:$0xff]
      %v1506 = vld [vmem:[%s1193 + $0x90] sm:$0xff]
      %v1507 = vld [vmem:[%s1193 + $0xa8] sm:$0xff]
      %v1508 = vld [vmem:[%s1193 + $0xb0] sm:$0xff]
      %v1509 = vld [vmem:[%s1193 + $0xc8] sm:$0xff]
      %v1510 = vld [vmem:[%s1193 + $0xd0] sm:$0xff]
      %v1511 = vld [vmem:[%s1193 + $0xe8] sm:$0xff]
      %v1512 = vld [vmem:[%s1193 + $0xf0] sm:$0xff]
      %v1513 = vld [vmem:[%s1193 + $0x108] sm:$0xff]
      %v1514 = vld [vmem:[%s1193 + $0x110] sm:$0xff]
      %v1515 = vld [vmem:[%s1193 + $0x128] sm:$0xff]
      %v1516 = vld [vmem:[%s1193 + $0x130] sm:$0xff]
      %v1517 = vld [vmem:[%s1193 + $0x148] sm:$0xff]
      %v1518 = vld [vmem:[%s1193 + $0x150] sm:$0xff]
      %v1519 = vld [vmem:[%s1193 + $0x168] sm:$0xff]
      %v1520 = vld [vmem:[%s1193 + $0x170] sm:$0xff]
      %v1521 = vld [vmem:[%s1193 + $0x188] sm:$0xff]
      %v1522 = vld [vmem:[%s1193 + $0x190] sm:$0xff]
      %v1523 = vld [vmem:[%s1193 + $0x1a8] sm:$0xff]
      %v1524 = vld [vmem:[%s1193 + $0x1b0] sm:$0xff]
      %v1525 = vld [vmem:[%s1193 + $0x1c8] sm:$0xff]
      %v1526 = vld [vmem:[%s1193 + $0x1d0] sm:$0xff]
      %v1527 = vld [vmem:[%s1193 + $0x1e8] sm:$0xff]
      %v1528 = vld [vmem:[%s1193 + $0x1f0] sm:$0xff]
      %v1529 = vld [vmem:[%s1 + $0xa] sm:$0x1]
      %v1530 = vlaneseq
      %v1531 = vshrl.u32 %v1530, 7
      %v1532 = vsub.s32 0, %v1531
      %v1533 = vrot.slane %v1529, %v1532
      %v1534 = vmul.f32 %v1497, %v1533
      %v1535 = vmul.f32 %v1498, %v1533
      %v1536 = vmul.f32 %v1499, %v1533
      %v1537 = vmul.f32 %v1500, %v1533
      %v1538 = vmul.f32 %v1501, %v1533
      %v1539 = vmul.f32 %v1502, %v1533
      %v1540 = vmul.f32 %v1503, %v1533
      %v1541 = vmul.f32 %v1504, %v1533
      %v1542 = vmul.f32 %v1505, %v1533
      %v1543 = vmul.f32 %v1506, %v1533
      %v1544 = vmul.f32 %v1507, %v1533
      %v1545 = vmul.f32 %v1508, %v1533
      %v1546 = vmul.f32 %v1509, %v1533
      %v1547 = vmul.f32 %v1510, %v1533
      %v1548 = vmul.f32 %v1511, %v1533
      %v1549 = vmul.f32 %v1512, %v1533
      %v1550 = vmul.f32 %v1513, %v1533
      %v1551 = vmul.f32 %v1514, %v1533
      %v1552 = vmul.f32 %v1515, %v1533
      %v1553 = vmul.f32 %v1516, %v1533
      %v1554 = vmul.f32 %v1517, %v1533
      %v1555 = vmul.f32 %v1518, %v1533
      %v1556 = vmul.f32 %v1519, %v1533
      %v1557 = vmul.f32 %v1520, %v1533
      %v1558 = vmul.f32 %v1521, %v1533
      %v1559 = vmul.f32 %v1522, %v1533
      %v1560 = vmul.f32 %v1523, %v1533
      %v1561 = vmul.f32 %v1524, %v1533
      %v1562 = vmul.f32 %v1525, %v1533
      %v1563 = vmul.f32 %v1526, %v1533
      %v1564 = vmul.f32 %v1527, %v1533
      %v1565 = vmul.f32 %v1528, %v1533
      %v1566 = vadd.f32 %v1465, %v1534
      %v1567 = vadd.f32 %v1466, %v1535
      %v1568 = vadd.f32 %v1467, %v1536
      %v1569 = vadd.f32 %v1468, %v1537
      %v1570 = vadd.f32 %v1469, %v1538
      %v1571 = vadd.f32 %v1470, %v1539
      %v1572 = vadd.f32 %v1471, %v1540
      %v1573 = vadd.f32 %v1472, %v1541
      %v1574 = vadd.f32 %v1473, %v1542
      %v1575 = vadd.f32 %v1474, %v1543
      %v1576 = vadd.f32 %v1475, %v1544
      %v1577 = vadd.f32 %v1476, %v1545
      %v1578 = vadd.f32 %v1477, %v1546
      %v1579 = vadd.f32 %v1478, %v1547
      %v1580 = vadd.f32 %v1479, %v1548
      %v1581 = vadd.f32 %v1480, %v1549
      %v1582 = vadd.f32 %v1481, %v1550
      %v1583 = vadd.f32 %v1482, %v1551
      %v1584 = vadd.f32 %v1483, %v1552
      %v1585 = vadd.f32 %v1484, %v1553
      %v1586 = vadd.f32 %v1485, %v1554
      %v1587 = vadd.f32 %v1486, %v1555
      %v1588 = vadd.f32 %v1487, %v1556
      %v1589 = vadd.f32 %v1488, %v1557
      %v1590 = vadd.f32 %v1489, %v1558
      %v1591 = vadd.f32 %v1490, %v1559
      %v1592 = vadd.f32 %v1491, %v1560
      %v1593 = vadd.f32 %v1492, %v1561
      %v1594 = vadd.f32 %v1493, %v1562
      %v1595 = vadd.f32 %v1494, %v1563
      %v1596 = vadd.f32 %v1495, %v1564
      %v1597 = vadd.f32 %v1496, %v1565
      %v1598 = vld [vmem:[%s1193 + $0x9] sm:$0xff]
      %v1599 = vld [vmem:[%s1193 + $0x11] sm:$0xff]
      %v1600 = vld [vmem:[%s1193 + $0x29] sm:$0xff]
      %v1601 = vld [vmem:[%s1193 + $0x31] sm:$0xff]
      %v1602 = vld [vmem:[%s1193 + $0x49] sm:$0xff]
      %v1603 = vld [vmem:[%s1193 + $0x51] sm:$0xff]
      %v1604 = vld [vmem:[%s1193 + $0x69] sm:$0xff]
      %v1605 = vld [vmem:[%s1193 + $0x71] sm:$0xff]
      %v1606 = vld [vmem:[%s1193 + $0x89] sm:$0xff]
      %v1607 = vld [vmem:[%s1193 + $0x91] sm:$0xff]
      %v1608 = vld [vmem:[%s1193 + $0xa9] sm:$0xff]
      %v1609 = vld [vmem:[%s1193 + $0xb1] sm:$0xff]
      %v1610 = vld [vmem:[%s1193 + $0xc9] sm:$0xff]
      %v1611 = vld [vmem:[%s1193 + $0xd1] sm:$0xff]
      %v1612 = vld [vmem:[%s1193 + $0xe9] sm:$0xff]
      %v1613 = vld [vmem:[%s1193 + $0xf1] sm:$0xff]
      %v1614 = vld [vmem:[%s1193 + $0x109] sm:$0xff]
      %v1615 = vld [vmem:[%s1193 + $0x111] sm:$0xff]
      %v1616 = vld [vmem:[%s1193 + $0x129] sm:$0xff]
      %v1617 = vld [vmem:[%s1193 + $0x131] sm:$0xff]
      %v1618 = vld [vmem:[%s1193 + $0x149] sm:$0xff]
      %v1619 = vld [vmem:[%s1193 + $0x151] sm:$0xff]
      %v1620 = vld [vmem:[%s1193 + $0x169] sm:$0xff]
      %v1621 = vld [vmem:[%s1193 + $0x171] sm:$0xff]
      %v1622 = vld [vmem:[%s1193 + $0x189] sm:$0xff]
      %v1623 = vld [vmem:[%s1193 + $0x191] sm:$0xff]
      %v1624 = vld [vmem:[%s1193 + $0x1a9] sm:$0xff]
      %v1625 = vld [vmem:[%s1193 + $0x1b1] sm:$0xff]
      %v1626 = vld [vmem:[%s1193 + $0x1c9] sm:$0xff]
      %v1627 = vld [vmem:[%s1193 + $0x1d1] sm:$0xff]
      %v1628 = vld [vmem:[%s1193 + $0x1e9] sm:$0xff]
      %v1629 = vld [vmem:[%s1193 + $0x1f1] sm:$0xff]
      %v1630 = vld [vmem:[%s1 + $0xb] sm:$0x1]
      %v1631 = vlaneseq
      %v1632 = vshrl.u32 %v1631, 7
      %v1633 = vsub.s32 0, %v1632
      %v1634 = vrot.slane %v1630, %v1633
      %v1635 = vmul.f32 %v1598, %v1634
      %v1636 = vmul.f32 %v1599, %v1634
      %v1637 = vmul.f32 %v1600, %v1634
      %v1638 = vmul.f32 %v1601, %v1634
      %v1639 = vmul.f32 %v1602, %v1634
      %v1640 = vmul.f32 %v1603, %v1634
      %v1641 = vmul.f32 %v1604, %v1634
      %v1642 = vmul.f32 %v1605, %v1634
      %v1643 = vmul.f32 %v1606, %v1634
      %v1644 = vmul.f32 %v1607, %v1634
      %v1645 = vmul.f32 %v1608, %v1634
      %v1646 = vmul.f32 %v1609, %v1634
      %v1647 = vmul.f32 %v1610, %v1634
      %v1648 = vmul.f32 %v1611, %v1634
      %v1649 = vmul.f32 %v1612, %v1634
      %v1650 = vmul.f32 %v1613, %v1634
      %v1651 = vmul.f32 %v1614, %v1634
      %v1652 = vmul.f32 %v1615, %v1634
      %v1653 = vmul.f32 %v1616, %v1634
      %v1654 = vmul.f32 %v1617, %v1634
      %v1655 = vmul.f32 %v1618, %v1634
      %v1656 = vmul.f32 %v1619, %v1634
      %v1657 = vmul.f32 %v1620, %v1634
      %v1658 = vmul.f32 %v1621, %v1634
      %v1659 = vmul.f32 %v1622, %v1634
      %v1660 = vmul.f32 %v1623, %v1634
      %v1661 = vmul.f32 %v1624, %v1634
      %v1662 = vmul.f32 %v1625, %v1634
      %v1663 = vmul.f32 %v1626, %v1634
      %v1664 = vmul.f32 %v1627, %v1634
      %v1665 = vmul.f32 %v1628, %v1634
      %v1666 = vmul.f32 %v1629, %v1634
      %v1667 = vadd.f32 %v1566, %v1635
      %v1668 = vadd.f32 %v1567, %v1636
      %v1669 = vadd.f32 %v1568, %v1637
      %v1670 = vadd.f32 %v1569, %v1638
      %v1671 = vadd.f32 %v1570, %v1639
      %v1672 = vadd.f32 %v1571, %v1640
      %v1673 = vadd.f32 %v1572, %v1641
      %v1674 = vadd.f32 %v1573, %v1642
      %v1675 = vadd.f32 %v1574, %v1643
      %v1676 = vadd.f32 %v1575, %v1644
      %v1677 = vadd.f32 %v1576, %v1645
      %v1678 = vadd.f32 %v1577, %v1646
      %v1679 = vadd.f32 %v1578, %v1647
      %v1680 = vadd.f32 %v1579, %v1648
      %v1681 = vadd.f32 %v1580, %v1649
      %v1682 = vadd.f32 %v1581, %v1650
      %v1683 = vadd.f32 %v1582, %v1651
      %v1684 = vadd.f32 %v1583, %v1652
      %v1685 = vadd.f32 %v1584, %v1653
      %v1686 = vadd.f32 %v1585, %v1654
      %v1687 = vadd.f32 %v1586, %v1655
      %v1688 = vadd.f32 %v1587, %v1656
      %v1689 = vadd.f32 %v1588, %v1657
      %v1690 = vadd.f32 %v1589, %v1658
      %v1691 = vadd.f32 %v1590, %v1659
      %v1692 = vadd.f32 %v1591, %v1660
      %v1693 = vadd.f32 %v1592, %v1661
      %v1694 = vadd.f32 %v1593, %v1662
      %v1695 = vadd.f32 %v1594, %v1663
      %v1696 = vadd.f32 %v1595, %v1664
      %v1697 = vadd.f32 %v1596, %v1665
      %v1698 = vadd.f32 %v1597, %v1666
      %v1699 = vld [vmem:[%s1193 + $0xa] sm:$0xff]
      %v1700 = vld [vmem:[%s1193 + $0x12] sm:$0xff]
      %v1701 = vld [vmem:[%s1193 + $0x2a] sm:$0xff]
      %v1702 = vld [vmem:[%s1193 + $0x32] sm:$0xff]
      %v1703 = vld [vmem:[%s1193 + $0x4a] sm:$0xff]
      %v1704 = vld [vmem:[%s1193 + $0x52] sm:$0xff]
      %v1705 = vld [vmem:[%s1193 + $0x6a] sm:$0xff]
      %v1706 = vld [vmem:[%s1193 + $0x72] sm:$0xff]
      %v1707 = vld [vmem:[%s1193 + $0x8a] sm:$0xff]
      %v1708 = vld [vmem:[%s1193 + $0x92] sm:$0xff]
      %v1709 = vld [vmem:[%s1193 + $0xaa] sm:$0xff]
      %v1710 = vld [vmem:[%s1193 + $0xb2] sm:$0xff]
      %v1711 = vld [vmem:[%s1193 + $0xca] sm:$0xff]
      %v1712 = vld [vmem:[%s1193 + $0xd2] sm:$0xff]
      %v1713 = vld [vmem:[%s1193 + $0xea] sm:$0xff]
      %v1714 = vld [vmem:[%s1193 + $0xf2] sm:$0xff]
      %v1715 = vld [vmem:[%s1193 + $0x10a] sm:$0xff]
      %v1716 = vld [vmem:[%s1193 + $0x112] sm:$0xff]
      %v1717 = vld [vmem:[%s1193 + $0x12a] sm:$0xff]
      %v1718 = vld [vmem:[%s1193 + $0x132] sm:$0xff]
      %v1719 = vld [vmem:[%s1193 + $0x14a] sm:$0xff]
      %v1720 = vld [vmem:[%s1193 + $0x152] sm:$0xff]
      %v1721 = vld [vmem:[%s1193 + $0x16a] sm:$0xff]
      %v1722 = vld [vmem:[%s1193 + $0x172] sm:$0xff]
      %v1723 = vld [vmem:[%s1193 + $0x18a] sm:$0xff]
      %v1724 = vld [vmem:[%s1193 + $0x192] sm:$0xff]
      %v1725 = vld [vmem:[%s1193 + $0x1aa] sm:$0xff]
      %v1726 = vld [vmem:[%s1193 + $0x1b2] sm:$0xff]
      %v1727 = vld [vmem:[%s1193 + $0x1ca] sm:$0xff]
      %v1728 = vld [vmem:[%s1193 + $0x1d2] sm:$0xff]
      %v1729 = vld [vmem:[%s1193 + $0x1ea] sm:$0xff]
      %v1730 = vld [vmem:[%s1193 + $0x1f2] sm:$0xff]
      %v1731 = vld [vmem:[%s1 + $0xc] sm:$0x1]
      %v1732 = vlaneseq
      %v1733 = vshrl.u32 %v1732, 7
      %v1734 = vsub.s32 0, %v1733
      %v1735 = vrot.slane %v1731, %v1734
      %v1736 = vmul.f32 %v1699, %v1735
      %v1737 = vmul.f32 %v1700, %v1735
      %v1738 = vmul.f32 %v1701, %v1735
      %v1739 = vmul.f32 %v1702, %v1735
      %v1740 = vmul.f32 %v1703, %v1735
      %v1741 = vmul.f32 %v1704, %v1735
      %v1742 = vmul.f32 %v1705, %v1735
      %v1743 = vmul.f32 %v1706, %v1735
      %v1744 = vmul.f32 %v1707, %v1735
      %v1745 = vmul.f32 %v1708, %v1735
      %v1746 = vmul.f32 %v1709, %v1735
      %v1747 = vmul.f32 %v1710, %v1735
      %v1748 = vmul.f32 %v1711, %v1735
      %v1749 = vmul.f32 %v1712, %v1735
      %v1750 = vmul.f32 %v1713, %v1735
      %v1751 = vmul.f32 %v1714, %v1735
      %v1752 = vmul.f32 %v1715, %v1735
      %v1753 = vmul.f32 %v1716, %v1735
      %v1754 = vmul.f32 %v1717, %v1735
      %v1755 = vmul.f32 %v1718, %v1735
      %v1756 = vmul.f32 %v1719, %v1735
      %v1757 = vmul.f32 %v1720, %v1735
      %v1758 = vmul.f32 %v1721, %v1735
      %v1759 = vmul.f32 %v1722, %v1735
      %v1760 = vmul.f32 %v1723, %v1735
      %v1761 = vmul.f32 %v1724, %v1735
      %v1762 = vmul.f32 %v1725, %v1735
      %v1763 = vmul.f32 %v1726, %v1735
      %v1764 = vmul.f32 %v1727, %v1735
      %v1765 = vmul.f32 %v1728, %v1735
      %v1766 = vmul.f32 %v1729, %v1735
      %v1767 = vmul.f32 %v1730, %v1735
      %v1768 = vadd.f32 %v1667, %v1736
      %v1769 = vadd.f32 %v1668, %v1737
      %v1770 = vadd.f32 %v1669, %v1738
      %v1771 = vadd.f32 %v1670, %v1739
      %v1772 = vadd.f32 %v1671, %v1740
      %v1773 = vadd.f32 %v1672, %v1741
      %v1774 = vadd.f32 %v1673, %v1742
      %v1775 = vadd.f32 %v1674, %v1743
      %v1776 = vadd.f32 %v1675, %v1744
      %v1777 = vadd.f32 %v1676, %v1745
      %v1778 = vadd.f32 %v1677, %v1746
      %v1779 = vadd.f32 %v1678, %v1747
      %v1780 = vadd.f32 %v1679, %v1748
      %v1781 = vadd.f32 %v1680, %v1749
      %v1782 = vadd.f32 %v1681, %v1750
      %v1783 = vadd.f32 %v1682, %v1751
      %v1784 = vadd.f32 %v1683, %v1752
      %v1785 = vadd.f32 %v1684, %v1753
      %v1786 = vadd.f32 %v1685, %v1754
      %v1787 = vadd.f32 %v1686, %v1755
      %v1788 = vadd.f32 %v1687, %v1756
      %v1789 = vadd.f32 %v1688, %v1757
      %v1790 = vadd.f32 %v1689, %v1758
      %v1791 = vadd.f32 %v1690, %v1759
      %v1792 = vadd.f32 %v1691, %v1760
      %v1793 = vadd.f32 %v1692, %v1761
      %v1794 = vadd.f32 %v1693, %v1762
      %v1795 = vadd.f32 %v1694, %v1763
      %v1796 = vadd.f32 %v1695, %v1764
      %v1797 = vadd.f32 %v1696, %v1765
      %v1798 = vadd.f32 %v1697, %v1766
      %v1799 = vadd.f32 %v1698, %v1767
      %v1800 = vld [vmem:[%s1193 + $0xb] sm:$0xff]
      %v1801 = vld [vmem:[%s1193 + $0x13] sm:$0xff]
      %v1802 = vld [vmem:[%s1193 + $0x2b] sm:$0xff]
      %v1803 = vld [vmem:[%s1193 + $0x33] sm:$0xff]
      %v1804 = vld [vmem:[%s1193 + $0x4b] sm:$0xff]
      %v1805 = vld [vmem:[%s1193 + $0x53] sm:$0xff]
      %v1806 = vld [vmem:[%s1193 + $0x6b] sm:$0xff]
      %v1807 = vld [vmem:[%s1193 + $0x73] sm:$0xff]
      %v1808 = vld [vmem:[%s1193 + $0x8b] sm:$0xff]
      %v1809 = vld [vmem:[%s1193 + $0x93] sm:$0xff]
      %v1810 = vld [vmem:[%s1193 + $0xab] sm:$0xff]
      %v1811 = vld [vmem:[%s1193 + $0xb3] sm:$0xff]
      %v1812 = vld [vmem:[%s1193 + $0xcb] sm:$0xff]
      %v1813 = vld [vmem:[%s1193 + $0xd3] sm:$0xff]
      %v1814 = vld [vmem:[%s1193 + $0xeb] sm:$0xff]
      %v1815 = vld [vmem:[%s1193 + $0xf3] sm:$0xff]
      %v1816 = vld [vmem:[%s1193 + $0x10b] sm:$0xff]
      %v1817 = vld [vmem:[%s1193 + $0x113] sm:$0xff]
      %v1818 = vld [vmem:[%s1193 + $0x12b] sm:$0xff]
      %v1819 = vld [vmem:[%s1193 + $0x133] sm:$0xff]
      %v1820 = vld [vmem:[%s1193 + $0x14b] sm:$0xff]
      %v1821 = vld [vmem:[%s1193 + $0x153] sm:$0xff]
      %v1822 = vld [vmem:[%s1193 + $0x16b] sm:$0xff]
      %v1823 = vld [vmem:[%s1193 + $0x173] sm:$0xff]
      %v1824 = vld [vmem:[%s1193 + $0x18b] sm:$0xff]
      %v1825 = vld [vmem:[%s1193 + $0x193] sm:$0xff]
      %v1826 = vld [vmem:[%s1193 + $0x1ab] sm:$0xff]
      %v1827 = vld [vmem:[%s1193 + $0x1b3] sm:$0xff]
      %v1828 = vld [vmem:[%s1193 + $0x1cb] sm:$0xff]
      %v1829 = vld [vmem:[%s1193 + $0x1d3] sm:$0xff]
      %v1830 = vld [vmem:[%s1193 + $0x1eb] sm:$0xff]
      %v1831 = vld [vmem:[%s1193 + $0x1f3] sm:$0xff]
      %v1832 = vld [vmem:[%s1 + $0xd] sm:$0x1]
      %v1833 = vlaneseq
      %v1834 = vshrl.u32 %v1833, 7
      %v1835 = vsub.s32 0, %v1834
      %v1836 = vrot.slane %v1832, %v1835
      %v1837 = vmul.f32 %v1800, %v1836
      %v1838 = vmul.f32 %v1801, %v1836
      %v1839 = vmul.f32 %v1802, %v1836
      %v1840 = vmul.f32 %v1803, %v1836
      %v1841 = vmul.f32 %v1804, %v1836
      %v1842 = vmul.f32 %v1805, %v1836
      %v1843 = vmul.f32 %v1806, %v1836
      %v1844 = vmul.f32 %v1807, %v1836
      %v1845 = vmul.f32 %v1808, %v1836
      %v1846 = vmul.f32 %v1809, %v1836
      %v1847 = vmul.f32 %v1810, %v1836
      %v1848 = vmul.f32 %v1811, %v1836
      %v1849 = vmul.f32 %v1812, %v1836
      %v1850 = vmul.f32 %v1813, %v1836
      %v1851 = vmul.f32 %v1814, %v1836
      %v1852 = vmul.f32 %v1815, %v1836
      %v1853 = vmul.f32 %v1816, %v1836
      %v1854 = vmul.f32 %v1817, %v1836
      %v1855 = vmul.f32 %v1818, %v1836
      %v1856 = vmul.f32 %v1819, %v1836
      %v1857 = vmul.f32 %v1820, %v1836
      %v1858 = vmul.f32 %v1821, %v1836
      %v1859 = vmul.f32 %v1822, %v1836
      %v1860 = vmul.f32 %v1823, %v1836
      %v1861 = vmul.f32 %v1824, %v1836
      %v1862 = vmul.f32 %v1825, %v1836
      %v1863 = vmul.f32 %v1826, %v1836
      %v1864 = vmul.f32 %v1827, %v1836
      %v1865 = vmul.f32 %v1828, %v1836
      %v1866 = vmul.f32 %v1829, %v1836
      %v1867 = vmul.f32 %v1830, %v1836
      %v1868 = vmul.f32 %v1831, %v1836
      %v1869 = vadd.f32 %v1768, %v1837
      %v1870 = vadd.f32 %v1769, %v1838
      %v1871 = vadd.f32 %v1770, %v1839
      %v1872 = vadd.f32 %v1771, %v1840
      %v1873 = vadd.f32 %v1772, %v1841
      %v1874 = vadd.f32 %v1773, %v1842
      %v1875 = vadd.f32 %v1774, %v1843
      %v1876 = vadd.f32 %v1775, %v1844
      %v1877 = vadd.f32 %v1776, %v1845
      %v1878 = vadd.f32 %v1777, %v1846
      %v1879 = vadd.f32 %v1778, %v1847
      %v1880 = vadd.f32 %v1779, %v1848
      %v1881 = vadd.f32 %v1780, %v1849
      %v1882 = vadd.f32 %v1781, %v1850
      %v1883 = vadd.f32 %v1782, %v1851
      %v1884 = vadd.f32 %v1783, %v1852
      %v1885 = vadd.f32 %v1784, %v1853
      %v1886 = vadd.f32 %v1785, %v1854
      %v1887 = vadd.f32 %v1786, %v1855
      %v1888 = vadd.f32 %v1787, %v1856
      %v1889 = vadd.f32 %v1788, %v1857
      %v1890 = vadd.f32 %v1789, %v1858
      %v1891 = vadd.f32 %v1790, %v1859
      %v1892 = vadd.f32 %v1791, %v1860
      %v1893 = vadd.f32 %v1792, %v1861
      %v1894 = vadd.f32 %v1793, %v1862
      %v1895 = vadd.f32 %v1794, %v1863
      %v1896 = vadd.f32 %v1795, %v1864
      %v1897 = vadd.f32 %v1796, %v1865
      %v1898 = vadd.f32 %v1797, %v1866
      %v1899 = vadd.f32 %v1798, %v1867
      %v1900 = vadd.f32 %v1799, %v1868
      %s1901 = scalar_lea.vmem [#allocation2], 64
      %v1902 = vld [vmem:[%s1901 + $0x5] sm:$0xff]
      %v1903 = vld [vmem:[%s1901 + $0xd] sm:$0xff]
      %v1904 = vld [vmem:[%s1901 + $0x25] sm:$0xff]
      %v1905 = vld [vmem:[%s1901 + $0x2d] sm:$0xff]
      %v1906 = vld [vmem:[%s1901 + $0x45] sm:$0xff]
      %v1907 = vld [vmem:[%s1901 + $0x4d] sm:$0xff]
      %v1908 = vld [vmem:[%s1901 + $0x65] sm:$0xff]
      %v1909 = vld [vmem:[%s1901 + $0x6d] sm:$0xff]
      %v1910 = vld [vmem:[%s1901 + $0x85] sm:$0xff]
      %v1911 = vld [vmem:[%s1901 + $0x8d] sm:$0xff]
      %v1912 = vld [vmem:[%s1901 + $0xa5] sm:$0xff]
      %v1913 = vld [vmem:[%s1901 + $0xad] sm:$0xff]
      %v1914 = vld [vmem:[%s1901 + $0xc5] sm:$0xff]
      %v1915 = vld [vmem:[%s1901 + $0xcd] sm:$0xff]
      %v1916 = vld [vmem:[%s1901 + $0xe5] sm:$0xff]
      %v1917 = vld [vmem:[%s1901 + $0xed] sm:$0xff]
      %v1918 = vld [vmem:[%s1901 + $0x105] sm:$0xff]
      %v1919 = vld [vmem:[%s1901 + $0x10d] sm:$0xff]
      %v1920 = vld [vmem:[%s1901 + $0x125] sm:$0xff]
      %v1921 = vld [vmem:[%s1901 + $0x12d] sm:$0xff]
      %v1922 = vld [vmem:[%s1901 + $0x145] sm:$0xff]
      %v1923 = vld [vmem:[%s1901 + $0x14d] sm:$0xff]
      %v1924 = vld [vmem:[%s1901 + $0x165] sm:$0xff]
      %v1925 = vld [vmem:[%s1901 + $0x16d] sm:$0xff]
      %v1926 = vld [vmem:[%s1901 + $0x185] sm:$0xff]
      %v1927 = vld [vmem:[%s1901 + $0x18d] sm:$0xff]
      %v1928 = vld [vmem:[%s1901 + $0x1a5] sm:$0xff]
      %v1929 = vld [vmem:[%s1901 + $0x1ad] sm:$0xff]
      %v1930 = vld [vmem:[%s1901 + $0x1c5] sm:$0xff]
      %v1931 = vld [vmem:[%s1901 + $0x1cd] sm:$0xff]
      %v1932 = vld [vmem:[%s1901 + $0x1e5] sm:$0xff]
      %v1933 = vld [vmem:[%s1901 + $0x1ed] sm:$0xff]
      %v1934 = vld [vmem:[%s1 + $0xe] sm:$0x1]
      %v1935 = vlaneseq
      %v1936 = vshrl.u32 %v1935, 7
      %v1937 = vsub.s32 0, %v1936
      %v1938 = vrot.slane %v1934, %v1937
      %v1939 = vmul.f32 %v1902, %v1938
      %v1940 = vmul.f32 %v1903, %v1938
      %v1941 = vmul.f32 %v1904, %v1938
      %v1942 = vmul.f32 %v1905, %v1938
      %v1943 = vmul.f32 %v1906, %v1938
      %v1944 = vmul.f32 %v1907, %v1938
      %v1945 = vmul.f32 %v1908, %v1938
      %v1946 = vmul.f32 %v1909, %v1938
      %v1947 = vmul.f32 %v1910, %v1938
      %v1948 = vmul.f32 %v1911, %v1938
      %v1949 = vmul.f32 %v1912, %v1938
      %v1950 = vmul.f32 %v1913, %v1938
      %v1951 = vmul.f32 %v1914, %v1938
      %v1952 = vmul.f32 %v1915, %v1938
      %v1953 = vmul.f32 %v1916, %v1938
      %v1954 = vmul.f32 %v1917, %v1938
      %v1955 = vmul.f32 %v1918, %v1938
      %v1956 = vmul.f32 %v1919, %v1938
      %v1957 = vmul.f32 %v1920, %v1938
      %v1958 = vmul.f32 %v1921, %v1938
      %v1959 = vmul.f32 %v1922, %v1938
      %v1960 = vmul.f32 %v1923, %v1938
      %v1961 = vmul.f32 %v1924, %v1938
      %v1962 = vmul.f32 %v1925, %v1938
      %v1963 = vmul.f32 %v1926, %v1938
      %v1964 = vmul.f32 %v1927, %v1938
      %v1965 = vmul.f32 %v1928, %v1938
      %v1966 = vmul.f32 %v1929, %v1938
      %v1967 = vmul.f32 %v1930, %v1938
      %v1968 = vmul.f32 %v1931, %v1938
      %v1969 = vmul.f32 %v1932, %v1938
      %v1970 = vmul.f32 %v1933, %v1938
      %v1971 = vadd.f32 %v1869, %v1939
      %v1972 = vadd.f32 %v1870, %v1940
      %v1973 = vadd.f32 %v1871, %v1941
      %v1974 = vadd.f32 %v1872, %v1942
      %v1975 = vadd.f32 %v1873, %v1943
      %v1976 = vadd.f32 %v1874, %v1944
      %v1977 = vadd.f32 %v1875, %v1945
      %v1978 = vadd.f32 %v1876, %v1946
      %v1979 = vadd.f32 %v1877, %v1947
      %v1980 = vadd.f32 %v1878, %v1948
      %v1981 = vadd.f32 %v1879, %v1949
      %v1982 = vadd.f32 %v1880, %v1950
      %v1983 = vadd.f32 %v1881, %v1951
      %v1984 = vadd.f32 %v1882, %v1952
      %v1985 = vadd.f32 %v1883, %v1953
      %v1986 = vadd.f32 %v1884, %v1954
      %v1987 = vadd.f32 %v1885, %v1955
      %v1988 = vadd.f32 %v1886, %v1956
      %v1989 = vadd.f32 %v1887, %v1957
      %v1990 = vadd.f32 %v1888, %v1958
      %v1991 = vadd.f32 %v1889, %v1959
      %v1992 = vadd.f32 %v1890, %v1960
      %v1993 = vadd.f32 %v1891, %v1961
      %v1994 = vadd.f32 %v1892, %v1962
      %v1995 = vadd.f32 %v1893, %v1963
      %v1996 = vadd.f32 %v1894, %v1964
      %v1997 = vadd.f32 %v1895, %v1965
      %v1998 = vadd.f32 %v1896, %v1966
      %v1999 = vadd.f32 %v1897, %v1967
      %v2000 = vadd.f32 %v1898, %v1968
      %v2001 = vadd.f32 %v1899, %v1969
      %v2002 = vadd.f32 %v1900, %v1970
      %v2003 = vld [vmem:[%s1901 + $0x6] sm:$0xff]
      %v2004 = vld [vmem:[%s1901 + $0xe] sm:$0xff]
      %v2005 = vld [vmem:[%s1901 + $0x26] sm:$0xff]
      %v2006 = vld [vmem:[%s1901 + $0x2e] sm:$0xff]
      %v2007 = vld [vmem:[%s1901 + $0x46] sm:$0xff]
      %v2008 = vld [vmem:[%s1901 + $0x4e] sm:$0xff]
      %v2009 = vld [vmem:[%s1901 + $0x66] sm:$0xff]
      %v2010 = vld [vmem:[%s1901 + $0x6e] sm:$0xff]
      %v2011 = vld [vmem:[%s1901 + $0x86] sm:$0xff]
      %v2012 = vld [vmem:[%s1901 + $0x8e] sm:$0xff]
      %v2013 = vld [vmem:[%s1901 + $0xa6] sm:$0xff]
      %v2014 = vld [vmem:[%s1901 + $0xae] sm:$0xff]
      %v2015 = vld [vmem:[%s1901 + $0xc6] sm:$0xff]
      %v2016 = vld [vmem:[%s1901 + $0xce] sm:$0xff]
      %v2017 = vld [vmem:[%s1901 + $0xe6] sm:$0xff]
      %v2018 = vld [vmem:[%s1901 + $0xee] sm:$0xff]
      %v2019 = vld [vmem:[%s1901 + $0x106] sm:$0xff]
      %v2020 = vld [vmem:[%s1901 + $0x10e] sm:$0xff]
      %v2021 = vld [vmem:[%s1901 + $0x126] sm:$0xff]
      %v2022 = vld [vmem:[%s1901 + $0x12e] sm:$0xff]
      %v2023 = vld [vmem:[%s1901 + $0x146] sm:$0xff]
      %v2024 = vld [vmem:[%s1901 + $0x14e] sm:$0xff]
      %v2025 = vld [vmem:[%s1901 + $0x166] sm:$0xff]
      %v2026 = vld [vmem:[%s1901 + $0x16e] sm:$0xff]
      %v2027 = vld [vmem:[%s1901 + $0x186] sm:$0xff]
      %v2028 = vld [vmem:[%s1901 + $0x18e] sm:$0xff]
      %v2029 = vld [vmem:[%s1901 + $0x1a6] sm:$0xff]
      %v2030 = vld [vmem:[%s1901 + $0x1ae] sm:$0xff]
      %v2031 = vld [vmem:[%s1901 + $0x1c6] sm:$0xff]
      %v2032 = vld [vmem:[%s1901 + $0x1ce] sm:$0xff]
      %v2033 = vld [vmem:[%s1901 + $0x1e6] sm:$0xff]
      %v2034 = vld [vmem:[%s1901 + $0x1ee] sm:$0xff]
      %v2035 = vld [vmem:[%s1 + $0xf] sm:$0x1]
      %v2036 = vlaneseq
      %v2037 = vshrl.u32 %v2036, 7
      %v2038 = vsub.s32 0, %v2037
      %v2039 = vrot.slane %v2035, %v2038
      %v2040 = vmul.f32 %v2003, %v2039
      %v2041 = vmul.f32 %v2004, %v2039
      %v2042 = vmul.f32 %v2005, %v2039
      %v2043 = vmul.f32 %v2006, %v2039
      %v2044 = vmul.f32 %v2007, %v2039
      %v2045 = vmul.f32 %v2008, %v2039
      %v2046 = vmul.f32 %v2009, %v2039
      %v2047 = vmul.f32 %v2010, %v2039
      %v2048 = vmul.f32 %v2011, %v2039
      %v2049 = vmul.f32 %v2012, %v2039
      %v2050 = vmul.f32 %v2013, %v2039
      %v2051 = vmul.f32 %v2014, %v2039
      %v2052 = vmul.f32 %v2015, %v2039
      %v2053 = vmul.f32 %v2016, %v2039
      %v2054 = vmul.f32 %v2017, %v2039
      %v2055 = vmul.f32 %v2018, %v2039
      %v2056 = vmul.f32 %v2019, %v2039
      %v2057 = vmul.f32 %v2020, %v2039
      %v2058 = vmul.f32 %v2021, %v2039
      %v2059 = vmul.f32 %v2022, %v2039
      %v2060 = vmul.f32 %v2023, %v2039
      %v2061 = vmul.f32 %v2024, %v2039
      %v2062 = vmul.f32 %v2025, %v2039
      %v2063 = vmul.f32 %v2026, %v2039
      %v2064 = vmul.f32 %v2027, %v2039
      %v2065 = vmul.f32 %v2028, %v2039
      %v2066 = vmul.f32 %v2029, %v2039
      %v2067 = vmul.f32 %v2030, %v2039
      %v2068 = vmul.f32 %v2031, %v2039
      %v2069 = vmul.f32 %v2032, %v2039
      %v2070 = vmul.f32 %v2033, %v2039
      %v2071 = vmul.f32 %v2034, %v2039
      %v2072 = vadd.f32 %v1971, %v2040
      %v2073 = vadd.f32 %v1972, %v2041
      %v2074 = vadd.f32 %v1973, %v2042
      %v2075 = vadd.f32 %v1974, %v2043
      %v2076 = vadd.f32 %v1975, %v2044
      %v2077 = vadd.f32 %v1976, %v2045
      %v2078 = vadd.f32 %v1977, %v2046
      %v2079 = vadd.f32 %v1978, %v2047
      %v2080 = vadd.f32 %v1979, %v2048
      %v2081 = vadd.f32 %v1980, %v2049
      %v2082 = vadd.f32 %v1981, %v2050
      %v2083 = vadd.f32 %v1982, %v2051
      %v2084 = vadd.f32 %v1983, %v2052
      %v2085 = vadd.f32 %v1984, %v2053
      %v2086 = vadd.f32 %v1985, %v2054
      %v2087 = vadd.f32 %v1986, %v2055
      %v2088 = vadd.f32 %v1987, %v2056
      %v2089 = vadd.f32 %v1988, %v2057
      %v2090 = vadd.f32 %v1989, %v2058
      %v2091 = vadd.f32 %v1990, %v2059
      %v2092 = vadd.f32 %v1991, %v2060
      %v2093 = vadd.f32 %v1992, %v2061
      %v2094 = vadd.f32 %v1993, %v2062
      %v2095 = vadd.f32 %v1994, %v2063
      %v2096 = vadd.f32 %v1995, %v2064
      %v2097 = vadd.f32 %v1996, %v2065
      %v2098 = vadd.f32 %v1997, %v2066
      %v2099 = vadd.f32 %v1998, %v2067
      %v2100 = vadd.f32 %v1999, %v2068
      %v2101 = vadd.f32 %v2000, %v2069
      %v2102 = vadd.f32 %v2001, %v2070
      %v2103 = vadd.f32 %v2002, %v2071
      %v2104 = vld [vmem:[%s1901 + $0x7] sm:$0xff]
      %v2105 = vld [vmem:[%s1901 + $0xf] sm:$0xff]
      %v2106 = vld [vmem:[%s1901 + $0x27] sm:$0xff]
      %v2107 = vld [vmem:[%s1901 + $0x2f] sm:$0xff]
      %v2108 = vld [vmem:[%s1901 + $0x47] sm:$0xff]
      %v2109 = vld [vmem:[%s1901 + $0x4f] sm:$0xff]
      %v2110 = vld [vmem:[%s1901 + $0x67] sm:$0xff]
      %v2111 = vld [vmem:[%s1901 + $0x6f] sm:$0xff]
      %v2112 = vld [vmem:[%s1901 + $0x87] sm:$0xff]
      %v2113 = vld [vmem:[%s1901 + $0x8f] sm:$0xff]
      %v2114 = vld [vmem:[%s1901 + $0xa7] sm:$0xff]
      %v2115 = vld [vmem:[%s1901 + $0xaf] sm:$0xff]
      %v2116 = vld [vmem:[%s1901 + $0xc7] sm:$0xff]
      %v2117 = vld [vmem:[%s1901 + $0xcf] sm:$0xff]
      %v2118 = vld [vmem:[%s1901 + $0xe7] sm:$0xff]
      %v2119 = vld [vmem:[%s1901 + $0xef] sm:$0xff]
      %v2120 = vld [vmem:[%s1901 + $0x107] sm:$0xff]
      %v2121 = vld [vmem:[%s1901 + $0x10f] sm:$0xff]
      %v2122 = vld [vmem:[%s1901 + $0x127] sm:$0xff]
      %v2123 = vld [vmem:[%s1901 + $0x12f] sm:$0xff]
      %v2124 = vld [vmem:[%s1901 + $0x147] sm:$0xff]
      %v2125 = vld [vmem:[%s1901 + $0x14f] sm:$0xff]
      %v2126 = vld [vmem:[%s1901 + $0x167] sm:$0xff]
      %v2127 = vld [vmem:[%s1901 + $0x16f] sm:$0xff]
      %v2128 = vld [vmem:[%s1901 + $0x187] sm:$0xff]
      %v2129 = vld [vmem:[%s1901 + $0x18f] sm:$0xff]
      %v2130 = vld [vmem:[%s1901 + $0x1a7] sm:$0xff]
      %v2131 = vld [vmem:[%s1901 + $0x1af] sm:$0xff]
      %v2132 = vld [vmem:[%s1901 + $0x1c7] sm:$0xff]
      %v2133 = vld [vmem:[%s1901 + $0x1cf] sm:$0xff]
      %v2134 = vld [vmem:[%s1901 + $0x1e7] sm:$0xff]
      %v2135 = vld [vmem:[%s1901 + $0x1ef] sm:$0xff]
      %v2136 = vld [vmem:[%s1 + $0x10] sm:$0x1]
      %v2137 = vlaneseq
      %v2138 = vshrl.u32 %v2137, 7
      %v2139 = vsub.s32 0, %v2138
      %v2140 = vrot.slane %v2136, %v2139
      %v2141 = vmul.f32 %v2104, %v2140
      %v2142 = vmul.f32 %v2105, %v2140
      %v2143 = vmul.f32 %v2106, %v2140
      %v2144 = vmul.f32 %v2107, %v2140
      %v2145 = vmul.f32 %v2108, %v2140
      %v2146 = vmul.f32 %v2109, %v2140
      %v2147 = vmul.f32 %v2110, %v2140
      %v2148 = vmul.f32 %v2111, %v2140
      %v2149 = vmul.f32 %v2112, %v2140
      %v2150 = vmul.f32 %v2113, %v2140
      %v2151 = vmul.f32 %v2114, %v2140
      %v2152 = vmul.f32 %v2115, %v2140
      %v2153 = vmul.f32 %v2116, %v2140
      %v2154 = vmul.f32 %v2117, %v2140
      %v2155 = vmul.f32 %v2118, %v2140
      %v2156 = vmul.f32 %v2119, %v2140
      %v2157 = vmul.f32 %v2120, %v2140
      %v2158 = vmul.f32 %v2121, %v2140
      %v2159 = vmul.f32 %v2122, %v2140
      %v2160 = vmul.f32 %v2123, %v2140
      %v2161 = vmul.f32 %v2124, %v2140
      %v2162 = vmul.f32 %v2125, %v2140
      %v2163 = vmul.f32 %v2126, %v2140
      %v2164 = vmul.f32 %v2127, %v2140
      %v2165 = vmul.f32 %v2128, %v2140
      %v2166 = vmul.f32 %v2129, %v2140
      %v2167 = vmul.f32 %v2130, %v2140
      %v2168 = vmul.f32 %v2131, %v2140
      %v2169 = vmul.f32 %v2132, %v2140
      %v2170 = vmul.f32 %v2133, %v2140
      %v2171 = vmul.f32 %v2134, %v2140
      %v2172 = vmul.f32 %v2135, %v2140
      %v2173 = vadd.f32 %v2072, %v2141
      %v2174 = vadd.f32 %v2073, %v2142
      %v2175 = vadd.f32 %v2074, %v2143
      %v2176 = vadd.f32 %v2075, %v2144
      %v2177 = vadd.f32 %v2076, %v2145
      %v2178 = vadd.f32 %v2077, %v2146
      %v2179 = vadd.f32 %v2078, %v2147
      %v2180 = vadd.f32 %v2079, %v2148
      %v2181 = vadd.f32 %v2080, %v2149
      %v2182 = vadd.f32 %v2081, %v2150
      %v2183 = vadd.f32 %v2082, %v2151
      %v2184 = vadd.f32 %v2083, %v2152
      %v2185 = vadd.f32 %v2084, %v2153
      %v2186 = vadd.f32 %v2085, %v2154
      %v2187 = vadd.f32 %v2086, %v2155
      %v2188 = vadd.f32 %v2087, %v2156
      %v2189 = vadd.f32 %v2088, %v2157
      %v2190 = vadd.f32 %v2089, %v2158
      %v2191 = vadd.f32 %v2090, %v2159
      %v2192 = vadd.f32 %v2091, %v2160
      %v2193 = vadd.f32 %v2092, %v2161
      %v2194 = vadd.f32 %v2093, %v2162
      %v2195 = vadd.f32 %v2094, %v2163
      %v2196 = vadd.f32 %v2095, %v2164
      %v2197 = vadd.f32 %v2096, %v2165
      %v2198 = vadd.f32 %v2097, %v2166
      %v2199 = vadd.f32 %v2098, %v2167
      %v2200 = vadd.f32 %v2099, %v2168
      %v2201 = vadd.f32 %v2100, %v2169
      %v2202 = vadd.f32 %v2101, %v2170
      %v2203 = vadd.f32 %v2102, %v2171
      %v2204 = vadd.f32 %v2103, %v2172
      %v2205 = vld [vmem:[%s1901 + $0x8] sm:$0xff]
      %v2206 = vld [vmem:[%s1901 + $0x10] sm:$0xff]
      %v2207 = vld [vmem:[%s1901 + $0x28] sm:$0xff]
      %v2208 = vld [vmem:[%s1901 + $0x30] sm:$0xff]
      %v2209 = vld [vmem:[%s1901 + $0x48] sm:$0xff]
      %v2210 = vld [vmem:[%s1901 + $0x50] sm:$0xff]
      %v2211 = vld [vmem:[%s1901 + $0x68] sm:$0xff]
      %v2212 = vld [vmem:[%s1901 + $0x70] sm:$0xff]
      %v2213 = vld [vmem:[%s1901 + $0x88] sm:$0xff]
      %v2214 = vld [vmem:[%s1901 + $0x90] sm:$0xff]
      %v2215 = vld [vmem:[%s1901 + $0xa8] sm:$0xff]
      %v2216 = vld [vmem:[%s1901 + $0xb0] sm:$0xff]
      %v2217 = vld [vmem:[%s1901 + $0xc8] sm:$0xff]
      %v2218 = vld [vmem:[%s1901 + $0xd0] sm:$0xff]
      %v2219 = vld [vmem:[%s1901 + $0xe8] sm:$0xff]
      %v2220 = vld [vmem:[%s1901 + $0xf0] sm:$0xff]
      %v2221 = vld [vmem:[%s1901 + $0x108] sm:$0xff]
      %v2222 = vld [vmem:[%s1901 + $0x110] sm:$0xff]
      %v2223 = vld [vmem:[%s1901 + $0x128] sm:$0xff]
      %v2224 = vld [vmem:[%s1901 + $0x130] sm:$0xff]
      %v2225 = vld [vmem:[%s1901 + $0x148] sm:$0xff]
      %v2226 = vld [vmem:[%s1901 + $0x150] sm:$0xff]
      %v2227 = vld [vmem:[%s1901 + $0x168] sm:$0xff]
      %v2228 = vld [vmem:[%s1901 + $0x170] sm:$0xff]
      %v2229 = vld [vmem:[%s1901 + $0x188] sm:$0xff]
      %v2230 = vld [vmem:[%s1901 + $0x190] sm:$0xff]
      %v2231 = vld [vmem:[%s1901 + $0x1a8] sm:$0xff]
      %v2232 = vld [vmem:[%s1901 + $0x1b0] sm:$0xff]
      %v2233 = vld [vmem:[%s1901 + $0x1c8] sm:$0xff]
      %v2234 = vld [vmem:[%s1901 + $0x1d0] sm:$0xff]
      %v2235 = vld [vmem:[%s1901 + $0x1e8] sm:$0xff]
      %v2236 = vld [vmem:[%s1901 + $0x1f0] sm:$0xff]
      %v2237 = vld [vmem:[%s1 + $0x11] sm:$0x1]
      %v2238 = vlaneseq
      %v2239 = vshrl.u32 %v2238, 7
      %v2240 = vsub.s32 0, %v2239
      %v2241 = vrot.slane %v2237, %v2240
      %v2242 = vmul.f32 %v2205, %v2241
      %v2243 = vmul.f32 %v2206, %v2241
      %v2244 = vmul.f32 %v2207, %v2241
      %v2245 = vmul.f32 %v2208, %v2241
      %v2246 = vmul.f32 %v2209, %v2241
      %v2247 = vmul.f32 %v2210, %v2241
      %v2248 = vmul.f32 %v2211, %v2241
      %v2249 = vmul.f32 %v2212, %v2241
      %v2250 = vmul.f32 %v2213, %v2241
      %v2251 = vmul.f32 %v2214, %v2241
      %v2252 = vmul.f32 %v2215, %v2241
      %v2253 = vmul.f32 %v2216, %v2241
      %v2254 = vmul.f32 %v2217, %v2241
      %v2255 = vmul.f32 %v2218, %v2241
      %v2256 = vmul.f32 %v2219, %v2241
      %v2257 = vmul.f32 %v2220, %v2241
      %v2258 = vmul.f32 %v2221, %v2241
      %v2259 = vmul.f32 %v2222, %v2241
      %v2260 = vmul.f32 %v2223, %v2241
      %v2261 = vmul.f32 %v2224, %v2241
      %v2262 = vmul.f32 %v2225, %v2241
      %v2263 = vmul.f32 %v2226, %v2241
      %v2264 = vmul.f32 %v2227, %v2241
      %v2265 = vmul.f32 %v2228, %v2241
      %v2266 = vmul.f32 %v2229, %v2241
      %v2267 = vmul.f32 %v2230, %v2241
      %v2268 = vmul.f32 %v2231, %v2241
      %v2269 = vmul.f32 %v2232, %v2241
      %v2270 = vmul.f32 %v2233, %v2241
      %v2271 = vmul.f32 %v2234, %v2241
      %v2272 = vmul.f32 %v2235, %v2241
      %v2273 = vmul.f32 %v2236, %v2241
      %v2274 = vadd.f32 %v2173, %v2242
      %v2275 = vadd.f32 %v2174, %v2243
      %v2276 = vadd.f32 %v2175, %v2244
      %v2277 = vadd.f32 %v2176, %v2245
      %v2278 = vadd.f32 %v2177, %v2246
      %v2279 = vadd.f32 %v2178, %v2247
      %v2280 = vadd.f32 %v2179, %v2248
      %v2281 = vadd.f32 %v2180, %v2249
      %v2282 = vadd.f32 %v2181, %v2250
      %v2283 = vadd.f32 %v2182, %v2251
      %v2284 = vadd.f32 %v2183, %v2252
      %v2285 = vadd.f32 %v2184, %v2253
      %v2286 = vadd.f32 %v2185, %v2254
      %v2287 = vadd.f32 %v2186, %v2255
      %v2288 = vadd.f32 %v2187, %v2256
      %v2289 = vadd.f32 %v2188, %v2257
      %v2290 = vadd.f32 %v2189, %v2258
      %v2291 = vadd.f32 %v2190, %v2259
      %v2292 = vadd.f32 %v2191, %v2260
      %v2293 = vadd.f32 %v2192, %v2261
      %v2294 = vadd.f32 %v2193, %v2262
      %v2295 = vadd.f32 %v2194, %v2263
      %v2296 = vadd.f32 %v2195, %v2264
      %v2297 = vadd.f32 %v2196, %v2265
      %v2298 = vadd.f32 %v2197, %v2266
      %v2299 = vadd.f32 %v2198, %v2267
      %v2300 = vadd.f32 %v2199, %v2268
      %v2301 = vadd.f32 %v2200, %v2269
      %v2302 = vadd.f32 %v2201, %v2270
      %v2303 = vadd.f32 %v2202, %v2271
      %v2304 = vadd.f32 %v2203, %v2272
      %v2305 = vadd.f32 %v2204, %v2273
      %v2306 = vld [vmem:[%s1901 + $0x9] sm:$0xff]
      %v2307 = vld [vmem:[%s1901 + $0x11] sm:$0xff]
      %v2308 = vld [vmem:[%s1901 + $0x29] sm:$0xff]
      %v2309 = vld [vmem:[%s1901 + $0x31] sm:$0xff]
      %v2310 = vld [vmem:[%s1901 + $0x49] sm:$0xff]
      %v2311 = vld [vmem:[%s1901 + $0x51] sm:$0xff]
      %v2312 = vld [vmem:[%s1901 + $0x69] sm:$0xff]
      %v2313 = vld [vmem:[%s1901 + $0x71] sm:$0xff]
      %v2314 = vld [vmem:[%s1901 + $0x89] sm:$0xff]
      %v2315 = vld [vmem:[%s1901 + $0x91] sm:$0xff]
      %v2316 = vld [vmem:[%s1901 + $0xa9] sm:$0xff]
      %v2317 = vld [vmem:[%s1901 + $0xb1] sm:$0xff]
      %v2318 = vld [vmem:[%s1901 + $0xc9] sm:$0xff]
      %v2319 = vld [vmem:[%s1901 + $0xd1] sm:$0xff]
      %v2320 = vld [vmem:[%s1901 + $0xe9] sm:$0xff]
      %v2321 = vld [vmem:[%s1901 + $0xf1] sm:$0xff]
      %v2322 = vld [vmem:[%s1901 + $0x109] sm:$0xff]
      %v2323 = vld [vmem:[%s1901 + $0x111] sm:$0xff]
      %v2324 = vld [vmem:[%s1901 + $0x129] sm:$0xff]
      %v2325 = vld [vmem:[%s1901 + $0x131] sm:$0xff]
      %v2326 = vld [vmem:[%s1901 + $0x149] sm:$0xff]
      %v2327 = vld [vmem:[%s1901 + $0x151] sm:$0xff]
      %v2328 = vld [vmem:[%s1901 + $0x169] sm:$0xff]
      %v2329 = vld [vmem:[%s1901 + $0x171] sm:$0xff]
      %v2330 = vld [vmem:[%s1901 + $0x189] sm:$0xff]
      %v2331 = vld [vmem:[%s1901 + $0x191] sm:$0xff]
      %v2332 = vld [vmem:[%s1901 + $0x1a9] sm:$0xff]
      %v2333 = vld [vmem:[%s1901 + $0x1b1] sm:$0xff]
      %v2334 = vld [vmem:[%s1901 + $0x1c9] sm:$0xff]
      %v2335 = vld [vmem:[%s1901 + $0x1d1] sm:$0xff]
      %v2336 = vld [vmem:[%s1901 + $0x1e9] sm:$0xff]
      %v2337 = vld [vmem:[%s1901 + $0x1f1] sm:$0xff]
      %v2338 = vld [vmem:[%s1 + $0x12] sm:$0x1]
      %v2339 = vlaneseq
      %v2340 = vshrl.u32 %v2339, 7
      %v2341 = vsub.s32 0, %v2340
      %v2342 = vrot.slane %v2338, %v2341
      %v2343 = vmul.f32 %v2306, %v2342
      %v2344 = vmul.f32 %v2307, %v2342
      %v2345 = vmul.f32 %v2308, %v2342
      %v2346 = vmul.f32 %v2309, %v2342
      %v2347 = vmul.f32 %v2310, %v2342
      %v2348 = vmul.f32 %v2311, %v2342
      %v2349 = vmul.f32 %v2312, %v2342
      %v2350 = vmul.f32 %v2313, %v2342
      %v2351 = vmul.f32 %v2314, %v2342
      %v2352 = vmul.f32 %v2315, %v2342
      %v2353 = vmul.f32 %v2316, %v2342
      %v2354 = vmul.f32 %v2317, %v2342
      %v2355 = vmul.f32 %v2318, %v2342
      %v2356 = vmul.f32 %v2319, %v2342
      %v2357 = vmul.f32 %v2320, %v2342
      %v2358 = vmul.f32 %v2321, %v2342
      %v2359 = vmul.f32 %v2322, %v2342
      %v2360 = vmul.f32 %v2323, %v2342
      %v2361 = vmul.f32 %v2324, %v2342
      %v2362 = vmul.f32 %v2325, %v2342
      %v2363 = vmul.f32 %v2326, %v2342
      %v2364 = vmul.f32 %v2327, %v2342
      %v2365 = vmul.f32 %v2328, %v2342
      %v2366 = vmul.f32 %v2329, %v2342
      %v2367 = vmul.f32 %v2330, %v2342
      %v2368 = vmul.f32 %v2331, %v2342
      %v2369 = vmul.f32 %v2332, %v2342
      %v2370 = vmul.f32 %v2333, %v2342
      %v2371 = vmul.f32 %v2334, %v2342
      %v2372 = vmul.f32 %v2335, %v2342
      %v2373 = vmul.f32 %v2336, %v2342
      %v2374 = vmul.f32 %v2337, %v2342
      %v2375 = vadd.f32 %v2274, %v2343
      %v2376 = vadd.f32 %v2275, %v2344
      %v2377 = vadd.f32 %v2276, %v2345
      %v2378 = vadd.f32 %v2277, %v2346
      %v2379 = vadd.f32 %v2278, %v2347
      %v2380 = vadd.f32 %v2279, %v2348
      %v2381 = vadd.f32 %v2280, %v2349
      %v2382 = vadd.f32 %v2281, %v2350
      %v2383 = vadd.f32 %v2282, %v2351
      %v2384 = vadd.f32 %v2283, %v2352
      %v2385 = vadd.f32 %v2284, %v2353
      %v2386 = vadd.f32 %v2285, %v2354
      %v2387 = vadd.f32 %v2286, %v2355
      %v2388 = vadd.f32 %v2287, %v2356
      %v2389 = vadd.f32 %v2288, %v2357
      %v2390 = vadd.f32 %v2289, %v2358
      %v2391 = vadd.f32 %v2290, %v2359
      %v2392 = vadd.f32 %v2291, %v2360
      %v2393 = vadd.f32 %v2292, %v2361
      %v2394 = vadd.f32 %v2293, %v2362
      %v2395 = vadd.f32 %v2294, %v2363
      %v2396 = vadd.f32 %v2295, %v2364
      %v2397 = vadd.f32 %v2296, %v2365
      %v2398 = vadd.f32 %v2297, %v2366
      %v2399 = vadd.f32 %v2298, %v2367
      %v2400 = vadd.f32 %v2299, %v2368
      %v2401 = vadd.f32 %v2300, %v2369
      %v2402 = vadd.f32 %v2301, %v2370
      %v2403 = vadd.f32 %v2302, %v2371
      %v2404 = vadd.f32 %v2303, %v2372
      %v2405 = vadd.f32 %v2304, %v2373
      %v2406 = vadd.f32 %v2305, %v2374
      %v2407 = vld [vmem:[%s1901 + $0xa] sm:$0xff]
      %v2408 = vld [vmem:[%s1901 + $0x12] sm:$0xff]
      %v2409 = vld [vmem:[%s1901 + $0x2a] sm:$0xff]
      %v2410 = vld [vmem:[%s1901 + $0x32] sm:$0xff]
      %v2411 = vld [vmem:[%s1901 + $0x4a] sm:$0xff]
      %v2412 = vld [vmem:[%s1901 + $0x52] sm:$0xff]
      %v2413 = vld [vmem:[%s1901 + $0x6a] sm:$0xff]
      %v2414 = vld [vmem:[%s1901 + $0x72] sm:$0xff]
      %v2415 = vld [vmem:[%s1901 + $0x8a] sm:$0xff]
      %v2416 = vld [vmem:[%s1901 + $0x92] sm:$0xff]
      %v2417 = vld [vmem:[%s1901 + $0xaa] sm:$0xff]
      %v2418 = vld [vmem:[%s1901 + $0xb2] sm:$0xff]
      %v2419 = vld [vmem:[%s1901 + $0xca] sm:$0xff]
      %v2420 = vld [vmem:[%s1901 + $0xd2] sm:$0xff]
      %v2421 = vld [vmem:[%s1901 + $0xea] sm:$0xff]
      %v2422 = vld [vmem:[%s1901 + $0xf2] sm:$0xff]
      %v2423 = vld [vmem:[%s1901 + $0x10a] sm:$0xff]
      %v2424 = vld [vmem:[%s1901 + $0x112] sm:$0xff]
      %v2425 = vld [vmem:[%s1901 + $0x12a] sm:$0xff]
      %v2426 = vld [vmem:[%s1901 + $0x132] sm:$0xff]
      %v2427 = vld [vmem:[%s1901 + $0x14a] sm:$0xff]
      %v2428 = vld [vmem:[%s1901 + $0x152] sm:$0xff]
      %v2429 = vld [vmem:[%s1901 + $0x16a] sm:$0xff]
      %v2430 = vld [vmem:[%s1901 + $0x172] sm:$0xff]
      %v2431 = vld [vmem:[%s1901 + $0x18a] sm:$0xff]
      %v2432 = vld [vmem:[%s1901 + $0x192] sm:$0xff]
      %v2433 = vld [vmem:[%s1901 + $0x1aa] sm:$0xff]
      %v2434 = vld [vmem:[%s1901 + $0x1b2] sm:$0xff]
      %v2435 = vld [vmem:[%s1901 + $0x1ca] sm:$0xff]
      %v2436 = vld [vmem:[%s1901 + $0x1d2] sm:$0xff]
      %v2437 = vld [vmem:[%s1901 + $0x1ea] sm:$0xff]
      %v2438 = vld [vmem:[%s1901 + $0x1f2] sm:$0xff]
      %v2439 = vld [vmem:[%s1 + $0x13] sm:$0x1]
      %v2440 = vlaneseq
      %v2441 = vshrl.u32 %v2440, 7
      %v2442 = vsub.s32 0, %v2441
      %v2443 = vrot.slane %v2439, %v2442
      %v2444 = vmul.f32 %v2407, %v2443
      %v2445 = vmul.f32 %v2408, %v2443
      %v2446 = vmul.f32 %v2409, %v2443
      %v2447 = vmul.f32 %v2410, %v2443
      %v2448 = vmul.f32 %v2411, %v2443
      %v2449 = vmul.f32 %v2412, %v2443
      %v2450 = vmul.f32 %v2413, %v2443
      %v2451 = vmul.f32 %v2414, %v2443
      %v2452 = vmul.f32 %v2415, %v2443
      %v2453 = vmul.f32 %v2416, %v2443
      %v2454 = vmul.f32 %v2417, %v2443
      %v2455 = vmul.f32 %v2418, %v2443
      %v2456 = vmul.f32 %v2419, %v2443
      %v2457 = vmul.f32 %v2420, %v2443
      %v2458 = vmul.f32 %v2421, %v2443
      %v2459 = vmul.f32 %v2422, %v2443
      %v2460 = vmul.f32 %v2423, %v2443
      %v2461 = vmul.f32 %v2424, %v2443
      %v2462 = vmul.f32 %v2425, %v2443
      %v2463 = vmul.f32 %v2426, %v2443
      %v2464 = vmul.f32 %v2427, %v2443
      %v2465 = vmul.f32 %v2428, %v2443
      %v2466 = vmul.f32 %v2429, %v2443
      %v2467 = vmul.f32 %v2430, %v2443
      %v2468 = vmul.f32 %v2431, %v2443
      %v2469 = vmul.f32 %v2432, %v2443
      %v2470 = vmul.f32 %v2433, %v2443
      %v2471 = vmul.f32 %v2434, %v2443
      %v2472 = vmul.f32 %v2435, %v2443
      %v2473 = vmul.f32 %v2436, %v2443
      %v2474 = vmul.f32 %v2437, %v2443
      %v2475 = vmul.f32 %v2438, %v2443
      %v2476 = vadd.f32 %v2375, %v2444
      %v2477 = vadd.f32 %v2376, %v2445
      %v2478 = vadd.f32 %v2377, %v2446
      %v2479 = vadd.f32 %v2378, %v2447
      %v2480 = vadd.f32 %v2379, %v2448
      %v2481 = vadd.f32 %v2380, %v2449
      %v2482 = vadd.f32 %v2381, %v2450
      %v2483 = vadd.f32 %v2382, %v2451
      %v2484 = vadd.f32 %v2383, %v2452
      %v2485 = vadd.f32 %v2384, %v2453
      %v2486 = vadd.f32 %v2385, %v2454
      %v2487 = vadd.f32 %v2386, %v2455
      %v2488 = vadd.f32 %v2387, %v2456
      %v2489 = vadd.f32 %v2388, %v2457
      %v2490 = vadd.f32 %v2389, %v2458
      %v2491 = vadd.f32 %v2390, %v2459
      %v2492 = vadd.f32 %v2391, %v2460
      %v2493 = vadd.f32 %v2392, %v2461
      %v2494 = vadd.f32 %v2393, %v2462
      %v2495 = vadd.f32 %v2394, %v2463
      %v2496 = vadd.f32 %v2395, %v2464
      %v2497 = vadd.f32 %v2396, %v2465
      %v2498 = vadd.f32 %v2397, %v2466
      %v2499 = vadd.f32 %v2398, %v2467
      %v2500 = vadd.f32 %v2399, %v2468
      %v2501 = vadd.f32 %v2400, %v2469
      %v2502 = vadd.f32 %v2401, %v2470
      %v2503 = vadd.f32 %v2402, %v2471
      %v2504 = vadd.f32 %v2403, %v2472
      %v2505 = vadd.f32 %v2404, %v2473
      %v2506 = vadd.f32 %v2405, %v2474
      %v2507 = vadd.f32 %v2406, %v2475
      %v2508 = vld [vmem:[%s1901 + $0xb] sm:$0xff]
      %v2509 = vld [vmem:[%s1901 + $0x13] sm:$0xff]
      %v2510 = vld [vmem:[%s1901 + $0x2b] sm:$0xff]
      %v2511 = vld [vmem:[%s1901 + $0x33] sm:$0xff]
      %v2512 = vld [vmem:[%s1901 + $0x4b] sm:$0xff]
      %v2513 = vld [vmem:[%s1901 + $0x53] sm:$0xff]
      %v2514 = vld [vmem:[%s1901 + $0x6b] sm:$0xff]
      %v2515 = vld [vmem:[%s1901 + $0x73] sm:$0xff]
      %v2516 = vld [vmem:[%s1901 + $0x8b] sm:$0xff]
      %v2517 = vld [vmem:[%s1901 + $0x93] sm:$0xff]
      %v2518 = vld [vmem:[%s1901 + $0xab] sm:$0xff]
      %v2519 = vld [vmem:[%s1901 + $0xb3] sm:$0xff]
      %v2520 = vld [vmem:[%s1901 + $0xcb] sm:$0xff]
      %v2521 = vld [vmem:[%s1901 + $0xd3] sm:$0xff]
      %v2522 = vld [vmem:[%s1901 + $0xeb] sm:$0xff]
      %v2523 = vld [vmem:[%s1901 + $0xf3] sm:$0xff]
      %v2524 = vld [vmem:[%s1901 + $0x10b] sm:$0xff]
      %v2525 = vld [vmem:[%s1901 + $0x113] sm:$0xff]
      %v2526 = vld [vmem:[%s1901 + $0x12b] sm:$0xff]
      %v2527 = vld [vmem:[%s1901 + $0x133] sm:$0xff]
      %v2528 = vld [vmem:[%s1901 + $0x14b] sm:$0xff]
      %v2529 = vld [vmem:[%s1901 + $0x153] sm:$0xff]
      %v2530 = vld [vmem:[%s1901 + $0x16b] sm:$0xff]
      %v2531 = vld [vmem:[%s1901 + $0x173] sm:$0xff]
      %v2532 = vld [vmem:[%s1901 + $0x18b] sm:$0xff]
      %v2533 = vld [vmem:[%s1901 + $0x193] sm:$0xff]
      %v2534 = vld [vmem:[%s1901 + $0x1ab] sm:$0xff]
      %v2535 = vld [vmem:[%s1901 + $0x1b3] sm:$0xff]
      %v2536 = vld [vmem:[%s1901 + $0x1cb] sm:$0xff]
      %v2537 = vld [vmem:[%s1901 + $0x1d3] sm:$0xff]
      %v2538 = vld [vmem:[%s1901 + $0x1eb] sm:$0xff]
      %v2539 = vld [vmem:[%s1901 + $0x1f3] sm:$0xff]
      %v2540 = vld [vmem:[%s1 + $0x14] sm:$0x1]
      %v2541 = vlaneseq
      %v2542 = vshrl.u32 %v2541, 7
      %v2543 = vsub.s32 0, %v2542
      %v2544 = vrot.slane %v2540, %v2543
      %v2545 = vmul.f32 %v2508, %v2544
      %v2546 = vmul.f32 %v2509, %v2544
      %v2547 = vmul.f32 %v2510, %v2544
      %v2548 = vmul.f32 %v2511, %v2544
      %v2549 = vmul.f32 %v2512, %v2544
      %v2550 = vmul.f32 %v2513, %v2544
      %v2551 = vmul.f32 %v2514, %v2544
      %v2552 = vmul.f32 %v2515, %v2544
      %v2553 = vmul.f32 %v2516, %v2544
      %v2554 = vmul.f32 %v2517, %v2544
      %v2555 = vmul.f32 %v2518, %v2544
      %v2556 = vmul.f32 %v2519, %v2544
      %v2557 = vmul.f32 %v2520, %v2544
      %v2558 = vmul.f32 %v2521, %v2544
      %v2559 = vmul.f32 %v2522, %v2544
      %v2560 = vmul.f32 %v2523, %v2544
      %v2561 = vmul.f32 %v2524, %v2544
      %v2562 = vmul.f32 %v2525, %v2544
      %v2563 = vmul.f32 %v2526, %v2544
      %v2564 = vmul.f32 %v2527, %v2544
      %v2565 = vmul.f32 %v2528, %v2544
      %v2566 = vmul.f32 %v2529, %v2544
      %v2567 = vmul.f32 %v2530, %v2544
      %v2568 = vmul.f32 %v2531, %v2544
      %v2569 = vmul.f32 %v2532, %v2544
      %v2570 = vmul.f32 %v2533, %v2544
      %v2571 = vmul.f32 %v2534, %v2544
      %v2572 = vmul.f32 %v2535, %v2544
      %v2573 = vmul.f32 %v2536, %v2544
      %v2574 = vmul.f32 %v2537, %v2544
      %v2575 = vmul.f32 %v2538, %v2544
      %v2576 = vmul.f32 %v2539, %v2544
      %v2577 = vadd.f32 %v2476, %v2545
      %v2578 = vadd.f32 %v2477, %v2546
      %v2579 = vadd.f32 %v2478, %v2547
      %v2580 = vadd.f32 %v2479, %v2548
      %v2581 = vadd.f32 %v2480, %v2549
      %v2582 = vadd.f32 %v2481, %v2550
      %v2583 = vadd.f32 %v2482, %v2551
      %v2584 = vadd.f32 %v2483, %v2552
      %v2585 = vadd.f32 %v2484, %v2553
      %v2586 = vadd.f32 %v2485, %v2554
      %v2587 = vadd.f32 %v2486, %v2555
      %v2588 = vadd.f32 %v2487, %v2556
      %v2589 = vadd.f32 %v2488, %v2557
      %v2590 = vadd.f32 %v2489, %v2558
      %v2591 = vadd.f32 %v2490, %v2559
      %v2592 = vadd.f32 %v2491, %v2560
      %v2593 = vadd.f32 %v2492, %v2561
      %v2594 = vadd.f32 %v2493, %v2562
      %v2595 = vadd.f32 %v2494, %v2563
      %v2596 = vadd.f32 %v2495, %v2564
      %v2597 = vadd.f32 %v2496, %v2565
      %v2598 = vadd.f32 %v2497, %v2566
      %v2599 = vadd.f32 %v2498, %v2567
      %v2600 = vadd.f32 %v2499, %v2568
      %v2601 = vadd.f32 %v2500, %v2569
      %v2602 = vadd.f32 %v2501, %v2570
      %v2603 = vadd.f32 %v2502, %v2571
      %v2604 = vadd.f32 %v2503, %v2572
      %v2605 = vadd.f32 %v2504, %v2573
      %v2606 = vadd.f32 %v2505, %v2574
      %v2607 = vadd.f32 %v2506, %v2575
      %v2608 = vadd.f32 %v2507, %v2576
      %v2609 = vld [vmem:[%s453 + $0x5] sm:$0xff]
      %v2610 = vld [vmem:[%s453 + $0xd] sm:$0xff]
      %v2611 = vld [vmem:[%s453 + $0x25] sm:$0xff]
      %v2612 = vld [vmem:[%s453 + $0x2d] sm:$0xff]
      %v2613 = vld [vmem:[%s453 + $0x45] sm:$0xff]
      %v2614 = vld [vmem:[%s453 + $0x4d] sm:$0xff]
      %v2615 = vld [vmem:[%s453 + $0x65] sm:$0xff]
      %v2616 = vld [vmem:[%s453 + $0x6d] sm:$0xff]
      %v2617 = vld [vmem:[%s453 + $0x85] sm:$0xff]
      %v2618 = vld [vmem:[%s453 + $0x8d] sm:$0xff]
      %v2619 = vld [vmem:[%s453 + $0xa5] sm:$0xff]
      %v2620 = vld [vmem:[%s453 + $0xad] sm:$0xff]
      %v2621 = vld [vmem:[%s453 + $0xc5] sm:$0xff]
      %v2622 = vld [vmem:[%s453 + $0xcd] sm:$0xff]
      %v2623 = vld [vmem:[%s453 + $0xe5] sm:$0xff]
      %v2624 = vld [vmem:[%s453 + $0xed] sm:$0xff]
      %v2625 = vld [vmem:[%s453 + $0x105] sm:$0xff]
      %v2626 = vld [vmem:[%s453 + $0x10d] sm:$0xff]
      %v2627 = vld [vmem:[%s453 + $0x125] sm:$0xff]
      %v2628 = vld [vmem:[%s453 + $0x12d] sm:$0xff]
      %v2629 = vld [vmem:[%s453 + $0x145] sm:$0xff]
      %v2630 = vld [vmem:[%s453 + $0x14d] sm:$0xff]
      %v2631 = vld [vmem:[%s453 + $0x165] sm:$0xff]
      %v2632 = vld [vmem:[%s453 + $0x16d] sm:$0xff]
      %v2633 = vld [vmem:[%s453 + $0x185] sm:$0xff]
      %v2634 = vld [vmem:[%s453 + $0x18d] sm:$0xff]
      %v2635 = vld [vmem:[%s453 + $0x1a5] sm:$0xff]
      %v2636 = vld [vmem:[%s453 + $0x1ad] sm:$0xff]
      %v2637 = vld [vmem:[%s453 + $0x1c5] sm:$0xff]
      %v2638 = vld [vmem:[%s453 + $0x1cd] sm:$0xff]
      %v2639 = vld [vmem:[%s453 + $0x1e5] sm:$0xff]
      %v2640 = vld [vmem:[%s453 + $0x1ed] sm:$0xff]
      %v2641 = vld [vmem:[%s1 + $0x15] sm:$0x1]
      %v2642 = vlaneseq
      %v2643 = vshrl.u32 %v2642, 7
      %v2644 = vsub.s32 0, %v2643
      %v2645 = vrot.slane %v2641, %v2644
      %v2646 = vmul.f32 %v2609, %v2645
      %v2647 = vmul.f32 %v2610, %v2645
      %v2648 = vmul.f32 %v2611, %v2645
      %v2649 = vmul.f32 %v2612, %v2645
      %v2650 = vmul.f32 %v2613, %v2645
      %v2651 = vmul.f32 %v2614, %v2645
      %v2652 = vmul.f32 %v2615, %v2645
      %v2653 = vmul.f32 %v2616, %v2645
      %v2654 = vmul.f32 %v2617, %v2645
      %v2655 = vmul.f32 %v2618, %v2645
      %v2656 = vmul.f32 %v2619, %v2645
      %v2657 = vmul.f32 %v2620, %v2645
      %v2658 = vmul.f32 %v2621, %v2645
      %v2659 = vmul.f32 %v2622, %v2645
      %v2660 = vmul.f32 %v2623, %v2645
      %v2661 = vmul.f32 %v2624, %v2645
      %v2662 = vmul.f32 %v2625, %v2645
      %v2663 = vmul.f32 %v2626, %v2645
      %v2664 = vmul.f32 %v2627, %v2645
      %v2665 = vmul.f32 %v2628, %v2645
      %v2666 = vmul.f32 %v2629, %v2645
      %v2667 = vmul.f32 %v2630, %v2645
      %v2668 = vmul.f32 %v2631, %v2645
      %v2669 = vmul.f32 %v2632, %v2645
      %v2670 = vmul.f32 %v2633, %v2645
      %v2671 = vmul.f32 %v2634, %v2645
      %v2672 = vmul.f32 %v2635, %v2645
      %v2673 = vmul.f32 %v2636, %v2645
      %v2674 = vmul.f32 %v2637, %v2645
      %v2675 = vmul.f32 %v2638, %v2645
      %v2676 = vmul.f32 %v2639, %v2645
      %v2677 = vmul.f32 %v2640, %v2645
      %v2678 = vadd.f32 %v2577, %v2646
      %v2679 = vadd.f32 %v2578, %v2647
      %v2680 = vadd.f32 %v2579, %v2648
      %v2681 = vadd.f32 %v2580, %v2649
      %v2682 = vadd.f32 %v2581, %v2650
      %v2683 = vadd.f32 %v2582, %v2651
      %v2684 = vadd.f32 %v2583, %v2652
      %v2685 = vadd.f32 %v2584, %v2653
      %v2686 = vadd.f32 %v2585, %v2654
      %v2687 = vadd.f32 %v2586, %v2655
      %v2688 = vadd.f32 %v2587, %v2656
      %v2689 = vadd.f32 %v2588, %v2657
      %v2690 = vadd.f32 %v2589, %v2658
      %v2691 = vadd.f32 %v2590, %v2659
      %v2692 = vadd.f32 %v2591, %v2660
      %v2693 = vadd.f32 %v2592, %v2661
      %v2694 = vadd.f32 %v2593, %v2662
      %v2695 = vadd.f32 %v2594, %v2663
      %v2696 = vadd.f32 %v2595, %v2664
      %v2697 = vadd.f32 %v2596, %v2665
      %v2698 = vadd.f32 %v2597, %v2666
      %v2699 = vadd.f32 %v2598, %v2667
      %v2700 = vadd.f32 %v2599, %v2668
      %v2701 = vadd.f32 %v2600, %v2669
      %v2702 = vadd.f32 %v2601, %v2670
      %v2703 = vadd.f32 %v2602, %v2671
      %v2704 = vadd.f32 %v2603, %v2672
      %v2705 = vadd.f32 %v2604, %v2673
      %v2706 = vadd.f32 %v2605, %v2674
      %v2707 = vadd.f32 %v2606, %v2675
      %v2708 = vadd.f32 %v2607, %v2676
      %v2709 = vadd.f32 %v2608, %v2677
      %v2710 = vld [vmem:[%s453 + $0x6] sm:$0xff]
      %v2711 = vld [vmem:[%s453 + $0xe] sm:$0xff]
      %v2712 = vld [vmem:[%s453 + $0x26] sm:$0xff]
      %v2713 = vld [vmem:[%s453 + $0x2e] sm:$0xff]
      %v2714 = vld [vmem:[%s453 + $0x46] sm:$0xff]
      %v2715 = vld [vmem:[%s453 + $0x4e] sm:$0xff]
      %v2716 = vld [vmem:[%s453 + $0x66] sm:$0xff]
      %v2717 = vld [vmem:[%s453 + $0x6e] sm:$0xff]
      %v2718 = vld [vmem:[%s453 + $0x86] sm:$0xff]
      %v2719 = vld [vmem:[%s453 + $0x8e] sm:$0xff]
      %v2720 = vld [vmem:[%s453 + $0xa6] sm:$0xff]
      %v2721 = vld [vmem:[%s453 + $0xae] sm:$0xff]
      %v2722 = vld [vmem:[%s453 + $0xc6] sm:$0xff]
      %v2723 = vld [vmem:[%s453 + $0xce] sm:$0xff]
      %v2724 = vld [vmem:[%s453 + $0xe6] sm:$0xff]
      %v2725 = vld [vmem:[%s453 + $0xee] sm:$0xff]
      %v2726 = vld [vmem:[%s453 + $0x106] sm:$0xff]
      %v2727 = vld [vmem:[%s453 + $0x10e] sm:$0xff]
      %v2728 = vld [vmem:[%s453 + $0x126] sm:$0xff]
      %v2729 = vld [vmem:[%s453 + $0x12e] sm:$0xff]
      %v2730 = vld [vmem:[%s453 + $0x146] sm:$0xff]
      %v2731 = vld [vmem:[%s453 + $0x14e] sm:$0xff]
      %v2732 = vld [vmem:[%s453 + $0x166] sm:$0xff]
      %v2733 = vld [vmem:[%s453 + $0x16e] sm:$0xff]
      %v2734 = vld [vmem:[%s453 + $0x186] sm:$0xff]
      %v2735 = vld [vmem:[%s453 + $0x18e] sm:$0xff]
      %v2736 = vld [vmem:[%s453 + $0x1a6] sm:$0xff]
      %v2737 = vld [vmem:[%s453 + $0x1ae] sm:$0xff]
      %v2738 = vld [vmem:[%s453 + $0x1c6] sm:$0xff]
      %v2739 = vld [vmem:[%s453 + $0x1ce] sm:$0xff]
      %v2740 = vld [vmem:[%s453 + $0x1e6] sm:$0xff]
      %v2741 = vld [vmem:[%s453 + $0x1ee] sm:$0xff]
      %v2742 = vld [vmem:[%s1 + $0x16] sm:$0x1]
      %v2743 = vlaneseq
      %v2744 = vshrl.u32 %v2743, 7
      %v2745 = vsub.s32 0, %v2744
      %v2746 = vrot.slane %v2742, %v2745
      %v2747 = vmul.f32 %v2710, %v2746
      %v2748 = vmul.f32 %v2711, %v2746
      %v2749 = vmul.f32 %v2712, %v2746
      %v2750 = vmul.f32 %v2713, %v2746
      %v2751 = vmul.f32 %v2714, %v2746
      %v2752 = vmul.f32 %v2715, %v2746
      %v2753 = vmul.f32 %v2716, %v2746
      %v2754 = vmul.f32 %v2717, %v2746
      %v2755 = vmul.f32 %v2718, %v2746
      %v2756 = vmul.f32 %v2719, %v2746
      %v2757 = vmul.f32 %v2720, %v2746
      %v2758 = vmul.f32 %v2721, %v2746
      %v2759 = vmul.f32 %v2722, %v2746
      %v2760 = vmul.f32 %v2723, %v2746
      %v2761 = vmul.f32 %v2724, %v2746
      %v2762 = vmul.f32 %v2725, %v2746
      %v2763 = vmul.f32 %v2726, %v2746
      %v2764 = vmul.f32 %v2727, %v2746
      %v2765 = vmul.f32 %v2728, %v2746
      %v2766 = vmul.f32 %v2729, %v2746
      %v2767 = vmul.f32 %v2730, %v2746
      %v2768 = vmul.f32 %v2731, %v2746
      %v2769 = vmul.f32 %v2732, %v2746
      %v2770 = vmul.f32 %v2733, %v2746
      %v2771 = vmul.f32 %v2734, %v2746
      %v2772 = vmul.f32 %v2735, %v2746
      %v2773 = vmul.f32 %v2736, %v2746
      %v2774 = vmul.f32 %v2737, %v2746
      %v2775 = vmul.f32 %v2738, %v2746
      %v2776 = vmul.f32 %v2739, %v2746
      %v2777 = vmul.f32 %v2740, %v2746
      %v2778 = vmul.f32 %v2741, %v2746
      %v2779 = vadd.f32 %v2678, %v2747
      %v2780 = vadd.f32 %v2679, %v2748
      %v2781 = vadd.f32 %v2680, %v2749
      %v2782 = vadd.f32 %v2681, %v2750
      %v2783 = vadd.f32 %v2682, %v2751
      %v2784 = vadd.f32 %v2683, %v2752
      %v2785 = vadd.f32 %v2684, %v2753
      %v2786 = vadd.f32 %v2685, %v2754
      %v2787 = vadd.f32 %v2686, %v2755
      %v2788 = vadd.f32 %v2687, %v2756
      %v2789 = vadd.f32 %v2688, %v2757
      %v2790 = vadd.f32 %v2689, %v2758
      %v2791 = vadd.f32 %v2690, %v2759
      %v2792 = vadd.f32 %v2691, %v2760
      %v2793 = vadd.f32 %v2692, %v2761
      %v2794 = vadd.f32 %v2693, %v2762
      %v2795 = vadd.f32 %v2694, %v2763
      %v2796 = vadd.f32 %v2695, %v2764
      %v2797 = vadd.f32 %v2696, %v2765
      %v2798 = vadd.f32 %v2697, %v2766
      %v2799 = vadd.f32 %v2698, %v2767
      %v2800 = vadd.f32 %v2699, %v2768
      %v2801 = vadd.f32 %v2700, %v2769
      %v2802 = vadd.f32 %v2701, %v2770
      %v2803 = vadd.f32 %v2702, %v2771
      %v2804 = vadd.f32 %v2703, %v2772
      %v2805 = vadd.f32 %v2704, %v2773
      %v2806 = vadd.f32 %v2705, %v2774
      %v2807 = vadd.f32 %v2706, %v2775
      %v2808 = vadd.f32 %v2707, %v2776
      %v2809 = vadd.f32 %v2708, %v2777
      %v2810 = vadd.f32 %v2709, %v2778
      %v2811 = vld [vmem:[%s453 + $0x7] sm:$0xff]
      %v2812 = vld [vmem:[%s453 + $0xf] sm:$0xff]
      %v2813 = vld [vmem:[%s453 + $0x27] sm:$0xff]
      %v2814 = vld [vmem:[%s453 + $0x2f] sm:$0xff]
      %v2815 = vld [vmem:[%s453 + $0x47] sm:$0xff]
      %v2816 = vld [vmem:[%s453 + $0x4f] sm:$0xff]
      %v2817 = vld [vmem:[%s453 + $0x67] sm:$0xff]
      %v2818 = vld [vmem:[%s453 + $0x6f] sm:$0xff]
      %v2819 = vld [vmem:[%s453 + $0x87] sm:$0xff]
      %v2820 = vld [vmem:[%s453 + $0x8f] sm:$0xff]
      %v2821 = vld [vmem:[%s453 + $0xa7] sm:$0xff]
      %v2822 = vld [vmem:[%s453 + $0xaf] sm:$0xff]
      %v2823 = vld [vmem:[%s453 + $0xc7] sm:$0xff]
      %v2824 = vld [vmem:[%s453 + $0xcf] sm:$0xff]
      %v2825 = vld [vmem:[%s453 + $0xe7] sm:$0xff]
      %v2826 = vld [vmem:[%s453 + $0xef] sm:$0xff]
      %v2827 = vld [vmem:[%s453 + $0x107] sm:$0xff]
      %v2828 = vld [vmem:[%s453 + $0x10f] sm:$0xff]
      %v2829 = vld [vmem:[%s453 + $0x127] sm:$0xff]
      %v2830 = vld [vmem:[%s453 + $0x12f] sm:$0xff]
      %v2831 = vld [vmem:[%s453 + $0x147] sm:$0xff]
      %v2832 = vld [vmem:[%s453 + $0x14f] sm:$0xff]
      %v2833 = vld [vmem:[%s453 + $0x167] sm:$0xff]
      %v2834 = vld [vmem:[%s453 + $0x16f] sm:$0xff]
      %v2835 = vld [vmem:[%s453 + $0x187] sm:$0xff]
      %v2836 = vld [vmem:[%s453 + $0x18f] sm:$0xff]
      %v2837 = vld [vmem:[%s453 + $0x1a7] sm:$0xff]
      %v2838 = vld [vmem:[%s453 + $0x1af] sm:$0xff]
      %v2839 = vld [vmem:[%s453 + $0x1c7] sm:$0xff]
      %v2840 = vld [vmem:[%s453 + $0x1cf] sm:$0xff]
      %v2841 = vld [vmem:[%s453 + $0x1e7] sm:$0xff]
      %v2842 = vld [vmem:[%s453 + $0x1ef] sm:$0xff]
      %v2843 = vld [vmem:[%s1 + $0x17] sm:$0x1]
      %v2844 = vlaneseq
      %v2845 = vshrl.u32 %v2844, 7
      %v2846 = vsub.s32 0, %v2845
      %v2847 = vrot.slane %v2843, %v2846
      %v2848 = vmul.f32 %v2811, %v2847
      %v2849 = vmul.f32 %v2812, %v2847
      %v2850 = vmul.f32 %v2813, %v2847
      %v2851 = vmul.f32 %v2814, %v2847
      %v2852 = vmul.f32 %v2815, %v2847
      %v2853 = vmul.f32 %v2816, %v2847
      %v2854 = vmul.f32 %v2817, %v2847
      %v2855 = vmul.f32 %v2818, %v2847
      %v2856 = vmul.f32 %v2819, %v2847
      %v2857 = vmul.f32 %v2820, %v2847
      %v2858 = vmul.f32 %v2821, %v2847
      %v2859 = vmul.f32 %v2822, %v2847
      %v2860 = vmul.f32 %v2823, %v2847
      %v2861 = vmul.f32 %v2824, %v2847
      %v2862 = vmul.f32 %v2825, %v2847
      %v2863 = vmul.f32 %v2826, %v2847
      %v2864 = vmul.f32 %v2827, %v2847
      %v2865 = vmul.f32 %v2828, %v2847
      %v2866 = vmul.f32 %v2829, %v2847
      %v2867 = vmul.f32 %v2830, %v2847
      %v2868 = vmul.f32 %v2831, %v2847
      %v2869 = vmul.f32 %v2832, %v2847
      %v2870 = vmul.f32 %v2833, %v2847
      %v2871 = vmul.f32 %v2834, %v2847
      %v2872 = vmul.f32 %v2835, %v2847
      %v2873 = vmul.f32 %v2836, %v2847
      %v2874 = vmul.f32 %v2837, %v2847
      %v2875 = vmul.f32 %v2838, %v2847
      %v2876 = vmul.f32 %v2839, %v2847
      %v2877 = vmul.f32 %v2840, %v2847
      %v2878 = vmul.f32 %v2841, %v2847
      %v2879 = vmul.f32 %v2842, %v2847
      %v2880 = vadd.f32 %v2779, %v2848
      %v2881 = vadd.f32 %v2780, %v2849
      %v2882 = vadd.f32 %v2781, %v2850
      %v2883 = vadd.f32 %v2782, %v2851
      %v2884 = vadd.f32 %v2783, %v2852
      %v2885 = vadd.f32 %v2784, %v2853
      %v2886 = vadd.f32 %v2785, %v2854
      %v2887 = vadd.f32 %v2786, %v2855
      %v2888 = vadd.f32 %v2787, %v2856
      %v2889 = vadd.f32 %v2788, %v2857
      %v2890 = vadd.f32 %v2789, %v2858
      %v2891 = vadd.f32 %v2790, %v2859
      %v2892 = vadd.f32 %v2791, %v2860
      %v2893 = vadd.f32 %v2792, %v2861
      %v2894 = vadd.f32 %v2793, %v2862
      %v2895 = vadd.f32 %v2794, %v2863
      %v2896 = vadd.f32 %v2795, %v2864
      %v2897 = vadd.f32 %v2796, %v2865
      %v2898 = vadd.f32 %v2797, %v2866
      %v2899 = vadd.f32 %v2798, %v2867
      %v2900 = vadd.f32 %v2799, %v2868
      %v2901 = vadd.f32 %v2800, %v2869
      %v2902 = vadd.f32 %v2801, %v2870
      %v2903 = vadd.f32 %v2802, %v2871
      %v2904 = vadd.f32 %v2803, %v2872
      %v2905 = vadd.f32 %v2804, %v2873
      %v2906 = vadd.f32 %v2805, %v2874
      %v2907 = vadd.f32 %v2806, %v2875
      %v2908 = vadd.f32 %v2807, %v2876
      %v2909 = vadd.f32 %v2808, %v2877
      %v2910 = vadd.f32 %v2809, %v2878
      %v2911 = vadd.f32 %v2810, %v2879
      %v2912 = vld [vmem:[%s453 + $0x8] sm:$0xff]
      %v2913 = vld [vmem:[%s453 + $0x10] sm:$0xff]
      %v2914 = vld [vmem:[%s453 + $0x28] sm:$0xff]
      %v2915 = vld [vmem:[%s453 + $0x30] sm:$0xff]
      %v2916 = vld [vmem:[%s453 + $0x48] sm:$0xff]
      %v2917 = vld [vmem:[%s453 + $0x50] sm:$0xff]
      %v2918 = vld [vmem:[%s453 + $0x68] sm:$0xff]
      %v2919 = vld [vmem:[%s453 + $0x70] sm:$0xff]
      %v2920 = vld [vmem:[%s453 + $0x88] sm:$0xff]
      %v2921 = vld [vmem:[%s453 + $0x90] sm:$0xff]
      %v2922 = vld [vmem:[%s453 + $0xa8] sm:$0xff]
      %v2923 = vld [vmem:[%s453 + $0xb0] sm:$0xff]
      %v2924 = vld [vmem:[%s453 + $0xc8] sm:$0xff]
      %v2925 = vld [vmem:[%s453 + $0xd0] sm:$0xff]
      %v2926 = vld [vmem:[%s453 + $0xe8] sm:$0xff]
      %v2927 = vld [vmem:[%s453 + $0xf0] sm:$0xff]
      %v2928 = vld [vmem:[%s453 + $0x108] sm:$0xff]
      %v2929 = vld [vmem:[%s453 + $0x110] sm:$0xff]
      %v2930 = vld [vmem:[%s453 + $0x128] sm:$0xff]
      %v2931 = vld [vmem:[%s453 + $0x130] sm:$0xff]
      %v2932 = vld [vmem:[%s453 + $0x148] sm:$0xff]
      %v2933 = vld [vmem:[%s453 + $0x150] sm:$0xff]
      %v2934 = vld [vmem:[%s453 + $0x168] sm:$0xff]
      %v2935 = vld [vmem:[%s453 + $0x170] sm:$0xff]
      %v2936 = vld [vmem:[%s453 + $0x188] sm:$0xff]
      %v2937 = vld [vmem:[%s453 + $0x190] sm:$0xff]
      %v2938 = vld [vmem:[%s453 + $0x1a8] sm:$0xff]
      %v2939 = vld [vmem:[%s453 + $0x1b0] sm:$0xff]
      %v2940 = vld [vmem:[%s453 + $0x1c8] sm:$0xff]
      %v2941 = vld [vmem:[%s453 + $0x1d0] sm:$0xff]
      %v2942 = vld [vmem:[%s453 + $0x1e8] sm:$0xff]
      %v2943 = vld [vmem:[%s453 + $0x1f0] sm:$0xff]
      %v2944 = vld [vmem:[%s1 + $0x18] sm:$0x1]
      %v2945 = vlaneseq
      %v2946 = vshrl.u32 %v2945, 7
      %v2947 = vsub.s32 0, %v2946
      %v2948 = vrot.slane %v2944, %v2947
      %v2949 = vmul.f32 %v2912, %v2948
      %v2950 = vmul.f32 %v2913, %v2948
      %v2951 = vmul.f32 %v2914, %v2948
      %v2952 = vmul.f32 %v2915, %v2948
      %v2953 = vmul.f32 %v2916, %v2948
      %v2954 = vmul.f32 %v2917, %v2948
      %v2955 = vmul.f32 %v2918, %v2948
      %v2956 = vmul.f32 %v2919, %v2948
      %v2957 = vmul.f32 %v2920, %v2948
      %v2958 = vmul.f32 %v2921, %v2948
      %v2959 = vmul.f32 %v2922, %v2948
      %v2960 = vmul.f32 %v2923, %v2948
      %v2961 = vmul.f32 %v2924, %v2948
      %v2962 = vmul.f32 %v2925, %v2948
      %v2963 = vmul.f32 %v2926, %v2948
      %v2964 = vmul.f32 %v2927, %v2948
      %v2965 = vmul.f32 %v2928, %v2948
      %v2966 = vmul.f32 %v2929, %v2948
      %v2967 = vmul.f32 %v2930, %v2948
      %v2968 = vmul.f32 %v2931, %v2948
      %v2969 = vmul.f32 %v2932, %v2948
      %v2970 = vmul.f32 %v2933, %v2948
      %v2971 = vmul.f32 %v2934, %v2948
      %v2972 = vmul.f32 %v2935, %v2948
      %v2973 = vmul.f32 %v2936, %v2948
      %v2974 = vmul.f32 %v2937, %v2948
      %v2975 = vmul.f32 %v2938, %v2948
      %v2976 = vmul.f32 %v2939, %v2948
      %v2977 = vmul.f32 %v2940, %v2948
      %v2978 = vmul.f32 %v2941, %v2948
      %v2979 = vmul.f32 %v2942, %v2948
      %v2980 = vmul.f32 %v2943, %v2948
      %v2981 = vadd.f32 %v2880, %v2949
      %v2982 = vadd.f32 %v2881, %v2950
      %v2983 = vadd.f32 %v2882, %v2951
      %v2984 = vadd.f32 %v2883, %v2952
      %v2985 = vadd.f32 %v2884, %v2953
      %v2986 = vadd.f32 %v2885, %v2954
      %v2987 = vadd.f32 %v2886, %v2955
      %v2988 = vadd.f32 %v2887, %v2956
      %v2989 = vadd.f32 %v2888, %v2957
      %v2990 = vadd.f32 %v2889, %v2958
      %v2991 = vadd.f32 %v2890, %v2959
      %v2992 = vadd.f32 %v2891, %v2960
      %v2993 = vadd.f32 %v2892, %v2961
      %v2994 = vadd.f32 %v2893, %v2962
      %v2995 = vadd.f32 %v2894, %v2963
      %v2996 = vadd.f32 %v2895, %v2964
      %v2997 = vadd.f32 %v2896, %v2965
      %v2998 = vadd.f32 %v2897, %v2966
      %v2999 = vadd.f32 %v2898, %v2967
      %v3000 = vadd.f32 %v2899, %v2968
      %v3001 = vadd.f32 %v2900, %v2969
      %v3002 = vadd.f32 %v2901, %v2970
      %v3003 = vadd.f32 %v2902, %v2971
      %v3004 = vadd.f32 %v2903, %v2972
      %v3005 = vadd.f32 %v2904, %v2973
      %v3006 = vadd.f32 %v2905, %v2974
      %v3007 = vadd.f32 %v2906, %v2975
      %v3008 = vadd.f32 %v2907, %v2976
      %v3009 = vadd.f32 %v2908, %v2977
      %v3010 = vadd.f32 %v2909, %v2978
      %v3011 = vadd.f32 %v2910, %v2979
      %v3012 = vadd.f32 %v2911, %v2980
      %v3013 = vld [vmem:[%s453 + $0x9] sm:$0xff]
      %v3014 = vld [vmem:[%s453 + $0x11] sm:$0xff]
      %v3015 = vld [vmem:[%s453 + $0x29] sm:$0xff]
      %v3016 = vld [vmem:[%s453 + $0x31] sm:$0xff]
      %v3017 = vld [vmem:[%s453 + $0x49] sm:$0xff]
      %v3018 = vld [vmem:[%s453 + $0x51] sm:$0xff]
      %v3019 = vld [vmem:[%s453 + $0x69] sm:$0xff]
      %v3020 = vld [vmem:[%s453 + $0x71] sm:$0xff]
      %v3021 = vld [vmem:[%s453 + $0x89] sm:$0xff]
      %v3022 = vld [vmem:[%s453 + $0x91] sm:$0xff]
      %v3023 = vld [vmem:[%s453 + $0xa9] sm:$0xff]
      %v3024 = vld [vmem:[%s453 + $0xb1] sm:$0xff]
      %v3025 = vld [vmem:[%s453 + $0xc9] sm:$0xff]
      %v3026 = vld [vmem:[%s453 + $0xd1] sm:$0xff]
      %v3027 = vld [vmem:[%s453 + $0xe9] sm:$0xff]
      %v3028 = vld [vmem:[%s453 + $0xf1] sm:$0xff]
      %v3029 = vld [vmem:[%s453 + $0x109] sm:$0xff]
      %v3030 = vld [vmem:[%s453 + $0x111] sm:$0xff]
      %v3031 = vld [vmem:[%s453 + $0x129] sm:$0xff]
      %v3032 = vld [vmem:[%s453 + $0x131] sm:$0xff]
      %v3033 = vld [vmem:[%s453 + $0x149] sm:$0xff]
      %v3034 = vld [vmem:[%s453 + $0x151] sm:$0xff]
      %v3035 = vld [vmem:[%s453 + $0x169] sm:$0xff]
      %v3036 = vld [vmem:[%s453 + $0x171] sm:$0xff]
      %v3037 = vld [vmem:[%s453 + $0x189] sm:$0xff]
      %v3038 = vld [vmem:[%s453 + $0x191] sm:$0xff]
      %v3039 = vld [vmem:[%s453 + $0x1a9] sm:$0xff]
      %v3040 = vld [vmem:[%s453 + $0x1b1] sm:$0xff]
      %v3041 = vld [vmem:[%s453 + $0x1c9] sm:$0xff]
      %v3042 = vld [vmem:[%s453 + $0x1d1] sm:$0xff]
      %v3043 = vld [vmem:[%s453 + $0x1e9] sm:$0xff]
      %v3044 = vld [vmem:[%s453 + $0x1f1] sm:$0xff]
      %v3045 = vld [vmem:[%s1 + $0x19] sm:$0x1]
      %v3046 = vlaneseq
      %v3047 = vshrl.u32 %v3046, 7
      %v3048 = vsub.s32 0, %v3047
      %v3049 = vrot.slane %v3045, %v3048
      %v3050 = vmul.f32 %v3013, %v3049
      %v3051 = vmul.f32 %v3014, %v3049
      %v3052 = vmul.f32 %v3015, %v3049
      %v3053 = vmul.f32 %v3016, %v3049
      %v3054 = vmul.f32 %v3017, %v3049
      %v3055 = vmul.f32 %v3018, %v3049
      %v3056 = vmul.f32 %v3019, %v3049
      %v3057 = vmul.f32 %v3020, %v3049
      %v3058 = vmul.f32 %v3021, %v3049
      %v3059 = vmul.f32 %v3022, %v3049
      %v3060 = vmul.f32 %v3023, %v3049
      %v3061 = vmul.f32 %v3024, %v3049
      %v3062 = vmul.f32 %v3025, %v3049
      %v3063 = vmul.f32 %v3026, %v3049
      %v3064 = vmul.f32 %v3027, %v3049
      %v3065 = vmul.f32 %v3028, %v3049
      %v3066 = vmul.f32 %v3029, %v3049
      %v3067 = vmul.f32 %v3030, %v3049
      %v3068 = vmul.f32 %v3031, %v3049
      %v3069 = vmul.f32 %v3032, %v3049
      %v3070 = vmul.f32 %v3033, %v3049
      %v3071 = vmul.f32 %v3034, %v3049
      %v3072 = vmul.f32 %v3035, %v3049
      %v3073 = vmul.f32 %v3036, %v3049
      %v3074 = vmul.f32 %v3037, %v3049
      %v3075 = vmul.f32 %v3038, %v3049
      %v3076 = vmul.f32 %v3039, %v3049
      %v3077 = vmul.f32 %v3040, %v3049
      %v3078 = vmul.f32 %v3041, %v3049
      %v3079 = vmul.f32 %v3042, %v3049
      %v3080 = vmul.f32 %v3043, %v3049
      %v3081 = vmul.f32 %v3044, %v3049
      %v3082 = vadd.f32 %v2981, %v3050
      %v3083 = vadd.f32 %v2982, %v3051
      %v3084 = vadd.f32 %v2983, %v3052
      %v3085 = vadd.f32 %v2984, %v3053
      %v3086 = vadd.f32 %v2985, %v3054
      %v3087 = vadd.f32 %v2986, %v3055
      %v3088 = vadd.f32 %v2987, %v3056
      %v3089 = vadd.f32 %v2988, %v3057
      %v3090 = vadd.f32 %v2989, %v3058
      %v3091 = vadd.f32 %v2990, %v3059
      %v3092 = vadd.f32 %v2991, %v3060
      %v3093 = vadd.f32 %v2992, %v3061
      %v3094 = vadd.f32 %v2993, %v3062
      %v3095 = vadd.f32 %v2994, %v3063
      %v3096 = vadd.f32 %v2995, %v3064
      %v3097 = vadd.f32 %v2996, %v3065
      %v3098 = vadd.f32 %v2997, %v3066
      %v3099 = vadd.f32 %v2998, %v3067
      %v3100 = vadd.f32 %v2999, %v3068
      %v3101 = vadd.f32 %v3000, %v3069
      %v3102 = vadd.f32 %v3001, %v3070
      %v3103 = vadd.f32 %v3002, %v3071
      %v3104 = vadd.f32 %v3003, %v3072
      %v3105 = vadd.f32 %v3004, %v3073
      %v3106 = vadd.f32 %v3005, %v3074
      %v3107 = vadd.f32 %v3006, %v3075
      %v3108 = vadd.f32 %v3007, %v3076
      %v3109 = vadd.f32 %v3008, %v3077
      %v3110 = vadd.f32 %v3009, %v3078
      %v3111 = vadd.f32 %v3010, %v3079
      %v3112 = vadd.f32 %v3011, %v3080
      %v3113 = vadd.f32 %v3012, %v3081
      %v3114 = vld [vmem:[%s453 + $0xa] sm:$0xff]
      %v3115 = vld [vmem:[%s453 + $0x12] sm:$0xff]
      %v3116 = vld [vmem:[%s453 + $0x2a] sm:$0xff]
      %v3117 = vld [vmem:[%s453 + $0x32] sm:$0xff]
      %v3118 = vld [vmem:[%s453 + $0x4a] sm:$0xff]
      %v3119 = vld [vmem:[%s453 + $0x52] sm:$0xff]
      %v3120 = vld [vmem:[%s453 + $0x6a] sm:$0xff]
      %v3121 = vld [vmem:[%s453 + $0x72] sm:$0xff]
      %v3122 = vld [vmem:[%s453 + $0x8a] sm:$0xff]
      %v3123 = vld [vmem:[%s453 + $0x92] sm:$0xff]
      %v3124 = vld [vmem:[%s453 + $0xaa] sm:$0xff]
      %v3125 = vld [vmem:[%s453 + $0xb2] sm:$0xff]
      %v3126 = vld [vmem:[%s453 + $0xca] sm:$0xff]
      %v3127 = vld [vmem:[%s453 + $0xd2] sm:$0xff]
      %v3128 = vld [vmem:[%s453 + $0xea] sm:$0xff]
      %v3129 = vld [vmem:[%s453 + $0xf2] sm:$0xff]
      %v3130 = vld [vmem:[%s453 + $0x10a] sm:$0xff]
      %v3131 = vld [vmem:[%s453 + $0x112] sm:$0xff]
      %v3132 = vld [vmem:[%s453 + $0x12a] sm:$0xff]
      %v3133 = vld [vmem:[%s453 + $0x132] sm:$0xff]
      %v3134 = vld [vmem:[%s453 + $0x14a] sm:$0xff]
      %v3135 = vld [vmem:[%s453 + $0x152] sm:$0xff]
      %v3136 = vld [vmem:[%s453 + $0x16a] sm:$0xff]
      %v3137 = vld [vmem:[%s453 + $0x172] sm:$0xff]
      %v3138 = vld [vmem:[%s453 + $0x18a] sm:$0xff]
      %v3139 = vld [vmem:[%s453 + $0x192] sm:$0xff]
      %v3140 = vld [vmem:[%s453 + $0x1aa] sm:$0xff]
      %v3141 = vld [vmem:[%s453 + $0x1b2] sm:$0xff]
      %v3142 = vld [vmem:[%s453 + $0x1ca] sm:$0xff]
      %v3143 = vld [vmem:[%s453 + $0x1d2] sm:$0xff]
      %v3144 = vld [vmem:[%s453 + $0x1ea] sm:$0xff]
      %v3145 = vld [vmem:[%s453 + $0x1f2] sm:$0xff]
      %v3146 = vld [vmem:[%s1 + $0x1a] sm:$0x1]
      %v3147 = vlaneseq
      %v3148 = vshrl.u32 %v3147, 7
      %v3149 = vsub.s32 0, %v3148
      %v3150 = vrot.slane %v3146, %v3149
      %v3151 = vmul.f32 %v3114, %v3150
      %v3152 = vmul.f32 %v3115, %v3150
      %v3153 = vmul.f32 %v3116, %v3150
      %v3154 = vmul.f32 %v3117, %v3150
      %v3155 = vmul.f32 %v3118, %v3150
      %v3156 = vmul.f32 %v3119, %v3150
      %v3157 = vmul.f32 %v3120, %v3150
      %v3158 = vmul.f32 %v3121, %v3150
      %v3159 = vmul.f32 %v3122, %v3150
      %v3160 = vmul.f32 %v3123, %v3150
      %v3161 = vmul.f32 %v3124, %v3150
      %v3162 = vmul.f32 %v3125, %v3150
      %v3163 = vmul.f32 %v3126, %v3150
      %v3164 = vmul.f32 %v3127, %v3150
      %v3165 = vmul.f32 %v3128, %v3150
      %v3166 = vmul.f32 %v3129, %v3150
      %v3167 = vmul.f32 %v3130, %v3150
      %v3168 = vmul.f32 %v3131, %v3150
      %v3169 = vmul.f32 %v3132, %v3150
      %v3170 = vmul.f32 %v3133, %v3150
      %v3171 = vmul.f32 %v3134, %v3150
      %v3172 = vmul.f32 %v3135, %v3150
      %v3173 = vmul.f32 %v3136, %v3150
      %v3174 = vmul.f32 %v3137, %v3150
      %v3175 = vmul.f32 %v3138, %v3150
      %v3176 = vmul.f32 %v3139, %v3150
      %v3177 = vmul.f32 %v3140, %v3150
      %v3178 = vmul.f32 %v3141, %v3150
      %v3179 = vmul.f32 %v3142, %v3150
      %v3180 = vmul.f32 %v3143, %v3150
      %v3181 = vmul.f32 %v3144, %v3150
      %v3182 = vmul.f32 %v3145, %v3150
      %v3183 = vadd.f32 %v3082, %v3151
      %v3184 = vadd.f32 %v3083, %v3152
      %v3185 = vadd.f32 %v3084, %v3153
      %v3186 = vadd.f32 %v3085, %v3154
      %v3187 = vadd.f32 %v3086, %v3155
      %v3188 = vadd.f32 %v3087, %v3156
      %v3189 = vadd.f32 %v3088, %v3157
      %v3190 = vadd.f32 %v3089, %v3158
      %v3191 = vadd.f32 %v3090, %v3159
      %v3192 = vadd.f32 %v3091, %v3160
      %v3193 = vadd.f32 %v3092, %v3161
      %v3194 = vadd.f32 %v3093, %v3162
      %v3195 = vadd.f32 %v3094, %v3163
      %v3196 = vadd.f32 %v3095, %v3164
      %v3197 = vadd.f32 %v3096, %v3165
      %v3198 = vadd.f32 %v3097, %v3166
      %v3199 = vadd.f32 %v3098, %v3167
      %v3200 = vadd.f32 %v3099, %v3168
      %v3201 = vadd.f32 %v3100, %v3169
      %v3202 = vadd.f32 %v3101, %v3170
      %v3203 = vadd.f32 %v3102, %v3171
      %v3204 = vadd.f32 %v3103, %v3172
      %v3205 = vadd.f32 %v3104, %v3173
      %v3206 = vadd.f32 %v3105, %v3174
      %v3207 = vadd.f32 %v3106, %v3175
      %v3208 = vadd.f32 %v3107, %v3176
      %v3209 = vadd.f32 %v3108, %v3177
      %v3210 = vadd.f32 %v3109, %v3178
      %v3211 = vadd.f32 %v3110, %v3179
      %v3212 = vadd.f32 %v3111, %v3180
      %v3213 = vadd.f32 %v3112, %v3181
      %v3214 = vadd.f32 %v3113, %v3182
      %v3215 = vld [vmem:[%s453 + $0xb] sm:$0xff]
      %v3216 = vld [vmem:[%s453 + $0x13] sm:$0xff]
      %v3217 = vld [vmem:[%s453 + $0x2b] sm:$0xff]
      %v3218 = vld [vmem:[%s453 + $0x33] sm:$0xff]
      %v3219 = vld [vmem:[%s453 + $0x4b] sm:$0xff]
      %v3220 = vld [vmem:[%s453 + $0x53] sm:$0xff]
      %v3221 = vld [vmem:[%s453 + $0x6b] sm:$0xff]
      %v3222 = vld [vmem:[%s453 + $0x73] sm:$0xff]
      %v3223 = vld [vmem:[%s453 + $0x8b] sm:$0xff]
      %v3224 = vld [vmem:[%s453 + $0x93] sm:$0xff]
      %v3225 = vld [vmem:[%s453 + $0xab] sm:$0xff]
      %v3226 = vld [vmem:[%s453 + $0xb3] sm:$0xff]
      %v3227 = vld [vmem:[%s453 + $0xcb] sm:$0xff]
      %v3228 = vld [vmem:[%s453 + $0xd3] sm:$0xff]
      %v3229 = vld [vmem:[%s453 + $0xeb] sm:$0xff]
      %v3230 = vld [vmem:[%s453 + $0xf3] sm:$0xff]
      %v3231 = vld [vmem:[%s453 + $0x10b] sm:$0xff]
      %v3232 = vld [vmem:[%s453 + $0x113] sm:$0xff]
      %v3233 = vld [vmem:[%s453 + $0x12b] sm:$0xff]
      %v3234 = vld [vmem:[%s453 + $0x133] sm:$0xff]
      %v3235 = vld [vmem:[%s453 + $0x14b] sm:$0xff]
      %v3236 = vld [vmem:[%s453 + $0x153] sm:$0xff]
      %v3237 = vld [vmem:[%s453 + $0x16b] sm:$0xff]
      %v3238 = vld [vmem:[%s453 + $0x173] sm:$0xff]
      %v3239 = vld [vmem:[%s453 + $0x18b] sm:$0xff]
      %v3240 = vld [vmem:[%s453 + $0x193] sm:$0xff]
      %v3241 = vld [vmem:[%s453 + $0x1ab] sm:$0xff]
      %v3242 = vld [vmem:[%s453 + $0x1b3] sm:$0xff]
      %v3243 = vld [vmem:[%s453 + $0x1cb] sm:$0xff]
      %v3244 = vld [vmem:[%s453 + $0x1d3] sm:$0xff]
      %v3245 = vld [vmem:[%s453 + $0x1eb] sm:$0xff]
      %v3246 = vld [vmem:[%s453 + $0x1f3] sm:$0xff]
      %v3247 = vld [vmem:[%s1 + $0x1b] sm:$0x1]
      %v3248 = vlaneseq
      %v3249 = vshrl.u32 %v3248, 7
      %v3250 = vsub.s32 0, %v3249
      %v3251 = vrot.slane %v3247, %v3250
      %v3252 = vmul.f32 %v3215, %v3251
      %v3253 = vmul.f32 %v3216, %v3251
      %v3254 = vmul.f32 %v3217, %v3251
      %v3255 = vmul.f32 %v3218, %v3251
      %v3256 = vmul.f32 %v3219, %v3251
      %v3257 = vmul.f32 %v3220, %v3251
      %v3258 = vmul.f32 %v3221, %v3251
      %v3259 = vmul.f32 %v3222, %v3251
      %v3260 = vmul.f32 %v3223, %v3251
      %v3261 = vmul.f32 %v3224, %v3251
      %v3262 = vmul.f32 %v3225, %v3251
      %v3263 = vmul.f32 %v3226, %v3251
      %v3264 = vmul.f32 %v3227, %v3251
      %v3265 = vmul.f32 %v3228, %v3251
      %v3266 = vmul.f32 %v3229, %v3251
      %v3267 = vmul.f32 %v3230, %v3251
      %v3268 = vmul.f32 %v3231, %v3251
      %v3269 = vmul.f32 %v3232, %v3251
      %v3270 = vmul.f32 %v3233, %v3251
      %v3271 = vmul.f32 %v3234, %v3251
      %v3272 = vmul.f32 %v3235, %v3251
      %v3273 = vmul.f32 %v3236, %v3251
      %v3274 = vmul.f32 %v3237, %v3251
      %v3275 = vmul.f32 %v3238, %v3251
      %v3276 = vmul.f32 %v3239, %v3251
      %v3277 = vmul.f32 %v3240, %v3251
      %v3278 = vmul.f32 %v3241, %v3251
      %v3279 = vmul.f32 %v3242, %v3251
      %v3280 = vmul.f32 %v3243, %v3251
      %v3281 = vmul.f32 %v3244, %v3251
      %v3282 = vmul.f32 %v3245, %v3251
      %v3283 = vmul.f32 %v3246, %v3251
      %v3284 = vadd.f32 %v3183, %v3252
      %v3285 = vadd.f32 %v3184, %v3253
      %v3286 = vadd.f32 %v3185, %v3254
      %v3287 = vadd.f32 %v3186, %v3255
      %v3288 = vadd.f32 %v3187, %v3256
      %v3289 = vadd.f32 %v3188, %v3257
      %v3290 = vadd.f32 %v3189, %v3258
      %v3291 = vadd.f32 %v3190, %v3259
      %v3292 = vadd.f32 %v3191, %v3260
      %v3293 = vadd.f32 %v3192, %v3261
      %v3294 = vadd.f32 %v3193, %v3262
      %v3295 = vadd.f32 %v3194, %v3263
      %v3296 = vadd.f32 %v3195, %v3264
      %v3297 = vadd.f32 %v3196, %v3265
      %v3298 = vadd.f32 %v3197, %v3266
      %v3299 = vadd.f32 %v3198, %v3267
      %v3300 = vadd.f32 %v3199, %v3268
      %v3301 = vadd.f32 %v3200, %v3269
      %v3302 = vadd.f32 %v3201, %v3270
      %v3303 = vadd.f32 %v3202, %v3271
      %v3304 = vadd.f32 %v3203, %v3272
      %v3305 = vadd.f32 %v3204, %v3273
      %v3306 = vadd.f32 %v3205, %v3274
      %v3307 = vadd.f32 %v3206, %v3275
      %v3308 = vadd.f32 %v3207, %v3276
      %v3309 = vadd.f32 %v3208, %v3277
      %v3310 = vadd.f32 %v3209, %v3278
      %v3311 = vadd.f32 %v3210, %v3279
      %v3312 = vadd.f32 %v3211, %v3280
      %v3313 = vadd.f32 %v3212, %v3281
      %v3314 = vadd.f32 %v3213, %v3282
      %v3315 = vadd.f32 %v3214, %v3283
      %s3316 = scalar_lea.vmem [#allocation2], 128
      %v3317 = vld [vmem:[%s3316 + $0x5] sm:$0xff]
      %v3318 = vld [vmem:[%s3316 + $0xd] sm:$0xff]
      %v3319 = vld [vmem:[%s3316 + $0x25] sm:$0xff]
      %v3320 = vld [vmem:[%s3316 + $0x2d] sm:$0xff]
      %v3321 = vld [vmem:[%s3316 + $0x45] sm:$0xff]
      %v3322 = vld [vmem:[%s3316 + $0x4d] sm:$0xff]
      %v3323 = vld [vmem:[%s3316 + $0x65] sm:$0xff]
      %v3324 = vld [vmem:[%s3316 + $0x6d] sm:$0xff]
      %v3325 = vld [vmem:[%s3316 + $0x85] sm:$0xff]
      %v3326 = vld [vmem:[%s3316 + $0x8d] sm:$0xff]
      %v3327 = vld [vmem:[%s3316 + $0xa5] sm:$0xff]
      %v3328 = vld [vmem:[%s3316 + $0xad] sm:$0xff]
      %v3329 = vld [vmem:[%s3316 + $0xc5] sm:$0xff]
      %v3330 = vld [vmem:[%s3316 + $0xcd] sm:$0xff]
      %v3331 = vld [vmem:[%s3316 + $0xe5] sm:$0xff]
      %v3332 = vld [vmem:[%s3316 + $0xed] sm:$0xff]
      %v3333 = vld [vmem:[%s3316 + $0x105] sm:$0xff]
      %v3334 = vld [vmem:[%s3316 + $0x10d] sm:$0xff]
      %v3335 = vld [vmem:[%s3316 + $0x125] sm:$0xff]
      %v3336 = vld [vmem:[%s3316 + $0x12d] sm:$0xff]
      %v3337 = vld [vmem:[%s3316 + $0x145] sm:$0xff]
      %v3338 = vld [vmem:[%s3316 + $0x14d] sm:$0xff]
      %v3339 = vld [vmem:[%s3316 + $0x165] sm:$0xff]
      %v3340 = vld [vmem:[%s3316 + $0x16d] sm:$0xff]
      %v3341 = vld [vmem:[%s3316 + $0x185] sm:$0xff]
      %v3342 = vld [vmem:[%s3316 + $0x18d] sm:$0xff]
      %v3343 = vld [vmem:[%s3316 + $0x1a5] sm:$0xff]
      %v3344 = vld [vmem:[%s3316 + $0x1ad] sm:$0xff]
      %v3345 = vld [vmem:[%s3316 + $0x1c5] sm:$0xff]
      %v3346 = vld [vmem:[%s3316 + $0x1cd] sm:$0xff]
      %v3347 = vld [vmem:[%s3316 + $0x1e5] sm:$0xff]
      %v3348 = vld [vmem:[%s3316 + $0x1ed] sm:$0xff]
      %v3349 = vld [vmem:[%s1 + $0x1c] sm:$0x1]
      %v3350 = vlaneseq
      %v3351 = vshrl.u32 %v3350, 7
      %v3352 = vsub.s32 0, %v3351
      %v3353 = vrot.slane %v3349, %v3352
      %v3354 = vmul.f32 %v3317, %v3353
      %v3355 = vmul.f32 %v3318, %v3353
      %v3356 = vmul.f32 %v3319, %v3353
      %v3357 = vmul.f32 %v3320, %v3353
      %v3358 = vmul.f32 %v3321, %v3353
      %v3359 = vmul.f32 %v3322, %v3353
      %v3360 = vmul.f32 %v3323, %v3353
      %v3361 = vmul.f32 %v3324, %v3353
      %v3362 = vmul.f32 %v3325, %v3353
      %v3363 = vmul.f32 %v3326, %v3353
      %v3364 = vmul.f32 %v3327, %v3353
      %v3365 = vmul.f32 %v3328, %v3353
      %v3366 = vmul.f32 %v3329, %v3353
      %v3367 = vmul.f32 %v3330, %v3353
      %v3368 = vmul.f32 %v3331, %v3353
      %v3369 = vmul.f32 %v3332, %v3353
      %v3370 = vmul.f32 %v3333, %v3353
      %v3371 = vmul.f32 %v3334, %v3353
      %v3372 = vmul.f32 %v3335, %v3353
      %v3373 = vmul.f32 %v3336, %v3353
      %v3374 = vmul.f32 %v3337, %v3353
      %v3375 = vmul.f32 %v3338, %v3353
      %v3376 = vmul.f32 %v3339, %v3353
      %v3377 = vmul.f32 %v3340, %v3353
      %v3378 = vmul.f32 %v3341, %v3353
      %v3379 = vmul.f32 %v3342, %v3353
      %v3380 = vmul.f32 %v3343, %v3353
      %v3381 = vmul.f32 %v3344, %v3353
      %v3382 = vmul.f32 %v3345, %v3353
      %v3383 = vmul.f32 %v3346, %v3353
      %v3384 = vmul.f32 %v3347, %v3353
      %v3385 = vmul.f32 %v3348, %v3353
      %v3386 = vadd.f32 %v3284, %v3354
      %v3387 = vadd.f32 %v3285, %v3355
      %v3388 = vadd.f32 %v3286, %v3356
      %v3389 = vadd.f32 %v3287, %v3357
      %v3390 = vadd.f32 %v3288, %v3358
      %v3391 = vadd.f32 %v3289, %v3359
      %v3392 = vadd.f32 %v3290, %v3360
      %v3393 = vadd.f32 %v3291, %v3361
      %v3394 = vadd.f32 %v3292, %v3362
      %v3395 = vadd.f32 %v3293, %v3363
      %v3396 = vadd.f32 %v3294, %v3364
      %v3397 = vadd.f32 %v3295, %v3365
      %v3398 = vadd.f32 %v3296, %v3366
      %v3399 = vadd.f32 %v3297, %v3367
      %v3400 = vadd.f32 %v3298, %v3368
      %v3401 = vadd.f32 %v3299, %v3369
      %v3402 = vadd.f32 %v3300, %v3370
      %v3403 = vadd.f32 %v3301, %v3371
      %v3404 = vadd.f32 %v3302, %v3372
      %v3405 = vadd.f32 %v3303, %v3373
      %v3406 = vadd.f32 %v3304, %v3374
      %v3407 = vadd.f32 %v3305, %v3375
      %v3408 = vadd.f32 %v3306, %v3376
      %v3409 = vadd.f32 %v3307, %v3377
      %v3410 = vadd.f32 %v3308, %v3378
      %v3411 = vadd.f32 %v3309, %v3379
      %v3412 = vadd.f32 %v3310, %v3380
      %v3413 = vadd.f32 %v3311, %v3381
      %v3414 = vadd.f32 %v3312, %v3382
      %v3415 = vadd.f32 %v3313, %v3383
      %v3416 = vadd.f32 %v3314, %v3384
      %v3417 = vadd.f32 %v3315, %v3385
      %v3418 = vld [vmem:[%s3316 + $0x6] sm:$0xff]
      %v3419 = vld [vmem:[%s3316 + $0xe] sm:$0xff]
      %v3420 = vld [vmem:[%s3316 + $0x26] sm:$0xff]
      %v3421 = vld [vmem:[%s3316 + $0x2e] sm:$0xff]
      %v3422 = vld [vmem:[%s3316 + $0x46] sm:$0xff]
      %v3423 = vld [vmem:[%s3316 + $0x4e] sm:$0xff]
      %v3424 = vld [vmem:[%s3316 + $0x66] sm:$0xff]
      %v3425 = vld [vmem:[%s3316 + $0x6e] sm:$0xff]
      %v3426 = vld [vmem:[%s3316 + $0x86] sm:$0xff]
      %v3427 = vld [vmem:[%s3316 + $0x8e] sm:$0xff]
      %v3428 = vld [vmem:[%s3316 + $0xa6] sm:$0xff]
      %v3429 = vld [vmem:[%s3316 + $0xae] sm:$0xff]
      %v3430 = vld [vmem:[%s3316 + $0xc6] sm:$0xff]
      %v3431 = vld [vmem:[%s3316 + $0xce] sm:$0xff]
      %v3432 = vld [vmem:[%s3316 + $0xe6] sm:$0xff]
      %v3433 = vld [vmem:[%s3316 + $0xee] sm:$0xff]
      %v3434 = vld [vmem:[%s3316 + $0x106] sm:$0xff]
      %v3435 = vld [vmem:[%s3316 + $0x10e] sm:$0xff]
      %v3436 = vld [vmem:[%s3316 + $0x126] sm:$0xff]
      %v3437 = vld [vmem:[%s3316 + $0x12e] sm:$0xff]
      %v3438 = vld [vmem:[%s3316 + $0x146] sm:$0xff]
      %v3439 = vld [vmem:[%s3316 + $0x14e] sm:$0xff]
      %v3440 = vld [vmem:[%s3316 + $0x166] sm:$0xff]
      %v3441 = vld [vmem:[%s3316 + $0x16e] sm:$0xff]
      %v3442 = vld [vmem:[%s3316 + $0x186] sm:$0xff]
      %v3443 = vld [vmem:[%s3316 + $0x18e] sm:$0xff]
      %v3444 = vld [vmem:[%s3316 + $0x1a6] sm:$0xff]
      %v3445 = vld [vmem:[%s3316 + $0x1ae] sm:$0xff]
      %v3446 = vld [vmem:[%s3316 + $0x1c6] sm:$0xff]
      %v3447 = vld [vmem:[%s3316 + $0x1ce] sm:$0xff]
      %v3448 = vld [vmem:[%s3316 + $0x1e6] sm:$0xff]
      %v3449 = vld [vmem:[%s3316 + $0x1ee] sm:$0xff]
      %v3450 = vld [vmem:[%s1 + $0x1d] sm:$0x1]
      %v3451 = vlaneseq
      %v3452 = vshrl.u32 %v3451, 7
      %v3453 = vsub.s32 0, %v3452
      %v3454 = vrot.slane %v3450, %v3453
      %v3455 = vmul.f32 %v3418, %v3454
      %v3456 = vmul.f32 %v3419, %v3454
      %v3457 = vmul.f32 %v3420, %v3454
      %v3458 = vmul.f32 %v3421, %v3454
      %v3459 = vmul.f32 %v3422, %v3454
      %v3460 = vmul.f32 %v3423, %v3454
      %v3461 = vmul.f32 %v3424, %v3454
      %v3462 = vmul.f32 %v3425, %v3454
      %v3463 = vmul.f32 %v3426, %v3454
      %v3464 = vmul.f32 %v3427, %v3454
      %v3465 = vmul.f32 %v3428, %v3454
      %v3466 = vmul.f32 %v3429, %v3454
      %v3467 = vmul.f32 %v3430, %v3454
      %v3468 = vmul.f32 %v3431, %v3454
      %v3469 = vmul.f32 %v3432, %v3454
      %v3470 = vmul.f32 %v3433, %v3454
      %v3471 = vmul.f32 %v3434, %v3454
      %v3472 = vmul.f32 %v3435, %v3454
      %v3473 = vmul.f32 %v3436, %v3454
      %v3474 = vmul.f32 %v3437, %v3454
      %v3475 = vmul.f32 %v3438, %v3454
      %v3476 = vmul.f32 %v3439, %v3454
      %v3477 = vmul.f32 %v3440, %v3454
      %v3478 = vmul.f32 %v3441, %v3454
      %v3479 = vmul.f32 %v3442, %v3454
      %v3480 = vmul.f32 %v3443, %v3454
      %v3481 = vmul.f32 %v3444, %v3454
      %v3482 = vmul.f32 %v3445, %v3454
      %v3483 = vmul.f32 %v3446, %v3454
      %v3484 = vmul.f32 %v3447, %v3454
      %v3485 = vmul.f32 %v3448, %v3454
      %v3486 = vmul.f32 %v3449, %v3454
      %v3487 = vadd.f32 %v3386, %v3455
      %v3488 = vadd.f32 %v3387, %v3456
      %v3489 = vadd.f32 %v3388, %v3457
      %v3490 = vadd.f32 %v3389, %v3458
      %v3491 = vadd.f32 %v3390, %v3459
      %v3492 = vadd.f32 %v3391, %v3460
      %v3493 = vadd.f32 %v3392, %v3461
      %v3494 = vadd.f32 %v3393, %v3462
      %v3495 = vadd.f32 %v3394, %v3463
      %v3496 = vadd.f32 %v3395, %v3464
      %v3497 = vadd.f32 %v3396, %v3465
      %v3498 = vadd.f32 %v3397, %v3466
      %v3499 = vadd.f32 %v3398, %v3467
      %v3500 = vadd.f32 %v3399, %v3468
      %v3501 = vadd.f32 %v3400, %v3469
      %v3502 = vadd.f32 %v3401, %v3470
      %v3503 = vadd.f32 %v3402, %v3471
      %v3504 = vadd.f32 %v3403, %v3472
      %v3505 = vadd.f32 %v3404, %v3473
      %v3506 = vadd.f32 %v3405, %v3474
      %v3507 = vadd.f32 %v3406, %v3475
      %v3508 = vadd.f32 %v3407, %v3476
      %v3509 = vadd.f32 %v3408, %v3477
      %v3510 = vadd.f32 %v3409, %v3478
      %v3511 = vadd.f32 %v3410, %v3479
      %v3512 = vadd.f32 %v3411, %v3480
      %v3513 = vadd.f32 %v3412, %v3481
      %v3514 = vadd.f32 %v3413, %v3482
      %v3515 = vadd.f32 %v3414, %v3483
      %v3516 = vadd.f32 %v3415, %v3484
      %v3517 = vadd.f32 %v3416, %v3485
      %v3518 = vadd.f32 %v3417, %v3486
      %v3519 = vld [vmem:[%s3316 + $0x7] sm:$0xff]
      %v3520 = vld [vmem:[%s3316 + $0xf] sm:$0xff]
      %v3521 = vld [vmem:[%s3316 + $0x27] sm:$0xff]
      %v3522 = vld [vmem:[%s3316 + $0x2f] sm:$0xff]
      %v3523 = vld [vmem:[%s3316 + $0x47] sm:$0xff]
      %v3524 = vld [vmem:[%s3316 + $0x4f] sm:$0xff]
      %v3525 = vld [vmem:[%s3316 + $0x67] sm:$0xff]
      %v3526 = vld [vmem:[%s3316 + $0x6f] sm:$0xff]
      %v3527 = vld [vmem:[%s3316 + $0x87] sm:$0xff]
      %v3528 = vld [vmem:[%s3316 + $0x8f] sm:$0xff]
      %v3529 = vld [vmem:[%s3316 + $0xa7] sm:$0xff]
      %v3530 = vld [vmem:[%s3316 + $0xaf] sm:$0xff]
      %v3531 = vld [vmem:[%s3316 + $0xc7] sm:$0xff]
      %v3532 = vld [vmem:[%s3316 + $0xcf] sm:$0xff]
      %v3533 = vld [vmem:[%s3316 + $0xe7] sm:$0xff]
      %v3534 = vld [vmem:[%s3316 + $0xef] sm:$0xff]
      %v3535 = vld [vmem:[%s3316 + $0x107] sm:$0xff]
      %v3536 = vld [vmem:[%s3316 + $0x10f] sm:$0xff]
      %v3537 = vld [vmem:[%s3316 + $0x127] sm:$0xff]
      %v3538 = vld [vmem:[%s3316 + $0x12f] sm:$0xff]
      %v3539 = vld [vmem:[%s3316 + $0x147] sm:$0xff]
      %v3540 = vld [vmem:[%s3316 + $0x14f] sm:$0xff]
      %v3541 = vld [vmem:[%s3316 + $0x167] sm:$0xff]
      %v3542 = vld [vmem:[%s3316 + $0x16f] sm:$0xff]
      %v3543 = vld [vmem:[%s3316 + $0x187] sm:$0xff]
      %v3544 = vld [vmem:[%s3316 + $0x18f] sm:$0xff]
      %v3545 = vld [vmem:[%s3316 + $0x1a7] sm:$0xff]
      %v3546 = vld [vmem:[%s3316 + $0x1af] sm:$0xff]
      %v3547 = vld [vmem:[%s3316 + $0x1c7] sm:$0xff]
      %v3548 = vld [vmem:[%s3316 + $0x1cf] sm:$0xff]
      %v3549 = vld [vmem:[%s3316 + $0x1e7] sm:$0xff]
      %v3550 = vld [vmem:[%s3316 + $0x1ef] sm:$0xff]
      %v3551 = vld [vmem:[%s1 + $0x1e] sm:$0x1]
      %v3552 = vlaneseq
      %v3553 = vshrl.u32 %v3552, 7
      %v3554 = vsub.s32 0, %v3553
      %v3555 = vrot.slane %v3551, %v3554
      %v3556 = vmul.f32 %v3519, %v3555
      %v3557 = vmul.f32 %v3520, %v3555
      %v3558 = vmul.f32 %v3521, %v3555
      %v3559 = vmul.f32 %v3522, %v3555
      %v3560 = vmul.f32 %v3523, %v3555
      %v3561 = vmul.f32 %v3524, %v3555
      %v3562 = vmul.f32 %v3525, %v3555
      %v3563 = vmul.f32 %v3526, %v3555
      %v3564 = vmul.f32 %v3527, %v3555
      %v3565 = vmul.f32 %v3528, %v3555
      %v3566 = vmul.f32 %v3529, %v3555
      %v3567 = vmul.f32 %v3530, %v3555
      %v3568 = vmul.f32 %v3531, %v3555
      %v3569 = vmul.f32 %v3532, %v3555
      %v3570 = vmul.f32 %v3533, %v3555
      %v3571 = vmul.f32 %v3534, %v3555
      %v3572 = vmul.f32 %v3535, %v3555
      %v3573 = vmul.f32 %v3536, %v3555
      %v3574 = vmul.f32 %v3537, %v3555
      %v3575 = vmul.f32 %v3538, %v3555
      %v3576 = vmul.f32 %v3539, %v3555
      %v3577 = vmul.f32 %v3540, %v3555
      %v3578 = vmul.f32 %v3541, %v3555
      %v3579 = vmul.f32 %v3542, %v3555
      %v3580 = vmul.f32 %v3543, %v3555
      %v3581 = vmul.f32 %v3544, %v3555
      %v3582 = vmul.f32 %v3545, %v3555
      %v3583 = vmul.f32 %v3546, %v3555
      %v3584 = vmul.f32 %v3547, %v3555
      %v3585 = vmul.f32 %v3548, %v3555
      %v3586 = vmul.f32 %v3549, %v3555
      %v3587 = vmul.f32 %v3550, %v3555
      %v3588 = vadd.f32 %v3487, %v3556
      %v3589 = vadd.f32 %v3488, %v3557
      %v3590 = vadd.f32 %v3489, %v3558
      %v3591 = vadd.f32 %v3490, %v3559
      %v3592 = vadd.f32 %v3491, %v3560
      %v3593 = vadd.f32 %v3492, %v3561
      %v3594 = vadd.f32 %v3493, %v3562
      %v3595 = vadd.f32 %v3494, %v3563
      %v3596 = vadd.f32 %v3495, %v3564
      %v3597 = vadd.f32 %v3496, %v3565
      %v3598 = vadd.f32 %v3497, %v3566
      %v3599 = vadd.f32 %v3498, %v3567
      %v3600 = vadd.f32 %v3499, %v3568
      %v3601 = vadd.f32 %v3500, %v3569
      %v3602 = vadd.f32 %v3501, %v3570
      %v3603 = vadd.f32 %v3502, %v3571
      %v3604 = vadd.f32 %v3503, %v3572
      %v3605 = vadd.f32 %v3504, %v3573
      %v3606 = vadd.f32 %v3505, %v3574
      %v3607 = vadd.f32 %v3506, %v3575
      %v3608 = vadd.f32 %v3507, %v3576
      %v3609 = vadd.f32 %v3508, %v3577
      %v3610 = vadd.f32 %v3509, %v3578
      %v3611 = vadd.f32 %v3510, %v3579
      %v3612 = vadd.f32 %v3511, %v3580
      %v3613 = vadd.f32 %v3512, %v3581
      %v3614 = vadd.f32 %v3513, %v3582
      %v3615 = vadd.f32 %v3514, %v3583
      %v3616 = vadd.f32 %v3515, %v3584
      %v3617 = vadd.f32 %v3516, %v3585
      %v3618 = vadd.f32 %v3517, %v3586
      %v3619 = vadd.f32 %v3518, %v3587
      %v3620 = vld [vmem:[%s3316 + $0x8] sm:$0xff]
      %v3621 = vld [vmem:[%s3316 + $0x10] sm:$0xff]
      %v3622 = vld [vmem:[%s3316 + $0x28] sm:$0xff]
      %v3623 = vld [vmem:[%s3316 + $0x30] sm:$0xff]
      %v3624 = vld [vmem:[%s3316 + $0x48] sm:$0xff]
      %v3625 = vld [vmem:[%s3316 + $0x50] sm:$0xff]
      %v3626 = vld [vmem:[%s3316 + $0x68] sm:$0xff]
      %v3627 = vld [vmem:[%s3316 + $0x70] sm:$0xff]
      %v3628 = vld [vmem:[%s3316 + $0x88] sm:$0xff]
      %v3629 = vld [vmem:[%s3316 + $0x90] sm:$0xff]
      %v3630 = vld [vmem:[%s3316 + $0xa8] sm:$0xff]
      %v3631 = vld [vmem:[%s3316 + $0xb0] sm:$0xff]
      %v3632 = vld [vmem:[%s3316 + $0xc8] sm:$0xff]
      %v3633 = vld [vmem:[%s3316 + $0xd0] sm:$0xff]
      %v3634 = vld [vmem:[%s3316 + $0xe8] sm:$0xff]
      %v3635 = vld [vmem:[%s3316 + $0xf0] sm:$0xff]
      %v3636 = vld [vmem:[%s3316 + $0x108] sm:$0xff]
      %v3637 = vld [vmem:[%s3316 + $0x110] sm:$0xff]
      %v3638 = vld [vmem:[%s3316 + $0x128] sm:$0xff]
      %v3639 = vld [vmem:[%s3316 + $0x130] sm:$0xff]
      %v3640 = vld [vmem:[%s3316 + $0x148] sm:$0xff]
      %v3641 = vld [vmem:[%s3316 + $0x150] sm:$0xff]
      %v3642 = vld [vmem:[%s3316 + $0x168] sm:$0xff]
      %v3643 = vld [vmem:[%s3316 + $0x170] sm:$0xff]
      %v3644 = vld [vmem:[%s3316 + $0x188] sm:$0xff]
      %v3645 = vld [vmem:[%s3316 + $0x190] sm:$0xff]
      %v3646 = vld [vmem:[%s3316 + $0x1a8] sm:$0xff]
      %v3647 = vld [vmem:[%s3316 + $0x1b0] sm:$0xff]
      %v3648 = vld [vmem:[%s3316 + $0x1c8] sm:$0xff]
      %v3649 = vld [vmem:[%s3316 + $0x1d0] sm:$0xff]
      %v3650 = vld [vmem:[%s3316 + $0x1e8] sm:$0xff]
      %v3651 = vld [vmem:[%s3316 + $0x1f0] sm:$0xff]
      %v3652 = vld [vmem:[%s1 + $0x1f] sm:$0x1]
      %v3653 = vlaneseq
      %v3654 = vshrl.u32 %v3653, 7
      %v3655 = vsub.s32 0, %v3654
      %v3656 = vrot.slane %v3652, %v3655
      %v3657 = vmul.f32 %v3620, %v3656
      %v3658 = vmul.f32 %v3621, %v3656
      %v3659 = vmul.f32 %v3622, %v3656
      %v3660 = vmul.f32 %v3623, %v3656
      %v3661 = vmul.f32 %v3624, %v3656
      %v3662 = vmul.f32 %v3625, %v3656
      %v3663 = vmul.f32 %v3626, %v3656
      %v3664 = vmul.f32 %v3627, %v3656
      %v3665 = vmul.f32 %v3628, %v3656
      %v3666 = vmul.f32 %v3629, %v3656
      %v3667 = vmul.f32 %v3630, %v3656
      %v3668 = vmul.f32 %v3631, %v3656
      %v3669 = vmul.f32 %v3632, %v3656
      %v3670 = vmul.f32 %v3633, %v3656
      %v3671 = vmul.f32 %v3634, %v3656
      %v3672 = vmul.f32 %v3635, %v3656
      %v3673 = vmul.f32 %v3636, %v3656
      %v3674 = vmul.f32 %v3637, %v3656
      %v3675 = vmul.f32 %v3638, %v3656
      %v3676 = vmul.f32 %v3639, %v3656
      %v3677 = vmul.f32 %v3640, %v3656
      %v3678 = vmul.f32 %v3641, %v3656
      %v3679 = vmul.f32 %v3642, %v3656
      %v3680 = vmul.f32 %v3643, %v3656
      %v3681 = vmul.f32 %v3644, %v3656
      %v3682 = vmul.f32 %v3645, %v3656
      %v3683 = vmul.f32 %v3646, %v3656
      %v3684 = vmul.f32 %v3647, %v3656
      %v3685 = vmul.f32 %v3648, %v3656
      %v3686 = vmul.f32 %v3649, %v3656
      %v3687 = vmul.f32 %v3650, %v3656
      %v3688 = vmul.f32 %v3651, %v3656
      %v3689 = vadd.f32 %v3588, %v3657
      %v3690 = vadd.f32 %v3589, %v3658
      %v3691 = vadd.f32 %v3590, %v3659
      %v3692 = vadd.f32 %v3591, %v3660
      %v3693 = vadd.f32 %v3592, %v3661
      %v3694 = vadd.f32 %v3593, %v3662
      %v3695 = vadd.f32 %v3594, %v3663
      %v3696 = vadd.f32 %v3595, %v3664
      %v3697 = vadd.f32 %v3596, %v3665
      %v3698 = vadd.f32 %v3597, %v3666
      %v3699 = vadd.f32 %v3598, %v3667
      %v3700 = vadd.f32 %v3599, %v3668
      %v3701 = vadd.f32 %v3600, %v3669
      %v3702 = vadd.f32 %v3601, %v3670
      %v3703 = vadd.f32 %v3602, %v3671
      %v3704 = vadd.f32 %v3603, %v3672
      %v3705 = vadd.f32 %v3604, %v3673
      %v3706 = vadd.f32 %v3605, %v3674
      %v3707 = vadd.f32 %v3606, %v3675
      %v3708 = vadd.f32 %v3607, %v3676
      %v3709 = vadd.f32 %v3608, %v3677
      %v3710 = vadd.f32 %v3609, %v3678
      %v3711 = vadd.f32 %v3610, %v3679
      %v3712 = vadd.f32 %v3611, %v3680
      %v3713 = vadd.f32 %v3612, %v3681
      %v3714 = vadd.f32 %v3613, %v3682
      %v3715 = vadd.f32 %v3614, %v3683
      %v3716 = vadd.f32 %v3615, %v3684
      %v3717 = vadd.f32 %v3616, %v3685
      %v3718 = vadd.f32 %v3617, %v3686
      %v3719 = vadd.f32 %v3618, %v3687
      %v3720 = vadd.f32 %v3619, %v3688
      %v3721 = vld [vmem:[%s3316 + $0x9] sm:$0xff]
      %v3722 = vld [vmem:[%s3316 + $0x11] sm:$0xff]
      %v3723 = vld [vmem:[%s3316 + $0x29] sm:$0xff]
      %v3724 = vld [vmem:[%s3316 + $0x31] sm:$0xff]
      %v3725 = vld [vmem:[%s3316 + $0x49] sm:$0xff]
      %v3726 = vld [vmem:[%s3316 + $0x51] sm:$0xff]
      %v3727 = vld [vmem:[%s3316 + $0x69] sm:$0xff]
      %v3728 = vld [vmem:[%s3316 + $0x71] sm:$0xff]
      %v3729 = vld [vmem:[%s3316 + $0x89] sm:$0xff]
      %v3730 = vld [vmem:[%s3316 + $0x91] sm:$0xff]
      %v3731 = vld [vmem:[%s3316 + $0xa9] sm:$0xff]
      %v3732 = vld [vmem:[%s3316 + $0xb1] sm:$0xff]
      %v3733 = vld [vmem:[%s3316 + $0xc9] sm:$0xff]
      %v3734 = vld [vmem:[%s3316 + $0xd1] sm:$0xff]
      %v3735 = vld [vmem:[%s3316 + $0xe9] sm:$0xff]
      %v3736 = vld [vmem:[%s3316 + $0xf1] sm:$0xff]
      %v3737 = vld [vmem:[%s3316 + $0x109] sm:$0xff]
      %v3738 = vld [vmem:[%s3316 + $0x111] sm:$0xff]
      %v3739 = vld [vmem:[%s3316 + $0x129] sm:$0xff]
      %v3740 = vld [vmem:[%s3316 + $0x131] sm:$0xff]
      %v3741 = vld [vmem:[%s3316 + $0x149] sm:$0xff]
      %v3742 = vld [vmem:[%s3316 + $0x151] sm:$0xff]
      %v3743 = vld [vmem:[%s3316 + $0x169] sm:$0xff]
      %v3744 = vld [vmem:[%s3316 + $0x171] sm:$0xff]
      %v3745 = vld [vmem:[%s3316 + $0x189] sm:$0xff]
      %v3746 = vld [vmem:[%s3316 + $0x191] sm:$0xff]
      %v3747 = vld [vmem:[%s3316 + $0x1a9] sm:$0xff]
      %v3748 = vld [vmem:[%s3316 + $0x1b1] sm:$0xff]
      %v3749 = vld [vmem:[%s3316 + $0x1c9] sm:$0xff]
      %v3750 = vld [vmem:[%s3316 + $0x1d1] sm:$0xff]
      %v3751 = vld [vmem:[%s3316 + $0x1e9] sm:$0xff]
      %v3752 = vld [vmem:[%s3316 + $0x1f1] sm:$0xff]
      %v3753 = vld [vmem:[%s1 + $0x20] sm:$0x1]
      %v3754 = vlaneseq
      %v3755 = vshrl.u32 %v3754, 7
      %v3756 = vsub.s32 0, %v3755
      %v3757 = vrot.slane %v3753, %v3756
      %v3758 = vmul.f32 %v3721, %v3757
      %v3759 = vmul.f32 %v3722, %v3757
      %v3760 = vmul.f32 %v3723, %v3757
      %v3761 = vmul.f32 %v3724, %v3757
      %v3762 = vmul.f32 %v3725, %v3757
      %v3763 = vmul.f32 %v3726, %v3757
      %v3764 = vmul.f32 %v3727, %v3757
      %v3765 = vmul.f32 %v3728, %v3757
      %v3766 = vmul.f32 %v3729, %v3757
      %v3767 = vmul.f32 %v3730, %v3757
      %v3768 = vmul.f32 %v3731, %v3757
      %v3769 = vmul.f32 %v3732, %v3757
      %v3770 = vmul.f32 %v3733, %v3757
      %v3771 = vmul.f32 %v3734, %v3757
      %v3772 = vmul.f32 %v3735, %v3757
      %v3773 = vmul.f32 %v3736, %v3757
      %v3774 = vmul.f32 %v3737, %v3757
      %v3775 = vmul.f32 %v3738, %v3757
      %v3776 = vmul.f32 %v3739, %v3757
      %v3777 = vmul.f32 %v3740, %v3757
      %v3778 = vmul.f32 %v3741, %v3757
      %v3779 = vmul.f32 %v3742, %v3757
      %v3780 = vmul.f32 %v3743, %v3757
      %v3781 = vmul.f32 %v3744, %v3757
      %v3782 = vmul.f32 %v3745, %v3757
      %v3783 = vmul.f32 %v3746, %v3757
      %v3784 = vmul.f32 %v3747, %v3757
      %v3785 = vmul.f32 %v3748, %v3757
      %v3786 = vmul.f32 %v3749, %v3757
      %v3787 = vmul.f32 %v3750, %v3757
      %v3788 = vmul.f32 %v3751, %v3757
      %v3789 = vmul.f32 %v3752, %v3757
      %v3790 = vadd.f32 %v3689, %v3758
      %v3791 = vadd.f32 %v3690, %v3759
      %v3792 = vadd.f32 %v3691, %v3760
      %v3793 = vadd.f32 %v3692, %v3761
      %v3794 = vadd.f32 %v3693, %v3762
      %v3795 = vadd.f32 %v3694, %v3763
      %v3796 = vadd.f32 %v3695, %v3764
      %v3797 = vadd.f32 %v3696, %v3765
      %v3798 = vadd.f32 %v3697, %v3766
      %v3799 = vadd.f32 %v3698, %v3767
      %v3800 = vadd.f32 %v3699, %v3768
      %v3801 = vadd.f32 %v3700, %v3769
      %v3802 = vadd.f32 %v3701, %v3770
      %v3803 = vadd.f32 %v3702, %v3771
      %v3804 = vadd.f32 %v3703, %v3772
      %v3805 = vadd.f32 %v3704, %v3773
      %v3806 = vadd.f32 %v3705, %v3774
      %v3807 = vadd.f32 %v3706, %v3775
      %v3808 = vadd.f32 %v3707, %v3776
      %v3809 = vadd.f32 %v3708, %v3777
      %v3810 = vadd.f32 %v3709, %v3778
      %v3811 = vadd.f32 %v3710, %v3779
      %v3812 = vadd.f32 %v3711, %v3780
      %v3813 = vadd.f32 %v3712, %v3781
      %v3814 = vadd.f32 %v3713, %v3782
      %v3815 = vadd.f32 %v3714, %v3783
      %v3816 = vadd.f32 %v3715, %v3784
      %v3817 = vadd.f32 %v3716, %v3785
      %v3818 = vadd.f32 %v3717, %v3786
      %v3819 = vadd.f32 %v3718, %v3787
      %v3820 = vadd.f32 %v3719, %v3788
      %v3821 = vadd.f32 %v3720, %v3789
      %v3822 = vld [vmem:[%s3316 + $0xa] sm:$0xff]
      %v3823 = vld [vmem:[%s3316 + $0x12] sm:$0xff]
      %v3824 = vld [vmem:[%s3316 + $0x2a] sm:$0xff]
      %v3825 = vld [vmem:[%s3316 + $0x32] sm:$0xff]
      %v3826 = vld [vmem:[%s3316 + $0x4a] sm:$0xff]
      %v3827 = vld [vmem:[%s3316 + $0x52] sm:$0xff]
      %v3828 = vld [vmem:[%s3316 + $0x6a] sm:$0xff]
      %v3829 = vld [vmem:[%s3316 + $0x72] sm:$0xff]
      %v3830 = vld [vmem:[%s3316 + $0x8a] sm:$0xff]
      %v3831 = vld [vmem:[%s3316 + $0x92] sm:$0xff]
      %v3832 = vld [vmem:[%s3316 + $0xaa] sm:$0xff]
      %v3833 = vld [vmem:[%s3316 + $0xb2] sm:$0xff]
      %v3834 = vld [vmem:[%s3316 + $0xca] sm:$0xff]
      %v3835 = vld [vmem:[%s3316 + $0xd2] sm:$0xff]
      %v3836 = vld [vmem:[%s3316 + $0xea] sm:$0xff]
      %v3837 = vld [vmem:[%s3316 + $0xf2] sm:$0xff]
      %v3838 = vld [vmem:[%s3316 + $0x10a] sm:$0xff]
      %v3839 = vld [vmem:[%s3316 + $0x112] sm:$0xff]
      %v3840 = vld [vmem:[%s3316 + $0x12a] sm:$0xff]
      %v3841 = vld [vmem:[%s3316 + $0x132] sm:$0xff]
      %v3842 = vld [vmem:[%s3316 + $0x14a] sm:$0xff]
      %v3843 = vld [vmem:[%s3316 + $0x152] sm:$0xff]
      %v3844 = vld [vmem:[%s3316 + $0x16a] sm:$0xff]
      %v3845 = vld [vmem:[%s3316 + $0x172] sm:$0xff]
      %v3846 = vld [vmem:[%s3316 + $0x18a] sm:$0xff]
      %v3847 = vld [vmem:[%s3316 + $0x192] sm:$0xff]
      %v3848 = vld [vmem:[%s3316 + $0x1aa] sm:$0xff]
      %v3849 = vld [vmem:[%s3316 + $0x1b2] sm:$0xff]
      %v3850 = vld [vmem:[%s3316 + $0x1ca] sm:$0xff]
      %v3851 = vld [vmem:[%s3316 + $0x1d2] sm:$0xff]
      %v3852 = vld [vmem:[%s3316 + $0x1ea] sm:$0xff]
      %v3853 = vld [vmem:[%s3316 + $0x1f2] sm:$0xff]
      %v3854 = vld [vmem:[%s1 + $0x21] sm:$0x1]
      %v3855 = vlaneseq
      %v3856 = vshrl.u32 %v3855, 7
      %v3857 = vsub.s32 0, %v3856
      %v3858 = vrot.slane %v3854, %v3857
      %v3859 = vmul.f32 %v3822, %v3858
      %v3860 = vmul.f32 %v3823, %v3858
      %v3861 = vmul.f32 %v3824, %v3858
      %v3862 = vmul.f32 %v3825, %v3858
      %v3863 = vmul.f32 %v3826, %v3858
      %v3864 = vmul.f32 %v3827, %v3858
      %v3865 = vmul.f32 %v3828, %v3858
      %v3866 = vmul.f32 %v3829, %v3858
      %v3867 = vmul.f32 %v3830, %v3858
      %v3868 = vmul.f32 %v3831, %v3858
      %v3869 = vmul.f32 %v3832, %v3858
      %v3870 = vmul.f32 %v3833, %v3858
      %v3871 = vmul.f32 %v3834, %v3858
      %v3872 = vmul.f32 %v3835, %v3858
      %v3873 = vmul.f32 %v3836, %v3858
      %v3874 = vmul.f32 %v3837, %v3858
      %v3875 = vmul.f32 %v3838, %v3858
      %v3876 = vmul.f32 %v3839, %v3858
      %v3877 = vmul.f32 %v3840, %v3858
      %v3878 = vmul.f32 %v3841, %v3858
      %v3879 = vmul.f32 %v3842, %v3858
      %v3880 = vmul.f32 %v3843, %v3858
      %v3881 = vmul.f32 %v3844, %v3858
      %v3882 = vmul.f32 %v3845, %v3858
      %v3883 = vmul.f32 %v3846, %v3858
      %v3884 = vmul.f32 %v3847, %v3858
      %v3885 = vmul.f32 %v3848, %v3858
      %v3886 = vmul.f32 %v3849, %v3858
      %v3887 = vmul.f32 %v3850, %v3858
      %v3888 = vmul.f32 %v3851, %v3858
      %v3889 = vmul.f32 %v3852, %v3858
      %v3890 = vmul.f32 %v3853, %v3858
      %v3891 = vadd.f32 %v3790, %v3859
      %v3892 = vadd.f32 %v3791, %v3860
      %v3893 = vadd.f32 %v3792, %v3861
      %v3894 = vadd.f32 %v3793, %v3862
      %v3895 = vadd.f32 %v3794, %v3863
      %v3896 = vadd.f32 %v3795, %v3864
      %v3897 = vadd.f32 %v3796, %v3865
      %v3898 = vadd.f32 %v3797, %v3866
      %v3899 = vadd.f32 %v3798, %v3867
      %v3900 = vadd.f32 %v3799, %v3868
      %v3901 = vadd.f32 %v3800, %v3869
      %v3902 = vadd.f32 %v3801, %v3870
      %v3903 = vadd.f32 %v3802, %v3871
      %v3904 = vadd.f32 %v3803, %v3872
      %v3905 = vadd.f32 %v3804, %v3873
      %v3906 = vadd.f32 %v3805, %v3874
      %v3907 = vadd.f32 %v3806, %v3875
      %v3908 = vadd.f32 %v3807, %v3876
      %v3909 = vadd.f32 %v3808, %v3877
      %v3910 = vadd.f32 %v3809, %v3878
      %v3911 = vadd.f32 %v3810, %v3879
      %v3912 = vadd.f32 %v3811, %v3880
      %v3913 = vadd.f32 %v3812, %v3881
      %v3914 = vadd.f32 %v3813, %v3882
      %v3915 = vadd.f32 %v3814, %v3883
      %v3916 = vadd.f32 %v3815, %v3884
      %v3917 = vadd.f32 %v3816, %v3885
      %v3918 = vadd.f32 %v3817, %v3886
      %v3919 = vadd.f32 %v3818, %v3887
      %v3920 = vadd.f32 %v3819, %v3888
      %v3921 = vadd.f32 %v3820, %v3889
      %v3922 = vadd.f32 %v3821, %v3890
      %v3923 = vld [vmem:[%s3316 + $0xb] sm:$0xff]
      %v3924 = vld [vmem:[%s3316 + $0x13] sm:$0xff]
      %v3925 = vld [vmem:[%s3316 + $0x2b] sm:$0xff]
      %v3926 = vld [vmem:[%s3316 + $0x33] sm:$0xff]
      %v3927 = vld [vmem:[%s3316 + $0x4b] sm:$0xff]
      %v3928 = vld [vmem:[%s3316 + $0x53] sm:$0xff]
      %v3929 = vld [vmem:[%s3316 + $0x6b] sm:$0xff]
      %v3930 = vld [vmem:[%s3316 + $0x73] sm:$0xff]
      %v3931 = vld [vmem:[%s3316 + $0x8b] sm:$0xff]
      %v3932 = vld [vmem:[%s3316 + $0x93] sm:$0xff]
      %v3933 = vld [vmem:[%s3316 + $0xab] sm:$0xff]
      %v3934 = vld [vmem:[%s3316 + $0xb3] sm:$0xff]
      %v3935 = vld [vmem:[%s3316 + $0xcb] sm:$0xff]
      %v3936 = vld [vmem:[%s3316 + $0xd3] sm:$0xff]
      %v3937 = vld [vmem:[%s3316 + $0xeb] sm:$0xff]
      %v3938 = vld [vmem:[%s3316 + $0xf3] sm:$0xff]
      %v3939 = vld [vmem:[%s3316 + $0x10b] sm:$0xff]
      %v3940 = vld [vmem:[%s3316 + $0x113] sm:$0xff]
      %v3941 = vld [vmem:[%s3316 + $0x12b] sm:$0xff]
      %v3942 = vld [vmem:[%s3316 + $0x133] sm:$0xff]
      %v3943 = vld [vmem:[%s3316 + $0x14b] sm:$0xff]
      %v3944 = vld [vmem:[%s3316 + $0x153] sm:$0xff]
      %v3945 = vld [vmem:[%s3316 + $0x16b] sm:$0xff]
      %v3946 = vld [vmem:[%s3316 + $0x173] sm:$0xff]
      %v3947 = vld [vmem:[%s3316 + $0x18b] sm:$0xff]
      %v3948 = vld [vmem:[%s3316 + $0x193] sm:$0xff]
      %v3949 = vld [vmem:[%s3316 + $0x1ab] sm:$0xff]
      %v3950 = vld [vmem:[%s3316 + $0x1b3] sm:$0xff]
      %v3951 = vld [vmem:[%s3316 + $0x1cb] sm:$0xff]
      %v3952 = vld [vmem:[%s3316 + $0x1d3] sm:$0xff]
      %v3953 = vld [vmem:[%s3316 + $0x1eb] sm:$0xff]
      %v3954 = vld [vmem:[%s3316 + $0x1f3] sm:$0xff]
      %v3955 = vld [vmem:[%s1 + $0x22] sm:$0x1]
      %v3956 = vlaneseq
      %v3957 = vshrl.u32 %v3956, 7
      %v3958 = vsub.s32 0, %v3957
      %v3959 = vrot.slane %v3955, %v3958
      %v3960 = vmul.f32 %v3923, %v3959
      %v3961 = vmul.f32 %v3924, %v3959
      %v3962 = vmul.f32 %v3925, %v3959
      %v3963 = vmul.f32 %v3926, %v3959
      %v3964 = vmul.f32 %v3927, %v3959
      %v3965 = vmul.f32 %v3928, %v3959
      %v3966 = vmul.f32 %v3929, %v3959
      %v3967 = vmul.f32 %v3930, %v3959
      %v3968 = vmul.f32 %v3931, %v3959
      %v3969 = vmul.f32 %v3932, %v3959
      %v3970 = vmul.f32 %v3933, %v3959
      %v3971 = vmul.f32 %v3934, %v3959
      %v3972 = vmul.f32 %v3935, %v3959
      %v3973 = vmul.f32 %v3936, %v3959
      %v3974 = vmul.f32 %v3937, %v3959
      %v3975 = vmul.f32 %v3938, %v3959
      %v3976 = vmul.f32 %v3939, %v3959
      %v3977 = vmul.f32 %v3940, %v3959
      %v3978 = vmul.f32 %v3941, %v3959
      %v3979 = vmul.f32 %v3942, %v3959
      %v3980 = vmul.f32 %v3943, %v3959
      %v3981 = vmul.f32 %v3944, %v3959
      %v3982 = vmul.f32 %v3945, %v3959
      %v3983 = vmul.f32 %v3946, %v3959
      %v3984 = vmul.f32 %v3947, %v3959
      %v3985 = vmul.f32 %v3948, %v3959
      %v3986 = vmul.f32 %v3949, %v3959
      %v3987 = vmul.f32 %v3950, %v3959
      %v3988 = vmul.f32 %v3951, %v3959
      %v3989 = vmul.f32 %v3952, %v3959
      %v3990 = vmul.f32 %v3953, %v3959
      %v3991 = vmul.f32 %v3954, %v3959
      %v3992 = vadd.f32 %v3891, %v3960
      %v3993 = vadd.f32 %v3892, %v3961
      %v3994 = vadd.f32 %v3893, %v3962
      %v3995 = vadd.f32 %v3894, %v3963
      %v3996 = vadd.f32 %v3895, %v3964
      %v3997 = vadd.f32 %v3896, %v3965
      %v3998 = vadd.f32 %v3897, %v3966
      %v3999 = vadd.f32 %v3898, %v3967
      %v4000 = vadd.f32 %v3899, %v3968
      %v4001 = vadd.f32 %v3900, %v3969
      %v4002 = vadd.f32 %v3901, %v3970
      %v4003 = vadd.f32 %v3902, %v3971
      %v4004 = vadd.f32 %v3903, %v3972
      %v4005 = vadd.f32 %v3904, %v3973
      %v4006 = vadd.f32 %v3905, %v3974
      %v4007 = vadd.f32 %v3906, %v3975
      %v4008 = vadd.f32 %v3907, %v3976
      %v4009 = vadd.f32 %v3908, %v3977
      %v4010 = vadd.f32 %v3909, %v3978
      %v4011 = vadd.f32 %v3910, %v3979
      %v4012 = vadd.f32 %v3911, %v3980
      %v4013 = vadd.f32 %v3912, %v3981
      %v4014 = vadd.f32 %v3913, %v3982
      %v4015 = vadd.f32 %v3914, %v3983
      %v4016 = vadd.f32 %v3915, %v3984
      %v4017 = vadd.f32 %v3916, %v3985
      %v4018 = vadd.f32 %v3917, %v3986
      %v4019 = vadd.f32 %v3918, %v3987
      %v4020 = vadd.f32 %v3919, %v3988
      %v4021 = vadd.f32 %v3920, %v3989
      %v4022 = vadd.f32 %v3921, %v3990
      %v4023 = vadd.f32 %v3922, %v3991
      %s4024 = scalar_lea.vmem [#allocation2], 160
      %v4025 = vld [vmem:[%s4024 + $0x5] sm:$0xff]
      %v4026 = vld [vmem:[%s4024 + $0xd] sm:$0xff]
      %v4027 = vld [vmem:[%s4024 + $0x25] sm:$0xff]
      %v4028 = vld [vmem:[%s4024 + $0x2d] sm:$0xff]
      %v4029 = vld [vmem:[%s4024 + $0x45] sm:$0xff]
      %v4030 = vld [vmem:[%s4024 + $0x4d] sm:$0xff]
      %v4031 = vld [vmem:[%s4024 + $0x65] sm:$0xff]
      %v4032 = vld [vmem:[%s4024 + $0x6d] sm:$0xff]
      %v4033 = vld [vmem:[%s4024 + $0x85] sm:$0xff]
      %v4034 = vld [vmem:[%s4024 + $0x8d] sm:$0xff]
      %v4035 = vld [vmem:[%s4024 + $0xa5] sm:$0xff]
      %v4036 = vld [vmem:[%s4024 + $0xad] sm:$0xff]
      %v4037 = vld [vmem:[%s4024 + $0xc5] sm:$0xff]
      %v4038 = vld [vmem:[%s4024 + $0xcd] sm:$0xff]
      %v4039 = vld [vmem:[%s4024 + $0xe5] sm:$0xff]
      %v4040 = vld [vmem:[%s4024 + $0xed] sm:$0xff]
      %v4041 = vld [vmem:[%s4024 + $0x105] sm:$0xff]
      %v4042 = vld [vmem:[%s4024 + $0x10d] sm:$0xff]
      %v4043 = vld [vmem:[%s4024 + $0x125] sm:$0xff]
      %v4044 = vld [vmem:[%s4024 + $0x12d] sm:$0xff]
      %v4045 = vld [vmem:[%s4024 + $0x145] sm:$0xff]
      %v4046 = vld [vmem:[%s4024 + $0x14d] sm:$0xff]
      %v4047 = vld [vmem:[%s4024 + $0x165] sm:$0xff]
      %v4048 = vld [vmem:[%s4024 + $0x16d] sm:$0xff]
      %v4049 = vld [vmem:[%s4024 + $0x185] sm:$0xff]
      %v4050 = vld [vmem:[%s4024 + $0x18d] sm:$0xff]
      %v4051 = vld [vmem:[%s4024 + $0x1a5] sm:$0xff]
      %v4052 = vld [vmem:[%s4024 + $0x1ad] sm:$0xff]
      %v4053 = vld [vmem:[%s4024 + $0x1c5] sm:$0xff]
      %v4054 = vld [vmem:[%s4024 + $0x1cd] sm:$0xff]
      %v4055 = vld [vmem:[%s4024 + $0x1e5] sm:$0xff]
      %v4056 = vld [vmem:[%s4024 + $0x1ed] sm:$0xff]
      %v4057 = vld [vmem:[%s1 + $0x23] sm:$0x1]
      %v4058 = vlaneseq
      %v4059 = vshrl.u32 %v4058, 7
      %v4060 = vsub.s32 0, %v4059
      %v4061 = vrot.slane %v4057, %v4060
      %v4062 = vmul.f32 %v4025, %v4061
      %v4063 = vmul.f32 %v4026, %v4061
      %v4064 = vmul.f32 %v4027, %v4061
      %v4065 = vmul.f32 %v4028, %v4061
      %v4066 = vmul.f32 %v4029, %v4061
      %v4067 = vmul.f32 %v4030, %v4061
      %v4068 = vmul.f32 %v4031, %v4061
      %v4069 = vmul.f32 %v4032, %v4061
      %v4070 = vmul.f32 %v4033, %v4061
      %v4071 = vmul.f32 %v4034, %v4061
      %v4072 = vmul.f32 %v4035, %v4061
      %v4073 = vmul.f32 %v4036, %v4061
      %v4074 = vmul.f32 %v4037, %v4061
      %v4075 = vmul.f32 %v4038, %v4061
      %v4076 = vmul.f32 %v4039, %v4061
      %v4077 = vmul.f32 %v4040, %v4061
      %v4078 = vmul.f32 %v4041, %v4061
      %v4079 = vmul.f32 %v4042, %v4061
      %v4080 = vmul.f32 %v4043, %v4061
      %v4081 = vmul.f32 %v4044, %v4061
      %v4082 = vmul.f32 %v4045, %v4061
      %v4083 = vmul.f32 %v4046, %v4061
      %v4084 = vmul.f32 %v4047, %v4061
      %v4085 = vmul.f32 %v4048, %v4061
      %v4086 = vmul.f32 %v4049, %v4061
      %v4087 = vmul.f32 %v4050, %v4061
      %v4088 = vmul.f32 %v4051, %v4061
      %v4089 = vmul.f32 %v4052, %v4061
      %v4090 = vmul.f32 %v4053, %v4061
      %v4091 = vmul.f32 %v4054, %v4061
      %v4092 = vmul.f32 %v4055, %v4061
      %v4093 = vmul.f32 %v4056, %v4061
      %v4094 = vadd.f32 %v3992, %v4062
      %v4095 = vadd.f32 %v3993, %v4063
      %v4096 = vadd.f32 %v3994, %v4064
      %v4097 = vadd.f32 %v3995, %v4065
      %v4098 = vadd.f32 %v3996, %v4066
      %v4099 = vadd.f32 %v3997, %v4067
      %v4100 = vadd.f32 %v3998, %v4068
      %v4101 = vadd.f32 %v3999, %v4069
      %v4102 = vadd.f32 %v4000, %v4070
      %v4103 = vadd.f32 %v4001, %v4071
      %v4104 = vadd.f32 %v4002, %v4072
      %v4105 = vadd.f32 %v4003, %v4073
      %v4106 = vadd.f32 %v4004, %v4074
      %v4107 = vadd.f32 %v4005, %v4075
      %v4108 = vadd.f32 %v4006, %v4076
      %v4109 = vadd.f32 %v4007, %v4077
      %v4110 = vadd.f32 %v4008, %v4078
      %v4111 = vadd.f32 %v4009, %v4079
      %v4112 = vadd.f32 %v4010, %v4080
      %v4113 = vadd.f32 %v4011, %v4081
      %v4114 = vadd.f32 %v4012, %v4082
      %v4115 = vadd.f32 %v4013, %v4083
      %v4116 = vadd.f32 %v4014, %v4084
      %v4117 = vadd.f32 %v4015, %v4085
      %v4118 = vadd.f32 %v4016, %v4086
      %v4119 = vadd.f32 %v4017, %v4087
      %v4120 = vadd.f32 %v4018, %v4088
      %v4121 = vadd.f32 %v4019, %v4089
      %v4122 = vadd.f32 %v4020, %v4090
      %v4123 = vadd.f32 %v4021, %v4091
      %v4124 = vadd.f32 %v4022, %v4092
      %v4125 = vadd.f32 %v4023, %v4093
      %v4126 = vld [vmem:[%s4024 + $0x6] sm:$0xff]
      %v4127 = vld [vmem:[%s4024 + $0xe] sm:$0xff]
      %v4128 = vld [vmem:[%s4024 + $0x26] sm:$0xff]
      %v4129 = vld [vmem:[%s4024 + $0x2e] sm:$0xff]
      %v4130 = vld [vmem:[%s4024 + $0x46] sm:$0xff]
      %v4131 = vld [vmem:[%s4024 + $0x4e] sm:$0xff]
      %v4132 = vld [vmem:[%s4024 + $0x66] sm:$0xff]
      %v4133 = vld [vmem:[%s4024 + $0x6e] sm:$0xff]
      %v4134 = vld [vmem:[%s4024 + $0x86] sm:$0xff]
      %v4135 = vld [vmem:[%s4024 + $0x8e] sm:$0xff]
      %v4136 = vld [vmem:[%s4024 + $0xa6] sm:$0xff]
      %v4137 = vld [vmem:[%s4024 + $0xae] sm:$0xff]
      %v4138 = vld [vmem:[%s4024 + $0xc6] sm:$0xff]
      %v4139 = vld [vmem:[%s4024 + $0xce] sm:$0xff]
      %v4140 = vld [vmem:[%s4024 + $0xe6] sm:$0xff]
      %v4141 = vld [vmem:[%s4024 + $0xee] sm:$0xff]
      %v4142 = vld [vmem:[%s4024 + $0x106] sm:$0xff]
      %v4143 = vld [vmem:[%s4024 + $0x10e] sm:$0xff]
      %v4144 = vld [vmem:[%s4024 + $0x126] sm:$0xff]
      %v4145 = vld [vmem:[%s4024 + $0x12e] sm:$0xff]
      %v4146 = vld [vmem:[%s4024 + $0x146] sm:$0xff]
      %v4147 = vld [vmem:[%s4024 + $0x14e] sm:$0xff]
      %v4148 = vld [vmem:[%s4024 + $0x166] sm:$0xff]
      %v4149 = vld [vmem:[%s4024 + $0x16e] sm:$0xff]
      %v4150 = vld [vmem:[%s4024 + $0x186] sm:$0xff]
      %v4151 = vld [vmem:[%s4024 + $0x18e] sm:$0xff]
      %v4152 = vld [vmem:[%s4024 + $0x1a6] sm:$0xff]
      %v4153 = vld [vmem:[%s4024 + $0x1ae] sm:$0xff]
      %v4154 = vld [vmem:[%s4024 + $0x1c6] sm:$0xff]
      %v4155 = vld [vmem:[%s4024 + $0x1ce] sm:$0xff]
      %v4156 = vld [vmem:[%s4024 + $0x1e6] sm:$0xff]
      %v4157 = vld [vmem:[%s4024 + $0x1ee] sm:$0xff]
      %v4158 = vld [vmem:[%s1 + $0x24] sm:$0x1]
      %v4159 = vlaneseq
      %v4160 = vshrl.u32 %v4159, 7
      %v4161 = vsub.s32 0, %v4160
      %v4162 = vrot.slane %v4158, %v4161
      %v4163 = vmul.f32 %v4126, %v4162
      %v4164 = vmul.f32 %v4127, %v4162
      %v4165 = vmul.f32 %v4128, %v4162
      %v4166 = vmul.f32 %v4129, %v4162
      %v4167 = vmul.f32 %v4130, %v4162
      %v4168 = vmul.f32 %v4131, %v4162
      %v4169 = vmul.f32 %v4132, %v4162
      %v4170 = vmul.f32 %v4133, %v4162
      %v4171 = vmul.f32 %v4134, %v4162
      %v4172 = vmul.f32 %v4135, %v4162
      %v4173 = vmul.f32 %v4136, %v4162
      %v4174 = vmul.f32 %v4137, %v4162
      %v4175 = vmul.f32 %v4138, %v4162
      %v4176 = vmul.f32 %v4139, %v4162
      %v4177 = vmul.f32 %v4140, %v4162
      %v4178 = vmul.f32 %v4141, %v4162
      %v4179 = vmul.f32 %v4142, %v4162
      %v4180 = vmul.f32 %v4143, %v4162
      %v4181 = vmul.f32 %v4144, %v4162
      %v4182 = vmul.f32 %v4145, %v4162
      %v4183 = vmul.f32 %v4146, %v4162
      %v4184 = vmul.f32 %v4147, %v4162
      %v4185 = vmul.f32 %v4148, %v4162
      %v4186 = vmul.f32 %v4149, %v4162
      %v4187 = vmul.f32 %v4150, %v4162
      %v4188 = vmul.f32 %v4151, %v4162
      %v4189 = vmul.f32 %v4152, %v4162
      %v4190 = vmul.f32 %v4153, %v4162
      %v4191 = vmul.f32 %v4154, %v4162
      %v4192 = vmul.f32 %v4155, %v4162
      %v4193 = vmul.f32 %v4156, %v4162
      %v4194 = vmul.f32 %v4157, %v4162
      %v4195 = vadd.f32 %v4094, %v4163
      %v4196 = vadd.f32 %v4095, %v4164
      %v4197 = vadd.f32 %v4096, %v4165
      %v4198 = vadd.f32 %v4097, %v4166
      %v4199 = vadd.f32 %v4098, %v4167
      %v4200 = vadd.f32 %v4099, %v4168
      %v4201 = vadd.f32 %v4100, %v4169
      %v4202 = vadd.f32 %v4101, %v4170
      %v4203 = vadd.f32 %v4102, %v4171
      %v4204 = vadd.f32 %v4103, %v4172
      %v4205 = vadd.f32 %v4104, %v4173
      %v4206 = vadd.f32 %v4105, %v4174
      %v4207 = vadd.f32 %v4106, %v4175
      %v4208 = vadd.f32 %v4107, %v4176
      %v4209 = vadd.f32 %v4108, %v4177
      %v4210 = vadd.f32 %v4109, %v4178
      %v4211 = vadd.f32 %v4110, %v4179
      %v4212 = vadd.f32 %v4111, %v4180
      %v4213 = vadd.f32 %v4112, %v4181
      %v4214 = vadd.f32 %v4113, %v4182
      %v4215 = vadd.f32 %v4114, %v4183
      %v4216 = vadd.f32 %v4115, %v4184
      %v4217 = vadd.f32 %v4116, %v4185
      %v4218 = vadd.f32 %v4117, %v4186
      %v4219 = vadd.f32 %v4118, %v4187
      %v4220 = vadd.f32 %v4119, %v4188
      %v4221 = vadd.f32 %v4120, %v4189
      %v4222 = vadd.f32 %v4121, %v4190
      %v4223 = vadd.f32 %v4122, %v4191
      %v4224 = vadd.f32 %v4123, %v4192
      %v4225 = vadd.f32 %v4124, %v4193
      %v4226 = vadd.f32 %v4125, %v4194
      %v4227 = vld [vmem:[%s4024 + $0x7] sm:$0xff]
      %v4228 = vld [vmem:[%s4024 + $0xf] sm:$0xff]
      %v4229 = vld [vmem:[%s4024 + $0x27] sm:$0xff]
      %v4230 = vld [vmem:[%s4024 + $0x2f] sm:$0xff]
      %v4231 = vld [vmem:[%s4024 + $0x47] sm:$0xff]
      %v4232 = vld [vmem:[%s4024 + $0x4f] sm:$0xff]
      %v4233 = vld [vmem:[%s4024 + $0x67] sm:$0xff]
      %v4234 = vld [vmem:[%s4024 + $0x6f] sm:$0xff]
      %v4235 = vld [vmem:[%s4024 + $0x87] sm:$0xff]
      %v4236 = vld [vmem:[%s4024 + $0x8f] sm:$0xff]
      %v4237 = vld [vmem:[%s4024 + $0xa7] sm:$0xff]
      %v4238 = vld [vmem:[%s4024 + $0xaf] sm:$0xff]
      %v4239 = vld [vmem:[%s4024 + $0xc7] sm:$0xff]
      %v4240 = vld [vmem:[%s4024 + $0xcf] sm:$0xff]
      %v4241 = vld [vmem:[%s4024 + $0xe7] sm:$0xff]
      %v4242 = vld [vmem:[%s4024 + $0xef] sm:$0xff]
      %v4243 = vld [vmem:[%s4024 + $0x107] sm:$0xff]
      %v4244 = vld [vmem:[%s4024 + $0x10f] sm:$0xff]
      %v4245 = vld [vmem:[%s4024 + $0x127] sm:$0xff]
      %v4246 = vld [vmem:[%s4024 + $0x12f] sm:$0xff]
      %v4247 = vld [vmem:[%s4024 + $0x147] sm:$0xff]
      %v4248 = vld [vmem:[%s4024 + $0x14f] sm:$0xff]
      %v4249 = vld [vmem:[%s4024 + $0x167] sm:$0xff]
      %v4250 = vld [vmem:[%s4024 + $0x16f] sm:$0xff]
      %v4251 = vld [vmem:[%s4024 + $0x187] sm:$0xff]
      %v4252 = vld [vmem:[%s4024 + $0x18f] sm:$0xff]
      %v4253 = vld [vmem:[%s4024 + $0x1a7] sm:$0xff]
      %v4254 = vld [vmem:[%s4024 + $0x1af] sm:$0xff]
      %v4255 = vld [vmem:[%s4024 + $0x1c7] sm:$0xff]
      %v4256 = vld [vmem:[%s4024 + $0x1cf] sm:$0xff]
      %v4257 = vld [vmem:[%s4024 + $0x1e7] sm:$0xff]
      %v4258 = vld [vmem:[%s4024 + $0x1ef] sm:$0xff]
      %v4259 = vld [vmem:[%s1 + $0x25] sm:$0x1]
      %v4260 = vlaneseq
      %v4261 = vshrl.u32 %v4260, 7
      %v4262 = vsub.s32 0, %v4261
      %v4263 = vrot.slane %v4259, %v4262
      %v4264 = vmul.f32 %v4227, %v4263
      %v4265 = vmul.f32 %v4228, %v4263
      %v4266 = vmul.f32 %v4229, %v4263
      %v4267 = vmul.f32 %v4230, %v4263
      %v4268 = vmul.f32 %v4231, %v4263
      %v4269 = vmul.f32 %v4232, %v4263
      %v4270 = vmul.f32 %v4233, %v4263
      %v4271 = vmul.f32 %v4234, %v4263
      %v4272 = vmul.f32 %v4235, %v4263
      %v4273 = vmul.f32 %v4236, %v4263
      %v4274 = vmul.f32 %v4237, %v4263
      %v4275 = vmul.f32 %v4238, %v4263
      %v4276 = vmul.f32 %v4239, %v4263
      %v4277 = vmul.f32 %v4240, %v4263
      %v4278 = vmul.f32 %v4241, %v4263
      %v4279 = vmul.f32 %v4242, %v4263
      %v4280 = vmul.f32 %v4243, %v4263
      %v4281 = vmul.f32 %v4244, %v4263
      %v4282 = vmul.f32 %v4245, %v4263
      %v4283 = vmul.f32 %v4246, %v4263
      %v4284 = vmul.f32 %v4247, %v4263
      %v4285 = vmul.f32 %v4248, %v4263
      %v4286 = vmul.f32 %v4249, %v4263
      %v4287 = vmul.f32 %v4250, %v4263
      %v4288 = vmul.f32 %v4251, %v4263
      %v4289 = vmul.f32 %v4252, %v4263
      %v4290 = vmul.f32 %v4253, %v4263
      %v4291 = vmul.f32 %v4254, %v4263
      %v4292 = vmul.f32 %v4255, %v4263
      %v4293 = vmul.f32 %v4256, %v4263
      %v4294 = vmul.f32 %v4257, %v4263
      %v4295 = vmul.f32 %v4258, %v4263
      %v4296 = vadd.f32 %v4195, %v4264
      %v4297 = vadd.f32 %v4196, %v4265
      %v4298 = vadd.f32 %v4197, %v4266
      %v4299 = vadd.f32 %v4198, %v4267
      %v4300 = vadd.f32 %v4199, %v4268
      %v4301 = vadd.f32 %v4200, %v4269
      %v4302 = vadd.f32 %v4201, %v4270
      %v4303 = vadd.f32 %v4202, %v4271
      %v4304 = vadd.f32 %v4203, %v4272
      %v4305 = vadd.f32 %v4204, %v4273
      %v4306 = vadd.f32 %v4205, %v4274
      %v4307 = vadd.f32 %v4206, %v4275
      %v4308 = vadd.f32 %v4207, %v4276
      %v4309 = vadd.f32 %v4208, %v4277
      %v4310 = vadd.f32 %v4209, %v4278
      %v4311 = vadd.f32 %v4210, %v4279
      %v4312 = vadd.f32 %v4211, %v4280
      %v4313 = vadd.f32 %v4212, %v4281
      %v4314 = vadd.f32 %v4213, %v4282
      %v4315 = vadd.f32 %v4214, %v4283
      %v4316 = vadd.f32 %v4215, %v4284
      %v4317 = vadd.f32 %v4216, %v4285
      %v4318 = vadd.f32 %v4217, %v4286
      %v4319 = vadd.f32 %v4218, %v4287
      %v4320 = vadd.f32 %v4219, %v4288
      %v4321 = vadd.f32 %v4220, %v4289
      %v4322 = vadd.f32 %v4221, %v4290
      %v4323 = vadd.f32 %v4222, %v4291
      %v4324 = vadd.f32 %v4223, %v4292
      %v4325 = vadd.f32 %v4224, %v4293
      %v4326 = vadd.f32 %v4225, %v4294
      %v4327 = vadd.f32 %v4226, %v4295
      %v4328 = vld [vmem:[%s4024 + $0x8] sm:$0xff]
      %v4329 = vld [vmem:[%s4024 + $0x10] sm:$0xff]
      %v4330 = vld [vmem:[%s4024 + $0x28] sm:$0xff]
      %v4331 = vld [vmem:[%s4024 + $0x30] sm:$0xff]
      %v4332 = vld [vmem:[%s4024 + $0x48] sm:$0xff]
      %v4333 = vld [vmem:[%s4024 + $0x50] sm:$0xff]
      %v4334 = vld [vmem:[%s4024 + $0x68] sm:$0xff]
      %v4335 = vld [vmem:[%s4024 + $0x70] sm:$0xff]
      %v4336 = vld [vmem:[%s4024 + $0x88] sm:$0xff]
      %v4337 = vld [vmem:[%s4024 + $0x90] sm:$0xff]
      %v4338 = vld [vmem:[%s4024 + $0xa8] sm:$0xff]
      %v4339 = vld [vmem:[%s4024 + $0xb0] sm:$0xff]
      %v4340 = vld [vmem:[%s4024 + $0xc8] sm:$0xff]
      %v4341 = vld [vmem:[%s4024 + $0xd0] sm:$0xff]
      %v4342 = vld [vmem:[%s4024 + $0xe8] sm:$0xff]
      %v4343 = vld [vmem:[%s4024 + $0xf0] sm:$0xff]
      %v4344 = vld [vmem:[%s4024 + $0x108] sm:$0xff]
      %v4345 = vld [vmem:[%s4024 + $0x110] sm:$0xff]
      %v4346 = vld [vmem:[%s4024 + $0x128] sm:$0xff]
      %v4347 = vld [vmem:[%s4024 + $0x130] sm:$0xff]
      %v4348 = vld [vmem:[%s4024 + $0x148] sm:$0xff]
      %v4349 = vld [vmem:[%s4024 + $0x150] sm:$0xff]
      %v4350 = vld [vmem:[%s4024 + $0x168] sm:$0xff]
      %v4351 = vld [vmem:[%s4024 + $0x170] sm:$0xff]
      %v4352 = vld [vmem:[%s4024 + $0x188] sm:$0xff]
      %v4353 = vld [vmem:[%s4024 + $0x190] sm:$0xff]
      %v4354 = vld [vmem:[%s4024 + $0x1a8] sm:$0xff]
      %v4355 = vld [vmem:[%s4024 + $0x1b0] sm:$0xff]
      %v4356 = vld [vmem:[%s4024 + $0x1c8] sm:$0xff]
      %v4357 = vld [vmem:[%s4024 + $0x1d0] sm:$0xff]
      %v4358 = vld [vmem:[%s4024 + $0x1e8] sm:$0xff]
      %v4359 = vld [vmem:[%s4024 + $0x1f0] sm:$0xff]
      %v4360 = vld [vmem:[%s1 + $0x26] sm:$0x1]
      %v4361 = vlaneseq
      %v4362 = vshrl.u32 %v4361, 7
      %v4363 = vsub.s32 0, %v4362
      %v4364 = vrot.slane %v4360, %v4363
      %v4365 = vmul.f32 %v4328, %v4364
      %v4366 = vmul.f32 %v4329, %v4364
      %v4367 = vmul.f32 %v4330, %v4364
      %v4368 = vmul.f32 %v4331, %v4364
      %v4369 = vmul.f32 %v4332, %v4364
      %v4370 = vmul.f32 %v4333, %v4364
      %v4371 = vmul.f32 %v4334, %v4364
      %v4372 = vmul.f32 %v4335, %v4364
      %v4373 = vmul.f32 %v4336, %v4364
      %v4374 = vmul.f32 %v4337, %v4364
      %v4375 = vmul.f32 %v4338, %v4364
      %v4376 = vmul.f32 %v4339, %v4364
      %v4377 = vmul.f32 %v4340, %v4364
      %v4378 = vmul.f32 %v4341, %v4364
      %v4379 = vmul.f32 %v4342, %v4364
      %v4380 = vmul.f32 %v4343, %v4364
      %v4381 = vmul.f32 %v4344, %v4364
      %v4382 = vmul.f32 %v4345, %v4364
      %v4383 = vmul.f32 %v4346, %v4364
      %v4384 = vmul.f32 %v4347, %v4364
      %v4385 = vmul.f32 %v4348, %v4364
      %v4386 = vmul.f32 %v4349, %v4364
      %v4387 = vmul.f32 %v4350, %v4364
      %v4388 = vmul.f32 %v4351, %v4364
      %v4389 = vmul.f32 %v4352, %v4364
      %v4390 = vmul.f32 %v4353, %v4364
      %v4391 = vmul.f32 %v4354, %v4364
      %v4392 = vmul.f32 %v4355, %v4364
      %v4393 = vmul.f32 %v4356, %v4364
      %v4394 = vmul.f32 %v4357, %v4364
      %v4395 = vmul.f32 %v4358, %v4364
      %v4396 = vmul.f32 %v4359, %v4364
      %v4397 = vadd.f32 %v4296, %v4365
      %v4398 = vadd.f32 %v4297, %v4366
      %v4399 = vadd.f32 %v4298, %v4367
      %v4400 = vadd.f32 %v4299, %v4368
      %v4401 = vadd.f32 %v4300, %v4369
      %v4402 = vadd.f32 %v4301, %v4370
      %v4403 = vadd.f32 %v4302, %v4371
      %v4404 = vadd.f32 %v4303, %v4372
      %v4405 = vadd.f32 %v4304, %v4373
      %v4406 = vadd.f32 %v4305, %v4374
      %v4407 = vadd.f32 %v4306, %v4375
      %v4408 = vadd.f32 %v4307, %v4376
      %v4409 = vadd.f32 %v4308, %v4377
      %v4410 = vadd.f32 %v4309, %v4378
      %v4411 = vadd.f32 %v4310, %v4379
      %v4412 = vadd.f32 %v4311, %v4380
      %v4413 = vadd.f32 %v4312, %v4381
      %v4414 = vadd.f32 %v4313, %v4382
      %v4415 = vadd.f32 %v4314, %v4383
      %v4416 = vadd.f32 %v4315, %v4384
      %v4417 = vadd.f32 %v4316, %v4385
      %v4418 = vadd.f32 %v4317, %v4386
      %v4419 = vadd.f32 %v4318, %v4387
      %v4420 = vadd.f32 %v4319, %v4388
      %v4421 = vadd.f32 %v4320, %v4389
      %v4422 = vadd.f32 %v4321, %v4390
      %v4423 = vadd.f32 %v4322, %v4391
      %v4424 = vadd.f32 %v4323, %v4392
      %v4425 = vadd.f32 %v4324, %v4393
      %v4426 = vadd.f32 %v4325, %v4394
      %v4427 = vadd.f32 %v4326, %v4395
      %v4428 = vadd.f32 %v4327, %v4396
      %v4429 = vld [vmem:[%s4024 + $0x9] sm:$0xff]
      %v4430 = vld [vmem:[%s4024 + $0x11] sm:$0xff]
      %v4431 = vld [vmem:[%s4024 + $0x29] sm:$0xff]
      %v4432 = vld [vmem:[%s4024 + $0x31] sm:$0xff]
      %v4433 = vld [vmem:[%s4024 + $0x49] sm:$0xff]
      %v4434 = vld [vmem:[%s4024 + $0x51] sm:$0xff]
      %v4435 = vld [vmem:[%s4024 + $0x69] sm:$0xff]
      %v4436 = vld [vmem:[%s4024 + $0x71] sm:$0xff]
      %v4437 = vld [vmem:[%s4024 + $0x89] sm:$0xff]
      %v4438 = vld [vmem:[%s4024 + $0x91] sm:$0xff]
      %v4439 = vld [vmem:[%s4024 + $0xa9] sm:$0xff]
      %v4440 = vld [vmem:[%s4024 + $0xb1] sm:$0xff]
      %v4441 = vld [vmem:[%s4024 + $0xc9] sm:$0xff]
      %v4442 = vld [vmem:[%s4024 + $0xd1] sm:$0xff]
      %v4443 = vld [vmem:[%s4024 + $0xe9] sm:$0xff]
      %v4444 = vld [vmem:[%s4024 + $0xf1] sm:$0xff]
      %v4445 = vld [vmem:[%s4024 + $0x109] sm:$0xff]
      %v4446 = vld [vmem:[%s4024 + $0x111] sm:$0xff]
      %v4447 = vld [vmem:[%s4024 + $0x129] sm:$0xff]
      %v4448 = vld [vmem:[%s4024 + $0x131] sm:$0xff]
      %v4449 = vld [vmem:[%s4024 + $0x149] sm:$0xff]
      %v4450 = vld [vmem:[%s4024 + $0x151] sm:$0xff]
      %v4451 = vld [vmem:[%s4024 + $0x169] sm:$0xff]
      %v4452 = vld [vmem:[%s4024 + $0x171] sm:$0xff]
      %v4453 = vld [vmem:[%s4024 + $0x189] sm:$0xff]
      %v4454 = vld [vmem:[%s4024 + $0x191] sm:$0xff]
      %v4455 = vld [vmem:[%s4024 + $0x1a9] sm:$0xff]
      %v4456 = vld [vmem:[%s4024 + $0x1b1] sm:$0xff]
      %v4457 = vld [vmem:[%s4024 + $0x1c9] sm:$0xff]
      %v4458 = vld [vmem:[%s4024 + $0x1d1] sm:$0xff]
      %v4459 = vld [vmem:[%s4024 + $0x1e9] sm:$0xff]
      %v4460 = vld [vmem:[%s4024 + $0x1f1] sm:$0xff]
      %v4461 = vld [vmem:[%s1 + $0x27] sm:$0x1]
      %v4462 = vlaneseq
      %v4463 = vshrl.u32 %v4462, 7
      %v4464 = vsub.s32 0, %v4463
      %v4465 = vrot.slane %v4461, %v4464
      %v4466 = vmul.f32 %v4429, %v4465
      %v4467 = vmul.f32 %v4430, %v4465
      %v4468 = vmul.f32 %v4431, %v4465
      %v4469 = vmul.f32 %v4432, %v4465
      %v4470 = vmul.f32 %v4433, %v4465
      %v4471 = vmul.f32 %v4434, %v4465
      %v4472 = vmul.f32 %v4435, %v4465
      %v4473 = vmul.f32 %v4436, %v4465
      %v4474 = vmul.f32 %v4437, %v4465
      %v4475 = vmul.f32 %v4438, %v4465
      %v4476 = vmul.f32 %v4439, %v4465
      %v4477 = vmul.f32 %v4440, %v4465
      %v4478 = vmul.f32 %v4441, %v4465
      %v4479 = vmul.f32 %v4442, %v4465
      %v4480 = vmul.f32 %v4443, %v4465
      %v4481 = vmul.f32 %v4444, %v4465
      %v4482 = vmul.f32 %v4445, %v4465
      %v4483 = vmul.f32 %v4446, %v4465
      %v4484 = vmul.f32 %v4447, %v4465
      %v4485 = vmul.f32 %v4448, %v4465
      %v4486 = vmul.f32 %v4449, %v4465
      %v4487 = vmul.f32 %v4450, %v4465
      %v4488 = vmul.f32 %v4451, %v4465
      %v4489 = vmul.f32 %v4452, %v4465
      %v4490 = vmul.f32 %v4453, %v4465
      %v4491 = vmul.f32 %v4454, %v4465
      %v4492 = vmul.f32 %v4455, %v4465
      %v4493 = vmul.f32 %v4456, %v4465
      %v4494 = vmul.f32 %v4457, %v4465
      %v4495 = vmul.f32 %v4458, %v4465
      %v4496 = vmul.f32 %v4459, %v4465
      %v4497 = vmul.f32 %v4460, %v4465
      %v4498 = vadd.f32 %v4397, %v4466
      %v4499 = vadd.f32 %v4398, %v4467
      %v4500 = vadd.f32 %v4399, %v4468
      %v4501 = vadd.f32 %v4400, %v4469
      %v4502 = vadd.f32 %v4401, %v4470
      %v4503 = vadd.f32 %v4402, %v4471
      %v4504 = vadd.f32 %v4403, %v4472
      %v4505 = vadd.f32 %v4404, %v4473
      %v4506 = vadd.f32 %v4405, %v4474
      %v4507 = vadd.f32 %v4406, %v4475
      %v4508 = vadd.f32 %v4407, %v4476
      %v4509 = vadd.f32 %v4408, %v4477
      %v4510 = vadd.f32 %v4409, %v4478
      %v4511 = vadd.f32 %v4410, %v4479
      %v4512 = vadd.f32 %v4411, %v4480
      %v4513 = vadd.f32 %v4412, %v4481
      %v4514 = vadd.f32 %v4413, %v4482
      %v4515 = vadd.f32 %v4414, %v4483
      %v4516 = vadd.f32 %v4415, %v4484
      %v4517 = vadd.f32 %v4416, %v4485
      %v4518 = vadd.f32 %v4417, %v4486
      %v4519 = vadd.f32 %v4418, %v4487
      %v4520 = vadd.f32 %v4419, %v4488
      %v4521 = vadd.f32 %v4420, %v4489
      %v4522 = vadd.f32 %v4421, %v4490
      %v4523 = vadd.f32 %v4422, %v4491
      %v4524 = vadd.f32 %v4423, %v4492
      %v4525 = vadd.f32 %v4424, %v4493
      %v4526 = vadd.f32 %v4425, %v4494
      %v4527 = vadd.f32 %v4426, %v4495
      %v4528 = vadd.f32 %v4427, %v4496
      %v4529 = vadd.f32 %v4428, %v4497
      %v4530 = vld [vmem:[%s4024 + $0xa] sm:$0xff]
      %v4531 = vld [vmem:[%s4024 + $0x12] sm:$0xff]
      %v4532 = vld [vmem:[%s4024 + $0x2a] sm:$0xff]
      %v4533 = vld [vmem:[%s4024 + $0x32] sm:$0xff]
      %v4534 = vld [vmem:[%s4024 + $0x4a] sm:$0xff]
      %v4535 = vld [vmem:[%s4024 + $0x52] sm:$0xff]
      %v4536 = vld [vmem:[%s4024 + $0x6a] sm:$0xff]
      %v4537 = vld [vmem:[%s4024 + $0x72] sm:$0xff]
      %v4538 = vld [vmem:[%s4024 + $0x8a] sm:$0xff]
      %v4539 = vld [vmem:[%s4024 + $0x92] sm:$0xff]
      %v4540 = vld [vmem:[%s4024 + $0xaa] sm:$0xff]
      %v4541 = vld [vmem:[%s4024 + $0xb2] sm:$0xff]
      %v4542 = vld [vmem:[%s4024 + $0xca] sm:$0xff]
      %v4543 = vld [vmem:[%s4024 + $0xd2] sm:$0xff]
      %v4544 = vld [vmem:[%s4024 + $0xea] sm:$0xff]
      %v4545 = vld [vmem:[%s4024 + $0xf2] sm:$0xff]
      %v4546 = vld [vmem:[%s4024 + $0x10a] sm:$0xff]
      %v4547 = vld [vmem:[%s4024 + $0x112] sm:$0xff]
      %v4548 = vld [vmem:[%s4024 + $0x12a] sm:$0xff]
      %v4549 = vld [vmem:[%s4024 + $0x132] sm:$0xff]
      %v4550 = vld [vmem:[%s4024 + $0x14a] sm:$0xff]
      %v4551 = vld [vmem:[%s4024 + $0x152] sm:$0xff]
      %v4552 = vld [vmem:[%s4024 + $0x16a] sm:$0xff]
      %v4553 = vld [vmem:[%s4024 + $0x172] sm:$0xff]
      %v4554 = vld [vmem:[%s4024 + $0x18a] sm:$0xff]
      %v4555 = vld [vmem:[%s4024 + $0x192] sm:$0xff]
      %v4556 = vld [vmem:[%s4024 + $0x1aa] sm:$0xff]
      %v4557 = vld [vmem:[%s4024 + $0x1b2] sm:$0xff]
      %v4558 = vld [vmem:[%s4024 + $0x1ca] sm:$0xff]
      %v4559 = vld [vmem:[%s4024 + $0x1d2] sm:$0xff]
      %v4560 = vld [vmem:[%s4024 + $0x1ea] sm:$0xff]
      %v4561 = vld [vmem:[%s4024 + $0x1f2] sm:$0xff]
      %v4562 = vld [vmem:[%s1 + $0x28] sm:$0x1]
      %v4563 = vlaneseq
      %v4564 = vshrl.u32 %v4563, 7
      %v4565 = vsub.s32 0, %v4564
      %v4566 = vrot.slane %v4562, %v4565
      %v4567 = vmul.f32 %v4530, %v4566
      %v4568 = vmul.f32 %v4531, %v4566
      %v4569 = vmul.f32 %v4532, %v4566
      %v4570 = vmul.f32 %v4533, %v4566
      %v4571 = vmul.f32 %v4534, %v4566
      %v4572 = vmul.f32 %v4535, %v4566
      %v4573 = vmul.f32 %v4536, %v4566
      %v4574 = vmul.f32 %v4537, %v4566
      %v4575 = vmul.f32 %v4538, %v4566
      %v4576 = vmul.f32 %v4539, %v4566
      %v4577 = vmul.f32 %v4540, %v4566
      %v4578 = vmul.f32 %v4541, %v4566
      %v4579 = vmul.f32 %v4542, %v4566
      %v4580 = vmul.f32 %v4543, %v4566
      %v4581 = vmul.f32 %v4544, %v4566
      %v4582 = vmul.f32 %v4545, %v4566
      %v4583 = vmul.f32 %v4546, %v4566
      %v4584 = vmul.f32 %v4547, %v4566
      %v4585 = vmul.f32 %v4548, %v4566
      %v4586 = vmul.f32 %v4549, %v4566
      %v4587 = vmul.f32 %v4550, %v4566
      %v4588 = vmul.f32 %v4551, %v4566
      %v4589 = vmul.f32 %v4552, %v4566
      %v4590 = vmul.f32 %v4553, %v4566
      %v4591 = vmul.f32 %v4554, %v4566
      %v4592 = vmul.f32 %v4555, %v4566
      %v4593 = vmul.f32 %v4556, %v4566
      %v4594 = vmul.f32 %v4557, %v4566
      %v4595 = vmul.f32 %v4558, %v4566
      %v4596 = vmul.f32 %v4559, %v4566
      %v4597 = vmul.f32 %v4560, %v4566
      %v4598 = vmul.f32 %v4561, %v4566
      %v4599 = vadd.f32 %v4498, %v4567
      %v4600 = vadd.f32 %v4499, %v4568
      %v4601 = vadd.f32 %v4500, %v4569
      %v4602 = vadd.f32 %v4501, %v4570
      %v4603 = vadd.f32 %v4502, %v4571
      %v4604 = vadd.f32 %v4503, %v4572
      %v4605 = vadd.f32 %v4504, %v4573
      %v4606 = vadd.f32 %v4505, %v4574
      %v4607 = vadd.f32 %v4506, %v4575
      %v4608 = vadd.f32 %v4507, %v4576
      %v4609 = vadd.f32 %v4508, %v4577
      %v4610 = vadd.f32 %v4509, %v4578
      %v4611 = vadd.f32 %v4510, %v4579
      %v4612 = vadd.f32 %v4511, %v4580
      %v4613 = vadd.f32 %v4512, %v4581
      %v4614 = vadd.f32 %v4513, %v4582
      %v4615 = vadd.f32 %v4514, %v4583
      %v4616 = vadd.f32 %v4515, %v4584
      %v4617 = vadd.f32 %v4516, %v4585
      %v4618 = vadd.f32 %v4517, %v4586
      %v4619 = vadd.f32 %v4518, %v4587
      %v4620 = vadd.f32 %v4519, %v4588
      %v4621 = vadd.f32 %v4520, %v4589
      %v4622 = vadd.f32 %v4521, %v4590
      %v4623 = vadd.f32 %v4522, %v4591
      %v4624 = vadd.f32 %v4523, %v4592
      %v4625 = vadd.f32 %v4524, %v4593
      %v4626 = vadd.f32 %v4525, %v4594
      %v4627 = vadd.f32 %v4526, %v4595
      %v4628 = vadd.f32 %v4527, %v4596
      %v4629 = vadd.f32 %v4528, %v4597
      %v4630 = vadd.f32 %v4529, %v4598
      %v4631 = vld [vmem:[%s4024 + $0xb] sm:$0xff]
      %v4632 = vld [vmem:[%s4024 + $0x13] sm:$0xff]
      %v4633 = vld [vmem:[%s4024 + $0x2b] sm:$0xff]
      %v4634 = vld [vmem:[%s4024 + $0x33] sm:$0xff]
      %v4635 = vld [vmem:[%s4024 + $0x4b] sm:$0xff]
      %v4636 = vld [vmem:[%s4024 + $0x53] sm:$0xff]
      %v4637 = vld [vmem:[%s4024 + $0x6b] sm:$0xff]
      %v4638 = vld [vmem:[%s4024 + $0x73] sm:$0xff]
      %v4639 = vld [vmem:[%s4024 + $0x8b] sm:$0xff]
      %v4640 = vld [vmem:[%s4024 + $0x93] sm:$0xff]
      %v4641 = vld [vmem:[%s4024 + $0xab] sm:$0xff]
      %v4642 = vld [vmem:[%s4024 + $0xb3] sm:$0xff]
      %v4643 = vld [vmem:[%s4024 + $0xcb] sm:$0xff]
      %v4644 = vld [vmem:[%s4024 + $0xd3] sm:$0xff]
      %v4645 = vld [vmem:[%s4024 + $0xeb] sm:$0xff]
      %v4646 = vld [vmem:[%s4024 + $0xf3] sm:$0xff]
      %v4647 = vld [vmem:[%s4024 + $0x10b] sm:$0xff]
      %v4648 = vld [vmem:[%s4024 + $0x113] sm:$0xff]
      %v4649 = vld [vmem:[%s4024 + $0x12b] sm:$0xff]
      %v4650 = vld [vmem:[%s4024 + $0x133] sm:$0xff]
      %v4651 = vld [vmem:[%s4024 + $0x14b] sm:$0xff]
      %v4652 = vld [vmem:[%s4024 + $0x153] sm:$0xff]
      %v4653 = vld [vmem:[%s4024 + $0x16b] sm:$0xff]
      %v4654 = vld [vmem:[%s4024 + $0x173] sm:$0xff]
      %v4655 = vld [vmem:[%s4024 + $0x18b] sm:$0xff]
      %v4656 = vld [vmem:[%s4024 + $0x193] sm:$0xff]
      %v4657 = vld [vmem:[%s4024 + $0x1ab] sm:$0xff]
      %v4658 = vld [vmem:[%s4024 + $0x1b3] sm:$0xff]
      %v4659 = vld [vmem:[%s4024 + $0x1cb] sm:$0xff]
      %v4660 = vld [vmem:[%s4024 + $0x1d3] sm:$0xff]
      %v4661 = vld [vmem:[%s4024 + $0x1eb] sm:$0xff]
      %v4662 = vld [vmem:[%s4024 + $0x1f3] sm:$0xff]
      %v4663 = vld [vmem:[%s1 + $0x29] sm:$0x1]
      %v4664 = vlaneseq
      %v4665 = vshrl.u32 %v4664, 7
      %v4666 = vsub.s32 0, %v4665
      %v4667 = vrot.slane %v4663, %v4666
      %v4668 = vmul.f32 %v4631, %v4667
      %v4669 = vmul.f32 %v4632, %v4667
      %v4670 = vmul.f32 %v4633, %v4667
      %v4671 = vmul.f32 %v4634, %v4667
      %v4672 = vmul.f32 %v4635, %v4667
      %v4673 = vmul.f32 %v4636, %v4667
      %v4674 = vmul.f32 %v4637, %v4667
      %v4675 = vmul.f32 %v4638, %v4667
      %v4676 = vmul.f32 %v4639, %v4667
      %v4677 = vmul.f32 %v4640, %v4667
      %v4678 = vmul.f32 %v4641, %v4667
      %v4679 = vmul.f32 %v4642, %v4667
      %v4680 = vmul.f32 %v4643, %v4667
      %v4681 = vmul.f32 %v4644, %v4667
      %v4682 = vmul.f32 %v4645, %v4667
      %v4683 = vmul.f32 %v4646, %v4667
      %v4684 = vmul.f32 %v4647, %v4667
      %v4685 = vmul.f32 %v4648, %v4667
      %v4686 = vmul.f32 %v4649, %v4667
      %v4687 = vmul.f32 %v4650, %v4667
      %v4688 = vmul.f32 %v4651, %v4667
      %v4689 = vmul.f32 %v4652, %v4667
      %v4690 = vmul.f32 %v4653, %v4667
      %v4691 = vmul.f32 %v4654, %v4667
      %v4692 = vmul.f32 %v4655, %v4667
      %v4693 = vmul.f32 %v4656, %v4667
      %v4694 = vmul.f32 %v4657, %v4667
      %v4695 = vmul.f32 %v4658, %v4667
      %v4696 = vmul.f32 %v4659, %v4667
      %v4697 = vmul.f32 %v4660, %v4667
      %v4698 = vmul.f32 %v4661, %v4667
      %v4699 = vmul.f32 %v4662, %v4667
      %v4700 = vadd.f32 %v4599, %v4668
      %v4701 = vadd.f32 %v4600, %v4669
      %v4702 = vadd.f32 %v4601, %v4670
      %v4703 = vadd.f32 %v4602, %v4671
      %v4704 = vadd.f32 %v4603, %v4672
      %v4705 = vadd.f32 %v4604, %v4673
      %v4706 = vadd.f32 %v4605, %v4674
      %v4707 = vadd.f32 %v4606, %v4675
      %v4708 = vadd.f32 %v4607, %v4676
      %v4709 = vadd.f32 %v4608, %v4677
      %v4710 = vadd.f32 %v4609, %v4678
      %v4711 = vadd.f32 %v4610, %v4679
      %v4712 = vadd.f32 %v4611, %v4680
      %v4713 = vadd.f32 %v4612, %v4681
      %v4714 = vadd.f32 %v4613, %v4682
      %v4715 = vadd.f32 %v4614, %v4683
      %v4716 = vadd.f32 %v4615, %v4684
      %v4717 = vadd.f32 %v4616, %v4685
      %v4718 = vadd.f32 %v4617, %v4686
      %v4719 = vadd.f32 %v4618, %v4687
      %v4720 = vadd.f32 %v4619, %v4688
      %v4721 = vadd.f32 %v4620, %v4689
      %v4722 = vadd.f32 %v4621, %v4690
      %v4723 = vadd.f32 %v4622, %v4691
      %v4724 = vadd.f32 %v4623, %v4692
      %v4725 = vadd.f32 %v4624, %v4693
      %v4726 = vadd.f32 %v4625, %v4694
      %v4727 = vadd.f32 %v4626, %v4695
      %v4728 = vadd.f32 %v4627, %v4696
      %v4729 = vadd.f32 %v4628, %v4697
      %v4730 = vadd.f32 %v4629, %v4698
      %v4731 = vadd.f32 %v4630, %v4699
      %s4732 = scalar_lea.vmem [#allocation2], 192
      %v4733 = vld [vmem:[%s4732 + $0x5] sm:$0xff]
      %v4734 = vld [vmem:[%s4732 + $0xd] sm:$0xff]
      %v4735 = vld [vmem:[%s4732 + $0x25] sm:$0xff]
      %v4736 = vld [vmem:[%s4732 + $0x2d] sm:$0xff]
      %v4737 = vld [vmem:[%s4732 + $0x45] sm:$0xff]
      %v4738 = vld [vmem:[%s4732 + $0x4d] sm:$0xff]
      %v4739 = vld [vmem:[%s4732 + $0x65] sm:$0xff]
      %v4740 = vld [vmem:[%s4732 + $0x6d] sm:$0xff]
      %v4741 = vld [vmem:[%s4732 + $0x85] sm:$0xff]
      %v4742 = vld [vmem:[%s4732 + $0x8d] sm:$0xff]
      %v4743 = vld [vmem:[%s4732 + $0xa5] sm:$0xff]
      %v4744 = vld [vmem:[%s4732 + $0xad] sm:$0xff]
      %v4745 = vld [vmem:[%s4732 + $0xc5] sm:$0xff]
      %v4746 = vld [vmem:[%s4732 + $0xcd] sm:$0xff]
      %v4747 = vld [vmem:[%s4732 + $0xe5] sm:$0xff]
      %v4748 = vld [vmem:[%s4732 + $0xed] sm:$0xff]
      %v4749 = vld [vmem:[%s4732 + $0x105] sm:$0xff]
      %v4750 = vld [vmem:[%s4732 + $0x10d] sm:$0xff]
      %v4751 = vld [vmem:[%s4732 + $0x125] sm:$0xff]
      %v4752 = vld [vmem:[%s4732 + $0x12d] sm:$0xff]
      %v4753 = vld [vmem:[%s4732 + $0x145] sm:$0xff]
      %v4754 = vld [vmem:[%s4732 + $0x14d] sm:$0xff]
      %v4755 = vld [vmem:[%s4732 + $0x165] sm:$0xff]
      %v4756 = vld [vmem:[%s4732 + $0x16d] sm:$0xff]
      %v4757 = vld [vmem:[%s4732 + $0x185] sm:$0xff]
      %v4758 = vld [vmem:[%s4732 + $0x18d] sm:$0xff]
      %v4759 = vld [vmem:[%s4732 + $0x1a5] sm:$0xff]
      %v4760 = vld [vmem:[%s4732 + $0x1ad] sm:$0xff]
      %v4761 = vld [vmem:[%s4732 + $0x1c5] sm:$0xff]
      %v4762 = vld [vmem:[%s4732 + $0x1cd] sm:$0xff]
      %v4763 = vld [vmem:[%s4732 + $0x1e5] sm:$0xff]
      %v4764 = vld [vmem:[%s4732 + $0x1ed] sm:$0xff]
      %v4765 = vld [vmem:[%s1 + $0x2a] sm:$0x1]
      %v4766 = vlaneseq
      %v4767 = vshrl.u32 %v4766, 7
      %v4768 = vsub.s32 0, %v4767
      %v4769 = vrot.slane %v4765, %v4768
      %v4770 = vmul.f32 %v4733, %v4769
      %v4771 = vmul.f32 %v4734, %v4769
      %v4772 = vmul.f32 %v4735, %v4769
      %v4773 = vmul.f32 %v4736, %v4769
      %v4774 = vmul.f32 %v4737, %v4769
      %v4775 = vmul.f32 %v4738, %v4769
      %v4776 = vmul.f32 %v4739, %v4769
      %v4777 = vmul.f32 %v4740, %v4769
      %v4778 = vmul.f32 %v4741, %v4769
      %v4779 = vmul.f32 %v4742, %v4769
      %v4780 = vmul.f32 %v4743, %v4769
      %v4781 = vmul.f32 %v4744, %v4769
      %v4782 = vmul.f32 %v4745, %v4769
      %v4783 = vmul.f32 %v4746, %v4769
      %v4784 = vmul.f32 %v4747, %v4769
      %v4785 = vmul.f32 %v4748, %v4769
      %v4786 = vmul.f32 %v4749, %v4769
      %v4787 = vmul.f32 %v4750, %v4769
      %v4788 = vmul.f32 %v4751, %v4769
      %v4789 = vmul.f32 %v4752, %v4769
      %v4790 = vmul.f32 %v4753, %v4769
      %v4791 = vmul.f32 %v4754, %v4769
      %v4792 = vmul.f32 %v4755, %v4769
      %v4793 = vmul.f32 %v4756, %v4769
      %v4794 = vmul.f32 %v4757, %v4769
      %v4795 = vmul.f32 %v4758, %v4769
      %v4796 = vmul.f32 %v4759, %v4769
      %v4797 = vmul.f32 %v4760, %v4769
      %v4798 = vmul.f32 %v4761, %v4769
      %v4799 = vmul.f32 %v4762, %v4769
      %v4800 = vmul.f32 %v4763, %v4769
      %v4801 = vmul.f32 %v4764, %v4769
      %v4802 = vadd.f32 %v4700, %v4770
      %v4803 = vadd.f32 %v4701, %v4771
      %v4804 = vadd.f32 %v4702, %v4772
      %v4805 = vadd.f32 %v4703, %v4773
      %v4806 = vadd.f32 %v4704, %v4774
      %v4807 = vadd.f32 %v4705, %v4775
      %v4808 = vadd.f32 %v4706, %v4776
      %v4809 = vadd.f32 %v4707, %v4777
      %v4810 = vadd.f32 %v4708, %v4778
      %v4811 = vadd.f32 %v4709, %v4779
      %v4812 = vadd.f32 %v4710, %v4780
      %v4813 = vadd.f32 %v4711, %v4781
      %v4814 = vadd.f32 %v4712, %v4782
      %v4815 = vadd.f32 %v4713, %v4783
      %v4816 = vadd.f32 %v4714, %v4784
      %v4817 = vadd.f32 %v4715, %v4785
      %v4818 = vadd.f32 %v4716, %v4786
      %v4819 = vadd.f32 %v4717, %v4787
      %v4820 = vadd.f32 %v4718, %v4788
      %v4821 = vadd.f32 %v4719, %v4789
      %v4822 = vadd.f32 %v4720, %v4790
      %v4823 = vadd.f32 %v4721, %v4791
      %v4824 = vadd.f32 %v4722, %v4792
      %v4825 = vadd.f32 %v4723, %v4793
      %v4826 = vadd.f32 %v4724, %v4794
      %v4827 = vadd.f32 %v4725, %v4795
      %v4828 = vadd.f32 %v4726, %v4796
      %v4829 = vadd.f32 %v4727, %v4797
      %v4830 = vadd.f32 %v4728, %v4798
      %v4831 = vadd.f32 %v4729, %v4799
      %v4832 = vadd.f32 %v4730, %v4800
      %v4833 = vadd.f32 %v4731, %v4801
      %v4834 = vld [vmem:[%s4732 + $0x6] sm:$0xff]
      %v4835 = vld [vmem:[%s4732 + $0xe] sm:$0xff]
      %v4836 = vld [vmem:[%s4732 + $0x26] sm:$0xff]
      %v4837 = vld [vmem:[%s4732 + $0x2e] sm:$0xff]
      %v4838 = vld [vmem:[%s4732 + $0x46] sm:$0xff]
      %v4839 = vld [vmem:[%s4732 + $0x4e] sm:$0xff]
      %v4840 = vld [vmem:[%s4732 + $0x66] sm:$0xff]
      %v4841 = vld [vmem:[%s4732 + $0x6e] sm:$0xff]
      %v4842 = vld [vmem:[%s4732 + $0x86] sm:$0xff]
      %v4843 = vld [vmem:[%s4732 + $0x8e] sm:$0xff]
      %v4844 = vld [vmem:[%s4732 + $0xa6] sm:$0xff]
      %v4845 = vld [vmem:[%s4732 + $0xae] sm:$0xff]
      %v4846 = vld [vmem:[%s4732 + $0xc6] sm:$0xff]
      %v4847 = vld [vmem:[%s4732 + $0xce] sm:$0xff]
      %v4848 = vld [vmem:[%s4732 + $0xe6] sm:$0xff]
      %v4849 = vld [vmem:[%s4732 + $0xee] sm:$0xff]
      %v4850 = vld [vmem:[%s4732 + $0x106] sm:$0xff]
      %v4851 = vld [vmem:[%s4732 + $0x10e] sm:$0xff]
      %v4852 = vld [vmem:[%s4732 + $0x126] sm:$0xff]
      %v4853 = vld [vmem:[%s4732 + $0x12e] sm:$0xff]
      %v4854 = vld [vmem:[%s4732 + $0x146] sm:$0xff]
      %v4855 = vld [vmem:[%s4732 + $0x14e] sm:$0xff]
      %v4856 = vld [vmem:[%s4732 + $0x166] sm:$0xff]
      %v4857 = vld [vmem:[%s4732 + $0x16e] sm:$0xff]
      %v4858 = vld [vmem:[%s4732 + $0x186] sm:$0xff]
      %v4859 = vld [vmem:[%s4732 + $0x18e] sm:$0xff]
      %v4860 = vld [vmem:[%s4732 + $0x1a6] sm:$0xff]
      %v4861 = vld [vmem:[%s4732 + $0x1ae] sm:$0xff]
      %v4862 = vld [vmem:[%s4732 + $0x1c6] sm:$0xff]
      %v4863 = vld [vmem:[%s4732 + $0x1ce] sm:$0xff]
      %v4864 = vld [vmem:[%s4732 + $0x1e6] sm:$0xff]
      %v4865 = vld [vmem:[%s4732 + $0x1ee] sm:$0xff]
      %v4866 = vld [vmem:[%s1 + $0x2b] sm:$0x1]
      %v4867 = vlaneseq
      %v4868 = vshrl.u32 %v4867, 7
      %v4869 = vsub.s32 0, %v4868
      %v4870 = vrot.slane %v4866, %v4869
      %v4871 = vmul.f32 %v4834, %v4870
      %v4872 = vmul.f32 %v4835, %v4870
      %v4873 = vmul.f32 %v4836, %v4870
      %v4874 = vmul.f32 %v4837, %v4870
      %v4875 = vmul.f32 %v4838, %v4870
      %v4876 = vmul.f32 %v4839, %v4870
      %v4877 = vmul.f32 %v4840, %v4870
      %v4878 = vmul.f32 %v4841, %v4870
      %v4879 = vmul.f32 %v4842, %v4870
      %v4880 = vmul.f32 %v4843, %v4870
      %v4881 = vmul.f32 %v4844, %v4870
      %v4882 = vmul.f32 %v4845, %v4870
      %v4883 = vmul.f32 %v4846, %v4870
      %v4884 = vmul.f32 %v4847, %v4870
      %v4885 = vmul.f32 %v4848, %v4870
      %v4886 = vmul.f32 %v4849, %v4870
      %v4887 = vmul.f32 %v4850, %v4870
      %v4888 = vmul.f32 %v4851, %v4870
      %v4889 = vmul.f32 %v4852, %v4870
      %v4890 = vmul.f32 %v4853, %v4870
      %v4891 = vmul.f32 %v4854, %v4870
      %v4892 = vmul.f32 %v4855, %v4870
      %v4893 = vmul.f32 %v4856, %v4870
      %v4894 = vmul.f32 %v4857, %v4870
      %v4895 = vmul.f32 %v4858, %v4870
      %v4896 = vmul.f32 %v4859, %v4870
      %v4897 = vmul.f32 %v4860, %v4870
      %v4898 = vmul.f32 %v4861, %v4870
      %v4899 = vmul.f32 %v4862, %v4870
      %v4900 = vmul.f32 %v4863, %v4870
      %v4901 = vmul.f32 %v4864, %v4870
      %v4902 = vmul.f32 %v4865, %v4870
      %v4903 = vadd.f32 %v4802, %v4871
      %v4904 = vadd.f32 %v4803, %v4872
      %v4905 = vadd.f32 %v4804, %v4873
      %v4906 = vadd.f32 %v4805, %v4874
      %v4907 = vadd.f32 %v4806, %v4875
      %v4908 = vadd.f32 %v4807, %v4876
      %v4909 = vadd.f32 %v4808, %v4877
      %v4910 = vadd.f32 %v4809, %v4878
      %v4911 = vadd.f32 %v4810, %v4879
      %v4912 = vadd.f32 %v4811, %v4880
      %v4913 = vadd.f32 %v4812, %v4881
      %v4914 = vadd.f32 %v4813, %v4882
      %v4915 = vadd.f32 %v4814, %v4883
      %v4916 = vadd.f32 %v4815, %v4884
      %v4917 = vadd.f32 %v4816, %v4885
      %v4918 = vadd.f32 %v4817, %v4886
      %v4919 = vadd.f32 %v4818, %v4887
      %v4920 = vadd.f32 %v4819, %v4888
      %v4921 = vadd.f32 %v4820, %v4889
      %v4922 = vadd.f32 %v4821, %v4890
      %v4923 = vadd.f32 %v4822, %v4891
      %v4924 = vadd.f32 %v4823, %v4892
      %v4925 = vadd.f32 %v4824, %v4893
      %v4926 = vadd.f32 %v4825, %v4894
      %v4927 = vadd.f32 %v4826, %v4895
      %v4928 = vadd.f32 %v4827, %v4896
      %v4929 = vadd.f32 %v4828, %v4897
      %v4930 = vadd.f32 %v4829, %v4898
      %v4931 = vadd.f32 %v4830, %v4899
      %v4932 = vadd.f32 %v4831, %v4900
      %v4933 = vadd.f32 %v4832, %v4901
      %v4934 = vadd.f32 %v4833, %v4902
      %v4935 = vld [vmem:[%s4732 + $0x7] sm:$0xff]
      %v4936 = vld [vmem:[%s4732 + $0xf] sm:$0xff]
      %v4937 = vld [vmem:[%s4732 + $0x27] sm:$0xff]
      %v4938 = vld [vmem:[%s4732 + $0x2f] sm:$0xff]
      %v4939 = vld [vmem:[%s4732 + $0x47] sm:$0xff]
      %v4940 = vld [vmem:[%s4732 + $0x4f] sm:$0xff]
      %v4941 = vld [vmem:[%s4732 + $0x67] sm:$0xff]
      %v4942 = vld [vmem:[%s4732 + $0x6f] sm:$0xff]
      %v4943 = vld [vmem:[%s4732 + $0x87] sm:$0xff]
      %v4944 = vld [vmem:[%s4732 + $0x8f] sm:$0xff]
      %v4945 = vld [vmem:[%s4732 + $0xa7] sm:$0xff]
      %v4946 = vld [vmem:[%s4732 + $0xaf] sm:$0xff]
      %v4947 = vld [vmem:[%s4732 + $0xc7] sm:$0xff]
      %v4948 = vld [vmem:[%s4732 + $0xcf] sm:$0xff]
      %v4949 = vld [vmem:[%s4732 + $0xe7] sm:$0xff]
      %v4950 = vld [vmem:[%s4732 + $0xef] sm:$0xff]
      %v4951 = vld [vmem:[%s4732 + $0x107] sm:$0xff]
      %v4952 = vld [vmem:[%s4732 + $0x10f] sm:$0xff]
      %v4953 = vld [vmem:[%s4732 + $0x127] sm:$0xff]
      %v4954 = vld [vmem:[%s4732 + $0x12f] sm:$0xff]
      %v4955 = vld [vmem:[%s4732 + $0x147] sm:$0xff]
      %v4956 = vld [vmem:[%s4732 + $0x14f] sm:$0xff]
      %v4957 = vld [vmem:[%s4732 + $0x167] sm:$0xff]
      %v4958 = vld [vmem:[%s4732 + $0x16f] sm:$0xff]
      %v4959 = vld [vmem:[%s4732 + $0x187] sm:$0xff]
      %v4960 = vld [vmem:[%s4732 + $0x18f] sm:$0xff]
      %v4961 = vld [vmem:[%s4732 + $0x1a7] sm:$0xff]
      %v4962 = vld [vmem:[%s4732 + $0x1af] sm:$0xff]
      %v4963 = vld [vmem:[%s4732 + $0x1c7] sm:$0xff]
      %v4964 = vld [vmem:[%s4732 + $0x1cf] sm:$0xff]
      %v4965 = vld [vmem:[%s4732 + $0x1e7] sm:$0xff]
      %v4966 = vld [vmem:[%s4732 + $0x1ef] sm:$0xff]
      %v4967 = vld [vmem:[%s1 + $0x2c] sm:$0x1]
      %v4968 = vlaneseq
      %v4969 = vshrl.u32 %v4968, 7
      %v4970 = vsub.s32 0, %v4969
      %v4971 = vrot.slane %v4967, %v4970
      %v4972 = vmul.f32 %v4935, %v4971
      %v4973 = vmul.f32 %v4936, %v4971
      %v4974 = vmul.f32 %v4937, %v4971
      %v4975 = vmul.f32 %v4938, %v4971
      %v4976 = vmul.f32 %v4939, %v4971
      %v4977 = vmul.f32 %v4940, %v4971
      %v4978 = vmul.f32 %v4941, %v4971
      %v4979 = vmul.f32 %v4942, %v4971
      %v4980 = vmul.f32 %v4943, %v4971
      %v4981 = vmul.f32 %v4944, %v4971
      %v4982 = vmul.f32 %v4945, %v4971
      %v4983 = vmul.f32 %v4946, %v4971
      %v4984 = vmul.f32 %v4947, %v4971
      %v4985 = vmul.f32 %v4948, %v4971
      %v4986 = vmul.f32 %v4949, %v4971
      %v4987 = vmul.f32 %v4950, %v4971
      %v4988 = vmul.f32 %v4951, %v4971
      %v4989 = vmul.f32 %v4952, %v4971
      %v4990 = vmul.f32 %v4953, %v4971
      %v4991 = vmul.f32 %v4954, %v4971
      %v4992 = vmul.f32 %v4955, %v4971
      %v4993 = vmul.f32 %v4956, %v4971
      %v4994 = vmul.f32 %v4957, %v4971
      %v4995 = vmul.f32 %v4958, %v4971
      %v4996 = vmul.f32 %v4959, %v4971
      %v4997 = vmul.f32 %v4960, %v4971
      %v4998 = vmul.f32 %v4961, %v4971
      %v4999 = vmul.f32 %v4962, %v4971
      %v5000 = vmul.f32 %v4963, %v4971
      %v5001 = vmul.f32 %v4964, %v4971
      %v5002 = vmul.f32 %v4965, %v4971
      %v5003 = vmul.f32 %v4966, %v4971
      %v5004 = vadd.f32 %v4903, %v4972
      %v5005 = vadd.f32 %v4904, %v4973
      %v5006 = vadd.f32 %v4905, %v4974
      %v5007 = vadd.f32 %v4906, %v4975
      %v5008 = vadd.f32 %v4907, %v4976
      %v5009 = vadd.f32 %v4908, %v4977
      %v5010 = vadd.f32 %v4909, %v4978
      %v5011 = vadd.f32 %v4910, %v4979
      %v5012 = vadd.f32 %v4911, %v4980
      %v5013 = vadd.f32 %v4912, %v4981
      %v5014 = vadd.f32 %v4913, %v4982
      %v5015 = vadd.f32 %v4914, %v4983
      %v5016 = vadd.f32 %v4915, %v4984
      %v5017 = vadd.f32 %v4916, %v4985
      %v5018 = vadd.f32 %v4917, %v4986
      %v5019 = vadd.f32 %v4918, %v4987
      %v5020 = vadd.f32 %v4919, %v4988
      %v5021 = vadd.f32 %v4920, %v4989
      %v5022 = vadd.f32 %v4921, %v4990
      %v5023 = vadd.f32 %v4922, %v4991
      %v5024 = vadd.f32 %v4923, %v4992
      %v5025 = vadd.f32 %v4924, %v4993
      %v5026 = vadd.f32 %v4925, %v4994
      %v5027 = vadd.f32 %v4926, %v4995
      %v5028 = vadd.f32 %v4927, %v4996
      %v5029 = vadd.f32 %v4928, %v4997
      %v5030 = vadd.f32 %v4929, %v4998
      %v5031 = vadd.f32 %v4930, %v4999
      %v5032 = vadd.f32 %v4931, %v5000
      %v5033 = vadd.f32 %v4932, %v5001
      %v5034 = vadd.f32 %v4933, %v5002
      %v5035 = vadd.f32 %v4934, %v5003
      %v5036 = vld [vmem:[%s4732 + $0x8] sm:$0xff]
      %v5037 = vld [vmem:[%s4732 + $0x10] sm:$0xff]
      %v5038 = vld [vmem:[%s4732 + $0x28] sm:$0xff]
      %v5039 = vld [vmem:[%s4732 + $0x30] sm:$0xff]
      %v5040 = vld [vmem:[%s4732 + $0x48] sm:$0xff]
      %v5041 = vld [vmem:[%s4732 + $0x50] sm:$0xff]
      %v5042 = vld [vmem:[%s4732 + $0x68] sm:$0xff]
      %v5043 = vld [vmem:[%s4732 + $0x70] sm:$0xff]
      %v5044 = vld [vmem:[%s4732 + $0x88] sm:$0xff]
      %v5045 = vld [vmem:[%s4732 + $0x90] sm:$0xff]
      %v5046 = vld [vmem:[%s4732 + $0xa8] sm:$0xff]
      %v5047 = vld [vmem:[%s4732 + $0xb0] sm:$0xff]
      %v5048 = vld [vmem:[%s4732 + $0xc8] sm:$0xff]
      %v5049 = vld [vmem:[%s4732 + $0xd0] sm:$0xff]
      %v5050 = vld [vmem:[%s4732 + $0xe8] sm:$0xff]
      %v5051 = vld [vmem:[%s4732 + $0xf0] sm:$0xff]
      %v5052 = vld [vmem:[%s4732 + $0x108] sm:$0xff]
      %v5053 = vld [vmem:[%s4732 + $0x110] sm:$0xff]
      %v5054 = vld [vmem:[%s4732 + $0x128] sm:$0xff]
      %v5055 = vld [vmem:[%s4732 + $0x130] sm:$0xff]
      %v5056 = vld [vmem:[%s4732 + $0x148] sm:$0xff]
      %v5057 = vld [vmem:[%s4732 + $0x150] sm:$0xff]
      %v5058 = vld [vmem:[%s4732 + $0x168] sm:$0xff]
      %v5059 = vld [vmem:[%s4732 + $0x170] sm:$0xff]
      %v5060 = vld [vmem:[%s4732 + $0x188] sm:$0xff]
      %v5061 = vld [vmem:[%s4732 + $0x190] sm:$0xff]
      %v5062 = vld [vmem:[%s4732 + $0x1a8] sm:$0xff]
      %v5063 = vld [vmem:[%s4732 + $0x1b0] sm:$0xff]
      %v5064 = vld [vmem:[%s4732 + $0x1c8] sm:$0xff]
      %v5065 = vld [vmem:[%s4732 + $0x1d0] sm:$0xff]
      %v5066 = vld [vmem:[%s4732 + $0x1e8] sm:$0xff]
      %v5067 = vld [vmem:[%s4732 + $0x1f0] sm:$0xff]
      %v5068 = vld [vmem:[%s1 + $0x2d] sm:$0x1]
      %v5069 = vlaneseq
      %v5070 = vshrl.u32 %v5069, 7
      %v5071 = vsub.s32 0, %v5070
      %v5072 = vrot.slane %v5068, %v5071
      %v5073 = vmul.f32 %v5036, %v5072
      %v5074 = vmul.f32 %v5037, %v5072
      %v5075 = vmul.f32 %v5038, %v5072
      %v5076 = vmul.f32 %v5039, %v5072
      %v5077 = vmul.f32 %v5040, %v5072
      %v5078 = vmul.f32 %v5041, %v5072
      %v5079 = vmul.f32 %v5042, %v5072
      %v5080 = vmul.f32 %v5043, %v5072
      %v5081 = vmul.f32 %v5044, %v5072
      %v5082 = vmul.f32 %v5045, %v5072
      %v5083 = vmul.f32 %v5046, %v5072
      %v5084 = vmul.f32 %v5047, %v5072
      %v5085 = vmul.f32 %v5048, %v5072
      %v5086 = vmul.f32 %v5049, %v5072
      %v5087 = vmul.f32 %v5050, %v5072
      %v5088 = vmul.f32 %v5051, %v5072
      %v5089 = vmul.f32 %v5052, %v5072
      %v5090 = vmul.f32 %v5053, %v5072
      %v5091 = vmul.f32 %v5054, %v5072
      %v5092 = vmul.f32 %v5055, %v5072
      %v5093 = vmul.f32 %v5056, %v5072
      %v5094 = vmul.f32 %v5057, %v5072
      %v5095 = vmul.f32 %v5058, %v5072
      %v5096 = vmul.f32 %v5059, %v5072
      %v5097 = vmul.f32 %v5060, %v5072
      %v5098 = vmul.f32 %v5061, %v5072
      %v5099 = vmul.f32 %v5062, %v5072
      %v5100 = vmul.f32 %v5063, %v5072
      %v5101 = vmul.f32 %v5064, %v5072
      %v5102 = vmul.f32 %v5065, %v5072
      %v5103 = vmul.f32 %v5066, %v5072
      %v5104 = vmul.f32 %v5067, %v5072
      %v5105 = vadd.f32 %v5004, %v5073
      %v5106 = vadd.f32 %v5005, %v5074
      %v5107 = vadd.f32 %v5006, %v5075
      %v5108 = vadd.f32 %v5007, %v5076
      %v5109 = vadd.f32 %v5008, %v5077
      %v5110 = vadd.f32 %v5009, %v5078
      %v5111 = vadd.f32 %v5010, %v5079
      %v5112 = vadd.f32 %v5011, %v5080
      %v5113 = vadd.f32 %v5012, %v5081
      %v5114 = vadd.f32 %v5013, %v5082
      %v5115 = vadd.f32 %v5014, %v5083
      %v5116 = vadd.f32 %v5015, %v5084
      %v5117 = vadd.f32 %v5016, %v5085
      %v5118 = vadd.f32 %v5017, %v5086
      %v5119 = vadd.f32 %v5018, %v5087
      %v5120 = vadd.f32 %v5019, %v5088
      %v5121 = vadd.f32 %v5020, %v5089
      %v5122 = vadd.f32 %v5021, %v5090
      %v5123 = vadd.f32 %v5022, %v5091
      %v5124 = vadd.f32 %v5023, %v5092
      %v5125 = vadd.f32 %v5024, %v5093
      %v5126 = vadd.f32 %v5025, %v5094
      %v5127 = vadd.f32 %v5026, %v5095
      %v5128 = vadd.f32 %v5027, %v5096
      %v5129 = vadd.f32 %v5028, %v5097
      %v5130 = vadd.f32 %v5029, %v5098
      %v5131 = vadd.f32 %v5030, %v5099
      %v5132 = vadd.f32 %v5031, %v5100
      %v5133 = vadd.f32 %v5032, %v5101
      %v5134 = vadd.f32 %v5033, %v5102
      %v5135 = vadd.f32 %v5034, %v5103
      %v5136 = vadd.f32 %v5035, %v5104
      %v5137 = vld [vmem:[%s4732 + $0x9] sm:$0xff]
      %v5138 = vld [vmem:[%s4732 + $0x11] sm:$0xff]
      %v5139 = vld [vmem:[%s4732 + $0x29] sm:$0xff]
      %v5140 = vld [vmem:[%s4732 + $0x31] sm:$0xff]
      %v5141 = vld [vmem:[%s4732 + $0x49] sm:$0xff]
      %v5142 = vld [vmem:[%s4732 + $0x51] sm:$0xff]
      %v5143 = vld [vmem:[%s4732 + $0x69] sm:$0xff]
      %v5144 = vld [vmem:[%s4732 + $0x71] sm:$0xff]
      %v5145 = vld [vmem:[%s4732 + $0x89] sm:$0xff]
      %v5146 = vld [vmem:[%s4732 + $0x91] sm:$0xff]
      %v5147 = vld [vmem:[%s4732 + $0xa9] sm:$0xff]
      %v5148 = vld [vmem:[%s4732 + $0xb1] sm:$0xff]
      %v5149 = vld [vmem:[%s4732 + $0xc9] sm:$0xff]
      %v5150 = vld [vmem:[%s4732 + $0xd1] sm:$0xff]
      %v5151 = vld [vmem:[%s4732 + $0xe9] sm:$0xff]
      %v5152 = vld [vmem:[%s4732 + $0xf1] sm:$0xff]
      %v5153 = vld [vmem:[%s4732 + $0x109] sm:$0xff]
      %v5154 = vld [vmem:[%s4732 + $0x111] sm:$0xff]
      %v5155 = vld [vmem:[%s4732 + $0x129] sm:$0xff]
      %v5156 = vld [vmem:[%s4732 + $0x131] sm:$0xff]
      %v5157 = vld [vmem:[%s4732 + $0x149] sm:$0xff]
      %v5158 = vld [vmem:[%s4732 + $0x151] sm:$0xff]
      %v5159 = vld [vmem:[%s4732 + $0x169] sm:$0xff]
      %v5160 = vld [vmem:[%s4732 + $0x171] sm:$0xff]
      %v5161 = vld [vmem:[%s4732 + $0x189] sm:$0xff]
      %v5162 = vld [vmem:[%s4732 + $0x191] sm:$0xff]
      %v5163 = vld [vmem:[%s4732 + $0x1a9] sm:$0xff]
      %v5164 = vld [vmem:[%s4732 + $0x1b1] sm:$0xff]
      %v5165 = vld [vmem:[%s4732 + $0x1c9] sm:$0xff]
      %v5166 = vld [vmem:[%s4732 + $0x1d1] sm:$0xff]
      %v5167 = vld [vmem:[%s4732 + $0x1e9] sm:$0xff]
      %v5168 = vld [vmem:[%s4732 + $0x1f1] sm:$0xff]
      %v5169 = vld [vmem:[%s1 + $0x2e] sm:$0x1]
      %v5170 = vlaneseq
      %v5171 = vshrl.u32 %v5170, 7
      %v5172 = vsub.s32 0, %v5171
      %v5173 = vrot.slane %v5169, %v5172
      %v5174 = vmul.f32 %v5137, %v5173
      %v5175 = vmul.f32 %v5138, %v5173
      %v5176 = vmul.f32 %v5139, %v5173
      %v5177 = vmul.f32 %v5140, %v5173
      %v5178 = vmul.f32 %v5141, %v5173
      %v5179 = vmul.f32 %v5142, %v5173
      %v5180 = vmul.f32 %v5143, %v5173
      %v5181 = vmul.f32 %v5144, %v5173
      %v5182 = vmul.f32 %v5145, %v5173
      %v5183 = vmul.f32 %v5146, %v5173
      %v5184 = vmul.f32 %v5147, %v5173
      %v5185 = vmul.f32 %v5148, %v5173
      %v5186 = vmul.f32 %v5149, %v5173
      %v5187 = vmul.f32 %v5150, %v5173
      %v5188 = vmul.f32 %v5151, %v5173
      %v5189 = vmul.f32 %v5152, %v5173
      %v5190 = vmul.f32 %v5153, %v5173
      %v5191 = vmul.f32 %v5154, %v5173
      %v5192 = vmul.f32 %v5155, %v5173
      %v5193 = vmul.f32 %v5156, %v5173
      %v5194 = vmul.f32 %v5157, %v5173
      %v5195 = vmul.f32 %v5158, %v5173
      %v5196 = vmul.f32 %v5159, %v5173
      %v5197 = vmul.f32 %v5160, %v5173
      %v5198 = vmul.f32 %v5161, %v5173
      %v5199 = vmul.f32 %v5162, %v5173
      %v5200 = vmul.f32 %v5163, %v5173
      %v5201 = vmul.f32 %v5164, %v5173
      %v5202 = vmul.f32 %v5165, %v5173
      %v5203 = vmul.f32 %v5166, %v5173
      %v5204 = vmul.f32 %v5167, %v5173
      %v5205 = vmul.f32 %v5168, %v5173
      %v5206 = vadd.f32 %v5105, %v5174
      %v5207 = vadd.f32 %v5106, %v5175
      %v5208 = vadd.f32 %v5107, %v5176
      %v5209 = vadd.f32 %v5108, %v5177
      %v5210 = vadd.f32 %v5109, %v5178
      %v5211 = vadd.f32 %v5110, %v5179
      %v5212 = vadd.f32 %v5111, %v5180
      %v5213 = vadd.f32 %v5112, %v5181
      %v5214 = vadd.f32 %v5113, %v5182
      %v5215 = vadd.f32 %v5114, %v5183
      %v5216 = vadd.f32 %v5115, %v5184
      %v5217 = vadd.f32 %v5116, %v5185
      %v5218 = vadd.f32 %v5117, %v5186
      %v5219 = vadd.f32 %v5118, %v5187
      %v5220 = vadd.f32 %v5119, %v5188
      %v5221 = vadd.f32 %v5120, %v5189
      %v5222 = vadd.f32 %v5121, %v5190
      %v5223 = vadd.f32 %v5122, %v5191
      %v5224 = vadd.f32 %v5123, %v5192
      %v5225 = vadd.f32 %v5124, %v5193
      %v5226 = vadd.f32 %v5125, %v5194
      %v5227 = vadd.f32 %v5126, %v5195
      %v5228 = vadd.f32 %v5127, %v5196
      %v5229 = vadd.f32 %v5128, %v5197
      %v5230 = vadd.f32 %v5129, %v5198
      %v5231 = vadd.f32 %v5130, %v5199
      %v5232 = vadd.f32 %v5131, %v5200
      %v5233 = vadd.f32 %v5132, %v5201
      %v5234 = vadd.f32 %v5133, %v5202
      %v5235 = vadd.f32 %v5134, %v5203
      %v5236 = vadd.f32 %v5135, %v5204
      %v5237 = vadd.f32 %v5136, %v5205
      %v5238 = vld [vmem:[%s4732 + $0xa] sm:$0xff]
      %v5239 = vld [vmem:[%s4732 + $0x12] sm:$0xff]
      %v5240 = vld [vmem:[%s4732 + $0x2a] sm:$0xff]
      %v5241 = vld [vmem:[%s4732 + $0x32] sm:$0xff]
      %v5242 = vld [vmem:[%s4732 + $0x4a] sm:$0xff]
      %v5243 = vld [vmem:[%s4732 + $0x52] sm:$0xff]
      %v5244 = vld [vmem:[%s4732 + $0x6a] sm:$0xff]
      %v5245 = vld [vmem:[%s4732 + $0x72] sm:$0xff]
      %v5246 = vld [vmem:[%s4732 + $0x8a] sm:$0xff]
      %v5247 = vld [vmem:[%s4732 + $0x92] sm:$0xff]
      %v5248 = vld [vmem:[%s4732 + $0xaa] sm:$0xff]
      %v5249 = vld [vmem:[%s4732 + $0xb2] sm:$0xff]
      %v5250 = vld [vmem:[%s4732 + $0xca] sm:$0xff]
      %v5251 = vld [vmem:[%s4732 + $0xd2] sm:$0xff]
      %v5252 = vld [vmem:[%s4732 + $0xea] sm:$0xff]
      %v5253 = vld [vmem:[%s4732 + $0xf2] sm:$0xff]
      %v5254 = vld [vmem:[%s4732 + $0x10a] sm:$0xff]
      %v5255 = vld [vmem:[%s4732 + $0x112] sm:$0xff]
      %v5256 = vld [vmem:[%s4732 + $0x12a] sm:$0xff]
      %v5257 = vld [vmem:[%s4732 + $0x132] sm:$0xff]
      %v5258 = vld [vmem:[%s4732 + $0x14a] sm:$0xff]
      %v5259 = vld [vmem:[%s4732 + $0x152] sm:$0xff]
      %v5260 = vld [vmem:[%s4732 + $0x16a] sm:$0xff]
      %v5261 = vld [vmem:[%s4732 + $0x172] sm:$0xff]
      %v5262 = vld [vmem:[%s4732 + $0x18a] sm:$0xff]
      %v5263 = vld [vmem:[%s4732 + $0x192] sm:$0xff]
      %v5264 = vld [vmem:[%s4732 + $0x1aa] sm:$0xff]
      %v5265 = vld [vmem:[%s4732 + $0x1b2] sm:$0xff]
      %v5266 = vld [vmem:[%s4732 + $0x1ca] sm:$0xff]
      %v5267 = vld [vmem:[%s4732 + $0x1d2] sm:$0xff]
      %v5268 = vld [vmem:[%s4732 + $0x1ea] sm:$0xff]
      %v5269 = vld [vmem:[%s4732 + $0x1f2] sm:$0xff]
      %v5270 = vld [vmem:[%s1 + $0x2f] sm:$0x1]
      %v5271 = vlaneseq
      %v5272 = vshrl.u32 %v5271, 7
      %v5273 = vsub.s32 0, %v5272
      %v5274 = vrot.slane %v5270, %v5273
      %v5275 = vmul.f32 %v5238, %v5274
      %v5276 = vmul.f32 %v5239, %v5274
      %v5277 = vmul.f32 %v5240, %v5274
      %v5278 = vmul.f32 %v5241, %v5274
      %v5279 = vmul.f32 %v5242, %v5274
      %v5280 = vmul.f32 %v5243, %v5274
      %v5281 = vmul.f32 %v5244, %v5274
      %v5282 = vmul.f32 %v5245, %v5274
      %v5283 = vmul.f32 %v5246, %v5274
      %v5284 = vmul.f32 %v5247, %v5274
      %v5285 = vmul.f32 %v5248, %v5274
      %v5286 = vmul.f32 %v5249, %v5274
      %v5287 = vmul.f32 %v5250, %v5274
      %v5288 = vmul.f32 %v5251, %v5274
      %v5289 = vmul.f32 %v5252, %v5274
      %v5290 = vmul.f32 %v5253, %v5274
      %v5291 = vmul.f32 %v5254, %v5274
      %v5292 = vmul.f32 %v5255, %v5274
      %v5293 = vmul.f32 %v5256, %v5274
      %v5294 = vmul.f32 %v5257, %v5274
      %v5295 = vmul.f32 %v5258, %v5274
      %v5296 = vmul.f32 %v5259, %v5274
      %v5297 = vmul.f32 %v5260, %v5274
      %v5298 = vmul.f32 %v5261, %v5274
      %v5299 = vmul.f32 %v5262, %v5274
      %v5300 = vmul.f32 %v5263, %v5274
      %v5301 = vmul.f32 %v5264, %v5274
      %v5302 = vmul.f32 %v5265, %v5274
      %v5303 = vmul.f32 %v5266, %v5274
      %v5304 = vmul.f32 %v5267, %v5274
      %v5305 = vmul.f32 %v5268, %v5274
      %v5306 = vmul.f32 %v5269, %v5274
      %v5307 = vadd.f32 %v5206, %v5275
      %v5308 = vadd.f32 %v5207, %v5276
      %v5309 = vadd.f32 %v5208, %v5277
      %v5310 = vadd.f32 %v5209, %v5278
      %v5311 = vadd.f32 %v5210, %v5279
      %v5312 = vadd.f32 %v5211, %v5280
      %v5313 = vadd.f32 %v5212, %v5281
      %v5314 = vadd.f32 %v5213, %v5282
      %v5315 = vadd.f32 %v5214, %v5283
      %v5316 = vadd.f32 %v5215, %v5284
      %v5317 = vadd.f32 %v5216, %v5285
      %v5318 = vadd.f32 %v5217, %v5286
      %v5319 = vadd.f32 %v5218, %v5287
      %v5320 = vadd.f32 %v5219, %v5288
      %v5321 = vadd.f32 %v5220, %v5289
      %v5322 = vadd.f32 %v5221, %v5290
      %v5323 = vadd.f32 %v5222, %v5291
      %v5324 = vadd.f32 %v5223, %v5292
      %v5325 = vadd.f32 %v5224, %v5293
      %v5326 = vadd.f32 %v5225, %v5294
      %v5327 = vadd.f32 %v5226, %v5295
      %v5328 = vadd.f32 %v5227, %v5296
      %v5329 = vadd.f32 %v5228, %v5297
      %v5330 = vadd.f32 %v5229, %v5298
      %v5331 = vadd.f32 %v5230, %v5299
      %v5332 = vadd.f32 %v5231, %v5300
      %v5333 = vadd.f32 %v5232, %v5301
      %v5334 = vadd.f32 %v5233, %v5302
      %v5335 = vadd.f32 %v5234, %v5303
      %v5336 = vadd.f32 %v5235, %v5304
      %v5337 = vadd.f32 %v5236, %v5305
      %v5338 = vadd.f32 %v5237, %v5306
      %v5339 = vld [vmem:[%s4732 + $0xb] sm:$0xff]
      %v5340 = vld [vmem:[%s4732 + $0x13] sm:$0xff]
      %v5341 = vld [vmem:[%s4732 + $0x2b] sm:$0xff]
      %v5342 = vld [vmem:[%s4732 + $0x33] sm:$0xff]
      %v5343 = vld [vmem:[%s4732 + $0x4b] sm:$0xff]
      %v5344 = vld [vmem:[%s4732 + $0x53] sm:$0xff]
      %v5345 = vld [vmem:[%s4732 + $0x6b] sm:$0xff]
      %v5346 = vld [vmem:[%s4732 + $0x73] sm:$0xff]
      %v5347 = vld [vmem:[%s4732 + $0x8b] sm:$0xff]
      %v5348 = vld [vmem:[%s4732 + $0x93] sm:$0xff]
      %v5349 = vld [vmem:[%s4732 + $0xab] sm:$0xff]
      %v5350 = vld [vmem:[%s4732 + $0xb3] sm:$0xff]
      %v5351 = vld [vmem:[%s4732 + $0xcb] sm:$0xff]
      %v5352 = vld [vmem:[%s4732 + $0xd3] sm:$0xff]
      %v5353 = vld [vmem:[%s4732 + $0xeb] sm:$0xff]
      %v5354 = vld [vmem:[%s4732 + $0xf3] sm:$0xff]
      %v5355 = vld [vmem:[%s4732 + $0x10b] sm:$0xff]
      %v5356 = vld [vmem:[%s4732 + $0x113] sm:$0xff]
      %v5357 = vld [vmem:[%s4732 + $0x12b] sm:$0xff]
      %v5358 = vld [vmem:[%s4732 + $0x133] sm:$0xff]
      %v5359 = vld [vmem:[%s4732 + $0x14b] sm:$0xff]
      %v5360 = vld [vmem:[%s4732 + $0x153] sm:$0xff]
      %v5361 = vld [vmem:[%s4732 + $0x16b] sm:$0xff]
      %v5362 = vld [vmem:[%s4732 + $0x173] sm:$0xff]
      %v5363 = vld [vmem:[%s4732 + $0x18b] sm:$0xff]
      %v5364 = vld [vmem:[%s4732 + $0x193] sm:$0xff]
      %v5365 = vld [vmem:[%s4732 + $0x1ab] sm:$0xff]
      %v5366 = vld [vmem:[%s4732 + $0x1b3] sm:$0xff]
      %v5367 = vld [vmem:[%s4732 + $0x1cb] sm:$0xff]
      %v5368 = vld [vmem:[%s4732 + $0x1d3] sm:$0xff]
      %v5369 = vld [vmem:[%s4732 + $0x1eb] sm:$0xff]
      %v5370 = vld [vmem:[%s4732 + $0x1f3] sm:$0xff]
      %v5371 = vld [vmem:[%s1 + $0x30] sm:$0x1]
      %v5372 = vlaneseq
      %v5373 = vshrl.u32 %v5372, 7
      %v5374 = vsub.s32 0, %v5373
      %v5375 = vrot.slane %v5371, %v5374
      %v5376 = vmul.f32 %v5339, %v5375
      %v5377 = vmul.f32 %v5340, %v5375
      %v5378 = vmul.f32 %v5341, %v5375
      %v5379 = vmul.f32 %v5342, %v5375
      %v5380 = vmul.f32 %v5343, %v5375
      %v5381 = vmul.f32 %v5344, %v5375
      %v5382 = vmul.f32 %v5345, %v5375
      %v5383 = vmul.f32 %v5346, %v5375
      %v5384 = vmul.f32 %v5347, %v5375
      %v5385 = vmul.f32 %v5348, %v5375
      %v5386 = vmul.f32 %v5349, %v5375
      %v5387 = vmul.f32 %v5350, %v5375
      %v5388 = vmul.f32 %v5351, %v5375
      %v5389 = vmul.f32 %v5352, %v5375
      %v5390 = vmul.f32 %v5353, %v5375
      %v5391 = vmul.f32 %v5354, %v5375
      %v5392 = vmul.f32 %v5355, %v5375
      %v5393 = vmul.f32 %v5356, %v5375
      %v5394 = vmul.f32 %v5357, %v5375
      %v5395 = vmul.f32 %v5358, %v5375
      %v5396 = vmul.f32 %v5359, %v5375
      %v5397 = vmul.f32 %v5360, %v5375
      %v5398 = vmul.f32 %v5361, %v5375
      %v5399 = vmul.f32 %v5362, %v5375
      %v5400 = vmul.f32 %v5363, %v5375
      %v5401 = vmul.f32 %v5364, %v5375
      %v5402 = vmul.f32 %v5365, %v5375
      %v5403 = vmul.f32 %v5366, %v5375
      %v5404 = vmul.f32 %v5367, %v5375
      %v5405 = vmul.f32 %v5368, %v5375
      %v5406 = vmul.f32 %v5369, %v5375
      %v5407 = vmul.f32 %v5370, %v5375
      %v5408 = vadd.f32 %v5307, %v5376
      %v5409 = vadd.f32 %v5308, %v5377
      %v5410 = vadd.f32 %v5309, %v5378
      %v5411 = vadd.f32 %v5310, %v5379
      %v5412 = vadd.f32 %v5311, %v5380
      %v5413 = vadd.f32 %v5312, %v5381
      %v5414 = vadd.f32 %v5313, %v5382
      %v5415 = vadd.f32 %v5314, %v5383
      %v5416 = vadd.f32 %v5315, %v5384
      %v5417 = vadd.f32 %v5316, %v5385
      %v5418 = vadd.f32 %v5317, %v5386
      %v5419 = vadd.f32 %v5318, %v5387
      %v5420 = vadd.f32 %v5319, %v5388
      %v5421 = vadd.f32 %v5320, %v5389
      %v5422 = vadd.f32 %v5321, %v5390
      %v5423 = vadd.f32 %v5322, %v5391
      %v5424 = vadd.f32 %v5323, %v5392
      %v5425 = vadd.f32 %v5324, %v5393
      %v5426 = vadd.f32 %v5325, %v5394
      %v5427 = vadd.f32 %v5326, %v5395
      %v5428 = vadd.f32 %v5327, %v5396
      %v5429 = vadd.f32 %v5328, %v5397
      %v5430 = vadd.f32 %v5329, %v5398
      %v5431 = vadd.f32 %v5330, %v5399
      %v5432 = vadd.f32 %v5331, %v5400
      %v5433 = vadd.f32 %v5332, %v5401
      %v5434 = vadd.f32 %v5333, %v5402
      %v5435 = vadd.f32 %v5334, %v5403
      %v5436 = vadd.f32 %v5335, %v5404
      %v5437 = vadd.f32 %v5336, %v5405
      %v5438 = vadd.f32 %v5337, %v5406
      %v5439 = vadd.f32 %v5338, %v5407
      %v5440 = vld [vmem:[%s2] sm:$0x1]
      %v5442 = vlaneseq
      %v5443 = vshrl.u32 %v5442, 7
      %v5444 = vsub.s32 0, %v5443
      %v5445 = vrot.slane %v5440, %v5444
      %v5447 = vadd.f32 %v5408, %v5445
      %v5448 = vadd.f32 %v5409, %v5445
      %v5449 = vadd.f32 %v5410, %v5445
      %v5450 = vadd.f32 %v5411, %v5445
      %v5451 = vadd.f32 %v5412, %v5445
      %v5452 = vadd.f32 %v5413, %v5445
      %v5453 = vadd.f32 %v5414, %v5445
      %v5454 = vadd.f32 %v5415, %v5445
      %v5455 = vadd.f32 %v5416, %v5445
      %v5456 = vadd.f32 %v5417, %v5445
      %v5457 = vadd.f32 %v5418, %v5445
      %v5458 = vadd.f32 %v5419, %v5445
      %v5459 = vadd.f32 %v5420, %v5445
      %v5460 = vadd.f32 %v5421, %v5445
      %v5461 = vadd.f32 %v5422, %v5445
      %v5462 = vadd.f32 %v5423, %v5445
      %v5463 = vadd.f32 %v5424, %v5445
      %v5464 = vadd.f32 %v5425, %v5445
      %v5465 = vadd.f32 %v5426, %v5445
      %v5466 = vadd.f32 %v5427, %v5445
      %v5467 = vadd.f32 %v5428, %v5445
      %v5468 = vadd.f32 %v5429, %v5445
      %v5469 = vadd.f32 %v5430, %v5445
      %v5470 = vadd.f32 %v5431, %v5445
      %v5471 = vadd.f32 %v5432, %v5445
      %v5472 = vadd.f32 %v5433, %v5445
      %v5473 = vadd.f32 %v5434, %v5445
      %v5474 = vadd.f32 %v5435, %v5445
      %v5475 = vadd.f32 %v5436, %v5445
      %v5476 = vadd.f32 %v5437, %v5445
      %v5477 = vadd.f32 %v5438, %v5445
      %v5478 = vadd.f32 %v5439, %v5445
      %v5479 = vadd.f32 %v5447, %v5448
      %v5480 = vadd.f32 %v5479, %v5449
      %v5481 = vadd.f32 %v5480, %v5450
      %v5482 = vadd.f32 %v5481, %v5451
      %v5483 = vadd.f32 %v5482, %v5452
      %v5484 = vadd.f32 %v5483, %v5453
      %v5485 = vadd.f32 %v5484, %v5454
      %v5486 = vadd.f32 %v5485, %v5455
      %v5487 = vadd.f32 %v5486, %v5456
      %v5488 = vadd.f32 %v5487, %v5457
      %v5489 = vadd.f32 %v5488, %v5458
      %v5490 = vadd.f32 %v5489, %v5459
      %v5491 = vadd.f32 %v5490, %v5460
      %v5492 = vadd.f32 %v5491, %v5461
      %v5493 = vadd.f32 %v5492, %v5462
      %v5494 = vadd.f32 %v5493, %v5463
      %v5495 = vadd.f32 %v5494, %v5464
      %v5496 = vadd.f32 %v5495, %v5465
      %v5497 = vadd.f32 %v5496, %v5466
      %v5498 = vadd.f32 %v5497, %v5467
      %v5499 = vadd.f32 %v5498, %v5468
      %v5500 = vadd.f32 %v5499, %v5469
      %v5501 = vadd.f32 %v5500, %v5470
      %v5502 = vadd.f32 %v5501, %v5471
      %v5503 = vadd.f32 %v5502, %v5472
      %v5504 = vadd.f32 %v5503, %v5473
      %v5505 = vadd.f32 %v5504, %v5474
      %v5506 = vadd.f32 %v5505, %v5475
      %v5507 = vadd.f32 %v5506, %v5476
      %v5508 = vadd.f32 %v5507, %v5477
      %v5509 = vadd.f32 %v5508, %v5478
      %5510 = vadd.xlane.f32.xlu0 %v5509
      %v5511 = vpop.xlane.xlu0 %5510
      %v5512 = vrot.slane %v5511, 4
      %v5513 = vadd.f32 %v5511, %v5512
      %v5514 = vrot.slane %v5513, 2
      %v5515 = vadd.f32 %v5513, %v5514
      %v5516 = vrot.slane %v5515, 1
      %v5517 = vadd.f32 %v5515, %v5516
      %s5518 = vtos %v5517
      %v5519 = vmul.f32 %v5447, %v5447
      %v5520 = vmul.f32 %v5448, %v5448
      %v5521 = vmul.f32 %v5449, %v5449
      %v5522 = vmul.f32 %v5450, %v5450
      %v5523 = vmul.f32 %v5451, %v5451
      %v5524 = vmul.f32 %v5452, %v5452
      %v5525 = vmul.f32 %v5453, %v5453
      %v5526 = vmul.f32 %v5454, %v5454
      %v5527 = vmul.f32 %v5455, %v5455
      %v5528 = vmul.f32 %v5456, %v5456
      %v5529 = vmul.f32 %v5457, %v5457
      %v5530 = vmul.f32 %v5458, %v5458
      %v5531 = vmul.f32 %v5459, %v5459
      %v5532 = vmul.f32 %v5460, %v5460
      %v5533 = vmul.f32 %v5461, %v5461
      %v5534 = vmul.f32 %v5462, %v5462
      %v5535 = vmul.f32 %v5463, %v5463
      %v5536 = vmul.f32 %v5464, %v5464
      %v5537 = vmul.f32 %v5465, %v5465
      %v5538 = vmul.f32 %v5466, %v5466
      %v5539 = vmul.f32 %v5467, %v5467
      %v5540 = vmul.f32 %v5468, %v5468
      %v5541 = vmul.f32 %v5469, %v5469
      %v5542 = vmul.f32 %v5470, %v5470
      %v5543 = vmul.f32 %v5471, %v5471
      %v5544 = vmul.f32 %v5472, %v5472
      %v5545 = vmul.f32 %v5473, %v5473
      %v5546 = vmul.f32 %v5474, %v5474
      %v5547 = vmul.f32 %v5475, %v5475
      %v5548 = vmul.f32 %v5476, %v5476
      %v5549 = vmul.f32 %v5477, %v5477
      %v5550 = vmul.f32 %v5478, %v5478
      %v5551 = vadd.f32 %v5519, %v5520
      %v5552 = vadd.f32 %v5551, %v5521
      %v5553 = vadd.f32 %v5552, %v5522
      %v5554 = vadd.f32 %v5553, %v5523
      %v5555 = vadd.f32 %v5554, %v5524
      %v5556 = vadd.f32 %v5555, %v5525
      %v5557 = vadd.f32 %v5556, %v5526
      %v5558 = vadd.f32 %v5557, %v5527
      %v5559 = vadd.f32 %v5558, %v5528
      %v5560 = vadd.f32 %v5559, %v5529
      %v5561 = vadd.f32 %v5560, %v5530
      %v5562 = vadd.f32 %v5561, %v5531
      %v5563 = vadd.f32 %v5562, %v5532
      %v5564 = vadd.f32 %v5563, %v5533
      %v5565 = vadd.f32 %v5564, %v5534
      %v5566 = vadd.f32 %v5565, %v5535
      %v5567 = vadd.f32 %v5566, %v5536
      %v5568 = vadd.f32 %v5567, %v5537
      %v5569 = vadd.f32 %v5568, %v5538
      %v5570 = vadd.f32 %v5569, %v5539
      %v5571 = vadd.f32 %v5570, %v5540
      %v5572 = vadd.f32 %v5571, %v5541
      %v5573 = vadd.f32 %v5572, %v5542
      %v5574 = vadd.f32 %v5573, %v5543
      %v5575 = vadd.f32 %v5574, %v5544
      %v5576 = vadd.f32 %v5575, %v5545
      %v5577 = vadd.f32 %v5576, %v5546
      %v5578 = vadd.f32 %v5577, %v5547
      %v5579 = vadd.f32 %v5578, %v5548
      %v5580 = vadd.f32 %v5579, %v5549
      %v5581 = vadd.f32 %v5580, %v5550
      %5582 = vadd.xlane.f32.xlu0 %v5581
      %v5583 = vpop.xlane.xlu0 %5582
      %v5584 = vrot.slane %v5583, 4
      %v5585 = vadd.f32 %v5583, %v5584
      %v5586 = vrot.slane %v5585, 2
      %v5587 = vadd.f32 %v5585, %v5586
      %v5588 = vrot.slane %v5587, 1
      %v5589 = vadd.f32 %v5587, %v5588
      %s5590 = vtos %v5589
      %v5591 = vrcp.pop 32768.0
      %s5592 = vtos %v5591
      %s5593 = smul.f32 %s5518, %s5592
      %v5594 = vrcp.pop 32768.0
      %s5595 = vtos %v5594
      %s5596 = smul.f32 %s5590, %s5595
      %s5597 = smul.f32 %s5593, %s5593
      %s5598 = ssub.f32 %s5596, %s5597
      %v5599 = vstv %s5593
      %v5600 = vsub.f32 %v5447, %v5599
      %v5601 = vsub.f32 %v5448, %v5599
      %v5602 = vsub.f32 %v5449, %v5599
      %v5603 = vsub.f32 %v5450, %v5599
      %v5604 = vsub.f32 %v5451, %v5599
      %v5605 = vsub.f32 %v5452, %v5599
      %v5606 = vsub.f32 %v5453, %v5599
      %v5607 = vsub.f32 %v5454, %v5599
      %v5608 = vsub.f32 %v5455, %v5599
      %v5609 = vsub.f32 %v5456, %v5599
      %v5610 = vsub.f32 %v5457, %v5599
      %v5611 = vsub.f32 %v5458, %v5599
      %v5612 = vsub.f32 %v5459, %v5599
      %v5613 = vsub.f32 %v5460, %v5599
      %v5614 = vsub.f32 %v5461, %v5599
      %v5615 = vsub.f32 %v5462, %v5599
      %v5616 = vsub.f32 %v5463, %v5599
      %v5617 = vsub.f32 %v5464, %v5599
      %v5618 = vsub.f32 %v5465, %v5599
      %v5619 = vsub.f32 %v5466, %v5599
      %v5620 = vsub.f32 %v5467, %v5599
      %v5621 = vsub.f32 %v5468, %v5599
      %v5622 = vsub.f32 %v5469, %v5599
      %v5623 = vsub.f32 %v5470, %v5599
      %v5624 = vsub.f32 %v5471, %v5599
      %v5625 = vsub.f32 %v5472, %v5599
      %v5626 = vsub.f32 %v5473, %v5599
      %v5627 = vsub.f32 %v5474, %v5599
      %v5628 = vsub.f32 %v5475, %v5599
      %v5629 = vsub.f32 %v5476, %v5599
      %v5630 = vsub.f32 %v5477, %v5599
      %v5631 = vsub.f32 %v5478, %v5599
      %s5632 = sadd.f32 %s5598, 1e-05
      %v5633 = vstv %s5632
      %v5634 = vrsqrt.pop %v5633
      %s5635 = vtos %v5634
      %v5636 = vstv %s5635
      %v5637 = vmul.f32 %v5600, %v5636
      %v5638 = vmul.f32 %v5601, %v5636
      %v5639 = vmul.f32 %v5602, %v5636
      %v5640 = vmul.f32 %v5603, %v5636
      %v5641 = vmul.f32 %v5604, %v5636
      %v5642 = vmul.f32 %v5605, %v5636
      %v5643 = vmul.f32 %v5606, %v5636
      %v5644 = vmul.f32 %v5607, %v5636
      %v5645 = vmul.f32 %v5608, %v5636
      %v5646 = vmul.f32 %v5609, %v5636
      %v5647 = vmul.f32 %v5610, %v5636
      %v5648 = vmul.f32 %v5611, %v5636
      %v5649 = vmul.f32 %v5612, %v5636
      %v5650 = vmul.f32 %v5613, %v5636
      %v5651 = vmul.f32 %v5614, %v5636
      %v5652 = vmul.f32 %v5615, %v5636
      %v5653 = vmul.f32 %v5616, %v5636
      %v5654 = vmul.f32 %v5617, %v5636
      %v5655 = vmul.f32 %v5618, %v5636
      %v5656 = vmul.f32 %v5619, %v5636
      %v5657 = vmul.f32 %v5620, %v5636
      %v5658 = vmul.f32 %v5621, %v5636
      %v5659 = vmul.f32 %v5622, %v5636
      %v5660 = vmul.f32 %v5623, %v5636
      %v5661 = vmul.f32 %v5624, %v5636
      %v5662 = vmul.f32 %v5625, %v5636
      %v5663 = vmul.f32 %v5626, %v5636
      %v5664 = vmul.f32 %v5627, %v5636
      %v5665 = vmul.f32 %v5628, %v5636
      %v5666 = vmul.f32 %v5629, %v5636
      %v5667 = vmul.f32 %v5630, %v5636
      %v5668 = vmul.f32 %v5631, %v5636
      %v5669 = vld [vmem:[%s3] sm:$0x1]
      %v5671 = vlaneseq
      %v5672 = vshrl.u32 %v5671, 7
      %v5673 = vsub.s32 0, %v5672
      %v5674 = vrot.slane %v5669, %v5673
      %v5676 = vmul.f32 %v5637, %v5674
      %v5677 = vmul.f32 %v5638, %v5674
      %v5678 = vmul.f32 %v5639, %v5674
      %v5679 = vmul.f32 %v5640, %v5674
      %v5680 = vmul.f32 %v5641, %v5674
      %v5681 = vmul.f32 %v5642, %v5674
      %v5682 = vmul.f32 %v5643, %v5674
      %v5683 = vmul.f32 %v5644, %v5674
      %v5684 = vmul.f32 %v5645, %v5674
      %v5685 = vmul.f32 %v5646, %v5674
      %v5686 = vmul.f32 %v5647, %v5674
      %v5687 = vmul.f32 %v5648, %v5674
      %v5688 = vmul.f32 %v5649, %v5674
      %v5689 = vmul.f32 %v5650, %v5674
      %v5690 = vmul.f32 %v5651, %v5674
      %v5691 = vmul.f32 %v5652, %v5674
      %v5692 = vmul.f32 %v5653, %v5674
      %v5693 = vmul.f32 %v5654, %v5674
      %v5694 = vmul.f32 %v5655, %v5674
      %v5695 = vmul.f32 %v5656, %v5674
      %v5696 = vmul.f32 %v5657, %v5674
      %v5697 = vmul.f32 %v5658, %v5674
      %v5698 = vmul.f32 %v5659, %v5674
      %v5699 = vmul.f32 %v5660, %v5674
      %v5700 = vmul.f32 %v5661, %v5674
      %v5701 = vmul.f32 %v5662, %v5674
      %v5702 = vmul.f32 %v5663, %v5674
      %v5703 = vmul.f32 %v5664, %v5674
      %v5704 = vmul.f32 %v5665, %v5674
      %v5705 = vmul.f32 %v5666, %v5674
      %v5706 = vmul.f32 %v5667, %v5674
      %v5707 = vmul.f32 %v5668, %v5674
      %v5708 = vld [vmem:[%s4] sm:$0x1]
      %v5710 = vlaneseq
      %v5711 = vshrl.u32 %v5710, 7
      %v5712 = vsub.s32 0, %v5711
      %v5713 = vrot.slane %v5708, %v5712
      %v5715 = vadd.f32 %v5676, %v5713
      %v5716 = vadd.f32 %v5677, %v5713
      %v5717 = vadd.f32 %v5678, %v5713
      %v5718 = vadd.f32 %v5679, %v5713
      %v5719 = vadd.f32 %v5680, %v5713
      %v5720 = vadd.f32 %v5681, %v5713
      %v5721 = vadd.f32 %v5682, %v5713
      %v5722 = vadd.f32 %v5683, %v5713
      %v5723 = vadd.f32 %v5684, %v5713
      %v5724 = vadd.f32 %v5685, %v5713
      %v5725 = vadd.f32 %v5686, %v5713
      %v5726 = vadd.f32 %v5687, %v5713
      %v5727 = vadd.f32 %v5688, %v5713
      %v5728 = vadd.f32 %v5689, %v5713
      %v5729 = vadd.f32 %v5690, %v5713
      %v5730 = vadd.f32 %v5691, %v5713
      %v5731 = vadd.f32 %v5692, %v5713
      %v5732 = vadd.f32 %v5693, %v5713
      %v5733 = vadd.f32 %v5694, %v5713
      %v5734 = vadd.f32 %v5695, %v5713
      %v5735 = vadd.f32 %v5696, %v5713
      %v5736 = vadd.f32 %v5697, %v5713
      %v5737 = vadd.f32 %v5698, %v5713
      %v5738 = vadd.f32 %v5699, %v5713
      %v5739 = vadd.f32 %v5700, %v5713
      %v5740 = vadd.f32 %v5701, %v5713
      %v5741 = vadd.f32 %v5702, %v5713
      %v5742 = vadd.f32 %v5703, %v5713
      %v5743 = vadd.f32 %v5704, %v5713
      %v5744 = vadd.f32 %v5705, %v5713
      %v5745 = vadd.f32 %v5706, %v5713
      %v5746 = vadd.f32 %v5707, %v5713
      %v5747 = vld [vmem:[%s5] sm:$0xff]
      %v5748 = vld [vmem:[%s5 + $0x8] sm:$0xff]
      %v5749 = vld [vmem:[%s5 + $0x10] sm:$0xff]
      %v5750 = vld [vmem:[%s5 + $0x18] sm:$0xff]
      %v5751 = vld [vmem:[%s5 + $0x20] sm:$0xff]
      %v5752 = vld [vmem:[%s5 + $0x28] sm:$0xff]
      %v5753 = vld [vmem:[%s5 + $0x30] sm:$0xff]
      %v5754 = vld [vmem:[%s5 + $0x38] sm:$0xff]
      %v5755 = vld [vmem:[%s5 + $0x40] sm:$0xff]
      %v5756 = vld [vmem:[%s5 + $0x48] sm:$0xff]
      %v5757 = vld [vmem:[%s5 + $0x50] sm:$0xff]
      %v5758 = vld [vmem:[%s5 + $0x58] sm:$0xff]
      %v5759 = vld [vmem:[%s5 + $0x60] sm:$0xff]
      %v5760 = vld [vmem:[%s5 + $0x68] sm:$0xff]
      %v5761 = vld [vmem:[%s5 + $0x70] sm:$0xff]
      %v5762 = vld [vmem:[%s5 + $0x78] sm:$0xff]
      %v5763 = vld [vmem:[%s5 + $0x80] sm:$0xff]
      %v5764 = vld [vmem:[%s5 + $0x88] sm:$0xff]
      %v5765 = vld [vmem:[%s5 + $0x90] sm:$0xff]
      %v5766 = vld [vmem:[%s5 + $0x98] sm:$0xff]
      %v5767 = vld [vmem:[%s5 + $0xa0] sm:$0xff]
      %v5768 = vld [vmem:[%s5 + $0xa8] sm:$0xff]
      %v5769 = vld [vmem:[%s5 + $0xb0] sm:$0xff]
      %v5770 = vld [vmem:[%s5 + $0xb8] sm:$0xff]
      %v5771 = vld [vmem:[%s5 + $0xc0] sm:$0xff]
      %v5772 = vld [vmem:[%s5 + $0xc8] sm:$0xff]
      %v5773 = vld [vmem:[%s5 + $0xd0] sm:$0xff]
      %v5774 = vld [vmem:[%s5 + $0xd8] sm:$0xff]
      %v5775 = vld [vmem:[%s5 + $0xe0] sm:$0xff]
      %v5776 = vld [vmem:[%s5 + $0xe8] sm:$0xff]
      %v5777 = vld [vmem:[%s5 + $0xf0] sm:$0xff]
      %v5778 = vld [vmem:[%s5 + $0xf8] sm:$0xff]
      %v5779 = vld [vmem:[%s5 + $0x100] sm:$0xff]
      %v5780 = vld [vmem:[%s5 + $0x108] sm:$0xff]
      %v5781 = vld [vmem:[%s5 + $0x110] sm:$0xff]
      %v5782 = vld [vmem:[%s5 + $0x118] sm:$0xff]
      %v5783 = vld [vmem:[%s5 + $0x120] sm:$0xff]
      %v5784 = vld [vmem:[%s5 + $0x128] sm:$0xff]
      %v5785 = vld [vmem:[%s5 + $0x130] sm:$0xff]
      %v5786 = vld [vmem:[%s5 + $0x138] sm:$0xff]
      %v5787 = vld [vmem:[%s5 + $0x140] sm:$0xff]
      %v5788 = vld [vmem:[%s5 + $0x148] sm:$0xff]
      %v5789 = vld [vmem:[%s5 + $0x150] sm:$0xff]
      %v5790 = vld [vmem:[%s5 + $0x158] sm:$0xff]
      %v5791 = vld [vmem:[%s5 + $0x160] sm:$0xff]
      %v5792 = vld [vmem:[%s5 + $0x168] sm:$0xff]
      %v5793 = vld [vmem:[%s5 + $0x170] sm:$0xff]
      %v5794 = vld [vmem:[%s5 + $0x178] sm:$0xff]
      %v5795 = vld [vmem:[%s5 + $0x180] sm:$0xff]
      %v5796 = vld [vmem:[%s5 + $0x188] sm:$0xff]
      %v5797 = vld [vmem:[%s5 + $0x190] sm:$0xff]
      %v5798 = vld [vmem:[%s5 + $0x198] sm:$0xff]
      %v5799 = vld [vmem:[%s5 + $0x1a0] sm:$0xff]
      %v5800 = vld [vmem:[%s5 + $0x1a8] sm:$0xff]
      %v5801 = vld [vmem:[%s5 + $0x1b0] sm:$0xff]
      %v5802 = vld [vmem:[%s5 + $0x1b8] sm:$0xff]
      %v5803 = vld [vmem:[%s5 + $0x1c0] sm:$0xff]
      %v5804 = vld [vmem:[%s5 + $0x1c8] sm:$0xff]
      %v5805 = vld [vmem:[%s5 + $0x1d0] sm:$0xff]
      %v5806 = vld [vmem:[%s5 + $0x1d8] sm:$0xff]
      %v5807 = vld [vmem:[%s5 + $0x1e0] sm:$0xff]
      %v5808 = vld [vmem:[%s5 + $0x1e8] sm:$0xff]
      %v5809 = vld [vmem:[%s5 + $0x1f0] sm:$0xff]
      %v5810 = vld [vmem:[%s5 + $0x1f8] sm:$0xff]
      %v5811 = vld [vmem:[%s6] sm:$0xf]
      %v5813 = vlaneseq
      %v5814 = vshrl.u32 %v5813, 7
      %v5815 = vsub.s32 0, %v5814
      %v5816 = vrot.slane %v5811, %v5815
      %v5817 = vlaneseq
      %v5818 = vshrl.u32 %v5817, 7
      %v5819 = vsub.s32 1, %v5818
      %v5820 = vrot.slane %v5811, %v5819
      %v5821 = vlaneseq
      %v5822 = vshrl.u32 %v5821, 7
      %v5823 = vsub.s32 2, %v5822
      %v5824 = vrot.slane %v5811, %v5823
      %v5825 = vlaneseq
      %v5826 = vshrl.u32 %v5825, 7
      %v5827 = vsub.s32 3, %v5826
      %v5828 = vrot.slane %v5811, %v5827
      %5833 = vmatprep.subr.mxu0 %v5808
      %5834 = vmatpush1.msra.mxu0 %v5807
      %5835 = vmatprep.subr.mxu0 %v5804
      %5836 = vmatpush1.msra.mxu0 %v5803
      %5837 = vmatprep.subr.mxu0 %v5800
      %5838 = vmatpush1.msra.mxu0 %v5799
      %5839 = vmatprep.subr.mxu0 %v5796
      %5840 = vmatpush1.msra.mxu0 %v5795
      %5841 = vmatprep.subr.mxu0 %v5792
      %5842 = vmatpush1.msra.mxu0 %v5791
      %5843 = vmatprep.subr.mxu0 %v5788
      %5844 = vmatpush1.msra.mxu0 %v5787
      %5845 = vmatprep.subr.mxu0 %v5784
      %5846 = vmatpush1.msra.mxu0 %v5783
      %5847 = vmatprep.subr.mxu0 %v5780
      %5848 = vmatpush1.msra.mxu0 %v5779
      %5849 = vmatprep.subr.mxu0 %v5776
      %5850 = vmatpush1.msra.mxu0 %v5775
      %5851 = vmatprep.subr.mxu0 %v5772
      %5852 = vmatpush1.msra.mxu0 %v5771
      %5853 = vmatprep.subr.mxu0 %v5768
      %5854 = vmatpush1.msra.mxu0 %v5767
      %5855 = vmatprep.subr.mxu0 %v5764
      %5856 = vmatpush1.msra.mxu0 %v5763
      %5857 = vmatprep.subr.mxu0 %v5760
      %5858 = vmatpush1.msra.mxu0 %v5759
      %5859 = vmatprep.subr.mxu0 %v5756
      %5860 = vmatpush1.msra.mxu0 %v5755
      %5861 = vmatprep.subr.mxu0 %v5752
      %5862 = vmatpush1.msra.mxu0 %v5751
      %5863 = vmatprep.subr.mxu0 %v5748
      %5864 = vmatpush1.msra.mxu0 %v5747
      %5865 = vmatprep.subr.mxu0 0.0
      %5866 = vmatpush2.msra.mxu0 0.0
      %5867 = vmatprep.subr.mxu0 0.0
      %5868 = vmatpush2.msra.mxu0 0.0
      %5869 = vmatprep.subr.mxu0 0.0
      %5870 = vmatpush2.msra.mxu0 0.0
      %5871 = vmatprep.subr.mxu0 0.0
      %5872 = vmatpush2.msra.mxu0 0.0
      %5873 = vmatprep.subr.mxu0 0.0
      %5874 = vmatpush2.msra.mxu0 0.0
      %5875 = vmatprep.subr.mxu0 0.0
      %5876 = vmatpush2.msra.mxu0 0.0
      %5877 = vmatprep.subr.mxu0 0.0
      %5878 = vmatpush2.msra.mxu0 0.0
      %5879 = vmatprep.subr.mxu0 0.0
      %5880 = vmatpush2.msra.mxu0 0.0
      %5881 = vmatprep.subr.mxu0 0.0
      %5882 = vmatpush2.msra.mxu0 0.0
      %5883 = vmatprep.subr.mxu0 0.0
      %5884 = vmatpush2.msra.mxu0 0.0
      %5885 = vmatprep.subr.mxu0 0.0
      %5886 = vmatpush2.msra.mxu0 0.0
      %5887 = vmatprep.subr.mxu0 0.0
      %5888 = vmatpush2.msra.mxu0 0.0
      %5889 = vmatprep.subr.mxu0 0.0
      %5890 = vmatpush2.msra.mxu0 0.0
      %5891 = vmatprep.subr.mxu0 0.0
      %5892 = vmatpush2.msra.mxu0 0.0
      %5893 = vmatprep.subr.mxu0 0.0
      %5894 = vmatpush2.msra.mxu0 0.0
      %5895 = vmatprep.subr.mxu0 0.0
      %5896 = vmatpush2.msra.mxu0 0.0
      %5897 = vmatprep.mubr.f32.mxu0 0.0
      %5898 = vmatmul.mubr.f32.gmra.mxu0 %v5715
      %v5899 = vpop.f32.mrf.mxu0
      %v5900 = vadd.f32 %v5816, %v5899
      %v5901 = vpop.f32.mrf.mxu0
      %v5902 = vadd.f32 %v5820, %v5901
      %5903 = vmatprep.mubr.f32.mxu0 0.0
      %5904 = vmatmul.mubr.f32.gmra.mxu0 %v5716
      %v5905 = vpop.f32.mrf.mxu0
      %v5906 = vadd.f32 %v5816, %v5905
      %v5907 = vpop.f32.mrf.mxu0
      %v5908 = vadd.f32 %v5820, %v5907
      %5909 = vmatprep.mubr.f32.mxu0 0.0
      %5910 = vmatmul.mubr.f32.gmra.mxu0 %v5717
      %v5911 = vpop.f32.mrf.mxu0
      %v5912 = vadd.f32 %v5816, %v5911
      %v5913 = vpop.f32.mrf.mxu0
      %v5914 = vadd.f32 %v5820, %v5913
      %5915 = vmatprep.mubr.f32.mxu0 0.0
      %5916 = vmatmul.mubr.f32.gmra.mxu0 %v5718
      %v5917 = vpop.f32.mrf.mxu0
      %v5918 = vadd.f32 %v5816, %v5917
      %v5919 = vpop.f32.mrf.mxu0
      %v5920 = vadd.f32 %v5820, %v5919
      %5921 = vmatprep.mubr.f32.mxu0 0.0
      %5922 = vmatmul.mubr.f32.gmra.mxu0 %v5719
      %v5923 = vpop.f32.mrf.mxu0
      %v5924 = vadd.f32 %v5816, %v5923
      %v5925 = vpop.f32.mrf.mxu0
      %v5926 = vadd.f32 %v5820, %v5925
      %5927 = vmatprep.mubr.f32.mxu0 0.0
      %5928 = vmatmul.mubr.f32.gmra.mxu0 %v5720
      %v5929 = vpop.f32.mrf.mxu0
      %v5930 = vadd.f32 %v5816, %v5929
      %v5931 = vpop.f32.mrf.mxu0
      %v5932 = vadd.f32 %v5820, %v5931
      %5933 = vmatprep.mubr.f32.mxu0 0.0
      %5934 = vmatmul.mubr.f32.gmra.mxu0 %v5721
      %v5935 = vpop.f32.mrf.mxu0
      %v5936 = vadd.f32 %v5816, %v5935
      %v5937 = vpop.f32.mrf.mxu0
      %v5938 = vadd.f32 %v5820, %v5937
      %5939 = vmatprep.mubr.f32.mxu0 0.0
      %5940 = vmatmul.mubr.f32.gmra.mxu0 %v5722
      %v5941 = vpop.f32.mrf.mxu0
      %v5942 = vadd.f32 %v5816, %v5941
      %v5943 = vpop.f32.mrf.mxu0
      %v5944 = vadd.f32 %v5820, %v5943
      %5945 = vmatprep.mubr.f32.mxu0 0.0
      %5946 = vmatmul.mubr.f32.gmra.mxu0 %v5723
      %v5947 = vpop.f32.mrf.mxu0
      %v5948 = vadd.f32 %v5816, %v5947
      %v5949 = vpop.f32.mrf.mxu0
      %v5950 = vadd.f32 %v5820, %v5949
      %5951 = vmatprep.mubr.f32.mxu0 0.0
      %5952 = vmatmul.mubr.f32.gmra.mxu0 %v5724
      %v5953 = vpop.f32.mrf.mxu0
      %v5954 = vadd.f32 %v5816, %v5953
      %v5955 = vpop.f32.mrf.mxu0
      %v5956 = vadd.f32 %v5820, %v5955
      %5957 = vmatprep.mubr.f32.mxu0 0.0
      %5958 = vmatmul.mubr.f32.gmra.mxu0 %v5725
      %v5959 = vpop.f32.mrf.mxu0
      %v5960 = vadd.f32 %v5816, %v5959
      %v5961 = vpop.f32.mrf.mxu0
      %v5962 = vadd.f32 %v5820, %v5961
      %5963 = vmatprep.mubr.f32.mxu0 0.0
      %5964 = vmatmul.mubr.f32.gmra.mxu0 %v5726
      %v5965 = vpop.f32.mrf.mxu0
      %v5966 = vadd.f32 %v5816, %v5965
      %v5967 = vpop.f32.mrf.mxu0
      %v5968 = vadd.f32 %v5820, %v5967
      %5969 = vmatprep.mubr.f32.mxu0 0.0
      %5970 = vmatmul.mubr.f32.gmra.mxu0 %v5727
      %v5971 = vpop.f32.mrf.mxu0
      %v5972 = vadd.f32 %v5816, %v5971
      %v5973 = vpop.f32.mrf.mxu0
      %v5974 = vadd.f32 %v5820, %v5973
      %5975 = vmatprep.mubr.f32.mxu0 0.0
      %5976 = vmatmul.mubr.f32.gmra.mxu0 %v5728
      %v5977 = vpop.f32.mrf.mxu0
      %v5978 = vadd.f32 %v5816, %v5977
      %v5979 = vpop.f32.mrf.mxu0
      %v5980 = vadd.f32 %v5820, %v5979
      %5981 = vmatprep.mubr.f32.mxu0 0.0
      %5982 = vmatmul.mubr.f32.gmra.mxu0 %v5729
      %v5983 = vpop.f32.mrf.mxu0
      %v5984 = vadd.f32 %v5816, %v5983
      %v5985 = vpop.f32.mrf.mxu0
      %v5986 = vadd.f32 %v5820, %v5985
      %5987 = vmatprep.mubr.f32.mxu0 0.0
      %5988 = vmatmul.mubr.f32.gmra.mxu0 %v5730
      %v5989 = vpop.f32.mrf.mxu0
      %v5990 = vadd.f32 %v5816, %v5989
      %v5991 = vpop.f32.mrf.mxu0
      %v5992 = vadd.f32 %v5820, %v5991
      %5993 = vmatprep.mubr.f32.mxu0 0.0
      %5994 = vmatmul.mubr.f32.gmra.mxu0 %v5731
      %v5995 = vpop.f32.mrf.mxu0
      %v5996 = vadd.f32 %v5816, %v5995
      %v5997 = vpop.f32.mrf.mxu0
      %v5998 = vadd.f32 %v5820, %v5997
      %5999 = vmatprep.mubr.f32.mxu0 0.0
      %6000 = vmatmul.mubr.f32.gmra.mxu0 %v5732
      %v6001 = vpop.f32.mrf.mxu0
      %v6002 = vadd.f32 %v5816, %v6001
      %v6003 = vpop.f32.mrf.mxu0
      %v6004 = vadd.f32 %v5820, %v6003
      %6005 = vmatprep.mubr.f32.mxu0 0.0
      %6006 = vmatmul.mubr.f32.gmra.mxu0 %v5733
      %v6007 = vpop.f32.mrf.mxu0
      %v6008 = vadd.f32 %v5816, %v6007
      %v6009 = vpop.f32.mrf.mxu0
      %v6010 = vadd.f32 %v5820, %v6009
      %6011 = vmatprep.mubr.f32.mxu0 0.0
      %6012 = vmatmul.mubr.f32.gmra.mxu0 %v5734
      %v6013 = vpop.f32.mrf.mxu0
      %v6014 = vadd.f32 %v5816, %v6013
      %v6015 = vpop.f32.mrf.mxu0
      %v6016 = vadd.f32 %v5820, %v6015
      %6017 = vmatprep.mubr.f32.mxu0 0.0
      %6018 = vmatmul.mubr.f32.gmra.mxu0 %v5735
      %v6019 = vpop.f32.mrf.mxu0
      %v6020 = vadd.f32 %v5816, %v6019
      %v6021 = vpop.f32.mrf.mxu0
      %v6022 = vadd.f32 %v5820, %v6021
      %6023 = vmatprep.mubr.f32.mxu0 0.0
      %6024 = vmatmul.mubr.f32.gmra.mxu0 %v5736
      %v6025 = vpop.f32.mrf.mxu0
      %v6026 = vadd.f32 %v5816, %v6025
      %v6027 = vpop.f32.mrf.mxu0
      %v6028 = vadd.f32 %v5820, %v6027
      %6029 = vmatprep.mubr.f32.mxu0 0.0
      %6030 = vmatmul.mubr.f32.gmra.mxu0 %v5737
      %v6031 = vpop.f32.mrf.mxu0
      %v6032 = vadd.f32 %v5816, %v6031
      %v6033 = vpop.f32.mrf.mxu0
      %v6034 = vadd.f32 %v5820, %v6033
      %6035 = vmatprep.mubr.f32.mxu0 0.0
      %6036 = vmatmul.mubr.f32.gmra.mxu0 %v5738
      %v6037 = vpop.f32.mrf.mxu0
      %v6038 = vadd.f32 %v5816, %v6037
      %v6039 = vpop.f32.mrf.mxu0
      %v6040 = vadd.f32 %v5820, %v6039
      %6041 = vmatprep.mubr.f32.mxu0 0.0
      %6042 = vmatmul.mubr.f32.gmra.mxu0 %v5739
      %v6043 = vpop.f32.mrf.mxu0
      %v6044 = vadd.f32 %v5816, %v6043
      %v6045 = vpop.f32.mrf.mxu0
      %v6046 = vadd.f32 %v5820, %v6045
      %6047 = vmatprep.mubr.f32.mxu0 0.0
      %6048 = vmatmul.mubr.f32.gmra.mxu0 %v5740
      %v6049 = vpop.f32.mrf.mxu0
      %v6050 = vadd.f32 %v5816, %v6049
      %v6051 = vpop.f32.mrf.mxu0
      %v6052 = vadd.f32 %v5820, %v6051
      %6053 = vmatprep.mubr.f32.mxu0 0.0
      %6054 = vmatmul.mubr.f32.gmra.mxu0 %v5741
      %v6055 = vpop.f32.mrf.mxu0
      %v6056 = vadd.f32 %v5816, %v6055
      %v6057 = vpop.f32.mrf.mxu0
      %v6058 = vadd.f32 %v5820, %v6057
      %6059 = vmatprep.mubr.f32.mxu0 0.0
      %6060 = vmatmul.mubr.f32.gmra.mxu0 %v5742
      %v6061 = vpop.f32.mrf.mxu0
      %v6062 = vadd.f32 %v5816, %v6061
      %v6063 = vpop.f32.mrf.mxu0
      %v6064 = vadd.f32 %v5820, %v6063
      %6065 = vmatprep.mubr.f32.mxu0 0.0
      %6066 = vmatmul.mubr.f32.gmra.mxu0 %v5743
      %v6067 = vpop.f32.mrf.mxu0
      %v6068 = vadd.f32 %v5816, %v6067
      %v6069 = vpop.f32.mrf.mxu0
      %v6070 = vadd.f32 %v5820, %v6069
      %6071 = vmatprep.mubr.f32.mxu0 0.0
      %6072 = vmatmul.mubr.f32.gmra.mxu0 %v5744
      %v6073 = vpop.f32.mrf.mxu0
      %v6074 = vadd.f32 %v5816, %v6073
      %v6075 = vpop.f32.mrf.mxu0
      %v6076 = vadd.f32 %v5820, %v6075
      %6077 = vmatprep.mubr.f32.mxu0 0.0
      %6078 = vmatmul.mubr.f32.gmra.mxu0 %v5745
      %v6079 = vpop.f32.mrf.mxu0
      %v6080 = vadd.f32 %v5816, %v6079
      %v6081 = vpop.f32.mrf.mxu0
      %v6082 = vadd.f32 %v5820, %v6081
      %6083 = vmatprep.mubr.f32.mxu0 0.0
      %6084 = vmatmul.mubr.f32.gmra.mxu0 %v5746
      %v6085 = vpop.f32.mrf.mxu0
      %v6086 = vadd.f32 %v5816, %v6085
      %v6087 = vpop.f32.mrf.mxu0
      %v6088 = vadd.f32 %v5820, %v6087
      %6089 = vdwg.mxu0
      %6090 = vmatprep.subr.mxu0 %v5810
      %6091 = vmatpush1.msra.mxu0 %v5809
      %6092 = vmatprep.subr.mxu0 %v5806
      %6093 = vmatpush1.msra.mxu0 %v5805
      %6094 = vmatprep.subr.mxu0 %v5802
      %6095 = vmatpush1.msra.mxu0 %v5801
      %6096 = vmatprep.subr.mxu0 %v5798
      %6097 = vmatpush1.msra.mxu0 %v5797
      %6098 = vmatprep.subr.mxu0 %v5794
      %6099 = vmatpush1.msra.mxu0 %v5793
      %6100 = vmatprep.subr.mxu0 %v5790
      %6101 = vmatpush1.msra.mxu0 %v5789
      %6102 = vmatprep.subr.mxu0 %v5786
      %6103 = vmatpush1.msra.mxu0 %v5785
      %6104 = vmatprep.subr.mxu0 %v5782
      %6105 = vmatpush1.msra.mxu0 %v5781
      %6106 = vmatprep.subr.mxu0 %v5778
      %6107 = vmatpush1.msra.mxu0 %v5777
      %6108 = vmatprep.subr.mxu0 %v5774
      %6109 = vmatpush1.msra.mxu0 %v5773
      %6110 = vmatprep.subr.mxu0 %v5770
      %6111 = vmatpush1.msra.mxu0 %v5769
      %6112 = vmatprep.subr.mxu0 %v5766
      %6113 = vmatpush1.msra.mxu0 %v5765
      %6114 = vmatprep.subr.mxu0 %v5762
      %6115 = vmatpush1.msra.mxu0 %v5761
      %6116 = vmatprep.subr.mxu0 %v5758
      %6117 = vmatpush1.msra.mxu0 %v5757
      %6118 = vmatprep.subr.mxu0 %v5754
      %6119 = vmatpush1.msra.mxu0 %v5753
      %6120 = vmatprep.subr.mxu0 %v5750
      %6121 = vmatpush1.msra.mxu0 %v5749
      %6122 = vmatprep.subr.mxu0 0.0
      %6123 = vmatpush2.msra.mxu0 0.0
      %6124 = vmatprep.subr.mxu0 0.0
      %6125 = vmatpush2.msra.mxu0 0.0
      %6126 = vmatprep.subr.mxu0 0.0
      %6127 = vmatpush2.msra.mxu0 0.0
      %6128 = vmatprep.subr.mxu0 0.0
      %6129 = vmatpush2.msra.mxu0 0.0
      %6130 = vmatprep.subr.mxu0 0.0
      %6131 = vmatpush2.msra.mxu0 0.0
      %6132 = vmatprep.subr.mxu0 0.0
      %6133 = vmatpush2.msra.mxu0 0.0
      %6134 = vmatprep.subr.mxu0 0.0
      %6135 = vmatpush2.msra.mxu0 0.0
      %6136 = vmatprep.subr.mxu0 0.0
      %6137 = vmatpush2.msra.mxu0 0.0
      %6138 = vmatprep.subr.mxu0 0.0
      %6139 = vmatpush2.msra.mxu0 0.0
      %6140 = vmatprep.subr.mxu0 0.0
      %6141 = vmatpush2.msra.mxu0 0.0
      %6142 = vmatprep.subr.mxu0 0.0
      %6143 = vmatpush2.msra.mxu0 0.0
      %6144 = vmatprep.subr.mxu0 0.0
      %6145 = vmatpush2.msra.mxu0 0.0
      %6146 = vmatprep.subr.mxu0 0.0
      %6147 = vmatpush2.msra.mxu0 0.0
      %6148 = vmatprep.subr.mxu0 0.0
      %6149 = vmatpush2.msra.mxu0 0.0
      %6150 = vmatprep.subr.mxu0 0.0
      %6151 = vmatpush2.msra.mxu0 0.0
      %6152 = vmatprep.subr.mxu0 0.0
      %6153 = vmatpush2.msra.mxu0 0.0
      %6154 = vmatprep.mubr.f32.mxu0 0.0
      %6155 = vmatmul.mubr.f32.gmra.mxu0 %v5715
      %v6156 = vpop.f32.mrf.mxu0
      %v6157 = vadd.f32 %v5824, %v6156
      %v6158 = vpop.f32.mrf.mxu0
      %v6159 = vadd.f32 %v5828, %v6158
      %6160 = vmatprep.mubr.f32.mxu0 0.0
      %6161 = vmatmul.mubr.f32.gmra.mxu0 %v5716
      %v6162 = vpop.f32.mrf.mxu0
      %v6163 = vadd.f32 %v5824, %v6162
      %v6164 = vpop.f32.mrf.mxu0
      %v6165 = vadd.f32 %v5828, %v6164
      %6166 = vmatprep.mubr.f32.mxu0 0.0
      %6167 = vmatmul.mubr.f32.gmra.mxu0 %v5717
      %v6168 = vpop.f32.mrf.mxu0
      %v6169 = vadd.f32 %v5824, %v6168
      %v6170 = vpop.f32.mrf.mxu0
      %v6171 = vadd.f32 %v5828, %v6170
      %6172 = vmatprep.mubr.f32.mxu0 0.0
      %6173 = vmatmul.mubr.f32.gmra.mxu0 %v5718
      %v6174 = vpop.f32.mrf.mxu0
      %v6175 = vadd.f32 %v5824, %v6174
      %v6176 = vpop.f32.mrf.mxu0
      %v6177 = vadd.f32 %v5828, %v6176
      %6178 = vmatprep.mubr.f32.mxu0 0.0
      %6179 = vmatmul.mubr.f32.gmra.mxu0 %v5719
      %v6180 = vpop.f32.mrf.mxu0
      %v6181 = vadd.f32 %v5824, %v6180
      %v6182 = vpop.f32.mrf.mxu0
      %v6183 = vadd.f32 %v5828, %v6182
      %6184 = vmatprep.mubr.f32.mxu0 0.0
      %6185 = vmatmul.mubr.f32.gmra.mxu0 %v5720
      %v6186 = vpop.f32.mrf.mxu0
      %v6187 = vadd.f32 %v5824, %v6186
      %v6188 = vpop.f32.mrf.mxu0
      %v6189 = vadd.f32 %v5828, %v6188
      %6190 = vmatprep.mubr.f32.mxu0 0.0
      %6191 = vmatmul.mubr.f32.gmra.mxu0 %v5721
      %v6192 = vpop.f32.mrf.mxu0
      %v6193 = vadd.f32 %v5824, %v6192
      %v6194 = vpop.f32.mrf.mxu0
      %v6195 = vadd.f32 %v5828, %v6194
      %6196 = vmatprep.mubr.f32.mxu0 0.0
      %6197 = vmatmul.mubr.f32.gmra.mxu0 %v5722
      %v6198 = vpop.f32.mrf.mxu0
      %v6199 = vadd.f32 %v5824, %v6198
      %v6200 = vpop.f32.mrf.mxu0
      %v6201 = vadd.f32 %v5828, %v6200
      %6202 = vmatprep.mubr.f32.mxu0 0.0
      %6203 = vmatmul.mubr.f32.gmra.mxu0 %v5723
      %v6204 = vpop.f32.mrf.mxu0
      %v6205 = vadd.f32 %v5824, %v6204
      %v6206 = vpop.f32.mrf.mxu0
      %v6207 = vadd.f32 %v5828, %v6206
      %6208 = vmatprep.mubr.f32.mxu0 0.0
      %6209 = vmatmul.mubr.f32.gmra.mxu0 %v5724
      %v6210 = vpop.f32.mrf.mxu0
      %v6211 = vadd.f32 %v5824, %v6210
      %v6212 = vpop.f32.mrf.mxu0
      %v6213 = vadd.f32 %v5828, %v6212
      %6214 = vmatprep.mubr.f32.mxu0 0.0
      %6215 = vmatmul.mubr.f32.gmra.mxu0 %v5725
      %v6216 = vpop.f32.mrf.mxu0
      %v6217 = vadd.f32 %v5824, %v6216
      %v6218 = vpop.f32.mrf.mxu0
      %v6219 = vadd.f32 %v5828, %v6218
      %6220 = vmatprep.mubr.f32.mxu0 0.0
      %6221 = vmatmul.mubr.f32.gmra.mxu0 %v5726
      %v6222 = vpop.f32.mrf.mxu0
      %v6223 = vadd.f32 %v5824, %v6222
      %v6224 = vpop.f32.mrf.mxu0
      %v6225 = vadd.f32 %v5828, %v6224
      %6226 = vmatprep.mubr.f32.mxu0 0.0
      %6227 = vmatmul.mubr.f32.gmra.mxu0 %v5727
      %v6228 = vpop.f32.mrf.mxu0
      %v6229 = vadd.f32 %v5824, %v6228
      %v6230 = vpop.f32.mrf.mxu0
      %v6231 = vadd.f32 %v5828, %v6230
      %6232 = vmatprep.mubr.f32.mxu0 0.0
      %6233 = vmatmul.mubr.f32.gmra.mxu0 %v5728
      %v6234 = vpop.f32.mrf.mxu0
      %v6235 = vadd.f32 %v5824, %v6234
      %v6236 = vpop.f32.mrf.mxu0
      %v6237 = vadd.f32 %v5828, %v6236
      %6238 = vmatprep.mubr.f32.mxu0 0.0
      %6239 = vmatmul.mubr.f32.gmra.mxu0 %v5729
      %v6240 = vpop.f32.mrf.mxu0
      %v6241 = vadd.f32 %v5824, %v6240
      %v6242 = vpop.f32.mrf.mxu0
      %v6243 = vadd.f32 %v5828, %v6242
      %6244 = vmatprep.mubr.f32.mxu0 0.0
      %6245 = vmatmul.mubr.f32.gmra.mxu0 %v5730
      %v6246 = vpop.f32.mrf.mxu0
      %v6247 = vadd.f32 %v5824, %v6246
      %v6248 = vpop.f32.mrf.mxu0
      %v6249 = vadd.f32 %v5828, %v6248
      %6250 = vmatprep.mubr.f32.mxu0 0.0
      %6251 = vmatmul.mubr.f32.gmra.mxu0 %v5731
      %v6252 = vpop.f32.mrf.mxu0
      %v6253 = vadd.f32 %v5824, %v6252
      %v6254 = vpop.f32.mrf.mxu0
      %v6255 = vadd.f32 %v5828, %v6254
      %6256 = vmatprep.mubr.f32.mxu0 0.0
      %6257 = vmatmul.mubr.f32.gmra.mxu0 %v5732
      %v6258 = vpop.f32.mrf.mxu0
      %v6259 = vadd.f32 %v5824, %v6258
      %v6260 = vpop.f32.mrf.mxu0
      %v6261 = vadd.f32 %v5828, %v6260
      %6262 = vmatprep.mubr.f32.mxu0 0.0
      %6263 = vmatmul.mubr.f32.gmra.mxu0 %v5733
      %v6264 = vpop.f32.mrf.mxu0
      %v6265 = vadd.f32 %v5824, %v6264
      %v6266 = vpop.f32.mrf.mxu0
      %v6267 = vadd.f32 %v5828, %v6266
      %6268 = vmatprep.mubr.f32.mxu0 0.0
      %6269 = vmatmul.mubr.f32.gmra.mxu0 %v5734
      %v6270 = vpop.f32.mrf.mxu0
      %v6271 = vadd.f32 %v5824, %v6270
      %v6272 = vpop.f32.mrf.mxu0
      %v6273 = vadd.f32 %v5828, %v6272
      %6274 = vmatprep.mubr.f32.mxu0 0.0
      %6275 = vmatmul.mubr.f32.gmra.mxu0 %v5735
      %v6276 = vpop.f32.mrf.mxu0
      %v6277 = vadd.f32 %v5824, %v6276
      %v6278 = vpop.f32.mrf.mxu0
      %v6279 = vadd.f32 %v5828, %v6278
      %6280 = vmatprep.mubr.f32.mxu0 0.0
      %6281 = vmatmul.mubr.f32.gmra.mxu0 %v5736
      %v6282 = vpop.f32.mrf.mxu0
      %v6283 = vadd.f32 %v5824, %v6282
      %v6284 = vpop.f32.mrf.mxu0
      %v6285 = vadd.f32 %v5828, %v6284
      %6286 = vmatprep.mubr.f32.mxu0 0.0
      %6287 = vmatmul.mubr.f32.gmra.mxu0 %v5737
      %v6288 = vpop.f32.mrf.mxu0
      %v6289 = vadd.f32 %v5824, %v6288
      %v6290 = vpop.f32.mrf.mxu0
      %v6291 = vadd.f32 %v5828, %v6290
      %6292 = vmatprep.mubr.f32.mxu0 0.0
      %6293 = vmatmul.mubr.f32.gmra.mxu0 %v5738
      %v6294 = vpop.f32.mrf.mxu0
      %v6295 = vadd.f32 %v5824, %v6294
      %v6296 = vpop.f32.mrf.mxu0
      %v6297 = vadd.f32 %v5828, %v6296
      %6298 = vmatprep.mubr.f32.mxu0 0.0
      %6299 = vmatmul.mubr.f32.gmra.mxu0 %v5739
      %v6300 = vpop.f32.mrf.mxu0
      %v6301 = vadd.f32 %v5824, %v6300
      %v6302 = vpop.f32.mrf.mxu0
      %v6303 = vadd.f32 %v5828, %v6302
      %6304 = vmatprep.mubr.f32.mxu0 0.0
      %6305 = vmatmul.mubr.f32.gmra.mxu0 %v5740
      %v6306 = vpop.f32.mrf.mxu0
      %v6307 = vadd.f32 %v5824, %v6306
      %v6308 = vpop.f32.mrf.mxu0
      %v6309 = vadd.f32 %v5828, %v6308
      %6310 = vmatprep.mubr.f32.mxu0 0.0
      %6311 = vmatmul.mubr.f32.gmra.mxu0 %v5741
      %v6312 = vpop.f32.mrf.mxu0
      %v6313 = vadd.f32 %v5824, %v6312
      %v6314 = vpop.f32.mrf.mxu0
      %v6315 = vadd.f32 %v5828, %v6314
      %6316 = vmatprep.mubr.f32.mxu0 0.0
      %6317 = vmatmul.mubr.f32.gmra.mxu0 %v5742
      %v6318 = vpop.f32.mrf.mxu0
      %v6319 = vadd.f32 %v5824, %v6318
      %v6320 = vpop.f32.mrf.mxu0
      %v6321 = vadd.f32 %v5828, %v6320
      %6322 = vmatprep.mubr.f32.mxu0 0.0
      %6323 = vmatmul.mubr.f32.gmra.mxu0 %v5743
      %v6324 = vpop.f32.mrf.mxu0
      %v6325 = vadd.f32 %v5824, %v6324
      %v6326 = vpop.f32.mrf.mxu0
      %v6327 = vadd.f32 %v5828, %v6326
      %6328 = vmatprep.mubr.f32.mxu0 0.0
      %6329 = vmatmul.mubr.f32.gmra.mxu0 %v5744
      %v6330 = vpop.f32.mrf.mxu0
      %v6331 = vadd.f32 %v5824, %v6330
      %v6332 = vpop.f32.mrf.mxu0
      %v6333 = vadd.f32 %v5828, %v6332
      %6334 = vmatprep.mubr.f32.mxu0 0.0
      %6335 = vmatmul.mubr.f32.gmra.mxu0 %v5745
      %v6336 = vpop.f32.mrf.mxu0
      %v6337 = vadd.f32 %v5824, %v6336
      %v6338 = vpop.f32.mrf.mxu0
      %v6339 = vadd.f32 %v5828, %v6338
      %6340 = vmatprep.mubr.f32.mxu0 0.0
      %6341 = vmatmul.mubr.f32.gmra.mxu0 %v5746
      %v6342 = vpop.f32.mrf.mxu0
      %v6343 = vadd.f32 %v5824, %v6342
      %v6344 = vpop.f32.mrf.mxu0
      %v6345 = vadd.f32 %v5828, %v6344
      %6346 = vdwg.mxu0
      %v6347 = vmul.f32 %v5900, 0.5
      %v6348 = vmul.f32 %v5902, 0.5
      %v6349 = vmul.f32 %v6157, 0.5
      %v6350 = vmul.f32 %v6159, 0.5
      %v6351 = vmul.f32 %v5906, 0.5
      %v6352 = vmul.f32 %v5908, 0.5
      %v6353 = vmul.f32 %v6163, 0.5
      %v6354 = vmul.f32 %v6165, 0.5
      %v6355 = vmul.f32 %v5912, 0.5
      %v6356 = vmul.f32 %v5914, 0.5
      %v6357 = vmul.f32 %v6169, 0.5
      %v6358 = vmul.f32 %v6171, 0.5
      %v6359 = vmul.f32 %v5918, 0.5
      %v6360 = vmul.f32 %v5920, 0.5
      %v6361 = vmul.f32 %v6175, 0.5
      %v6362 = vmul.f32 %v6177, 0.5
      %v6363 = vmul.f32 %v5924, 0.5
      %v6364 = vmul.f32 %v5926, 0.5
      %v6365 = vmul.f32 %v6181, 0.5
      %v6366 = vmul.f32 %v6183, 0.5
      %v6367 = vmul.f32 %v5930, 0.5
      %v6368 = vmul.f32 %v5932, 0.5
      %v6369 = vmul.f32 %v6187, 0.5
      %v6370 = vmul.f32 %v6189, 0.5
      %v6371 = vmul.f32 %v5936, 0.5
      %v6372 = vmul.f32 %v5938, 0.5
      %v6373 = vmul.f32 %v6193, 0.5
      %v6374 = vmul.f32 %v6195, 0.5
      %v6375 = vmul.f32 %v5942, 0.5
      %v6376 = vmul.f32 %v5944, 0.5
      %v6377 = vmul.f32 %v6199, 0.5
      %v6378 = vmul.f32 %v6201, 0.5
      %v6379 = vmul.f32 %v5948, 0.5
      %v6380 = vmul.f32 %v5950, 0.5
      %v6381 = vmul.f32 %v6205, 0.5
      %v6382 = vmul.f32 %v6207, 0.5
      %v6383 = vmul.f32 %v5954, 0.5
      %v6384 = vmul.f32 %v5956, 0.5
      %v6385 = vmul.f32 %v6211, 0.5
      %v6386 = vmul.f32 %v6213, 0.5
      %v6387 = vmul.f32 %v5960, 0.5
      %v6388 = vmul.f32 %v5962, 0.5
      %v6389 = vmul.f32 %v6217, 0.5
      %v6390 = vmul.f32 %v6219, 0.5
      %v6391 = vmul.f32 %v5966, 0.5
      %v6392 = vmul.f32 %v5968, 0.5
      %v6393 = vmul.f32 %v6223, 0.5
      %v6394 = vmul.f32 %v6225, 0.5
      %v6395 = vmul.f32 %v5972, 0.5
      %v6396 = vmul.f32 %v5974, 0.5
      %v6397 = vmul.f32 %v6229, 0.5
      %v6398 = vmul.f32 %v6231, 0.5
      %v6399 = vmul.f32 %v5978, 0.5
      %v6400 = vmul.f32 %v5980, 0.5
      %v6401 = vmul.f32 %v6235, 0.5
      %v6402 = vmul.f32 %v6237, 0.5
      %v6403 = vmul.f32 %v5984, 0.5
      %v6404 = vmul.f32 %v5986, 0.5
      %v6405 = vmul.f32 %v6241, 0.5
      %v6406 = vmul.f32 %v6243, 0.5
      %v6407 = vmul.f32 %v5990, 0.5
      %v6408 = vmul.f32 %v5992, 0.5
      %v6409 = vmul.f32 %v6247, 0.5
      %v6410 = vmul.f32 %v6249, 0.5
      %v6411 = vmul.f32 %v5996, 0.5
      %v6412 = vmul.f32 %v5998, 0.5
      %v6413 = vmul.f32 %v6253, 0.5
      %v6414 = vmul.f32 %v6255, 0.5
      %v6415 = vmul.f32 %v6002, 0.5
      %v6416 = vmul.f32 %v6004, 0.5
      %v6417 = vmul.f32 %v6259, 0.5
      %v6418 = vmul.f32 %v6261, 0.5
      %v6419 = vmul.f32 %v6008, 0.5
      %v6420 = vmul.f32 %v6010, 0.5
      %v6421 = vmul.f32 %v6265, 0.5
      %v6422 = vmul.f32 %v6267, 0.5
      %v6423 = vmul.f32 %v6014, 0.5
      %v6424 = vmul.f32 %v6016, 0.5
      %v6425 = vmul.f32 %v6271, 0.5
      %v6426 = vmul.f32 %v6273, 0.5
      %v6427 = vmul.f32 %v6020, 0.5
      %v6428 = vmul.f32 %v6022, 0.5
      %v6429 = vmul.f32 %v6277, 0.5
      %v6430 = vmul.f32 %v6279, 0.5
      %v6431 = vmul.f32 %v6026, 0.5
      %v6432 = vmul.f32 %v6028, 0.5
      %v6433 = vmul.f32 %v6283, 0.5
      %v6434 = vmul.f32 %v6285, 0.5
      %v6435 = vmul.f32 %v6032, 0.5
      %v6436 = vmul.f32 %v6034, 0.5
      %v6437 = vmul.f32 %v6289, 0.5
      %v6438 = vmul.f32 %v6291, 0.5
      %v6439 = vmul.f32 %v6038, 0.5
      %v6440 = vmul.f32 %v6040, 0.5
      %v6441 = vmul.f32 %v6295, 0.5
      %v6442 = vmul.f32 %v6297, 0.5
      %v6443 = vmul.f32 %v6044, 0.5
      %v6444 = vmul.f32 %v6046, 0.5
      %v6445 = vmul.f32 %v6301, 0.5
      %v6446 = vmul.f32 %v6303, 0.5
      %v6447 = vmul.f32 %v6050, 0.5
      %v6448 = vmul.f32 %v6052, 0.5
      %v6449 = vmul.f32 %v6307, 0.5
      %v6450 = vmul.f32 %v6309, 0.5
      %v6451 = vmul.f32 %v6056, 0.5
      %v6452 = vmul.f32 %v6058, 0.5
      %v6453 = vmul.f32 %v6313, 0.5
      %v6454 = vmul.f32 %v6315, 0.5
      %v6455 = vmul.f32 %v6062, 0.5
      %v6456 = vmul.f32 %v6064, 0.5
      %v6457 = vmul.f32 %v6319, 0.5
      %v6458 = vmul.f32 %v6321, 0.5
      %v6459 = vmul.f32 %v6068, 0.5
      %v6460 = vmul.f32 %v6070, 0.5
      %v6461 = vmul.f32 %v6325, 0.5
      %v6462 = vmul.f32 %v6327, 0.5
      %v6463 = vmul.f32 %v6074, 0.5
      %v6464 = vmul.f32 %v6076, 0.5
      %v6465 = vmul.f32 %v6331, 0.5
      %v6466 = vmul.f32 %v6333, 0.5
      %v6467 = vmul.f32 %v6080, 0.5
      %v6468 = vmul.f32 %v6082, 0.5
      %v6469 = vmul.f32 %v6337, 0.5
      %v6470 = vmul.f32 %v6339, 0.5
      %v6471 = vmul.f32 %v6086, 0.5
      %v6472 = vmul.f32 %v6088, 0.5
      %v6473 = vmul.f32 %v6343, 0.5
      %v6474 = vmul.f32 %v6345, 0.5
      %v6475 = vrcp.pop 1.4142135
      %v6476 = vmul.f32 %v5900, %v6475
      %v6477 = vmul.f32 %v5902, %v6475
      %v6478 = vmul.f32 %v6157, %v6475
      %v6479 = vmul.f32 %v6159, %v6475
      %v6480 = vmul.f32 %v5906, %v6475
      %v6481 = vmul.f32 %v5908, %v6475
      %v6482 = vmul.f32 %v6163, %v6475
      %v6483 = vmul.f32 %v6165, %v6475
      %v6484 = vmul.f32 %v5912, %v6475
      %v6485 = vmul.f32 %v5914, %v6475
      %v6486 = vmul.f32 %v6169, %v6475
      %v6487 = vmul.f32 %v6171, %v6475
      %v6488 = vmul.f32 %v5918, %v6475
      %v6489 = vmul.f32 %v5920, %v6475
      %v6490 = vmul.f32 %v6175, %v6475
      %v6491 = vmul.f32 %v6177, %v6475
      %v6492 = vmul.f32 %v5924, %v6475
      %v6493 = vmul.f32 %v5926, %v6475
      %v6494 = vmul.f32 %v6181, %v6475
      %v6495 = vmul.f32 %v6183, %v6475
      %v6496 = vmul.f32 %v5930, %v6475
      %v6497 = vmul.f32 %v5932, %v6475
      %v6498 = vmul.f32 %v6187, %v6475
      %v6499 = vmul.f32 %v6189, %v6475
      %v6500 = vmul.f32 %v5936, %v6475
      %v6501 = vmul.f32 %v5938, %v6475
      %v6502 = vmul.f32 %v6193, %v6475
      %v6503 = vmul.f32 %v6195, %v6475
      %v6504 = vmul.f32 %v5942, %v6475
      %v6505 = vmul.f32 %v5944, %v6475
      %v6506 = vmul.f32 %v6199, %v6475
      %v6507 = vmul.f32 %v6201, %v6475
      %v6508 = vmul.f32 %v5948, %v6475
      %v6509 = vmul.f32 %v5950, %v6475
      %v6510 = vmul.f32 %v6205, %v6475
      %v6511 = vmul.f32 %v6207, %v6475
      %v6512 = vmul.f32 %v5954, %v6475
      %v6513 = vmul.f32 %v5956, %v6475
      %v6514 = vmul.f32 %v6211, %v6475
      %v6515 = vmul.f32 %v6213, %v6475
      %v6516 = vmul.f32 %v5960, %v6475
      %v6517 = vmul.f32 %v5962, %v6475
      %v6518 = vmul.f32 %v6217, %v6475
      %v6519 = vmul.f32 %v6219, %v6475
      %v6520 = vmul.f32 %v5966, %v6475
      %v6521 = vmul.f32 %v5968, %v6475
      %v6522 = vmul.f32 %v6223, %v6475
      %v6523 = vmul.f32 %v6225, %v6475
      %v6524 = vmul.f32 %v5972, %v6475
      %v6525 = vmul.f32 %v5974, %v6475
      %v6526 = vmul.f32 %v6229, %v6475
      %v6527 = vmul.f32 %v6231, %v6475
      %v6528 = vmul.f32 %v5978, %v6475
      %v6529 = vmul.f32 %v5980, %v6475
      %v6530 = vmul.f32 %v6235, %v6475
      %v6531 = vmul.f32 %v6237, %v6475
      %v6532 = vmul.f32 %v5984, %v6475
      %v6533 = vmul.f32 %v5986, %v6475
      %v6534 = vmul.f32 %v6241, %v6475
      %v6535 = vmul.f32 %v6243, %v6475
      %v6536 = vmul.f32 %v5990, %v6475
      %v6537 = vmul.f32 %v5992, %v6475
      %v6538 = vmul.f32 %v6247, %v6475
      %v6539 = vmul.f32 %v6249, %v6475
      %v6540 = vmul.f32 %v5996, %v6475
      %v6541 = vmul.f32 %v5998, %v6475
      %v6542 = vmul.f32 %v6253, %v6475
      %v6543 = vmul.f32 %v6255, %v6475
      %v6544 = vmul.f32 %v6002, %v6475
      %v6545 = vmul.f32 %v6004, %v6475
      %v6546 = vmul.f32 %v6259, %v6475
      %v6547 = vmul.f32 %v6261, %v6475
      %v6548 = vmul.f32 %v6008, %v6475
      %v6549 = vmul.f32 %v6010, %v6475
      %v6550 = vmul.f32 %v6265, %v6475
      %v6551 = vmul.f32 %v6267, %v6475
      %v6552 = vmul.f32 %v6014, %v6475
      %v6553 = vmul.f32 %v6016, %v6475
      %v6554 = vmul.f32 %v6271, %v6475
      %v6555 = vmul.f32 %v6273, %v6475
      %v6556 = vmul.f32 %v6020, %v6475
      %v6557 = vmul.f32 %v6022, %v6475
      %v6558 = vmul.f32 %v6277, %v6475
      %v6559 = vmul.f32 %v6279, %v6475
      %v6560 = vmul.f32 %v6026, %v6475
      %v6561 = vmul.f32 %v6028, %v6475
      %v6562 = vmul.f32 %v6283, %v6475
      %v6563 = vmul.f32 %v6285, %v6475
      %v6564 = vmul.f32 %v6032, %v6475
      %v6565 = vmul.f32 %v6034, %v6475
      %v6566 = vmul.f32 %v6289, %v6475
      %v6567 = vmul.f32 %v6291, %v6475
      %v6568 = vmul.f32 %v6038, %v6475
      %v6569 = vmul.f32 %v6040, %v6475
      %v6570 = vmul.f32 %v6295, %v6475
      %v6571 = vmul.f32 %v6297, %v6475
      %v6572 = vmul.f32 %v6044, %v6475
      %v6573 = vmul.f32 %v6046, %v6475
      %v6574 = vmul.f32 %v6301, %v6475
      %v6575 = vmul.f32 %v6303, %v6475
      %v6576 = vmul.f32 %v6050, %v6475
      %v6577 = vmul.f32 %v6052, %v6475
      %v6578 = vmul.f32 %v6307, %v6475
      %v6579 = vmul.f32 %v6309, %v6475
      %v6580 = vmul.f32 %v6056, %v6475
      %v6581 = vmul.f32 %v6058, %v6475
      %v6582 = vmul.f32 %v6313, %v6475
      %v6583 = vmul.f32 %v6315, %v6475
      %v6584 = vmul.f32 %v6062, %v6475
      %v6585 = vmul.f32 %v6064, %v6475
      %v6586 = vmul.f32 %v6319, %v6475
      %v6587 = vmul.f32 %v6321, %v6475
      %v6588 = vmul.f32 %v6068, %v6475
      %v6589 = vmul.f32 %v6070, %v6475
      %v6590 = vmul.f32 %v6325, %v6475
      %v6591 = vmul.f32 %v6327, %v6475
      %v6592 = vmul.f32 %v6074, %v6475
      %v6593 = vmul.f32 %v6076, %v6475
      %v6594 = vmul.f32 %v6331, %v6475
      %v6595 = vmul.f32 %v6333, %v6475
      %v6596 = vmul.f32 %v6080, %v6475
      %v6597 = vmul.f32 %v6082, %v6475
      %v6598 = vmul.f32 %v6337, %v6475
      %v6599 = vmul.f32 %v6339, %v6475
      %v6600 = vmul.f32 %v6086, %v6475
      %v6601 = vmul.f32 %v6088, %v6475
      %v6602 = vmul.f32 %v6343, %v6475
      %v6603 = vmul.f32 %v6345, %v6475
      %v6604 = verf.f32.pop %v6476
      %v6605 = verf.f32.pop %v6477
      %v6606 = verf.f32.pop %v6478
      %v6607 = verf.f32.pop %v6479
      %v6608 = verf.f32.pop %v6480
      %v6609 = verf.f32.pop %v6481
      %v6610 = verf.f32.pop %v6482
      %v6611 = verf.f32.pop %v6483
      %v6612 = verf.f32.pop %v6484
      %v6613 = verf.f32.pop %v6485
      %v6614 = verf.f32.pop %v6486
      %v6615 = verf.f32.pop %v6487
      %v6616 = verf.f32.pop %v6488
      %v6617 = verf.f32.pop %v6489
      %v6618 = verf.f32.pop %v6490
      %v6619 = verf.f32.pop %v6491
      %v6620 = verf.f32.pop %v6492
      %v6621 = verf.f32.pop %v6493
      %v6622 = verf.f32.pop %v6494
      %v6623 = verf.f32.pop %v6495
      %v6624 = verf.f32.pop %v6496
      %v6625 = verf.f32.pop %v6497
      %v6626 = verf.f32.pop %v6498
      %v6627 = verf.f32.pop %v6499
      %v6628 = verf.f32.pop %v6500
      %v6629 = verf.f32.pop %v6501
      %v6630 = verf.f32.pop %v6502
      %v6631 = verf.f32.pop %v6503
      %v6632 = verf.f32.pop %v6504
      %v6633 = verf.f32.pop %v6505
      %v6634 = verf.f32.pop %v6506
      %v6635 = verf.f32.pop %v6507
      %v6636 = verf.f32.pop %v6508
      %v6637 = verf.f32.pop %v6509
      %v6638 = verf.f32.pop %v6510
      %v6639 = verf.f32.pop %v6511
      %v6640 = verf.f32.pop %v6512
      %v6641 = verf.f32.pop %v6513
      %v6642 = verf.f32.pop %v6514
      %v6643 = verf.f32.pop %v6515
      %v6644 = verf.f32.pop %v6516
      %v6645 = verf.f32.pop %v6517
      %v6646 = verf.f32.pop %v6518
      %v6647 = verf.f32.pop %v6519
      %v6648 = verf.f32.pop %v6520
      %v6649 = verf.f32.pop %v6521
      %v6650 = verf.f32.pop %v6522
      %v6651 = verf.f32.pop %v6523
      %v6652 = verf.f32.pop %v6524
      %v6653 = verf.f32.pop %v6525
      %v6654 = verf.f32.pop %v6526
      %v6655 = verf.f32.pop %v6527
      %v6656 = verf.f32.pop %v6528
      %v6657 = verf.f32.pop %v6529
      %v6658 = verf.f32.pop %v6530
      %v6659 = verf.f32.pop %v6531
      %v6660 = verf.f32.pop %v6532
      %v6661 = verf.f32.pop %v6533
      %v6662 = verf.f32.pop %v6534
      %v6663 = verf.f32.pop %v6535
      %v6664 = verf.f32.pop %v6536
      %v6665 = verf.f32.pop %v6537
      %v6666 = verf.f32.pop %v6538
      %v6667 = verf.f32.pop %v6539
      %v6668 = verf.f32.pop %v6540
      %v6669 = verf.f32.pop %v6541
      %v6670 = verf.f32.pop %v6542
      %v6671 = verf.f32.pop %v6543
      %v6672 = verf.f32.pop %v6544
      %v6673 = verf.f32.pop %v6545
      %v6674 = verf.f32.pop %v6546
      %v6675 = verf.f32.pop %v6547
      %v6676 = verf.f32.pop %v6548
      %v6677 = verf.f32.pop %v6549
      %v6678 = verf.f32.pop %v6550
      %v6679 = verf.f32.pop %v6551
      %v6680 = verf.f32.pop %v6552
      %v6681 = verf.f32.pop %v6553
      %v6682 = verf.f32.pop %v6554
      %v6683 = verf.f32.pop %v6555
      %v6684 = verf.f32.pop %v6556
      %v6685 = verf.f32.pop %v6557
      %v6686 = verf.f32.pop %v6558
      %v6687 = verf.f32.pop %v6559
      %v6688 = verf.f32.pop %v6560
      %v6689 = verf.f32.pop %v6561
      %v6690 = verf.f32.pop %v6562
      %v6691 = verf.f32.pop %v6563
      %v6692 = verf.f32.pop %v6564
      %v6693 = verf.f32.pop %v6565
      %v6694 = verf.f32.pop %v6566
      %v6695 = verf.f32.pop %v6567
      %v6696 = verf.f32.pop %v6568
      %v6697 = verf.f32.pop %v6569
      %v6698 = verf.f32.pop %v6570
      %v6699 = verf.f32.pop %v6571
      %v6700 = verf.f32.pop %v6572
      %v6701 = verf.f32.pop %v6573
      %v6702 = verf.f32.pop %v6574
      %v6703 = verf.f32.pop %v6575
      %v6704 = verf.f32.pop %v6576
      %v6705 = verf.f32.pop %v6577
      %v6706 = verf.f32.pop %v6578
      %v6707 = verf.f32.pop %v6579
      %v6708 = verf.f32.pop %v6580
      %v6709 = verf.f32.pop %v6581
      %v6710 = verf.f32.pop %v6582
      %v6711 = verf.f32.pop %v6583
      %v6712 = verf.f32.pop %v6584
      %v6713 = verf.f32.pop %v6585
      %v6714 = verf.f32.pop %v6586
      %v6715 = verf.f32.pop %v6587
      %v6716 = verf.f32.pop %v6588
      %v6717 = verf.f32.pop %v6589
      %v6718 = verf.f32.pop %v6590
      %v6719 = verf.f32.pop %v6591
      %v6720 = verf.f32.pop %v6592
      %v6721 = verf.f32.pop %v6593
      %v6722 = verf.f32.pop %v6594
      %v6723 = verf.f32.pop %v6595
      %v6724 = verf.f32.pop %v6596
      %v6725 = verf.f32.pop %v6597
      %v6726 = verf.f32.pop %v6598
      %v6727 = verf.f32.pop %v6599
      %v6728 = verf.f32.pop %v6600
      %v6729 = verf.f32.pop %v6601
      %v6730 = verf.f32.pop %v6602
      %v6731 = verf.f32.pop %v6603
      %v6732 = vadd.f32 %v6604, 1.0
      %v6733 = vadd.f32 %v6605, 1.0
      %v6734 = vadd.f32 %v6606, 1.0
      %v6735 = vadd.f32 %v6607, 1.0
      %v6736 = vadd.f32 %v6608, 1.0
      %v6737 = vadd.f32 %v6609, 1.0
      %v6738 = vadd.f32 %v6610, 1.0
      %v6739 = vadd.f32 %v6611, 1.0
      %v6740 = vadd.f32 %v6612, 1.0
      %v6741 = vadd.f32 %v6613, 1.0
      %v6742 = vadd.f32 %v6614, 1.0
      %v6743 = vadd.f32 %v6615, 1.0
      %v6744 = vadd.f32 %v6616, 1.0
      %v6745 = vadd.f32 %v6617, 1.0
      %v6746 = vadd.f32 %v6618, 1.0
      %v6747 = vadd.f32 %v6619, 1.0
      %v6748 = vadd.f32 %v6620, 1.0
      %v6749 = vadd.f32 %v6621, 1.0
      %v6750 = vadd.f32 %v6622, 1.0
      %v6751 = vadd.f32 %v6623, 1.0
      %v6752 = vadd.f32 %v6624, 1.0
      %v6753 = vadd.f32 %v6625, 1.0
      %v6754 = vadd.f32 %v6626, 1.0
      %v6755 = vadd.f32 %v6627, 1.0
      %v6756 = vadd.f32 %v6628, 1.0
      %v6757 = vadd.f32 %v6629, 1.0
      %v6758 = vadd.f32 %v6630, 1.0
      %v6759 = vadd.f32 %v6631, 1.0
      %v6760 = vadd.f32 %v6632, 1.0
      %v6761 = vadd.f32 %v6633, 1.0
      %v6762 = vadd.f32 %v6634, 1.0
      %v6763 = vadd.f32 %v6635, 1.0
      %v6764 = vadd.f32 %v6636, 1.0
      %v6765 = vadd.f32 %v6637, 1.0
      %v6766 = vadd.f32 %v6638, 1.0
      %v6767 = vadd.f32 %v6639, 1.0
      %v6768 = vadd.f32 %v6640, 1.0
      %v6769 = vadd.f32 %v6641, 1.0
      %v6770 = vadd.f32 %v6642, 1.0
      %v6771 = vadd.f32 %v6643, 1.0
      %v6772 = vadd.f32 %v6644, 1.0
      %v6773 = vadd.f32 %v6645, 1.0
      %v6774 = vadd.f32 %v6646, 1.0
      %v6775 = vadd.f32 %v6647, 1.0
      %v6776 = vadd.f32 %v6648, 1.0
      %v6777 = vadd.f32 %v6649, 1.0
      %v6778 = vadd.f32 %v6650, 1.0
      %v6779 = vadd.f32 %v6651, 1.0
      %v6780 = vadd.f32 %v6652, 1.0
      %v6781 = vadd.f32 %v6653, 1.0
      %v6782 = vadd.f32 %v6654, 1.0
      %v6783 = vadd.f32 %v6655, 1.0
      %v6784 = vadd.f32 %v6656, 1.0
      %v6785 = vadd.f32 %v6657, 1.0
      %v6786 = vadd.f32 %v6658, 1.0
      %v6787 = vadd.f32 %v6659, 1.0
      %v6788 = vadd.f32 %v6660, 1.0
      %v6789 = vadd.f32 %v6661, 1.0
      %v6790 = vadd.f32 %v6662, 1.0
      %v6791 = vadd.f32 %v6663, 1.0
      %v6792 = vadd.f32 %v6664, 1.0
      %v6793 = vadd.f32 %v6665, 1.0
      %v6794 = vadd.f32 %v6666, 1.0
      %v6795 = vadd.f32 %v6667, 1.0
      %v6796 = vadd.f32 %v6668, 1.0
      %v6797 = vadd.f32 %v6669, 1.0
      %v6798 = vadd.f32 %v6670, 1.0
      %v6799 = vadd.f32 %v6671, 1.0
      %v6800 = vadd.f32 %v6672, 1.0
      %v6801 = vadd.f32 %v6673, 1.0
      %v6802 = vadd.f32 %v6674, 1.0
      %v6803 = vadd.f32 %v6675, 1.0
      %v6804 = vadd.f32 %v6676, 1.0
      %v6805 = vadd.f32 %v6677, 1.0
      %v6806 = vadd.f32 %v6678, 1.0
      %v6807 = vadd.f32 %v6679, 1.0
      %v6808 = vadd.f32 %v6680, 1.0
      %v6809 = vadd.f32 %v6681, 1.0
      %v6810 = vadd.f32 %v6682, 1.0
      %v6811 = vadd.f32 %v6683, 1.0
      %v6812 = vadd.f32 %v6684, 1.0
      %v6813 = vadd.f32 %v6685, 1.0
      %v6814 = vadd.f32 %v6686, 1.0
      %v6815 = vadd.f32 %v6687, 1.0
      %v6816 = vadd.f32 %v6688, 1.0
      %v6817 = vadd.f32 %v6689, 1.0
      %v6818 = vadd.f32 %v6690, 1.0
      %v6819 = vadd.f32 %v6691, 1.0
      %v6820 = vadd.f32 %v6692, 1.0
      %v6821 = vadd.f32 %v6693, 1.0
      %v6822 = vadd.f32 %v6694, 1.0
      %v6823 = vadd.f32 %v6695, 1.0
      %v6824 = vadd.f32 %v6696, 1.0
      %v6825 = vadd.f32 %v6697, 1.0
      %v6826 = vadd.f32 %v6698, 1.0
      %v6827 = vadd.f32 %v6699, 1.0
      %v6828 = vadd.f32 %v6700, 1.0
      %v6829 = vadd.f32 %v6701, 1.0
      %v6830 = vadd.f32 %v6702, 1.0
      %v6831 = vadd.f32 %v6703, 1.0
      %v6832 = vadd.f32 %v6704, 1.0
      %v6833 = vadd.f32 %v6705, 1.0
      %v6834 = vadd.f32 %v6706, 1.0
      %v6835 = vadd.f32 %v6707, 1.0
      %v6836 = vadd.f32 %v6708, 1.0
      %v6837 = vadd.f32 %v6709, 1.0
      %v6838 = vadd.f32 %v6710, 1.0
      %v6839 = vadd.f32 %v6711, 1.0
      %v6840 = vadd.f32 %v6712, 1.0
      %v6841 = vadd.f32 %v6713, 1.0
      %v6842 = vadd.f32 %v6714, 1.0
      %v6843 = vadd.f32 %v6715, 1.0
      %v6844 = vadd.f32 %v6716, 1.0
      %v6845 = vadd.f32 %v6717, 1.0
      %v6846 = vadd.f32 %v6718, 1.0
      %v6847 = vadd.f32 %v6719, 1.0
      %v6848 = vadd.f32 %v6720, 1.0
      %v6849 = vadd.f32 %v6721, 1.0
      %v6850 = vadd.f32 %v6722, 1.0
      %v6851 = vadd.f32 %v6723, 1.0
      %v6852 = vadd.f32 %v6724, 1.0
      %v6853 = vadd.f32 %v6725, 1.0
      %v6854 = vadd.f32 %v6726, 1.0
      %v6855 = vadd.f32 %v6727, 1.0
      %v6856 = vadd.f32 %v6728, 1.0
      %v6857 = vadd.f32 %v6729, 1.0
      %v6858 = vadd.f32 %v6730, 1.0
      %v6859 = vadd.f32 %v6731, 1.0
      %v6860 = vmul.f32 %v6347, %v6732
      %v6861 = vmul.f32 %v6348, %v6733
      %v6862 = vmul.f32 %v6349, %v6734
      %v6863 = vmul.f32 %v6350, %v6735
      %v6864 = vmul.f32 %v6351, %v6736
      %v6865 = vmul.f32 %v6352, %v6737
      %v6866 = vmul.f32 %v6353, %v6738
      %v6867 = vmul.f32 %v6354, %v6739
      %v6868 = vmul.f32 %v6355, %v6740
      %v6869 = vmul.f32 %v6356, %v6741
      %v6870 = vmul.f32 %v6357, %v6742
      %v6871 = vmul.f32 %v6358, %v6743
      %v6872 = vmul.f32 %v6359, %v6744
      %v6873 = vmul.f32 %v6360, %v6745
      %v6874 = vmul.f32 %v6361, %v6746
      %v6875 = vmul.f32 %v6362, %v6747
      %v6876 = vmul.f32 %v6363, %v6748
      %v6877 = vmul.f32 %v6364, %v6749
      %v6878 = vmul.f32 %v6365, %v6750
      %v6879 = vmul.f32 %v6366, %v6751
      %v6880 = vmul.f32 %v6367, %v6752
      %v6881 = vmul.f32 %v6368, %v6753
      %v6882 = vmul.f32 %v6369, %v6754
      %v6883 = vmul.f32 %v6370, %v6755
      %v6884 = vmul.f32 %v6371, %v6756
      %v6885 = vmul.f32 %v6372, %v6757
      %v6886 = vmul.f32 %v6373, %v6758
      %v6887 = vmul.f32 %v6374, %v6759
      %v6888 = vmul.f32 %v6375, %v6760
      %v6889 = vmul.f32 %v6376, %v6761
      %v6890 = vmul.f32 %v6377, %v6762
      %v6891 = vmul.f32 %v6378, %v6763
      %v6892 = vmul.f32 %v6379, %v6764
      %v6893 = vmul.f32 %v6380, %v6765
      %v6894 = vmul.f32 %v6381, %v6766
      %v6895 = vmul.f32 %v6382, %v6767
      %v6896 = vmul.f32 %v6383, %v6768
      %v6897 = vmul.f32 %v6384, %v6769
      %v6898 = vmul.f32 %v6385, %v6770
      %v6899 = vmul.f32 %v6386, %v6771
      %v6900 = vmul.f32 %v6387, %v6772
      %v6901 = vmul.f32 %v6388, %v6773
      %v6902 = vmul.f32 %v6389, %v6774
      %v6903 = vmul.f32 %v6390, %v6775
      %v6904 = vmul.f32 %v6391, %v6776
      %v6905 = vmul.f32 %v6392, %v6777
      %v6906 = vmul.f32 %v6393, %v6778
      %v6907 = vmul.f32 %v6394, %v6779
      %v6908 = vmul.f32 %v6395, %v6780
      %v6909 = vmul.f32 %v6396, %v6781
      %v6910 = vmul.f32 %v6397, %v6782
      %v6911 = vmul.f32 %v6398, %v6783
      %v6912 = vmul.f32 %v6399, %v6784
      %v6913 = vmul.f32 %v6400, %v6785
      %v6914 = vmul.f32 %v6401, %v6786
      %v6915 = vmul.f32 %v6402, %v6787
      %v6916 = vmul.f32 %v6403, %v6788
      %v6917 = vmul.f32 %v6404, %v6789
      %v6918 = vmul.f32 %v6405, %v6790
      %v6919 = vmul.f32 %v6406, %v6791
      %v6920 = vmul.f32 %v6407, %v6792
      %v6921 = vmul.f32 %v6408, %v6793
      %v6922 = vmul.f32 %v6409, %v6794
      %v6923 = vmul.f32 %v6410, %v6795
      %v6924 = vmul.f32 %v6411, %v6796
      %v6925 = vmul.f32 %v6412, %v6797
      %v6926 = vmul.f32 %v6413, %v6798
      %v6927 = vmul.f32 %v6414, %v6799
      %v6928 = vmul.f32 %v6415, %v6800
      %v6929 = vmul.f32 %v6416, %v6801
      %v6930 = vmul.f32 %v6417, %v6802
      %v6931 = vmul.f32 %v6418, %v6803
      %v6932 = vmul.f32 %v6419, %v6804
      %v6933 = vmul.f32 %v6420, %v6805
      %v6934 = vmul.f32 %v6421, %v6806
      %v6935 = vmul.f32 %v6422, %v6807
      %v6936 = vmul.f32 %v6423, %v6808
      %v6937 = vmul.f32 %v6424, %v6809
      %v6938 = vmul.f32 %v6425, %v6810
      %v6939 = vmul.f32 %v6426, %v6811
      %v6940 = vmul.f32 %v6427, %v6812
      %v6941 = vmul.f32 %v6428, %v6813
      %v6942 = vmul.f32 %v6429, %v6814
      %v6943 = vmul.f32 %v6430, %v6815
      %v6944 = vmul.f32 %v6431, %v6816
      %v6945 = vmul.f32 %v6432, %v6817
      %v6946 = vmul.f32 %v6433, %v6818
      %v6947 = vmul.f32 %v6434, %v6819
      %v6948 = vmul.f32 %v6435, %v6820
      %v6949 = vmul.f32 %v6436, %v6821
      %v6950 = vmul.f32 %v6437, %v6822
      %v6951 = vmul.f32 %v6438, %v6823
      %v6952 = vmul.f32 %v6439, %v6824
      %v6953 = vmul.f32 %v6440, %v6825
      %v6954 = vmul.f32 %v6441, %v6826
      %v6955 = vmul.f32 %v6442, %v6827
      %v6956 = vmul.f32 %v6443, %v6828
      %v6957 = vmul.f32 %v6444, %v6829
      %v6958 = vmul.f32 %v6445, %v6830
      %v6959 = vmul.f32 %v6446, %v6831
      %v6960 = vmul.f32 %v6447, %v6832
      %v6961 = vmul.f32 %v6448, %v6833
      %v6962 = vmul.f32 %v6449, %v6834
      %v6963 = vmul.f32 %v6450, %v6835
      %v6964 = vmul.f32 %v6451, %v6836
      %v6965 = vmul.f32 %v6452, %v6837
      %v6966 = vmul.f32 %v6453, %v6838
      %v6967 = vmul.f32 %v6454, %v6839
      %v6968 = vmul.f32 %v6455, %v6840
      %v6969 = vmul.f32 %v6456, %v6841
      %v6970 = vmul.f32 %v6457, %v6842
      %v6971 = vmul.f32 %v6458, %v6843
      %v6972 = vmul.f32 %v6459, %v6844
      %v6973 = vmul.f32 %v6460, %v6845
      %v6974 = vmul.f32 %v6461, %v6846
      %v6975 = vmul.f32 %v6462, %v6847
      %v6976 = vmul.f32 %v6463, %v6848
      %v6977 = vmul.f32 %v6464, %v6849
      %v6978 = vmul.f32 %v6465, %v6850
      %v6979 = vmul.f32 %v6466, %v6851
      %v6980 = vmul.f32 %v6467, %v6852
      %v6981 = vmul.f32 %v6468, %v6853
      %v6982 = vmul.f32 %v6469, %v6854
      %v6983 = vmul.f32 %v6470, %v6855
      %v6984 = vmul.f32 %v6471, %v6856
      %v6985 = vmul.f32 %v6472, %v6857
      %v6986 = vmul.f32 %v6473, %v6858
      %v6987 = vmul.f32 %v6474, %v6859
      %v6988 = vld [vmem:[%s7] sm:$0xff]
      %v6989 = vld [vmem:[%s7 + $0x8] sm:$0xff]
      %v6990 = vld [vmem:[%s7 + $0x10] sm:$0xff]
      %v6991 = vld [vmem:[%s7 + $0x18] sm:$0xff]
      %v6992 = vld [vmem:[%s7 + $0x20] sm:$0xff]
      %v6993 = vld [vmem:[%s7 + $0x28] sm:$0xff]
      %v6994 = vld [vmem:[%s7 + $0x30] sm:$0xff]
      %v6995 = vld [vmem:[%s7 + $0x38] sm:$0xff]
      %v6996 = vld [vmem:[%s7 + $0x40] sm:$0xff]
      %v6997 = vld [vmem:[%s7 + $0x48] sm:$0xff]
      %v6998 = vld [vmem:[%s7 + $0x50] sm:$0xff]
      %v6999 = vld [vmem:[%s7 + $0x58] sm:$0xff]
      %v7000 = vld [vmem:[%s7 + $0x60] sm:$0xff]
      %v7001 = vld [vmem:[%s7 + $0x68] sm:$0xff]
      %v7002 = vld [vmem:[%s7 + $0x70] sm:$0xff]
      %v7003 = vld [vmem:[%s7 + $0x78] sm:$0xff]
      %v7004 = vld [vmem:[%s7 + $0x80] sm:$0xff]
      %v7005 = vld [vmem:[%s7 + $0x88] sm:$0xff]
      %v7006 = vld [vmem:[%s7 + $0x90] sm:$0xff]
      %v7007 = vld [vmem:[%s7 + $0x98] sm:$0xff]
      %v7008 = vld [vmem:[%s7 + $0xa0] sm:$0xff]
      %v7009 = vld [vmem:[%s7 + $0xa8] sm:$0xff]
      %v7010 = vld [vmem:[%s7 + $0xb0] sm:$0xff]
      %v7011 = vld [vmem:[%s7 + $0xb8] sm:$0xff]
      %v7012 = vld [vmem:[%s7 + $0xc0] sm:$0xff]
      %v7013 = vld [vmem:[%s7 + $0xc8] sm:$0xff]
      %v7014 = vld [vmem:[%s7 + $0xd0] sm:$0xff]
      %v7015 = vld [vmem:[%s7 + $0xd8] sm:$0xff]
      %v7016 = vld [vmem:[%s7 + $0xe0] sm:$0xff]
      %v7017 = vld [vmem:[%s7 + $0xe8] sm:$0xff]
      %v7018 = vld [vmem:[%s7 + $0xf0] sm:$0xff]
      %v7019 = vld [vmem:[%s7 + $0xf8] sm:$0xff]
      %v7020 = vld [vmem:[%s7 + $0x100] sm:$0xff]
      %v7021 = vld [vmem:[%s7 + $0x108] sm:$0xff]
      %v7022 = vld [vmem:[%s7 + $0x110] sm:$0xff]
      %v7023 = vld [vmem:[%s7 + $0x118] sm:$0xff]
      %v7024 = vld [vmem:[%s7 + $0x120] sm:$0xff]
      %v7025 = vld [vmem:[%s7 + $0x128] sm:$0xff]
      %v7026 = vld [vmem:[%s7 + $0x130] sm:$0xff]
      %v7027 = vld [vmem:[%s7 + $0x138] sm:$0xff]
      %v7028 = vld [vmem:[%s7 + $0x140] sm:$0xff]
      %v7029 = vld [vmem:[%s7 + $0x148] sm:$0xff]
      %v7030 = vld [vmem:[%s7 + $0x150] sm:$0xff]
      %v7031 = vld [vmem:[%s7 + $0x158] sm:$0xff]
      %v7032 = vld [vmem:[%s7 + $0x160] sm:$0xff]
      %v7033 = vld [vmem:[%s7 + $0x168] sm:$0xff]
      %v7034 = vld [vmem:[%s7 + $0x170] sm:$0xff]
      %v7035 = vld [vmem:[%s7 + $0x178] sm:$0xff]
      %v7036 = vld [vmem:[%s7 + $0x180] sm:$0xff]
      %v7037 = vld [vmem:[%s7 + $0x188] sm:$0xff]
      %v7038 = vld [vmem:[%s7 + $0x190] sm:$0xff]
      %v7039 = vld [vmem:[%s7 + $0x198] sm:$0xff]
      %v7040 = vld [vmem:[%s7 + $0x1a0] sm:$0xff]
      %v7041 = vld [vmem:[%s7 + $0x1a8] sm:$0xff]
      %v7042 = vld [vmem:[%s7 + $0x1b0] sm:$0xff]
      %v7043 = vld [vmem:[%s7 + $0x1b8] sm:$0xff]
      %v7044 = vld [vmem:[%s7 + $0x1c0] sm:$0xff]
      %v7045 = vld [vmem:[%s7 + $0x1c8] sm:$0xff]
      %v7046 = vld [vmem:[%s7 + $0x1d0] sm:$0xff]
      %v7047 = vld [vmem:[%s7 + $0x1d8] sm:$0xff]
      %v7048 = vld [vmem:[%s7 + $0x1e0] sm:$0xff]
      %v7049 = vld [vmem:[%s7 + $0x1e8] sm:$0xff]
      %v7050 = vld [vmem:[%s7 + $0x1f0] sm:$0xff]
      %v7051 = vld [vmem:[%s7 + $0x1f8] sm:$0xff]
      %v7052 = vld [vmem:[%s8] sm:$0x1]
      %v7054 = vlaneseq
      %v7055 = vshrl.u32 %v7054, 7
      %v7056 = vsub.s32 0, %v7055
      %v7057 = vrot.slane %v7052, %v7056
      %7059 = vmatprep.subr.mxu0 0.0
      %7060 = vmatpush1.msra.mxu0 %v7003
      %7061 = vmatprep.subr.mxu0 0.0
      %7062 = vmatpush1.msra.mxu0 %v7002
      %7063 = vmatprep.subr.mxu0 0.0
      %7064 = vmatpush1.msra.mxu0 %v7001
      %7065 = vmatprep.subr.mxu0 0.0
      %7066 = vmatpush1.msra.mxu0 %v7000
      %7067 = vmatprep.subr.mxu0 0.0
      %7068 = vmatpush1.msra.mxu0 %v6999
      %7069 = vmatprep.subr.mxu0 0.0
      %7070 = vmatpush1.msra.mxu0 %v6998
      %7071 = vmatprep.subr.mxu0 0.0
      %7072 = vmatpush1.msra.mxu0 %v6997
      %7073 = vmatprep.subr.mxu0 0.0
      %7074 = vmatpush1.msra.mxu0 %v6996
      %7075 = vmatprep.subr.mxu0 0.0
      %7076 = vmatpush1.msra.mxu0 %v6995
      %7077 = vmatprep.subr.mxu0 0.0
      %7078 = vmatpush1.msra.mxu0 %v6994
      %7079 = vmatprep.subr.mxu0 0.0
      %7080 = vmatpush1.msra.mxu0 %v6993
      %7081 = vmatprep.subr.mxu0 0.0
      %7082 = vmatpush1.msra.mxu0 %v6992
      %7083 = vmatprep.subr.mxu0 0.0
      %7084 = vmatpush1.msra.mxu0 %v6991
      %7085 = vmatprep.subr.mxu0 0.0
      %7086 = vmatpush1.msra.mxu0 %v6990
      %7087 = vmatprep.subr.mxu0 0.0
      %7088 = vmatpush1.msra.mxu0 %v6989
      %7089 = vmatprep.subr.mxu0 0.0
      %7090 = vmatpush1.msra.mxu0 %v6988
      %7091 = vmatprep.subr.mxu0 0.0
      %7092 = vmatpush2.msra.mxu0 %v7019
      %7093 = vmatprep.subr.mxu0 0.0
      %7094 = vmatpush2.msra.mxu0 %v7018
      %7095 = vmatprep.subr.mxu0 0.0
      %7096 = vmatpush2.msra.mxu0 %v7017
      %7097 = vmatprep.subr.mxu0 0.0
      %7098 = vmatpush2.msra.mxu0 %v7016
      %7099 = vmatprep.subr.mxu0 0.0
      %7100 = vmatpush2.msra.mxu0 %v7015
      %7101 = vmatprep.subr.mxu0 0.0
      %7102 = vmatpush2.msra.mxu0 %v7014
      %7103 = vmatprep.subr.mxu0 0.0
      %7104 = vmatpush2.msra.mxu0 %v7013
      %7105 = vmatprep.subr.mxu0 0.0
      %7106 = vmatpush2.msra.mxu0 %v7012
      %7107 = vmatprep.subr.mxu0 0.0
      %7108 = vmatpush2.msra.mxu0 %v7011
      %7109 = vmatprep.subr.mxu0 0.0
      %7110 = vmatpush2.msra.mxu0 %v7010
      %7111 = vmatprep.subr.mxu0 0.0
      %7112 = vmatpush2.msra.mxu0 %v7009
      %7113 = vmatprep.subr.mxu0 0.0
      %7114 = vmatpush2.msra.mxu0 %v7008
      %7115 = vmatprep.subr.mxu0 0.0
      %7116 = vmatpush2.msra.mxu0 %v7007
      %7117 = vmatprep.subr.mxu0 0.0
      %7118 = vmatpush2.msra.mxu0 %v7006
      %7119 = vmatprep.subr.mxu0 0.0
      %7120 = vmatpush2.msra.mxu0 %v7005
      %7121 = vmatprep.subr.mxu0 0.0
      %7122 = vmatpush2.msra.mxu0 %v7004
      %7123 = vmatprep.mubr.f32.mxu0 %v6861
      %7124 = vmatmul.mubr.f32.gmra.mxu0 %v6860
      %v7125 = vpop.f32.mrf.mxu0
      %v7126 = vadd.f32 %v7057, %v7125
      %v7127 = vpop.f32.mrf.mxu0
      %7128 = vmatprep.mubr.f32.mxu0 %v6865
      %7129 = vmatmul.mubr.f32.gmra.mxu0 %v6864
      %v7130 = vpop.f32.mrf.mxu0
      %v7131 = vadd.f32 %v7057, %v7130
      %v7132 = vpop.f32.mrf.mxu0
      %7133 = vmatprep.mubr.f32.mxu0 %v6869
      %7134 = vmatmul.mubr.f32.gmra.mxu0 %v6868
      %v7135 = vpop.f32.mrf.mxu0
      %v7136 = vadd.f32 %v7057, %v7135
      %v7137 = vpop.f32.mrf.mxu0
      %7138 = vmatprep.mubr.f32.mxu0 %v6873
      %7139 = vmatmul.mubr.f32.gmra.mxu0 %v6872
      %v7140 = vpop.f32.mrf.mxu0
      %v7141 = vadd.f32 %v7057, %v7140
      %v7142 = vpop.f32.mrf.mxu0
      %7143 = vmatprep.mubr.f32.mxu0 %v6877
      %7144 = vmatmul.mubr.f32.gmra.mxu0 %v6876
      %v7145 = vpop.f32.mrf.mxu0
      %v7146 = vadd.f32 %v7057, %v7145
      %v7147 = vpop.f32.mrf.mxu0
      %7148 = vmatprep.mubr.f32.mxu0 %v6881
      %7149 = vmatmul.mubr.f32.gmra.mxu0 %v6880
      %v7150 = vpop.f32.mrf.mxu0
      %v7151 = vadd.f32 %v7057, %v7150
      %v7152 = vpop.f32.mrf.mxu0
      %7153 = vmatprep.mubr.f32.mxu0 %v6885
      %7154 = vmatmul.mubr.f32.gmra.mxu0 %v6884
      %v7155 = vpop.f32.mrf.mxu0
      %v7156 = vadd.f32 %v7057, %v7155
      %v7157 = vpop.f32.mrf.mxu0
      %7158 = vmatprep.mubr.f32.mxu0 %v6889
      %7159 = vmatmul.mubr.f32.gmra.mxu0 %v6888
      %v7160 = vpop.f32.mrf.mxu0
      %v7161 = vadd.f32 %v7057, %v7160
      %v7162 = vpop.f32.mrf.mxu0
      %7163 = vmatprep.mubr.f32.mxu0 %v6893
      %7164 = vmatmul.mubr.f32.gmra.mxu0 %v6892
      %v7165 = vpop.f32.mrf.mxu0
      %v7166 = vadd.f32 %v7057, %v7165
      %v7167 = vpop.f32.mrf.mxu0
      %7168 = vmatprep.mubr.f32.mxu0 %v6897
      %7169 = vmatmul.mubr.f32.gmra.mxu0 %v6896
      %v7170 = vpop.f32.mrf.mxu0
      %v7171 = vadd.f32 %v7057, %v7170
      %v7172 = vpop.f32.mrf.mxu0
      %7173 = vmatprep.mubr.f32.mxu0 %v6901
      %7174 = vmatmul.mubr.f32.gmra.mxu0 %v6900
      %v7175 = vpop.f32.mrf.mxu0
      %v7176 = vadd.f32 %v7057, %v7175
      %v7177 = vpop.f32.mrf.mxu0
      %7178 = vmatprep.mubr.f32.mxu0 %v6905
      %7179 = vmatmul.mubr.f32.gmra.mxu0 %v6904
      %v7180 = vpop.f32.mrf.mxu0
      %v7181 = vadd.f32 %v7057, %v7180
      %v7182 = vpop.f32.mrf.mxu0
      %7183 = vmatprep.mubr.f32.mxu0 %v6909
      %7184 = vmatmul.mubr.f32.gmra.mxu0 %v6908
      %v7185 = vpop.f32.mrf.mxu0
      %v7186 = vadd.f32 %v7057, %v7185
      %v7187 = vpop.f32.mrf.mxu0
      %7188 = vmatprep.mubr.f32.mxu0 %v6913
      %7189 = vmatmul.mubr.f32.gmra.mxu0 %v6912
      %v7190 = vpop.f32.mrf.mxu0
      %v7191 = vadd.f32 %v7057, %v7190
      %v7192 = vpop.f32.mrf.mxu0
      %7193 = vmatprep.mubr.f32.mxu0 %v6917
      %7194 = vmatmul.mubr.f32.gmra.mxu0 %v6916
      %v7195 = vpop.f32.mrf.mxu0
      %v7196 = vadd.f32 %v7057, %v7195
      %v7197 = vpop.f32.mrf.mxu0
      %7198 = vmatprep.mubr.f32.mxu0 %v6921
      %7199 = vmatmul.mubr.f32.gmra.mxu0 %v6920
      %v7200 = vpop.f32.mrf.mxu0
      %v7201 = vadd.f32 %v7057, %v7200
      %v7202 = vpop.f32.mrf.mxu0
      %7203 = vmatprep.mubr.f32.mxu0 %v6925
      %7204 = vmatmul.mubr.f32.gmra.mxu0 %v6924
      %v7205 = vpop.f32.mrf.mxu0
      %v7206 = vadd.f32 %v7057, %v7205
      %v7207 = vpop.f32.mrf.mxu0
      %7208 = vmatprep.mubr.f32.mxu0 %v6929
      %7209 = vmatmul.mubr.f32.gmra.mxu0 %v6928
      %v7210 = vpop.f32.mrf.mxu0
      %v7211 = vadd.f32 %v7057, %v7210
      %v7212 = vpop.f32.mrf.mxu0
      %7213 = vmatprep.mubr.f32.mxu0 %v6933
      %7214 = vmatmul.mubr.f32.gmra.mxu0 %v6932
      %v7215 = vpop.f32.mrf.mxu0
      %v7216 = vadd.f32 %v7057, %v7215
      %v7217 = vpop.f32.mrf.mxu0
      %7218 = vmatprep.mubr.f32.mxu0 %v6937
      %7219 = vmatmul.mubr.f32.gmra.mxu0 %v6936
      %v7220 = vpop.f32.mrf.mxu0
      %v7221 = vadd.f32 %v7057, %v7220
      %v7222 = vpop.f32.mrf.mxu0
      %7223 = vmatprep.mubr.f32.mxu0 %v6941
      %7224 = vmatmul.mubr.f32.gmra.mxu0 %v6940
      %v7225 = vpop.f32.mrf.mxu0
      %v7226 = vadd.f32 %v7057, %v7225
      %v7227 = vpop.f32.mrf.mxu0
      %7228 = vmatprep.mubr.f32.mxu0 %v6945
      %7229 = vmatmul.mubr.f32.gmra.mxu0 %v6944
      %v7230 = vpop.f32.mrf.mxu0
      %v7231 = vadd.f32 %v7057, %v7230
      %v7232 = vpop.f32.mrf.mxu0
      %7233 = vmatprep.mubr.f32.mxu0 %v6949
      %7234 = vmatmul.mubr.f32.gmra.mxu0 %v6948
      %v7235 = vpop.f32.mrf.mxu0
      %v7236 = vadd.f32 %v7057, %v7235
      %v7237 = vpop.f32.mrf.mxu0
      %7238 = vmatprep.mubr.f32.mxu0 %v6953
      %7239 = vmatmul.mubr.f32.gmra.mxu0 %v6952
      %v7240 = vpop.f32.mrf.mxu0
      %v7241 = vadd.f32 %v7057, %v7240
      %v7242 = vpop.f32.mrf.mxu0
      %7243 = vmatprep.mubr.f32.mxu0 %v6957
      %7244 = vmatmul.mubr.f32.gmra.mxu0 %v6956
      %v7245 = vpop.f32.mrf.mxu0
      %v7246 = vadd.f32 %v7057, %v7245
      %v7247 = vpop.f32.mrf.mxu0
      %7248 = vmatprep.mubr.f32.mxu0 %v6961
      %7249 = vmatmul.mubr.f32.gmra.mxu0 %v6960
      %v7250 = vpop.f32.mrf.mxu0
      %v7251 = vadd.f32 %v7057, %v7250
      %v7252 = vpop.f32.mrf.mxu0
      %7253 = vmatprep.mubr.f32.mxu0 %v6965
      %7254 = vmatmul.mubr.f32.gmra.mxu0 %v6964
      %v7255 = vpop.f32.mrf.mxu0
      %v7256 = vadd.f32 %v7057, %v7255
      %v7257 = vpop.f32.mrf.mxu0
      %7258 = vmatprep.mubr.f32.mxu0 %v6969
      %7259 = vmatmul.mubr.f32.gmra.mxu0 %v6968
      %v7260 = vpop.f32.mrf.mxu0
      %v7261 = vadd.f32 %v7057, %v7260
      %v7262 = vpop.f32.mrf.mxu0
      %7263 = vmatprep.mubr.f32.mxu0 %v6973
      %7264 = vmatmul.mubr.f32.gmra.mxu0 %v6972
      %v7265 = vpop.f32.mrf.mxu0
      %v7266 = vadd.f32 %v7057, %v7265
      %v7267 = vpop.f32.mrf.mxu0
      %7268 = vmatprep.mubr.f32.mxu0 %v6977
      %7269 = vmatmul.mubr.f32.gmra.mxu0 %v6976
      %v7270 = vpop.f32.mrf.mxu0
      %v7271 = vadd.f32 %v7057, %v7270
      %v7272 = vpop.f32.mrf.mxu0
      %7273 = vmatprep.mubr.f32.mxu0 %v6981
      %7274 = vmatmul.mubr.f32.gmra.mxu0 %v6980
      %v7275 = vpop.f32.mrf.mxu0
      %v7276 = vadd.f32 %v7057, %v7275
      %v7277 = vpop.f32.mrf.mxu0
      %7278 = vmatprep.mubr.f32.mxu0 %v6985
      %7279 = vmatmul.mubr.f32.gmra.mxu0 %v6984
      %v7280 = vpop.f32.mrf.mxu0
      %v7281 = vadd.f32 %v7057, %v7280
      %v7282 = vpop.f32.mrf.mxu0
      %7283 = vdwg.mxu0
      %7284 = vmatprep.subr.mxu0 0.0
      %7285 = vmatpush1.msra.mxu0 %v7035
      %7286 = vmatprep.subr.mxu0 0.0
      %7287 = vmatpush1.msra.mxu0 %v7034
      %7288 = vmatprep.subr.mxu0 0.0
      %7289 = vmatpush1.msra.mxu0 %v7033
      %7290 = vmatprep.subr.mxu0 0.0
      %7291 = vmatpush1.msra.mxu0 %v7032
      %7292 = vmatprep.subr.mxu0 0.0
      %7293 = vmatpush1.msra.mxu0 %v7031
      %7294 = vmatprep.subr.mxu0 0.0
      %7295 = vmatpush1.msra.mxu0 %v7030
      %7296 = vmatprep.subr.mxu0 0.0
      %7297 = vmatpush1.msra.mxu0 %v7029
      %7298 = vmatprep.subr.mxu0 0.0
      %7299 = vmatpush1.msra.mxu0 %v7028
      %7300 = vmatprep.subr.mxu0 0.0
      %7301 = vmatpush1.msra.mxu0 %v7027
      %7302 = vmatprep.subr.mxu0 0.0
      %7303 = vmatpush1.msra.mxu0 %v7026
      %7304 = vmatprep.subr.mxu0 0.0
      %7305 = vmatpush1.msra.mxu0 %v7025
      %7306 = vmatprep.subr.mxu0 0.0
      %7307 = vmatpush1.msra.mxu0 %v7024
      %7308 = vmatprep.subr.mxu0 0.0
      %7309 = vmatpush1.msra.mxu0 %v7023
      %7310 = vmatprep.subr.mxu0 0.0
      %7311 = vmatpush1.msra.mxu0 %v7022
      %7312 = vmatprep.subr.mxu0 0.0
      %7313 = vmatpush1.msra.mxu0 %v7021
      %7314 = vmatprep.subr.mxu0 0.0
      %7315 = vmatpush1.msra.mxu0 %v7020
      %7316 = vmatprep.subr.mxu0 0.0
      %7317 = vmatpush2.msra.mxu0 %v7051
      %7318 = vmatprep.subr.mxu0 0.0
      %7319 = vmatpush2.msra.mxu0 %v7050
      %7320 = vmatprep.subr.mxu0 0.0
      %7321 = vmatpush2.msra.mxu0 %v7049
      %7322 = vmatprep.subr.mxu0 0.0
      %7323 = vmatpush2.msra.mxu0 %v7048
      %7324 = vmatprep.subr.mxu0 0.0
      %7325 = vmatpush2.msra.mxu0 %v7047
      %7326 = vmatprep.subr.mxu0 0.0
      %7327 = vmatpush2.msra.mxu0 %v7046
      %7328 = vmatprep.subr.mxu0 0.0
      %7329 = vmatpush2.msra.mxu0 %v7045
      %7330 = vmatprep.subr.mxu0 0.0
      %7331 = vmatpush2.msra.mxu0 %v7044
      %7332 = vmatprep.subr.mxu0 0.0
      %7333 = vmatpush2.msra.mxu0 %v7043
      %7334 = vmatprep.subr.mxu0 0.0
      %7335 = vmatpush2.msra.mxu0 %v7042
      %7336 = vmatprep.subr.mxu0 0.0
      %7337 = vmatpush2.msra.mxu0 %v7041
      %7338 = vmatprep.subr.mxu0 0.0
      %7339 = vmatpush2.msra.mxu0 %v7040
      %7340 = vmatprep.subr.mxu0 0.0
      %7341 = vmatpush2.msra.mxu0 %v7039
      %7342 = vmatprep.subr.mxu0 0.0
      %7343 = vmatpush2.msra.mxu0 %v7038
      %7344 = vmatprep.subr.mxu0 0.0
      %7345 = vmatpush2.msra.mxu0 %v7037
      %7346 = vmatprep.subr.mxu0 0.0
      %7347 = vmatpush2.msra.mxu0 %v7036
      %7348 = vmatprep.mubr.f32.mxu0 %v6863
      %7349 = vmatmul.mubr.f32.gmra.mxu0 %v6862
      %v7350 = vpop.f32.mrf.mxu0
      %v7351 = vadd.f32 %v7126, %v7350
      %v7352 = vpop.f32.mrf.mxu0
      %7353 = vmatprep.mubr.f32.mxu0 %v6867
      %7354 = vmatmul.mubr.f32.gmra.mxu0 %v6866
      %v7355 = vpop.f32.mrf.mxu0
      %v7356 = vadd.f32 %v7131, %v7355
      %v7357 = vpop.f32.mrf.mxu0
      %7358 = vmatprep.mubr.f32.mxu0 %v6871
      %7359 = vmatmul.mubr.f32.gmra.mxu0 %v6870
      %v7360 = vpop.f32.mrf.mxu0
      %v7361 = vadd.f32 %v7136, %v7360
      %v7362 = vpop.f32.mrf.mxu0
      %7363 = vmatprep.mubr.f32.mxu0 %v6875
      %7364 = vmatmul.mubr.f32.gmra.mxu0 %v6874
      %v7365 = vpop.f32.mrf.mxu0
      %v7366 = vadd.f32 %v7141, %v7365
      %v7367 = vpop.f32.mrf.mxu0
      %7368 = vmatprep.mubr.f32.mxu0 %v6879
      %7369 = vmatmul.mubr.f32.gmra.mxu0 %v6878
      %v7370 = vpop.f32.mrf.mxu0
      %v7371 = vadd.f32 %v7146, %v7370
      %v7372 = vpop.f32.mrf.mxu0
      %7373 = vmatprep.mubr.f32.mxu0 %v6883
      %7374 = vmatmul.mubr.f32.gmra.mxu0 %v6882
      %v7375 = vpop.f32.mrf.mxu0
      %v7376 = vadd.f32 %v7151, %v7375
      %v7377 = vpop.f32.mrf.mxu0
      %7378 = vmatprep.mubr.f32.mxu0 %v6887
      %7379 = vmatmul.mubr.f32.gmra.mxu0 %v6886
      %v7380 = vpop.f32.mrf.mxu0
      %v7381 = vadd.f32 %v7156, %v7380
      %v7382 = vpop.f32.mrf.mxu0
      %7383 = vmatprep.mubr.f32.mxu0 %v6891
      %7384 = vmatmul.mubr.f32.gmra.mxu0 %v6890
      %v7385 = vpop.f32.mrf.mxu0
      %v7386 = vadd.f32 %v7161, %v7385
      %v7387 = vpop.f32.mrf.mxu0
      %7388 = vmatprep.mubr.f32.mxu0 %v6895
      %7389 = vmatmul.mubr.f32.gmra.mxu0 %v6894
      %v7390 = vpop.f32.mrf.mxu0
      %v7391 = vadd.f32 %v7166, %v7390
      %v7392 = vpop.f32.mrf.mxu0
      %7393 = vmatprep.mubr.f32.mxu0 %v6899
      %7394 = vmatmul.mubr.f32.gmra.mxu0 %v6898
      %v7395 = vpop.f32.mrf.mxu0
      %v7396 = vadd.f32 %v7171, %v7395
      %v7397 = vpop.f32.mrf.mxu0
      %7398 = vmatprep.mubr.f32.mxu0 %v6903
      %7399 = vmatmul.mubr.f32.gmra.mxu0 %v6902
      %v7400 = vpop.f32.mrf.mxu0
      %v7401 = vadd.f32 %v7176, %v7400
      %v7402 = vpop.f32.mrf.mxu0
      %7403 = vmatprep.mubr.f32.mxu0 %v6907
      %7404 = vmatmul.mubr.f32.gmra.mxu0 %v6906
      %v7405 = vpop.f32.mrf.mxu0
      %v7406 = vadd.f32 %v7181, %v7405
      %v7407 = vpop.f32.mrf.mxu0
      %7408 = vmatprep.mubr.f32.mxu0 %v6911
      %7409 = vmatmul.mubr.f32.gmra.mxu0 %v6910
      %v7410 = vpop.f32.mrf.mxu0
      %v7411 = vadd.f32 %v7186, %v7410
      %v7412 = vpop.f32.mrf.mxu0
      %7413 = vmatprep.mubr.f32.mxu0 %v6915
      %7414 = vmatmul.mubr.f32.gmra.mxu0 %v6914
      %v7415 = vpop.f32.mrf.mxu0
      %v7416 = vadd.f32 %v7191, %v7415
      %v7417 = vpop.f32.mrf.mxu0
      %7418 = vmatprep.mubr.f32.mxu0 %v6919
      %7419 = vmatmul.mubr.f32.gmra.mxu0 %v6918
      %v7420 = vpop.f32.mrf.mxu0
      %v7421 = vadd.f32 %v7196, %v7420
      %v7422 = vpop.f32.mrf.mxu0
      %7423 = vmatprep.mubr.f32.mxu0 %v6923
      %7424 = vmatmul.mubr.f32.gmra.mxu0 %v6922
      %v7425 = vpop.f32.mrf.mxu0
      %v7426 = vadd.f32 %v7201, %v7425
      %v7427 = vpop.f32.mrf.mxu0
      %7428 = vmatprep.mubr.f32.mxu0 %v6927
      %7429 = vmatmul.mubr.f32.gmra.mxu0 %v6926
      %v7430 = vpop.f32.mrf.mxu0
      %v7431 = vadd.f32 %v7206, %v7430
      %v7432 = vpop.f32.mrf.mxu0
      %7433 = vmatprep.mubr.f32.mxu0 %v6931
      %7434 = vmatmul.mubr.f32.gmra.mxu0 %v6930
      %v7435 = vpop.f32.mrf.mxu0
      %v7436 = vadd.f32 %v7211, %v7435
      %v7437 = vpop.f32.mrf.mxu0
      %7438 = vmatprep.mubr.f32.mxu0 %v6935
      %7439 = vmatmul.mubr.f32.gmra.mxu0 %v6934
      %v7440 = vpop.f32.mrf.mxu0
      %v7441 = vadd.f32 %v7216, %v7440
      %v7442 = vpop.f32.mrf.mxu0
      %7443 = vmatprep.mubr.f32.mxu0 %v6939
      %7444 = vmatmul.mubr.f32.gmra.mxu0 %v6938
      %v7445 = vpop.f32.mrf.mxu0
      %v7446 = vadd.f32 %v7221, %v7445
      %v7447 = vpop.f32.mrf.mxu0
      %7448 = vmatprep.mubr.f32.mxu0 %v6943
      %7449 = vmatmul.mubr.f32.gmra.mxu0 %v6942
      %v7450 = vpop.f32.mrf.mxu0
      %v7451 = vadd.f32 %v7226, %v7450
      %v7452 = vpop.f32.mrf.mxu0
      %7453 = vmatprep.mubr.f32.mxu0 %v6947
      %7454 = vmatmul.mubr.f32.gmra.mxu0 %v6946
      %v7455 = vpop.f32.mrf.mxu0
      %v7456 = vadd.f32 %v7231, %v7455
      %v7457 = vpop.f32.mrf.mxu0
      %7458 = vmatprep.mubr.f32.mxu0 %v6951
      %7459 = vmatmul.mubr.f32.gmra.mxu0 %v6950
      %v7460 = vpop.f32.mrf.mxu0
      %v7461 = vadd.f32 %v7236, %v7460
      %v7462 = vpop.f32.mrf.mxu0
      %7463 = vmatprep.mubr.f32.mxu0 %v6955
      %7464 = vmatmul.mubr.f32.gmra.mxu0 %v6954
      %v7465 = vpop.f32.mrf.mxu0
      %v7466 = vadd.f32 %v7241, %v7465
      %v7467 = vpop.f32.mrf.mxu0
      %7468 = vmatprep.mubr.f32.mxu0 %v6959
      %7469 = vmatmul.mubr.f32.gmra.mxu0 %v6958
      %v7470 = vpop.f32.mrf.mxu0
      %v7471 = vadd.f32 %v7246, %v7470
      %v7472 = vpop.f32.mrf.mxu0
      %7473 = vmatprep.mubr.f32.mxu0 %v6963
      %7474 = vmatmul.mubr.f32.gmra.mxu0 %v6962
      %v7475 = vpop.f32.mrf.mxu0
      %v7476 = vadd.f32 %v7251, %v7475
      %v7477 = vpop.f32.mrf.mxu0
      %7478 = vmatprep.mubr.f32.mxu0 %v6967
      %7479 = vmatmul.mubr.f32.gmra.mxu0 %v6966
      %v7480 = vpop.f32.mrf.mxu0
      %v7481 = vadd.f32 %v7256, %v7480
      %v7482 = vpop.f32.mrf.mxu0
      %7483 = vmatprep.mubr.f32.mxu0 %v6971
      %7484 = vmatmul.mubr.f32.gmra.mxu0 %v6970
      %v7485 = vpop.f32.mrf.mxu0
      %v7486 = vadd.f32 %v7261, %v7485
      %v7487 = vpop.f32.mrf.mxu0
      %7488 = vmatprep.mubr.f32.mxu0 %v6975
      %7489 = vmatmul.mubr.f32.gmra.mxu0 %v6974
      %v7490 = vpop.f32.mrf.mxu0
      %v7491 = vadd.f32 %v7266, %v7490
      %v7492 = vpop.f32.mrf.mxu0
      %7493 = vmatprep.mubr.f32.mxu0 %v6979
      %7494 = vmatmul.mubr.f32.gmra.mxu0 %v6978
      %v7495 = vpop.f32.mrf.mxu0
      %v7496 = vadd.f32 %v7271, %v7495
      %v7497 = vpop.f32.mrf.mxu0
      %7498 = vmatprep.mubr.f32.mxu0 %v6983
      %7499 = vmatmul.mubr.f32.gmra.mxu0 %v6982
      %v7500 = vpop.f32.mrf.mxu0
      %v7501 = vadd.f32 %v7276, %v7500
      %v7502 = vpop.f32.mrf.mxu0
      %7503 = vmatprep.mubr.f32.mxu0 %v6987
      %7504 = vmatmul.mubr.f32.gmra.mxu0 %v6986
      %v7505 = vpop.f32.mrf.mxu0
      %v7506 = vadd.f32 %v7281, %v7505
      %v7507 = vpop.f32.mrf.mxu0
      %7508 = vdwg.mxu0
      %v7509 = vadd.f32 %v7351, %v333
      %v7510 = vadd.f32 %v7356, %v334
      %v7511 = vadd.f32 %v7361, %v335
      %v7512 = vadd.f32 %v7366, %v336
      %v7513 = vadd.f32 %v7371, %v337
      %v7514 = vadd.f32 %v7376, %v338
      %v7515 = vadd.f32 %v7381, %v339
      %v7516 = vadd.f32 %v7386, %v340
      %v7517 = vadd.f32 %v7391, %v341
      %v7518 = vadd.f32 %v7396, %v342
      %v7519 = vadd.f32 %v7401, %v343
      %v7520 = vadd.f32 %v7406, %v344
      %v7521 = vadd.f32 %v7411, %v345
      %v7522 = vadd.f32 %v7416, %v346
      %v7523 = vadd.f32 %v7421, %v347
      %v7524 = vadd.f32 %v7426, %v348
      %v7525 = vadd.f32 %v7431, %v349
      %v7526 = vadd.f32 %v7436, %v350
      %v7527 = vadd.f32 %v7441, %v351
      %v7528 = vadd.f32 %v7446, %v352
      %v7529 = vadd.f32 %v7451, %v353
      %v7530 = vadd.f32 %v7456, %v354
      %v7531 = vadd.f32 %v7461, %v355
      %v7532 = vadd.f32 %v7466, %v356
      %v7533 = vadd.f32 %v7471, %v357
      %v7534 = vadd.f32 %v7476, %v358
      %v7535 = vadd.f32 %v7481, %v359
      %v7536 = vadd.f32 %v7486, %v360
      %v7537 = vadd.f32 %v7491, %v361
      %v7538 = vadd.f32 %v7496, %v362
      %v7539 = vadd.f32 %v7501, %v363
      %v7540 = vadd.f32 %v7506, %v364
      %7541 = vst [vmem:[%s332] sm:$0xff] %v7509
      %7542 = vst [vmem:[%s332 + $0x8] sm:$0xff] %v7510
      %7543 = vst [vmem:[%s332 + $0x10] sm:$0xff] %v7511
      %7544 = vst [vmem:[%s332 + $0x18] sm:$0xff] %v7512
      %7545 = vst [vmem:[%s332 + $0x20] sm:$0xff] %v7513
      %7546 = vst [vmem:[%s332 + $0x28] sm:$0xff] %v7514
      %7547 = vst [vmem:[%s332 + $0x30] sm:$0xff] %v7515
      %7548 = vst [vmem:[%s332 + $0x38] sm:$0xff] %v7516
      %7549 = vst [vmem:[%s332 + $0x40] sm:$0xff] %v7517
      %7550 = vst [vmem:[%s332 + $0x48] sm:$0xff] %v7518
      %7551 = vst [vmem:[%s332 + $0x50] sm:$0xff] %v7519
      %7552 = vst [vmem:[%s332 + $0x58] sm:$0xff] %v7520
      %7553 = vst [vmem:[%s332 + $0x60] sm:$0xff] %v7521
      %7554 = vst [vmem:[%s332 + $0x68] sm:$0xff] %v7522
      %7555 = vst [vmem:[%s332 + $0x70] sm:$0xff] %v7523
      %7556 = vst [vmem:[%s332 + $0x78] sm:$0xff] %v7524
      %7557 = vst [vmem:[%s332 + $0x80] sm:$0xff] %v7525
      %7558 = vst [vmem:[%s332 + $0x88] sm:$0xff] %v7526
      %7559 = vst [vmem:[%s332 + $0x90] sm:$0xff] %v7527
      %7560 = vst [vmem:[%s332 + $0x98] sm:$0xff] %v7528
      %7561 = vst [vmem:[%s332 + $0xa0] sm:$0xff] %v7529
      %7562 = vst [vmem:[%s332 + $0xa8] sm:$0xff] %v7530
      %7563 = vst [vmem:[%s332 + $0xb0] sm:$0xff] %v7531
      %7564 = vst [vmem:[%s332 + $0xb8] sm:$0xff] %v7532
      %7565 = vst [vmem:[%s332 + $0xc0] sm:$0xff] %v7533
      %7566 = vst [vmem:[%s332 + $0xc8] sm:$0xff] %v7534
      %7567 = vst [vmem:[%s332 + $0xd0] sm:$0xff] %v7535
      %7568 = vst [vmem:[%s332 + $0xd8] sm:$0xff] %v7536
      %7569 = vst [vmem:[%s332 + $0xe0] sm:$0xff] %v7537
      %7570 = vst [vmem:[%s332 + $0xe8] sm:$0xff] %v7538
      %7571 = vst [vmem:[%s332 + $0xf0] sm:$0xff] %v7539
      %7572 = vst [vmem:[%s332 + $0xf8] sm:$0xff] %v7540
      %p7573 = scmp.lt.s32.totalorder %s20, 1
      %s7574 = scalar_select %p7573, %s20, 1
      %s7575 = smul.addr %s7574, 32
      %s7576 = smul.addr %s7575, 8
      %s7577 = scalar_lea.vmem %s9, %s7576
      // Predicated region
      $region57: #{net_forward.5} parent=55 // pred_check
        %p7578 = pneg %p232
      $region58: #{net_forward.5} parent=55 // pred_check_branch
        %7580 = sbr.rel (%p7578) target = $region60
      $region59: #{net_forward.5} parent=55 // pred_region
        _
      $region60: #{net_forward.5} parent=55 // pred_fallthru
        _
    $region56: #{net_forward.5} parent=5 // pred_fallthru
      _
    %p7581 = scmp.le.s32.totalorder 2, %s15
    // Predicated region
    $region61: #{net_forward.5} parent=5 // pred_check
      %p7582 = pneg %p7581
    $region62: #{net_forward.5} parent=5 // pred_check_branch
      %7584 = sbr.rel (%p7582) target = $region64
    $region63: #{net_forward.5} parent=5 // pred_region
      %s7585 = ssub.s32 %s15, 2
      // Predicated region
      $region65: #{net_forward.5} parent=63 // pred_check
        %p7586 = pneg %p238
      $region66: #{net_forward.5} parent=63 // pred_check_branch
        %7588 = sbr.rel (%p7586) target = $region68
      $region67: #{net_forward.5} parent=63 // pred_region
        %p7589 = scmp.lt.s32.totalorder %s21, 1
        %s7590 = scalar_select %p7589, %s21, 1
        %s7591 = smul.addr %s7590, 32
        %s7592 = smul.addr %s7591, 8
        %s7593 = scalar_lea.vmem %s9, %s7592
      $region68: #{net_forward.5} parent=63 // pred_fallthru
        _
    $region64: #{net_forward.5} parent=5 // pred_fallthru
      _
  $region6: #{net_forward.5} parent=0 // loop_footer
    %s19 = sadd.s32 1, %s15
  $region7: #{net_forward.5} parent=0 // loop_footer_branch
    %14 = sbr.rel target = $region3
  $region8: #{net_forward.5} parent=0 // loop_exit
    _

</llo_original>
